<compile_context>
chip_gen: v7x
topology: tpu7x:2x2x1
jax: 0.10.0
libtpu: 0.0.40
codegen_flags: <defaults>
</compile_context>

<pallas_src>
import jax
import jax.numpy as jnp
from jax.experimental import pallas as pl
from jax.experimental.pallas import tpu as pltpu

SMEM_SPEC = pl.BlockSpec(memory_space=pltpu.MemorySpace.SMEM)
VMEM_SPEC = pl.BlockSpec(memory_space=pltpu.MemorySpace.VMEM)


def _round_up(x, m):
    return ((x + m - 1) // m) * m


# ----------------------------- fused Pallas kernel -----------------------------

def rnn_two_kernel(
    # token ids (SMEM, int32)
    tok0_ref, tok1_ref, tok2_ref,
    # embedding tables (VMEM, f32)
    emb0_ref, emb1_ref, emb2_ref,
    # initial hidden states, lane-padded to (1, HP), f32
    h1_0_ref, h2_0_ref, ht_0_ref,
    # GRU params (bf16 weights, f32 biases).  bih already has b_hh's r/z gate
    # components folded in; bhn is the n-gate hidden bias (1, HP).
    wih0_ref, whh0_ref, bih0_ref, bhn0_ref,     # encoder 0
    wih1_ref, whh1_ref, bih1_ref, bhn1_ref,     # encoder 1
    wihd_ref, whhd_ref, bihd_ref, bhnd_ref,     # rnn_decoder
    # mlp_decoder (lane padded): W1 (2HP,MIDP) bf16, b1 (1,MIDP), W2 (MIDP,V2P) bf16, b2 (1,V2P)
    w1_ref, b1_ref, w2_ref, b2_ref,
    # rnn_output (lane padded): Wo (HP,OUTP) bf16, bo (1,OUTP)
    wo_ref, bo_ref,
    # outputs (all 128-lane dense; wrapper slices back)
    out1_ref, out2_ref, h1_ref, h2_ref, ht_ref,
    # scratch
    xg0_ref, xg1_ref, xg2_ref, gi0_ref, gi1_ref, gi2_ref, dseq_ref,
):
    HP = whh0_ref.shape[0]          # padded hidden width (multiple of 128)

    # ---- phase 1: embedding gathers + hoisted input projections (off the serial path)
    def gather_project(tok_ref, emb_ref, xg_ref, wih_ref, bih_ref, gi_ref):
        T = tok_ref.shape[0]        # static
        for t in range(T):
            # token ids are SMEM scalars; table rows live in VMEM.
            xg_ref[pl.ds(t, 1), :] = emb_ref[pl.ds(tok_ref[t], 1), :]
        # one (T, E) @ (E, 3*HP) bf16 matmul for the whole sequence; combined bias add.
        gi_ref[...] = (jnp.dot(xg_ref[...].astype(jnp.bfloat16), wih_ref[...],
                               preferred_element_type=jnp.float32) + bih_ref[...])

    gather_project(tok0_ref, emb0_ref, xg0_ref, wih0_ref, bih0_ref, gi0_ref)
    gather_project(tok1_ref, emb1_ref, xg1_ref, wih1_ref, bih1_ref, gi1_ref)
    gather_project(tok2_ref, emb2_ref, xg2_ref, wihd_ref, bihd_ref, gi2_ref)

    # ---- phase 2: the three independent recurrences, interleaved step-by-step.
    def gru_step(h, t, gi_ref, whh_ref, bhn_ref):
        gh = jnp.dot(h.astype(jnp.bfloat16), whh_ref[...],
                     preferred_element_type=jnp.float32)             # (1, 3*HP)
        gi_t = gi_ref[pl.ds(t, 1), :]                                # (1, 3*HP)
        # single fused sigmoid over the r|z block (lane-aligned slices).
        rz = jax.nn.sigmoid(gi_t[:, 0:2 * HP] + gh[:, 0:2 * HP])
        r = rz[:, 0:HP]
        z = rz[:, HP:2 * HP]
        n = jnp.tanh(gi_t[:, 2 * HP:3 * HP] + r * (gh[:, 2 * HP:3 * HP] + bhn_ref[...]))
        return (1.0 - z) * n + z * h

    h1 = h1_0_ref[...]
    h2 = h2_0_ref[...]
    ht = ht_0_ref[...]
    T0, T1, T2 = tok0_ref.shape[0], tok1_ref.shape[0], tok2_ref.shape[0]
    # Fully unrolled at trace time (all T are static and tiny) so the scheduler can
    # overlap the three chains' MXU pushes / EUP issues within each step.
    for t in range(max(T0, T1, T2)):
        if t < T0:
            h1 = gru_step(h1, t, gi0_ref, whh0_ref, bhn0_ref)
        if t < T1:
            h2 = gru_step(h2, t, gi1_ref, whh1_ref, bhn1_ref)
        if t < T2:
            ht = gru_step(ht, t, gi2_ref, whhd_ref, bhnd_ref)
            dseq_ref[pl.ds(t, 1), :] = ht

    # final hiddens, full 128-lane stores (wrapper slices :H).
    h1_ref[...] = h1
    h2_ref[...] = h2
    ht_ref[...] = ht

    # ---- phase 3: mlp decoder  ReLU -> Linear(4E,2E) -> ReLU -> Linear(2E,V2)
    # (all lane padded; padded lanes of h are exactly 0 and W1's padded rows are 0).
    combined = jnp.concatenate([h1, h2], axis=-1)                    # (1, 2*HP)
    y = jnp.dot(jnp.maximum(combined, 0.0).astype(jnp.bfloat16), w1_ref[...],
                preferred_element_type=jnp.float32) + b1_ref[...]
    out1_ref[...] = jnp.dot(jnp.maximum(y, 0.0).astype(jnp.bfloat16), w2_ref[...],
                            preferred_element_type=jnp.float32) + b2_ref[...]

    # ---- phase 4: output projection over the whole decoded sequence, one matmul.
    out2_ref[...] = (jnp.dot(dseq_ref[...].astype(jnp.bfloat16), wo_ref[...],
                             preferred_element_type=jnp.float32) + bo_ref[...])


# ----------------------------- padding / prep helpers -----------------------------

def _pad_gate_cols(w, H, HP):
    """(in, 3H) -> (in, 3HP): gate g moves to lanes [g*HP, g*HP + H); padding is zero."""
    out = jnp.zeros((w.shape[0], 3 * HP), w.dtype)
    for g in range(3):
        out = out.at[:, g * HP:g * HP + H].set(w[:, g * H:(g + 1) * H])
    return out


def _pad_rows(w, rows_out):
    return jnp.zeros((rows_out, w.shape[1]), w.dtype).at[:w.shape[0], :].set(w)


def _pad_cols(w, cols_out):
    return jnp.zeros((w.shape[0], cols_out), w.dtype).at[:, :w.shape[1]].set(w)


def _prep_gru(p, H, HP):
    """Kernel-ready GRU params: gate/lane padded, bf16 weights, r/z hidden biases folded."""
    w_ih, w_hh, b_ih, b_hh = p
    # PyTorch GRU: only the n-gate b_hh must stay inside the r*(...) term; r/z hidden
    # biases can be folded into the input-side bias at prep time.
    b_comb = b_ih.at[:, 0:2 * H].add(b_hh[:, 0:2 * H])
    return (
        _pad_gate_cols(w_ih, H, HP).astype(jnp.bfloat16),                 # (E, 3HP)
        _pad_gate_cols(_pad_rows(w_hh, HP), H, HP).astype(jnp.bfloat16),  # (HP, 3HP)
        _pad_gate_cols(b_comb, H, HP),                                    # (1, 3HP) f32
        _pad_cols(b_hh[:, 2 * H:3 * H], HP),                              # (1, HP)  f32
    )


def _prep_mlp(p, H, HP, MIDP, V2P):
    w1, b1, w2, b2 = p
    mid = w1.shape[1]                       # 2E
    # w1 rows [0:H) come from h1 and [H:2H) from h2 -> move to the lane-padded
    # positions [0:H) and [HP:HP+H) of a (2*HP, MIDP) matrix; padded rows/cols are 0.
    w1_p = jnp.zeros((2 * HP, MIDP), jnp.float32)
    w1_p = w1_p.at[0:H, 0:mid].set(w1[0:H, :])
    w1_p = w1_p.at[HP:HP + H, 0:mid].set(w1[H:2 * H, :])
    return (w1_p.astype(jnp.bfloat16), _pad_cols(b1, MIDP),
            _pad_cols(_pad_rows(w2, MIDP), V2P).astype(jnp.bfloat16),
            _pad_cols(b2, V2P))


def _prep_out(p, HP, OUTP):
    wo, bo = p
    return (_pad_cols(_pad_rows(wo, HP), OUTP).astype(jnp.bfloat16),
            _pad_cols(bo, OUTP))


# ----------------------------- parameter init -----------------------------

def _uniform(key, shape, bound):
    return jax.random.uniform(key, shape, jnp.float32, -bound, bound)


def init_params(key, vocab_size, emb_dim):
    assert len(vocab_size) == 3
    E = emb_dim
    H = 2 * E
    HP = _round_up(H, 128)
    MIDP = _round_up(2 * E, 128)
    token_start = vocab_size[2]
    output_size = token_start + 2
    V2P = _round_up(vocab_size[2], 128)
    OUTP = _round_up(output_size, 128)
    ks = list(jax.random.split(key, 32))
    nxt = iter(ks).__next__

    def gru_params():
        kb = 1.0 / (H ** 0.5)
        return (_uniform(nxt(), (E, 3 * H), kb),   # W_ih^T
                _uniform(nxt(), (H, 3 * H), kb),   # W_hh^T
                _uniform(nxt(), (1, 3 * H), kb),   # b_ih
                _uniform(nxt(), (1, 3 * H), kb))   # b_hh

    emb_sizes = [vocab_size[0], vocab_size[1], output_size]
    params = {
        "emb_dim": E,
        "hp": HP,
        "token_start": token_start,
        "output_size": output_size,
        "vocab2": vocab_size[2],
        "emb": [jax.random.normal(nxt(), (v, E), jnp.float32) for v in emb_sizes],
        "enc0": gru_params(),
        "enc1": gru_params(),
        "dec": gru_params(),
        "mlp": (_uniform(nxt(), (4 * E, 2 * E), 1.0 / ((4 * E) ** 0.5)),
                _uniform(nxt(), (1, 2 * E), 1.0 / ((4 * E) ** 0.5)),
                _uniform(nxt(), (2 * E, vocab_size[2]), 1.0 / ((2 * E) ** 0.5)),
                _uniform(nxt(), (1, vocab_size[2]), 1.0 / ((2 * E) ** 0.5))),
        "rnn_out": (_uniform(nxt(), (H, output_size), 1.0 / (H ** 0.5)),
                    _uniform(nxt(), (1, output_size), 1.0 / (H ** 0.5))),
    }
    # lane-aligned, bf16, bias-folded copies consumed by the fused Pallas kernel.
    params["enc0_k"] = _prep_gru(params["enc0"], H, HP)
    params["enc1_k"] = _prep_gru(params["enc1"], H, HP)
    params["dec_k"] = _prep_gru(params["dec"], H, HP)
    params["mlp_k"] = _prep_mlp(params["mlp"], H, HP, MIDP, V2P)
    params["out_k"] = _prep_out(params["rnn_out"], HP, OUTP)
    return params


# ----------------------------- RNN_Two.forward -----------------------------

def rnn_two_forward(params, input_seqs, hidden=(None, None, None)):
    E = params["emb_dim"]
    H = 2 * E
    HP = params["hp"]
    V2 = params["vocab2"]
    OUT = params["output_size"]
    V2P = _round_up(V2, 128)
    OUTP = _round_up(OUT, 128)

    tok0 = jnp.asarray(list(input_seqs[0]), jnp.int32)
    tok1 = jnp.asarray(list(input_seqs[1]), jnp.int32)
    tok2 = jnp.asarray([params["token_start"]] + list(input_seqs[2]), jnp.int32)
    T0, T1, T2p = int(tok0.shape[0]), int(tok1.shape[0]), int(tok2.shape[0])

    def pad_h(h):
        if h is None:
            return jnp.zeros((1, HP), jnp.float32)
        return jnp.zeros((1, HP), jnp.float32).at[:, :H].set(h)

    h1_0, h2_0, ht_0 = (pad_h(h) for h in hidden)

    out_shape = (
        jax.ShapeDtypeStruct((1, V2P), jnp.float32),      # target_output1 (lane padded)
        jax.ShapeDtypeStruct((T2p, OUTP), jnp.float32),   # target_output2 (lane padded)
        jax.ShapeDtypeStruct((1, HP), jnp.float32),       # h1 (lane padded)
        jax.ShapeDtypeStruct((1, HP), jnp.float32),       # h2
        jax.ShapeDtypeStruct((1, HP), jnp.float32),       # ht
    )

    fused = pl.pallas_call(
        rnn_two_kernel,
        out_shape=out_shape,
        in_specs=[SMEM_SPEC] * 3 + [VMEM_SPEC] * 24,
        out_specs=(VMEM_SPEC,) * 5,
        scratch_shapes=[
            pltpu.VMEM((T0, E), jnp.float32),        # gathered embeddings, encoder 0
            pltpu.VMEM((T1, E), jnp.float32),        # gathered embeddings, encoder 1
            pltpu.VMEM((T2p, E), jnp.float32),       # gathered embeddings, decoder
            pltpu.VMEM((T0, 3 * HP), jnp.float32),   # hoisted input gates, encoder 0
            pltpu.VMEM((T1, 3 * HP), jnp.float32),   # hoisted input gates, encoder 1
            pltpu.VMEM((T2p, 3 * HP), jnp.float32),  # hoisted input gates, decoder
            pltpu.VMEM((T2p, HP), jnp.float32),      # decoder hidden sequence (padded)
        ],
        compiler_params=pltpu.CompilerParams(vmem_limit_bytes=16 * 1024 * 1024),
    )

    to1_p, to2_p, h1_p, h2_p, ht_p = fused(
        tok0, tok1, tok2,
        params["emb"][0], params["emb"][1], params["emb"][2],
        h1_0, h2_0, ht_0,
        *params["enc0_k"], *params["enc1_k"], *params["dec_k"],
        *params["mlp_k"], *params["out_k"],
    )
    # slice the lane padding back off (outside the kernel).
    return (to1_p[:, :V2], to2_p[:, :OUT],
            (h1_p[:, :H], h2_p[:, :H], ht_p[:, :H]))


# ----------------------------- pure-JAX references -----------------------------

def _gru_ref(x, h0, w_ih, w_hh, b_ih, b_hh):
    H = h0.shape[1]

    def step(h, x_t):
        x_t = x_t[None, :]
        gi = x_t @ w_ih + b_ih
        gh = h @ w_hh + b_hh
        r = jax.nn.sigmoid(gi[:, :H] + gh[:, :H])
        z = jax.nn.sigmoid(gi[:, H:2 * H] + gh[:, H:2 * H])
        n = jnp.tanh(gi[:, 2 * H:] + r * gh[:, 2 * H:])
        h_new = (1.0 - z) * n + z * h
        return h_new, h_new[0]

    hT, seq = jax.lax.scan(step, h0, x)
    return seq, hT


def rnn_two_ref(params, input_seqs):
    """Full-f32 reference (PyTorch semantics)."""
    E = params["emb_dim"]
    H = 2 * E
    z = jnp.zeros((1, H), jnp.float32)
    x0 = jnp.take(params["emb"][0], jnp.asarray(list(input_seqs[0]), jnp.int32), axis=0)
    _, h1 = _gru_ref(x0, z, *params["enc0"])
    x1 = jnp.take(params["emb"][1], jnp.asarray(list(input_seqs[1]), jnp.int32), axis=0)
    _, h2 = _gru_ref(x1, z, *params["enc1"])
    combined = jnp.concatenate([h1, h2], axis=-1)
    w1, b1, w2, b2 = params["mlp"]
    to1 = jnp.maximum(jnp.maximum(combined, 0.0) @ w1 + b1, 0.0) @ w2 + b2
    tgt = jnp.asarray([params["token_start"]] + list(input_seqs[2]), jnp.int32)
    x2 = jnp.take(params["emb"][2], tgt, axis=0)
    seq, ht = _gru_ref(x2, z, *params["dec"])
    wo, bo = params["rnn_out"]
    to2 = seq @ wo + bo
    return to1, to2, (h1, h2, ht)


def rnn_two_mirror_ref(params, input_seqs):
    """Pure-JAX mirror of the kernel's exact numerics (bf16 matmul operands, f32
    accumulation, folded biases, lane padding with padded h lanes == 0)."""
    E = params["emb_dim"]
    H = 2 * E
    HP = params["hp"]
    V2 = params["vocab2"]
    OUT = params["output_size"]

    def gru(tokens, emb, prep):
        wih_p, whh_p, bih_p, bhn_p = prep
        x = jnp.take(emb, tokens, axis=0)                              # (T, E) f32
        gi = jnp.dot(x.astype(jnp.bfloat16), wih_p,
                     preferred_element_type=jnp.float32) + bih_p       # (T, 3HP)
        h = jnp.zeros((1, HP), jnp.float32)
        seq = []
        for t in range(x.shape[0]):
            gh = jnp.dot(h.astype(jnp.bfloat16), whh_p,
                         preferred_element_type=jnp.float32)
            gi_t = gi[t:t + 1, :]
            rz = jax.nn.sigmoid(gi_t[:, :2 * HP] + gh[:, :2 * HP])
            r, z = rz[:, :HP], rz[:, HP:]
            n = jnp.tanh(gi_t[:, 2 * HP:] + r * (gh[:, 2 * HP:] + bhn_p))
            h = (1.0 - z) * n + z * h
            seq.append(h)
        return jnp.concatenate(seq, axis=0), h

    tok0 = jnp.asarray(list(input_seqs[0]), jnp.int32)
    tok1 = jnp.asarray(list(input_seqs[1]), jnp.int32)
    tok2 = jnp.asarray([params["token_start"]] + list(input_seqs[2]), jnp.int32)

    _, h1 = gru(tok0, params["emb"][0], params["enc0_k"])
    _, h2 = gru(tok1, params["emb"][1], params["enc1_k"])
    w1_p, b1_p, w2_p, b2_p = params["mlp_k"]
    combined = jnp.concatenate([h1, h2], axis=-1)
    y = jnp.dot(jnp.maximum(combined, 0.0).astype(jnp.bfloat16), w1_p,
                preferred_element_type=jnp.float32) + b1_p
    to1 = jnp.dot(jnp.maximum(y, 0.0).astype(jnp.bfloat16), w2_p,
                  preferred_element_type=jnp.float32) + b2_p
    seq, ht = gru(tok2, params["emb"][2], params["dec_k"])
    wo_p, bo_p = params["out_k"]
    to2 = jnp.dot(seq.astype(jnp.bfloat16), wo_p,
                  preferred_element_type=jnp.float32) + bo_p
    return (to1[:, :V2], to2[:, :OUT], (h1[:, :H], h2[:, :H], ht[:, :H]))


# ----------------------------- main -----------------------------

if __name__ == "__main__":
    key = jax.random.PRNGKey(0)
    k_params, k0, k1, k2 = jax.random.split(key, 4)

    vocab_size = [50, 40, 30]
    emb_dim = 32
    params = init_params(k_params, vocab_size, emb_dim)

    # synthetic token sequences (python lists, mirroring the torch module's input)
    seq0 = [int(t) for t in jax.random.randint(k0, (7,), 0, vocab_size[0])]
    seq1 = [int(t) for t in jax.random.randint(k1, (5,), 0, vocab_size[1])]
    seq2 = [int(t) for t in jax.random.randint(k2, (6,), 0, vocab_size[2])]

    to1, to2, (h1, h2, ht) = rnn_two_forward(params, (seq0, seq1, seq2))
    jax.block_until_ready((to1, to2, h1, h2, ht))

    # Tier 1 (tight, 1e-3): compare against a pure-JAX mirror of the kernel's exact
    # numerics (identical bf16-rounded operands, f32 accumulation, folded biases).
    # Any gate-padding / layout / indexing bug shows up here at O(0.1+).
    m1, m2, (mh1, mh2, mht) = rnn_two_mirror_ref(params, (seq0, seq1, seq2))
    for name, got, ref in [("to1", to1, m1), ("to2", to2, m2),
                           ("h1", h1, mh1), ("h2", h2, mh2), ("ht", ht, mht)]:
        err = float(jnp.max(jnp.abs(got - ref)))
        assert err < 1e-3, f"mirror mismatch on {name}: max abs err {err}"

    # Tier 2 (semantic, 5e-2): compare against the full-f32 reference; the only gap is
    # the intentional bf16 matmul-operand quantization.
    r1, r2, (rh1, rh2, rht) = rnn_two_ref(params, (seq0, seq1, seq2))
    for name, got, ref in [("to1", to1, r1), ("to2", to2, r2),
                           ("h1", h1, rh1), ("h2", h2, rh2), ("ht", ht, rht)]:
        err = float(jnp.max(jnp.abs(got - ref)))
        assert err < 5e-2, f"f32-reference mismatch on {name}: max abs err {err}"

    assert to1.shape == (1, vocab_size[2])
    assert to2.shape == (len(seq2) + 1, vocab_size[2] + 2)
    print("KERNEL_OK")
</pallas_src>

<mosaic_0001>
module attributes {stable_mosaic.version = 11 : i64} {
  func.func @rnn_two_kernel(%arg0: memref<7xi32, #tpu.memory_space<smem>>, %arg1: memref<5xi32, #tpu.memory_space<smem>>, %arg2: memref<7xi32, #tpu.memory_space<smem>>, %arg3: memref<50x32xf32, #tpu.memory_space<vmem>>, %arg4: memref<40x32xf32, #tpu.memory_space<vmem>>, %arg5: memref<32x32xf32, #tpu.memory_space<vmem>>, %arg6: memref<1x128xf32, #tpu.memory_space<vmem>>, %arg7: memref<1x128xf32, #tpu.memory_space<vmem>>, %arg8: memref<1x128xf32, #tpu.memory_space<vmem>>, %arg9: memref<32x384xbf16, #tpu.memory_space<vmem>>, %arg10: memref<128x384xbf16, #tpu.memory_space<vmem>>, %arg11: memref<1x384xf32, #tpu.memory_space<vmem>>, %arg12: memref<1x128xf32, #tpu.memory_space<vmem>>, %arg13: memref<32x384xbf16, #tpu.memory_space<vmem>>, %arg14: memref<128x384xbf16, #tpu.memory_space<vmem>>, %arg15: memref<1x384xf32, #tpu.memory_space<vmem>>, %arg16: memref<1x128xf32, #tpu.memory_space<vmem>>, %arg17: memref<32x384xbf16, #tpu.memory_space<vmem>>, %arg18: memref<128x384xbf16, #tpu.memory_space<vmem>>, %arg19: memref<1x384xf32, #tpu.memory_space<vmem>>, %arg20: memref<1x128xf32, #tpu.memory_space<vmem>>, %arg21: memref<256x128xbf16, #tpu.memory_space<vmem>>, %arg22: memref<1x128xf32, #tpu.memory_space<vmem>>, %arg23: memref<128x128xbf16, #tpu.memory_space<vmem>>, %arg24: memref<1x128xf32, #tpu.memory_space<vmem>>, %arg25: memref<128x128xbf16, #tpu.memory_space<vmem>>, %arg26: memref<1x128xf32, #tpu.memory_space<vmem>>, %arg27: memref<1x128xf32, #tpu.memory_space<vmem>>, %arg28: memref<7x128xf32, #tpu.memory_space<vmem>>, %arg29: memref<1x128xf32, #tpu.memory_space<vmem>>, %arg30: memref<1x128xf32, #tpu.memory_space<vmem>>, %arg31: memref<1x128xf32, #tpu.memory_space<vmem>>, %arg32: memref<7x32xf32, #tpu.memory_space<vmem>>, %arg33: memref<5x32xf32, #tpu.memory_space<vmem>>, %arg34: memref<7x32xf32, #tpu.memory_space<vmem>>, %arg35: memref<7x384xf32, #tpu.memory_space<vmem>>, %arg36: memref<5x384xf32, #tpu.memory_space<vmem>>, %arg37: memref<7x384xf32, #tpu.memory_space<vmem>>, %arg38: memref<7x128xf32, #tpu.memory_space<vmem>>) attributes {dimension_semantics = [], scalar_prefetch = 0 : i64, scratch_operands = 7 : i64, tpu.core_type = #tpu.core_type<tc>} {
    %c0 = arith.constant 0 : index
    %0 = memref.load %arg0[%c0] : memref<7xi32, #tpu.memory_space<smem>>
    %1 = arith.index_cast %0 : i32 to index
    %c0_0 = arith.constant 0 : index
    %2 = vector.load %arg3[%1, %c0_0] : memref<50x32xf32, #tpu.memory_space<vmem>>, vector<1x32xf32>
    %c0_1 = arith.constant 0 : index
    %c0_2 = arith.constant 0 : index
    %3 = vector.load %arg32[%c0_1, %c0_2] : memref<7x32xf32, #tpu.memory_space<vmem>>, vector<1x32xf32>
    tpu.vector_store %arg32[%c0_1, %c0_2], %2 {strides = array<i32>} : memref<7x32xf32, #tpu.memory_space<vmem>>, vector<1x32xf32>,
    %c1 = arith.constant 1 : index
    %4 = memref.load %arg0[%c1] : memref<7xi32, #tpu.memory_space<smem>>
    %5 = arith.index_cast %4 : i32 to index
    %c0_3 = arith.constant 0 : index
    %6 = vector.load %arg3[%5, %c0_3] : memref<50x32xf32, #tpu.memory_space<vmem>>, vector<1x32xf32>
    %c1_4 = arith.constant 1 : index
    %c0_5 = arith.constant 0 : index
    %7 = vector.load %arg32[%c1_4, %c0_5] : memref<7x32xf32, #tpu.memory_space<vmem>>, vector<1x32xf32>
    tpu.vector_store %arg32[%c1_4, %c0_5], %6 {strides = array<i32>} : memref<7x32xf32, #tpu.memory_space<vmem>>, vector<1x32xf32>,
    %c2 = arith.constant 2 : index
    %8 = memref.load %arg0[%c2] : memref<7xi32, #tpu.memory_space<smem>>
    %9 = arith.index_cast %8 : i32 to index
    %c0_6 = arith.constant 0 : index
    %10 = vector.load %arg3[%9, %c0_6] : memref<50x32xf32, #tpu.memory_space<vmem>>, vector<1x32xf32>
    %c2_7 = arith.constant 2 : index
    %c0_8 = arith.constant 0 : index
    %11 = vector.load %arg32[%c2_7, %c0_8] : memref<7x32xf32, #tpu.memory_space<vmem>>, vector<1x32xf32>
    tpu.vector_store %arg32[%c2_7, %c0_8], %10 {strides = array<i32>} : memref<7x32xf32, #tpu.memory_space<vmem>>, vector<1x32xf32>,
    %c3 = arith.constant 3 : index
    %12 = memref.load %arg0[%c3] : memref<7xi32, #tpu.memory_space<smem>>
    %13 = arith.index_cast %12 : i32 to index
    %c0_9 = arith.constant 0 : index
    %14 = vector.load %arg3[%13, %c0_9] : memref<50x32xf32, #tpu.memory_space<vmem>>, vector<1x32xf32>
    %c3_10 = arith.constant 3 : index
    %c0_11 = arith.constant 0 : index
    %15 = vector.load %arg32[%c3_10, %c0_11] : memref<7x32xf32, #tpu.memory_space<vmem>>, vector<1x32xf32>
    tpu.vector_store %arg32[%c3_10, %c0_11], %14 {strides = array<i32>} : memref<7x32xf32, #tpu.memory_space<vmem>>, vector<1x32xf32>,
    %c4 = arith.constant 4 : index
    %16 = memref.load %arg0[%c4] : memref<7xi32, #tpu.memory_space<smem>>
    %17 = arith.index_cast %16 : i32 to index
    %c0_12 = arith.constant 0 : index
    %18 = vector.load %arg3[%17, %c0_12] : memref<50x32xf32, #tpu.memory_space<vmem>>, vector<1x32xf32>
    %c4_13 = arith.constant 4 : index
    %c0_14 = arith.constant 0 : index
    %19 = vector.load %arg32[%c4_13, %c0_14] : memref<7x32xf32, #tpu.memory_space<vmem>>, vector<1x32xf32>
    tpu.vector_store %arg32[%c4_13, %c0_14], %18 {strides = array<i32>} : memref<7x32xf32, #tpu.memory_space<vmem>>, vector<1x32xf32>,
    %c5 = arith.constant 5 : index
    %20 = memref.load %arg0[%c5] : memref<7xi32, #tpu.memory_space<smem>>
    %21 = arith.index_cast %20 : i32 to index
    %c0_15 = arith.constant 0 : index
    %22 = vector.load %arg3[%21, %c0_15] : memref<50x32xf32, #tpu.memory_space<vmem>>, vector<1x32xf32>
    %c5_16 = arith.constant 5 : index
    %c0_17 = arith.constant 0 : index
    %23 = vector.load %arg32[%c5_16, %c0_17] : memref<7x32xf32, #tpu.memory_space<vmem>>, vector<1x32xf32>
    tpu.vector_store %arg32[%c5_16, %c0_17], %22 {strides = array<i32>} : memref<7x32xf32, #tpu.memory_space<vmem>>, vector<1x32xf32>,
    %c6 = arith.constant 6 : index
    %24 = memref.load %arg0[%c6] : memref<7xi32, #tpu.memory_space<smem>>
    %25 = arith.index_cast %24 : i32 to index
    %c0_18 = arith.constant 0 : index
    %26 = vector.load %arg3[%25, %c0_18] : memref<50x32xf32, #tpu.memory_space<vmem>>, vector<1x32xf32>
    %c6_19 = arith.constant 6 : index
    %c0_20 = arith.constant 0 : index
    %27 = vector.load %arg32[%c6_19, %c0_20] : memref<7x32xf32, #tpu.memory_space<vmem>>, vector<1x32xf32>
    tpu.vector_store %arg32[%c6_19, %c0_20], %26 {strides = array<i32>} : memref<7x32xf32, #tpu.memory_space<vmem>>, vector<1x32xf32>,
    %c0_21 = arith.constant 0 : index
    %c0_22 = arith.constant 0 : index
    %28 = vector.load %arg32[%c0_21, %c0_22] : memref<7x32xf32, #tpu.memory_space<vmem>>, vector<7x32xf32>
    %29 = arith.truncf %28 : vector<7x32xf32> to vector<7x32xbf16>
    %c0_23 = arith.constant 0 : index
    %c0_24 = arith.constant 0 : index
    %30 = vector.load %arg9[%c0_23, %c0_24] : memref<32x384xbf16, #tpu.memory_space<vmem>>, vector<32x384xbf16>
    %cst = arith.constant dense<0.000000e+00> : vector<7x384xf32>
    %31 = tpu.matmul %29, %30, %cst {dimension_numbers = #tpu.dot_dimension_numbers<[1], [0], [0], [1], [0, 0, 1, 1], [], []>} : vector<7x32xbf16>, vector<32x384xbf16>, vector<7x384xf32> -> vector<7x384xf32>
    %c0_25 = arith.constant 0 : index
    %c0_26 = arith.constant 0 : index
    %32 = vector.load %arg11[%c0_25, %c0_26] : memref<1x384xf32, #tpu.memory_space<vmem>>, vector<1x384xf32>
    %33 = vector.broadcast %32 : vector<1x384xf32> to vector<7x384xf32>
    %34 = arith.addf %31, %33 : vector<7x384xf32>
    %c0_27 = arith.constant 0 : index
    %c0_28 = arith.constant 0 : index
    %35 = vector.load %arg35[%c0_27, %c0_28] : memref<7x384xf32, #tpu.memory_space<vmem>>, vector<7x384xf32>
    tpu.vector_store %arg35[%c0_27, %c0_28], %34 {strides = array<i32>} : memref<7x384xf32, #tpu.memory_space<vmem>>, vector<7x384xf32>,
    %c0_29 = arith.constant 0 : index
    %36 = memref.load %arg1[%c0_29] : memref<5xi32, #tpu.memory_space<smem>>
    %37 = arith.index_cast %36 : i32 to index
    %c0_30 = arith.constant 0 : index
    %38 = vector.load %arg4[%37, %c0_30] : memref<40x32xf32, #tpu.memory_space<vmem>>, vector<1x32xf32>
    %c0_31 = arith.constant 0 : index
    %c0_32 = arith.constant 0 : index
    %39 = vector.load %arg33[%c0_31, %c0_32] : memref<5x32xf32, #tpu.memory_space<vmem>>, vector<1x32xf32>
    tpu.vector_store %arg33[%c0_31, %c0_32], %38 {strides = array<i32>} : memref<5x32xf32, #tpu.memory_space<vmem>>, vector<1x32xf32>,
    %c1_33 = arith.constant 1 : index
    %40 = memref.load %arg1[%c1_33] : memref<5xi32, #tpu.memory_space<smem>>
    %41 = arith.index_cast %40 : i32 to index
    %c0_34 = arith.constant 0 : index
    %42 = vector.load %arg4[%41, %c0_34] : memref<40x32xf32, #tpu.memory_space<vmem>>, vector<1x32xf32>
    %c1_35 = arith.constant 1 : index
    %c0_36 = arith.constant 0 : index
    %43 = vector.load %arg33[%c1_35, %c0_36] : memref<5x32xf32, #tpu.memory_space<vmem>>, vector<1x32xf32>
    tpu.vector_store %arg33[%c1_35, %c0_36], %42 {strides = array<i32>} : memref<5x32xf32, #tpu.memory_space<vmem>>, vector<1x32xf32>,
    %c2_37 = arith.constant 2 : index
    %44 = memref.load %arg1[%c2_37] : memref<5xi32, #tpu.memory_space<smem>>
    %45 = arith.index_cast %44 : i32 to index
    %c0_38 = arith.constant 0 : index
    %46 = vector.load %arg4[%45, %c0_38] : memref<40x32xf32, #tpu.memory_space<vmem>>, vector<1x32xf32>
    %c2_39 = arith.constant 2 : index
    %c0_40 = arith.constant 0 : index
    %47 = vector.load %arg33[%c2_39, %c0_40] : memref<5x32xf32, #tpu.memory_space<vmem>>, vector<1x32xf32>
    tpu.vector_store %arg33[%c2_39, %c0_40], %46 {strides = array<i32>} : memref<5x32xf32, #tpu.memory_space<vmem>>, vector<1x32xf32>,
    %c3_41 = arith.constant 3 : index
    %48 = memref.load %arg1[%c3_41] : memref<5xi32, #tpu.memory_space<smem>>
    %49 = arith.index_cast %48 : i32 to index
    %c0_42 = arith.constant 0 : index
    %50 = vector.load %arg4[%49, %c0_42] : memref<40x32xf32, #tpu.memory_space<vmem>>, vector<1x32xf32>
    %c3_43 = arith.constant 3 : index
    %c0_44 = arith.constant 0 : index
    %51 = vector.load %arg33[%c3_43, %c0_44] : memref<5x32xf32, #tpu.memory_space<vmem>>, vector<1x32xf32>
    tpu.vector_store %arg33[%c3_43, %c0_44], %50 {strides = array<i32>} : memref<5x32xf32, #tpu.memory_space<vmem>>, vector<1x32xf32>,
    %c4_45 = arith.constant 4 : index
    %52 = memref.load %arg1[%c4_45] : memref<5xi32, #tpu.memory_space<smem>>
    %53 = arith.index_cast %52 : i32 to index
    %c0_46 = arith.constant 0 : index
    %54 = vector.load %arg4[%53, %c0_46] : memref<40x32xf32, #tpu.memory_space<vmem>>, vector<1x32xf32>
    %c4_47 = arith.constant 4 : index
    %c0_48 = arith.constant 0 : index
    %55 = vector.load %arg33[%c4_47, %c0_48] : memref<5x32xf32, #tpu.memory_space<vmem>>, vector<1x32xf32>
    tpu.vector_store %arg33[%c4_47, %c0_48], %54 {strides = array<i32>} : memref<5x32xf32, #tpu.memory_space<vmem>>, vector<1x32xf32>,
    %c0_49 = arith.constant 0 : index
    %c0_50 = arith.constant 0 : index
    %56 = vector.load %arg33[%c0_49, %c0_50] : memref<5x32xf32, #tpu.memory_space<vmem>>, vector<5x32xf32>
    %57 = arith.truncf %56 : vector<5x32xf32> to vector<5x32xbf16>
    %c0_51 = arith.constant 0 : index
    %c0_52 = arith.constant 0 : index
    %58 = vector.load %arg13[%c0_51, %c0_52] : memref<32x384xbf16, #tpu.memory_space<vmem>>, vector<32x384xbf16>
    %cst_53 = arith.constant dense<0.000000e+00> : vector<5x384xf32>
    %59 = tpu.matmul %57, %58, %cst_53 {dimension_numbers = #tpu.dot_dimension_numbers<[1], [0], [0], [1], [0, 0, 1, 1], [], []>} : vector<5x32xbf16>, vector<32x384xbf16>, vector<5x384xf32> -> vector<5x384xf32>
    %c0_54 = arith.constant 0 : index
    %c0_55 = arith.constant 0 : index
    %60 = vector.load %arg15[%c0_54, %c0_55] : memref<1x384xf32, #tpu.memory_space<vmem>>, vector<1x384xf32>
    %61 = vector.broadcast %60 : vector<1x384xf32> to vector<5x384xf32>
    %62 = arith.addf %59, %61 : vector<5x384xf32>
    %c0_56 = arith.constant 0 : index
    %c0_57 = arith.constant 0 : index
    %63 = vector.load %arg36[%c0_56, %c0_57] : memref<5x384xf32, #tpu.memory_space<vmem>>, vector<5x384xf32>
    tpu.vector_store %arg36[%c0_56, %c0_57], %62 {strides = array<i32>} : memref<5x384xf32, #tpu.memory_space<vmem>>, vector<5x384xf32>,
    %c0_58 = arith.constant 0 : index
    %64 = memref.load %arg2[%c0_58] : memref<7xi32, #tpu.memory_space<smem>>
    %65 = arith.index_cast %64 : i32 to index
    %c0_59 = arith.constant 0 : index
    %66 = vector.load %arg5[%65, %c0_59] : memref<32x32xf32, #tpu.memory_space<vmem>>, vector<1x32xf32>
    %c0_60 = arith.constant 0 : index
    %c0_61 = arith.constant 0 : index
    %67 = vector.load %arg34[%c0_60, %c0_61] : memref<7x32xf32, #tpu.memory_space<vmem>>, vector<1x32xf32>
    tpu.vector_store %arg34[%c0_60, %c0_61], %66 {strides = array<i32>} : memref<7x32xf32, #tpu.memory_space<vmem>>, vector<1x32xf32>,
    %c1_62 = arith.constant 1 : index
    %68 = memref.load %arg2[%c1_62] : memref<7xi32, #tpu.memory_space<smem>>
    %69 = arith.index_cast %68 : i32 to index
    %c0_63 = arith.constant 0 : index
    %70 = vector.load %arg5[%69, %c0_63] : memref<32x32xf32, #tpu.memory_space<vmem>>, vector<1x32xf32>
    %c1_64 = arith.constant 1 : index
    %c0_65 = arith.constant 0 : index
    %71 = vector.load %arg34[%c1_64, %c0_65] : memref<7x32xf32, #tpu.memory_space<vmem>>, vector<1x32xf32>
    tpu.vector_store %arg34[%c1_64, %c0_65], %70 {strides = array<i32>} : memref<7x32xf32, #tpu.memory_space<vmem>>, vector<1x32xf32>,
    %c2_66 = arith.constant 2 : index
    %72 = memref.load %arg2[%c2_66] : memref<7xi32, #tpu.memory_space<smem>>
    %73 = arith.index_cast %72 : i32 to index
    %c0_67 = arith.constant 0 : index
    %74 = vector.load %arg5[%73, %c0_67] : memref<32x32xf32, #tpu.memory_space<vmem>>, vector<1x32xf32>
    %c2_68 = arith.constant 2 : index
    %c0_69 = arith.constant 0 : index
    %75 = vector.load %arg34[%c2_68, %c0_69] : memref<7x32xf32, #tpu.memory_space<vmem>>, vector<1x32xf32>
    tpu.vector_store %arg34[%c2_68, %c0_69], %74 {strides = array<i32>} : memref<7x32xf32, #tpu.memory_space<vmem>>, vector<1x32xf32>,
    %c3_70 = arith.constant 3 : index
    %76 = memref.load %arg2[%c3_70] : memref<7xi32, #tpu.memory_space<smem>>
    %77 = arith.index_cast %76 : i32 to index
    %c0_71 = arith.constant 0 : index
    %78 = vector.load %arg5[%77, %c0_71] : memref<32x32xf32, #tpu.memory_space<vmem>>, vector<1x32xf32>
    %c3_72 = arith.constant 3 : index
    %c0_73 = arith.constant 0 : index
    %79 = vector.load %arg34[%c3_72, %c0_73] : memref<7x32xf32, #tpu.memory_space<vmem>>, vector<1x32xf32>
    tpu.vector_store %arg34[%c3_72, %c0_73], %78 {strides = array<i32>} : memref<7x32xf32, #tpu.memory_space<vmem>>, vector<1x32xf32>,
    %c4_74 = arith.constant 4 : index
    %80 = memref.load %arg2[%c4_74] : memref<7xi32, #tpu.memory_space<smem>>
    %81 = arith.index_cast %80 : i32 to index
    %c0_75 = arith.constant 0 : index
    %82 = vector.load %arg5[%81, %c0_75] : memref<32x32xf32, #tpu.memory_space<vmem>>, vector<1x32xf32>
    %c4_76 = arith.constant 4 : index
    %c0_77 = arith.constant 0 : index
    %83 = vector.load %arg34[%c4_76, %c0_77] : memref<7x32xf32, #tpu.memory_space<vmem>>, vector<1x32xf32>
    tpu.vector_store %arg34[%c4_76, %c0_77], %82 {strides = array<i32>} : memref<7x32xf32, #tpu.memory_space<vmem>>, vector<1x32xf32>,
    %c5_78 = arith.constant 5 : index
    %84 = memref.load %arg2[%c5_78] : memref<7xi32, #tpu.memory_space<smem>>
    %85 = arith.index_cast %84 : i32 to index
    %c0_79 = arith.constant 0 : index
    %86 = vector.load %arg5[%85, %c0_79] : memref<32x32xf32, #tpu.memory_space<vmem>>, vector<1x32xf32>
    %c5_80 = arith.constant 5 : index
    %c0_81 = arith.constant 0 : index
    %87 = vector.load %arg34[%c5_80, %c0_81] : memref<7x32xf32, #tpu.memory_space<vmem>>, vector<1x32xf32>
    tpu.vector_store %arg34[%c5_80, %c0_81], %86 {strides = array<i32>} : memref<7x32xf32, #tpu.memory_space<vmem>>, vector<1x32xf32>,
    %c6_82 = arith.constant 6 : index
    %88 = memref.load %arg2[%c6_82] : memref<7xi32, #tpu.memory_space<smem>>
    %89 = arith.index_cast %88 : i32 to index
    %c0_83 = arith.constant 0 : index
    %90 = vector.load %arg5[%89, %c0_83] : memref<32x32xf32, #tpu.memory_space<vmem>>, vector<1x32xf32>
    %c6_84 = arith.constant 6 : index
    %c0_85 = arith.constant 0 : index
    %91 = vector.load %arg34[%c6_84, %c0_85] : memref<7x32xf32, #tpu.memory_space<vmem>>, vector<1x32xf32>
    tpu.vector_store %arg34[%c6_84, %c0_85], %90 {strides = array<i32>} : memref<7x32xf32, #tpu.memory_space<vmem>>, vector<1x32xf32>,
    %c0_86 = arith.constant 0 : index
    %c0_87 = arith.constant 0 : index
    %92 = vector.load %arg34[%c0_86, %c0_87] : memref<7x32xf32, #tpu.memory_space<vmem>>, vector<7x32xf32>
    %93 = arith.truncf %92 : vector<7x32xf32> to vector<7x32xbf16>
    %c0_88 = arith.constant 0 : index
    %c0_89 = arith.constant 0 : index
    %94 = vector.load %arg17[%c0_88, %c0_89] : memref<32x384xbf16, #tpu.memory_space<vmem>>, vector<32x384xbf16>
    %cst_90 = arith.constant dense<0.000000e+00> : vector<7x384xf32>
    %95 = tpu.matmul %93, %94, %cst_90 {dimension_numbers = #tpu.dot_dimension_numbers<[1], [0], [0], [1], [0, 0, 1, 1], [], []>} : vector<7x32xbf16>, vector<32x384xbf16>, vector<7x384xf32> -> vector<7x384xf32>
    %c0_91 = arith.constant 0 : index
    %c0_92 = arith.constant 0 : index
    %96 = vector.load %arg19[%c0_91, %c0_92] : memref<1x384xf32, #tpu.memory_space<vmem>>, vector<1x384xf32>
    %97 = vector.broadcast %96 : vector<1x384xf32> to vector<7x384xf32>
    %98 = arith.addf %95, %97 : vector<7x384xf32>
    %c0_93 = arith.constant 0 : index
    %c0_94 = arith.constant 0 : index
    %99 = vector.load %arg37[%c0_93, %c0_94] : memref<7x384xf32, #tpu.memory_space<vmem>>, vector<7x384xf32>
    tpu.vector_store %arg37[%c0_93, %c0_94], %98 {strides = array<i32>} : memref<7x384xf32, #tpu.memory_space<vmem>>, vector<7x384xf32>,
    %c0_95 = arith.constant 0 : index
    %c0_96 = arith.constant 0 : index
    %100 = vector.load %arg6[%c0_95, %c0_96] : memref<1x128xf32, #tpu.memory_space<vmem>>, vector<1x128xf32>
    %c0_97 = arith.constant 0 : index
    %c0_98 = arith.constant 0 : index
    %101 = vector.load %arg7[%c0_97, %c0_98] : memref<1x128xf32, #tpu.memory_space<vmem>>, vector<1x128xf32>
    %c0_99 = arith.constant 0 : index
    %c0_100 = arith.constant 0 : index
    %102 = vector.load %arg8[%c0_99, %c0_100] : memref<1x128xf32, #tpu.memory_space<vmem>>, vector<1x128xf32>
    %103 = arith.truncf %100 : vector<1x128xf32> to vector<1x128xbf16>
    %c0_101 = arith.constant 0 : index
    %c0_102 = arith.constant 0 : index
    %104 = vector.load %arg10[%c0_101, %c0_102] : memref<128x384xbf16, #tpu.memory_space<vmem>>, vector<128x384xbf16>
    %cst_103 = arith.constant dense<0.000000e+00> : vector<1x384xf32>
    %105 = tpu.matmul %103, %104, %cst_103 {dimension_numbers = #tpu.dot_dimension_numbers<[1], [0], [0], [1], [0, 0, 1, 1], [], []>} : vector<1x128xbf16>, vector<128x384xbf16>, vector<1x384xf32> -> vector<1x384xf32>
    %c0_104 = arith.constant 0 : index
    %c0_105 = arith.constant 0 : index
    %106 = vector.load %arg35[%c0_104, %c0_105] : memref<7x384xf32, #tpu.memory_space<vmem>>, vector<1x384xf32>
    %107 = vector.extract_strided_slice %106 {offsets = [0, 0], sizes = [1, 256], strides = [1, 1]} : vector<1x384xf32> to vector<1x256xf32>
    %108 = vector.extract_strided_slice %105 {offsets = [0, 0], sizes = [1, 256], strides = [1, 1]} : vector<1x384xf32> to vector<1x256xf32>
    %109 = arith.addf %107, %108 : vector<1x256xf32>
    %110 = arith.negf %109 : vector<1x256xf32>
    %111 = math.exp %110 : vector<1x256xf32>
    %cst_106 = arith.constant 1.000000e+00 : f32
    %112 = vector.broadcast %cst_106 : f32 to vector<1x256xf32>
    %113 = arith.addf %112, %111 : vector<1x256xf32>
    %114 = arith.divf %112, %113 : vector<1x256xf32>
    %115 = vector.extract_strided_slice %114 {offsets = [0, 0], sizes = [1, 128], strides = [1, 1]} : vector<1x256xf32> to vector<1x128xf32>
    %116 = vector.extract_strided_slice %114 {offsets = [0, 128], sizes = [1, 128], strides = [1, 1]} : vector<1x256xf32> to vector<1x128xf32>
    %117 = vector.extract_strided_slice %106 {offsets = [0, 256], sizes = [1, 128], strides = [1, 1]} : vector<1x384xf32> to vector<1x128xf32>
    %118 = vector.extract_strided_slice %105 {offsets = [0, 256], sizes = [1, 128], strides = [1, 1]} : vector<1x384xf32> to vector<1x128xf32>
    %c0_107 = arith.constant 0 : index
    %c0_108 = arith.constant 0 : index
    %119 = vector.load %arg12[%c0_107, %c0_108] : memref<1x128xf32, #tpu.memory_space<vmem>>, vector<1x128xf32>
    %120 = arith.addf %118, %119 : vector<1x128xf32>
    %121 = arith.mulf %115, %120 : vector<1x128xf32>
    %122 = arith.addf %117, %121 : vector<1x128xf32>
    %123 = math.tanh %122 : vector<1x128xf32>
    %cst_109 = arith.constant 1.000000e+00 : f32
    %124 = vector.broadcast %cst_109 : f32 to vector<1x128xf32>
    %125 = arith.subf %124, %116 : vector<1x128xf32>
    %126 = arith.mulf %125, %123 : vector<1x128xf32>
    %127 = arith.mulf %116, %100 : vector<1x128xf32>
    %128 = arith.addf %126, %127 : vector<1x128xf32>
    %129 = arith.truncf %101 : vector<1x128xf32> to vector<1x128xbf16>
    %c0_110 = arith.constant 0 : index
    %c0_111 = arith.constant 0 : index
    %130 = vector.load %arg14[%c0_110, %c0_111] : memref<128x384xbf16, #tpu.memory_space<vmem>>, vector<128x384xbf16>
    %cst_112 = arith.constant dense<0.000000e+00> : vector<1x384xf32>
    %131 = tpu.matmul %129, %130, %cst_112 {dimension_numbers = #tpu.dot_dimension_numbers<[1], [0], [0], [1], [0, 0, 1, 1], [], []>} : vector<1x128xbf16>, vector<128x384xbf16>, vector<1x384xf32> -> vector<1x384xf32>
    %c0_113 = arith.constant 0 : index
    %c0_114 = arith.constant 0 : index
    %132 = vector.load %arg36[%c0_113, %c0_114] : memref<5x384xf32, #tpu.memory_space<vmem>>, vector<1x384xf32>
    %133 = vector.extract_strided_slice %132 {offsets = [0, 0], sizes = [1, 256], strides = [1, 1]} : vector<1x384xf32> to vector<1x256xf32>
    %134 = vector.extract_strided_slice %131 {offsets = [0, 0], sizes = [1, 256], strides = [1, 1]} : vector<1x384xf32> to vector<1x256xf32>
    %135 = arith.addf %133, %134 : vector<1x256xf32>
    %136 = arith.negf %135 : vector<1x256xf32>
    %137 = math.exp %136 : vector<1x256xf32>
    %cst_115 = arith.constant 1.000000e+00 : f32
    %138 = vector.broadcast %cst_115 : f32 to vector<1x256xf32>
    %139 = arith.addf %138, %137 : vector<1x256xf32>
    %140 = arith.divf %138, %139 : vector<1x256xf32>
    %141 = vector.extract_strided_slice %140 {offsets = [0, 0], sizes = [1, 128], strides = [1, 1]} : vector<1x256xf32> to vector<1x128xf32>
    %142 = vector.extract_strided_slice %140 {offsets = [0, 128], sizes = [1, 128], strides = [1, 1]} : vector<1x256xf32> to vector<1x128xf32>
    %143 = vector.extract_strided_slice %132 {offsets = [0, 256], sizes = [1, 128], strides = [1, 1]} : vector<1x384xf32> to vector<1x128xf32>
    %144 = vector.extract_strided_slice %131 {offsets = [0, 256], sizes = [1, 128], strides = [1, 1]} : vector<1x384xf32> to vector<1x128xf32>
    %c0_116 = arith.constant 0 : index
    %c0_117 = arith.constant 0 : index
    %145 = vector.load %arg16[%c0_116, %c0_117] : memref<1x128xf32, #tpu.memory_space<vmem>>, vector<1x128xf32>
    %146 = arith.addf %144, %145 : vector<1x128xf32>
    %147 = arith.mulf %141, %146 : vector<1x128xf32>
    %148 = arith.addf %143, %147 : vector<1x128xf32>
    %149 = math.tanh %148 : vector<1x128xf32>
    %cst_118 = arith.constant 1.000000e+00 : f32
    %150 = vector.broadcast %cst_118 : f32 to vector<1x128xf32>
    %151 = arith.subf %150, %142 : vector<1x128xf32>
    %152 = arith.mulf %151, %149 : vector<1x128xf32>
    %153 = arith.mulf %142, %101 : vector<1x128xf32>
    %154 = arith.addf %152, %153 : vector<1x128xf32>
    %155 = arith.truncf %102 : vector<1x128xf32> to vector<1x128xbf16>
    %c0_119 = arith.constant 0 : index
    %c0_120 = arith.constant 0 : index
    %156 = vector.load %arg18[%c0_119, %c0_120] : memref<128x384xbf16, #tpu.memory_space<vmem>>, vector<128x384xbf16>
    %cst_121 = arith.constant dense<0.000000e+00> : vector<1x384xf32>
    %157 = tpu.matmul %155, %156, %cst_121 {dimension_numbers = #tpu.dot_dimension_numbers<[1], [0], [0], [1], [0, 0, 1, 1], [], []>} : vector<1x128xbf16>, vector<128x384xbf16>, vector<1x384xf32> -> vector<1x384xf32>
    %c0_122 = arith.constant 0 : index
    %c0_123 = arith.constant 0 : index
    %158 = vector.load %arg37[%c0_122, %c0_123] : memref<7x384xf32, #tpu.memory_space<vmem>>, vector<1x384xf32>
    %159 = vector.extract_strided_slice %158 {offsets = [0, 0], sizes = [1, 256], strides = [1, 1]} : vector<1x384xf32> to vector<1x256xf32>
    %160 = vector.extract_strided_slice %157 {offsets = [0, 0], sizes = [1, 256], strides = [1, 1]} : vector<1x384xf32> to vector<1x256xf32>
    %161 = arith.addf %159, %160 : vector<1x256xf32>
    %162 = arith.negf %161 : vector<1x256xf32>
    %163 = math.exp %162 : vector<1x256xf32>
    %cst_124 = arith.constant 1.000000e+00 : f32
    %164 = vector.broadcast %cst_124 : f32 to vector<1x256xf32>
    %165 = arith.addf %164, %163 : vector<1x256xf32>
    %166 = arith.divf %164, %165 : vector<1x256xf32>
    %167 = vector.extract_strided_slice %166 {offsets = [0, 0], sizes = [1, 128], strides = [1, 1]} : vector<1x256xf32> to vector<1x128xf32>
    %168 = vector.extract_strided_slice %166 {offsets = [0, 128], sizes = [1, 128], strides = [1, 1]} : vector<1x256xf32> to vector<1x128xf32>
    %169 = vector.extract_strided_slice %158 {offsets = [0, 256], sizes = [1, 128], strides = [1, 1]} : vector<1x384xf32> to vector<1x128xf32>
    %170 = vector.extract_strided_slice %157 {offsets = [0, 256], sizes = [1, 128], strides = [1, 1]} : vector<1x384xf32> to vector<1x128xf32>
    %c0_125 = arith.constant 0 : index
    %c0_126 = arith.constant 0 : index
    %171 = vector.load %arg20[%c0_125, %c0_126] : memref<1x128xf32, #tpu.memory_space<vmem>>, vector<1x128xf32>
    %172 = arith.addf %170, %171 : vector<1x128xf32>
    %173 = arith.mulf %167, %172 : vector<1x128xf32>
    %174 = arith.addf %169, %173 : vector<1x128xf32>
    %175 = math.tanh %174 : vector<1x128xf32>
    %cst_127 = arith.constant 1.000000e+00 : f32
    %176 = vector.broadcast %cst_127 : f32 to vector<1x128xf32>
    %177 = arith.subf %176, %168 : vector<1x128xf32>
    %178 = arith.mulf %177, %175 : vector<1x128xf32>
    %179 = arith.mulf %168, %102 : vector<1x128xf32>
    %180 = arith.addf %178, %179 : vector<1x128xf32>
    %c0_128 = arith.constant 0 : index
    %c0_129 = arith.constant 0 : index
    %181 = vector.load %arg38[%c0_128, %c0_129] : memref<7x128xf32, #tpu.memory_space<vmem>>, vector<1x128xf32>
    tpu.vector_store %arg38[%c0_128, %c0_129], %180 {strides = array<i32>} : memref<7x128xf32, #tpu.memory_space<vmem>>, vector<1x128xf32>,
    %182 = arith.truncf %128 : vector<1x128xf32> to vector<1x128xbf16>
    %c0_130 = arith.constant 0 : index
    %c0_131 = arith.constant 0 : index
    %183 = vector.load %arg10[%c0_130, %c0_131] : memref<128x384xbf16, #tpu.memory_space<vmem>>, vector<128x384xbf16>
    %cst_132 = arith.constant dense<0.000000e+00> : vector<1x384xf32>
    %184 = tpu.matmul %182, %183, %cst_132 {dimension_numbers = #tpu.dot_dimension_numbers<[1], [0], [0], [1], [0, 0, 1, 1], [], []>} : vector<1x128xbf16>, vector<128x384xbf16>, vector<1x384xf32> -> vector<1x384xf32>
    %c1_133 = arith.constant 1 : index
    %c0_134 = arith.constant 0 : index
    %185 = vector.load %arg35[%c1_133, %c0_134] : memref<7x384xf32, #tpu.memory_space<vmem>>, vector<1x384xf32>
    %186 = vector.extract_strided_slice %185 {offsets = [0, 0], sizes = [1, 256], strides = [1, 1]} : vector<1x384xf32> to vector<1x256xf32>
    %187 = vector.extract_strided_slice %184 {offsets = [0, 0], sizes = [1, 256], strides = [1, 1]} : vector<1x384xf32> to vector<1x256xf32>
    %188 = arith.addf %186, %187 : vector<1x256xf32>
    %189 = arith.negf %188 : vector<1x256xf32>
    %190 = math.exp %189 : vector<1x256xf32>
    %cst_135 = arith.constant 1.000000e+00 : f32
    %191 = vector.broadcast %cst_135 : f32 to vector<1x256xf32>
    %192 = arith.addf %191, %190 : vector<1x256xf32>
    %193 = arith.divf %191, %192 : vector<1x256xf32>
    %194 = vector.extract_strided_slice %193 {offsets = [0, 0], sizes = [1, 128], strides = [1, 1]} : vector<1x256xf32> to vector<1x128xf32>
    %195 = vector.extract_strided_slice %193 {offsets = [0, 128], sizes = [1, 128], strides = [1, 1]} : vector<1x256xf32> to vector<1x128xf32>
    %196 = vector.extract_strided_slice %185 {offsets = [0, 256], sizes = [1, 128], strides = [1, 1]} : vector<1x384xf32> to vector<1x128xf32>
    %197 = vector.extract_strided_slice %184 {offsets = [0, 256], sizes = [1, 128], strides = [1, 1]} : vector<1x384xf32> to vector<1x128xf32>
    %c0_136 = arith.constant 0 : index
    %c0_137 = arith.constant 0 : index
    %198 = vector.load %arg12[%c0_136, %c0_137] : memref<1x128xf32, #tpu.memory_space<vmem>>, vector<1x128xf32>
    %199 = arith.addf %197, %198 : vector<1x128xf32>
    %200 = arith.mulf %194, %199 : vector<1x128xf32>
    %201 = arith.addf %196, %200 : vector<1x128xf32>
    %202 = math.tanh %201 : vector<1x128xf32>
    %cst_138 = arith.constant 1.000000e+00 : f32
    %203 = vector.broadcast %cst_138 : f32 to vector<1x128xf32>
    %204 = arith.subf %203, %195 : vector<1x128xf32>
    %205 = arith.mulf %204, %202 : vector<1x128xf32>
    %206 = arith.mulf %195, %128 : vector<1x128xf32>
    %207 = arith.addf %205, %206 : vector<1x128xf32>
    %208 = arith.truncf %154 : vector<1x128xf32> to vector<1x128xbf16>
    %c0_139 = arith.constant 0 : index
    %c0_140 = arith.constant 0 : index
    %209 = vector.load %arg14[%c0_139, %c0_140] : memref<128x384xbf16, #tpu.memory_space<vmem>>, vector<128x384xbf16>
    %cst_141 = arith.constant dense<0.000000e+00> : vector<1x384xf32>
    %210 = tpu.matmul %208, %209, %cst_141 {dimension_numbers = #tpu.dot_dimension_numbers<[1], [0], [0], [1], [0, 0, 1, 1], [], []>} : vector<1x128xbf16>, vector<128x384xbf16>, vector<1x384xf32> -> vector<1x384xf32>
    %c1_142 = arith.constant 1 : index
    %c0_143 = arith.constant 0 : index
    %211 = vector.load %arg36[%c1_142, %c0_143] : memref<5x384xf32, #tpu.memory_space<vmem>>, vector<1x384xf32>
    %212 = vector.extract_strided_slice %211 {offsets = [0, 0], sizes = [1, 256], strides = [1, 1]} : vector<1x384xf32> to vector<1x256xf32>
    %213 = vector.extract_strided_slice %210 {offsets = [0, 0], sizes = [1, 256], strides = [1, 1]} : vector<1x384xf32> to vector<1x256xf32>
    %214 = arith.addf %212, %213 : vector<1x256xf32>
    %215 = arith.negf %214 : vector<1x256xf32>
    %216 = math.exp %215 : vector<1x256xf32>
    %cst_144 = arith.constant 1.000000e+00 : f32
    %217 = vector.broadcast %cst_144 : f32 to vector<1x256xf32>
    %218 = arith.addf %217, %216 : vector<1x256xf32>
    %219 = arith.divf %217, %218 : vector<1x256xf32>
    %220 = vector.extract_strided_slice %219 {offsets = [0, 0], sizes = [1, 128], strides = [1, 1]} : vector<1x256xf32> to vector<1x128xf32>
    %221 = vector.extract_strided_slice %219 {offsets = [0, 128], sizes = [1, 128], strides = [1, 1]} : vector<1x256xf32> to vector<1x128xf32>
    %222 = vector.extract_strided_slice %211 {offsets = [0, 256], sizes = [1, 128], strides = [1, 1]} : vector<1x384xf32> to vector<1x128xf32>
    %223 = vector.extract_strided_slice %210 {offsets = [0, 256], sizes = [1, 128], strides = [1, 1]} : vector<1x384xf32> to vector<1x128xf32>
    %c0_145 = arith.constant 0 : index
    %c0_146 = arith.constant 0 : index
    %224 = vector.load %arg16[%c0_145, %c0_146] : memref<1x128xf32, #tpu.memory_space<vmem>>, vector<1x128xf32>
    %225 = arith.addf %223, %224 : vector<1x128xf32>
    %226 = arith.mulf %220, %225 : vector<1x128xf32>
    %227 = arith.addf %222, %226 : vector<1x128xf32>
    %228 = math.tanh %227 : vector<1x128xf32>
    %cst_147 = arith.constant 1.000000e+00 : f32
    %229 = vector.broadcast %cst_147 : f32 to vector<1x128xf32>
    %230 = arith.subf %229, %221 : vector<1x128xf32>
    %231 = arith.mulf %230, %228 : vector<1x128xf32>
    %232 = arith.mulf %221, %154 : vector<1x128xf32>
    %233 = arith.addf %231, %232 : vector<1x128xf32>
    %234 = arith.truncf %180 : vector<1x128xf32> to vector<1x128xbf16>
    %c0_148 = arith.constant 0 : index
    %c0_149 = arith.constant 0 : index
    %235 = vector.load %arg18[%c0_148, %c0_149] : memref<128x384xbf16, #tpu.memory_space<vmem>>, vector<128x384xbf16>
    %cst_150 = arith.constant dense<0.000000e+00> : vector<1x384xf32>
    %236 = tpu.matmul %234, %235, %cst_150 {dimension_numbers = #tpu.dot_dimension_numbers<[1], [0], [0], [1], [0, 0, 1, 1], [], []>} : vector<1x128xbf16>, vector<128x384xbf16>, vector<1x384xf32> -> vector<1x384xf32>
    %c1_151 = arith.constant 1 : index
    %c0_152 = arith.constant 0 : index
    %237 = vector.load %arg37[%c1_151, %c0_152] : memref<7x384xf32, #tpu.memory_space<vmem>>, vector<1x384xf32>
    %238 = vector.extract_strided_slice %237 {offsets = [0, 0], sizes = [1, 256], strides = [1, 1]} : vector<1x384xf32> to vector<1x256xf32>
    %239 = vector.extract_strided_slice %236 {offsets = [0, 0], sizes = [1, 256], strides = [1, 1]} : vector<1x384xf32> to vector<1x256xf32>
    %240 = arith.addf %238, %239 : vector<1x256xf32>
    %241 = arith.negf %240 : vector<1x256xf32>
    %242 = math.exp %241 : vector<1x256xf32>
    %cst_153 = arith.constant 1.000000e+00 : f32
    %243 = vector.broadcast %cst_153 : f32 to vector<1x256xf32>
    %244 = arith.addf %243, %242 : vector<1x256xf32>
    %245 = arith.divf %243, %244 : vector<1x256xf32>
    %246 = vector.extract_strided_slice %245 {offsets = [0, 0], sizes = [1, 128], strides = [1, 1]} : vector<1x256xf32> to vector<1x128xf32>
    %247 = vector.extract_strided_slice %245 {offsets = [0, 128], sizes = [1, 128], strides = [1, 1]} : vector<1x256xf32> to vector<1x128xf32>
    %248 = vector.extract_strided_slice %237 {offsets = [0, 256], sizes = [1, 128], strides = [1, 1]} : vector<1x384xf32> to vector<1x128xf32>
    %249 = vector.extract_strided_slice %236 {offsets = [0, 256], sizes = [1, 128], strides = [1, 1]} : vector<1x384xf32> to vector<1x128xf32>
    %c0_154 = arith.constant 0 : index
    %c0_155 = arith.constant 0 : index
    %250 = vector.load %arg20[%c0_154, %c0_155] : memref<1x128xf32, #tpu.memory_space<vmem>>, vector<1x128xf32>
    %251 = arith.addf %249, %250 : vector<1x128xf32>
    %252 = arith.mulf %246, %251 : vector<1x128xf32>
    %253 = arith.addf %248, %252 : vector<1x128xf32>
    %254 = math.tanh %253 : vector<1x128xf32>
    %cst_156 = arith.constant 1.000000e+00 : f32
    %255 = vector.broadcast %cst_156 : f32 to vector<1x128xf32>
    %256 = arith.subf %255, %247 : vector<1x128xf32>
    %257 = arith.mulf %256, %254 : vector<1x128xf32>
    %258 = arith.mulf %247, %180 : vector<1x128xf32>
    %259 = arith.addf %257, %258 : vector<1x128xf32>
    %c1_157 = arith.constant 1 : index
    %c0_158 = arith.constant 0 : index
    %260 = vector.load %arg38[%c1_157, %c0_158] : memref<7x128xf32, #tpu.memory_space<vmem>>, vector<1x128xf32>
    tpu.vector_store %arg38[%c1_157, %c0_158], %259 {strides = array<i32>} : memref<7x128xf32, #tpu.memory_space<vmem>>, vector<1x128xf32>,
    %261 = arith.truncf %207 : vector<1x128xf32> to vector<1x128xbf16>
    %c0_159 = arith.constant 0 : index
    %c0_160 = arith.constant 0 : index
    %262 = vector.load %arg10[%c0_159, %c0_160] : memref<128x384xbf16, #tpu.memory_space<vmem>>, vector<128x384xbf16>
    %cst_161 = arith.constant dense<0.000000e+00> : vector<1x384xf32>
    %263 = tpu.matmul %261, %262, %cst_161 {dimension_numbers = #tpu.dot_dimension_numbers<[1], [0], [0], [1], [0, 0, 1, 1], [], []>} : vector<1x128xbf16>, vector<128x384xbf16>, vector<1x384xf32> -> vector<1x384xf32>
    %c2_162 = arith.constant 2 : index
    %c0_163 = arith.constant 0 : index
    %264 = vector.load %arg35[%c2_162, %c0_163] : memref<7x384xf32, #tpu.memory_space<vmem>>, vector<1x384xf32>
    %265 = vector.extract_strided_slice %264 {offsets = [0, 0], sizes = [1, 256], strides = [1, 1]} : vector<1x384xf32> to vector<1x256xf32>
    %266 = vector.extract_strided_slice %263 {offsets = [0, 0], sizes = [1, 256], strides = [1, 1]} : vector<1x384xf32> to vector<1x256xf32>
    %267 = arith.addf %265, %266 : vector<1x256xf32>
    %268 = arith.negf %267 : vector<1x256xf32>
    %269 = math.exp %268 : vector<1x256xf32>
    %cst_164 = arith.constant 1.000000e+00 : f32
    %270 = vector.broadcast %cst_164 : f32 to vector<1x256xf32>
    %271 = arith.addf %270, %269 : vector<1x256xf32>
    %272 = arith.divf %270, %271 : vector<1x256xf32>
    %273 = vector.extract_strided_slice %272 {offsets = [0, 0], sizes = [1, 128], strides = [1, 1]} : vector<1x256xf32> to vector<1x128xf32>
    %274 = vector.extract_strided_slice %272 {offsets = [0, 128], sizes = [1, 128], strides = [1, 1]} : vector<1x256xf32> to vector<1x128xf32>
    %275 = vector.extract_strided_slice %264 {offsets = [0, 256], sizes = [1, 128], strides = [1, 1]} : vector<1x384xf32> to vector<1x128xf32>
    %276 = vector.extract_strided_slice %263 {offsets = [0, 256], sizes = [1, 128], strides = [1, 1]} : vector<1x384xf32> to vector<1x128xf32>
    %c0_165 = arith.constant 0 : index
    %c0_166 = arith.constant 0 : index
    %277 = vector.load %arg12[%c0_165, %c0_166] : memref<1x128xf32, #tpu.memory_space<vmem>>, vector<1x128xf32>
    %278 = arith.addf %276, %277 : vector<1x128xf32>
    %279 = arith.mulf %273, %278 : vector<1x128xf32>
    %280 = arith.addf %275, %279 : vector<1x128xf32>
    %281 = math.tanh %280 : vector<1x128xf32>
    %cst_167 = arith.constant 1.000000e+00 : f32
    %282 = vector.broadcast %cst_167 : f32 to vector<1x128xf32>
    %283 = arith.subf %282, %274 : vector<1x128xf32>
    %284 = arith.mulf %283, %281 : vector<1x128xf32>
    %285 = arith.mulf %274, %207 : vector<1x128xf32>
    %286 = arith.addf %284, %285 : vector<1x128xf32>
    %287 = arith.truncf %233 : vector<1x128xf32> to vector<1x128xbf16>
    %c0_168 = arith.constant 0 : index
    %c0_169 = arith.constant 0 : index
    %288 = vector.load %arg14[%c0_168, %c0_169] : memref<128x384xbf16, #tpu.memory_space<vmem>>, vector<128x384xbf16>
    %cst_170 = arith.constant dense<0.000000e+00> : vector<1x384xf32>
    %289 = tpu.matmul %287, %288, %cst_170 {dimension_numbers = #tpu.dot_dimension_numbers<[1], [0], [0], [1], [0, 0, 1, 1], [], []>} : vector<1x128xbf16>, vector<128x384xbf16>, vector<1x384xf32> -> vector<1x384xf32>
    %c2_171 = arith.constant 2 : index
    %c0_172 = arith.constant 0 : index
    %290 = vector.load %arg36[%c2_171, %c0_172] : memref<5x384xf32, #tpu.memory_space<vmem>>, vector<1x384xf32>
    %291 = vector.extract_strided_slice %290 {offsets = [0, 0], sizes = [1, 256], strides = [1, 1]} : vector<1x384xf32> to vector<1x256xf32>
    %292 = vector.extract_strided_slice %289 {offsets = [0, 0], sizes = [1, 256], strides = [1, 1]} : vector<1x384xf32> to vector<1x256xf32>
    %293 = arith.addf %291, %292 : vector<1x256xf32>
    %294 = arith.negf %293 : vector<1x256xf32>
    %295 = math.exp %294 : vector<1x256xf32>
    %cst_173 = arith.constant 1.000000e+00 : f32
    %296 = vector.broadcast %cst_173 : f32 to vector<1x256xf32>
    %297 = arith.addf %296, %295 : vector<1x256xf32>
    %298 = arith.divf %296, %297 : vector<1x256xf32>
    %299 = vector.extract_strided_slice %298 {offsets = [0, 0], sizes = [1, 128], strides = [1, 1]} : vector<1x256xf32> to vector<1x128xf32>
    %300 = vector.extract_strided_slice %298 {offsets = [0, 128], sizes = [1, 128], strides = [1, 1]} : vector<1x256xf32> to vector<1x128xf32>
    %301 = vector.extract_strided_slice %290 {offsets = [0, 256], sizes = [1, 128], strides = [1, 1]} : vector<1x384xf32> to vector<1x128xf32>
    %302 = vector.extract_strided_slice %289 {offsets = [0, 256], sizes = [1, 128], strides = [1, 1]} : vector<1x384xf32> to vector<1x128xf32>
    %c0_174 = arith.constant 0 : index
    %c0_175 = arith.constant 0 : index
    %303 = vector.load %arg16[%c0_174, %c0_175] : memref<1x128xf32, #tpu.memory_space<vmem>>, vector<1x128xf32>
    %304 = arith.addf %302, %303 : vector<1x128xf32>
    %305 = arith.mulf %299, %304 : vector<1x128xf32>
    %306 = arith.addf %301, %305 : vector<1x128xf32>
    %307 = math.tanh %306 : vector<1x128xf32>
    %cst_176 = arith.constant 1.000000e+00 : f32
    %308 = vector.broadcast %cst_176 : f32 to vector<1x128xf32>
    %309 = arith.subf %308, %300 : vector<1x128xf32>
    %310 = arith.mulf %309, %307 : vector<1x128xf32>
    %311 = arith.mulf %300, %233 : vector<1x128xf32>
    %312 = arith.addf %310, %311 : vector<1x128xf32>
    %313 = arith.truncf %259 : vector<1x128xf32> to vector<1x128xbf16>
    %c0_177 = arith.constant 0 : index
    %c0_178 = arith.constant 0 : index
    %314 = vector.load %arg18[%c0_177, %c0_178] : memref<128x384xbf16, #tpu.memory_space<vmem>>, vector<128x384xbf16>
    %cst_179 = arith.constant dense<0.000000e+00> : vector<1x384xf32>
    %315 = tpu.matmul %313, %314, %cst_179 {dimension_numbers = #tpu.dot_dimension_numbers<[1], [0], [0], [1], [0, 0, 1, 1], [], []>} : vector<1x128xbf16>, vector<128x384xbf16>, vector<1x384xf32> -> vector<1x384xf32>
    %c2_180 = arith.constant 2 : index
    %c0_181 = arith.constant 0 : index
    %316 = vector.load %arg37[%c2_180, %c0_181] : memref<7x384xf32, #tpu.memory_space<vmem>>, vector<1x384xf32>
    %317 = vector.extract_strided_slice %316 {offsets = [0, 0], sizes = [1, 256], strides = [1, 1]} : vector<1x384xf32> to vector<1x256xf32>
    %318 = vector.extract_strided_slice %315 {offsets = [0, 0], sizes = [1, 256], strides = [1, 1]} : vector<1x384xf32> to vector<1x256xf32>
    %319 = arith.addf %317, %318 : vector<1x256xf32>
    %320 = arith.negf %319 : vector<1x256xf32>
    %321 = math.exp %320 : vector<1x256xf32>
    %cst_182 = arith.constant 1.000000e+00 : f32
    %322 = vector.broadcast %cst_182 : f32 to vector<1x256xf32>
    %323 = arith.addf %322, %321 : vector<1x256xf32>
    %324 = arith.divf %322, %323 : vector<1x256xf32>
    %325 = vector.extract_strided_slice %324 {offsets = [0, 0], sizes = [1, 128], strides = [1, 1]} : vector<1x256xf32> to vector<1x128xf32>
    %326 = vector.extract_strided_slice %324 {offsets = [0, 128], sizes = [1, 128], strides = [1, 1]} : vector<1x256xf32> to vector<1x128xf32>
    %327 = vector.extract_strided_slice %316 {offsets = [0, 256], sizes = [1, 128], strides = [1, 1]} : vector<1x384xf32> to vector<1x128xf32>
    %328 = vector.extract_strided_slice %315 {offsets = [0, 256], sizes = [1, 128], strides = [1, 1]} : vector<1x384xf32> to vector<1x128xf32>
    %c0_183 = arith.constant 0 : index
    %c0_184 = arith.constant 0 : index
    %329 = vector.load %arg20[%c0_183, %c0_184] : memref<1x128xf32, #tpu.memory_space<vmem>>, vector<1x128xf32>
    %330 = arith.addf %328, %329 : vector<1x128xf32>
    %331 = arith.mulf %325, %330 : vector<1x128xf32>
    %332 = arith.addf %327, %331 : vector<1x128xf32>
    %333 = math.tanh %332 : vector<1x128xf32>
    %cst_185 = arith.constant 1.000000e+00 : f32
    %334 = vector.broadcast %cst_185 : f32 to vector<1x128xf32>
    %335 = arith.subf %334, %326 : vector<1x128xf32>
    %336 = arith.mulf %335, %333 : vector<1x128xf32>
    %337 = arith.mulf %326, %259 : vector<1x128xf32>
    %338 = arith.addf %336, %337 : vector<1x128xf32>
    %c2_186 = arith.constant 2 : index
    %c0_187 = arith.constant 0 : index
    %339 = vector.load %arg38[%c2_186, %c0_187] : memref<7x128xf32, #tpu.memory_space<vmem>>, vector<1x128xf32>
    tpu.vector_store %arg38[%c2_186, %c0_187], %338 {strides = array<i32>} : memref<7x128xf32, #tpu.memory_space<vmem>>, vector<1x128xf32>,
    %340 = arith.truncf %286 : vector<1x128xf32> to vector<1x128xbf16>
    %c0_188 = arith.constant 0 : index
    %c0_189 = arith.constant 0 : index
    %341 = vector.load %arg10[%c0_188, %c0_189] : memref<128x384xbf16, #tpu.memory_space<vmem>>, vector<128x384xbf16>
    %cst_190 = arith.constant dense<0.000000e+00> : vector<1x384xf32>
    %342 = tpu.matmul %340, %341, %cst_190 {dimension_numbers = #tpu.dot_dimension_numbers<[1], [0], [0], [1], [0, 0, 1, 1], [], []>} : vector<1x128xbf16>, vector<128x384xbf16>, vector<1x384xf32> -> vector<1x384xf32>
    %c3_191 = arith.constant 3 : index
    %c0_192 = arith.constant 0 : index
    %343 = vector.load %arg35[%c3_191, %c0_192] : memref<7x384xf32, #tpu.memory_space<vmem>>, vector<1x384xf32>
    %344 = vector.extract_strided_slice %343 {offsets = [0, 0], sizes = [1, 256], strides = [1, 1]} : vector<1x384xf32> to vector<1x256xf32>
    %345 = vector.extract_strided_slice %342 {offsets = [0, 0], sizes = [1, 256], strides = [1, 1]} : vector<1x384xf32> to vector<1x256xf32>
    %346 = arith.addf %344, %345 : vector<1x256xf32>
    %347 = arith.negf %346 : vector<1x256xf32>
    %348 = math.exp %347 : vector<1x256xf32>
    %cst_193 = arith.constant 1.000000e+00 : f32
    %349 = vector.broadcast %cst_193 : f32 to vector<1x256xf32>
    %350 = arith.addf %349, %348 : vector<1x256xf32>
    %351 = arith.divf %349, %350 : vector<1x256xf32>
    %352 = vector.extract_strided_slice %351 {offsets = [0, 0], sizes = [1, 128], strides = [1, 1]} : vector<1x256xf32> to vector<1x128xf32>
    %353 = vector.extract_strided_slice %351 {offsets = [0, 128], sizes = [1, 128], strides = [1, 1]} : vector<1x256xf32> to vector<1x128xf32>
    %354 = vector.extract_strided_slice %343 {offsets = [0, 256], sizes = [1, 128], strides = [1, 1]} : vector<1x384xf32> to vector<1x128xf32>
    %355 = vector.extract_strided_slice %342 {offsets = [0, 256], sizes = [1, 128], strides = [1, 1]} : vector<1x384xf32> to vector<1x128xf32>
    %c0_194 = arith.constant 0 : index
    %c0_195 = arith.constant 0 : index
    %356 = vector.load %arg12[%c0_194, %c0_195] : memref<1x128xf32, #tpu.memory_space<vmem>>, vector<1x128xf32>
    %357 = arith.addf %355, %356 : vector<1x128xf32>
    %358 = arith.mulf %352, %357 : vector<1x128xf32>
    %359 = arith.addf %354, %358 : vector<1x128xf32>
    %360 = math.tanh %359 : vector<1x128xf32>
    %cst_196 = arith.constant 1.000000e+00 : f32
    %361 = vector.broadcast %cst_196 : f32 to vector<1x128xf32>
    %362 = arith.subf %361, %353 : vector<1x128xf32>
    %363 = arith.mulf %362, %360 : vector<1x128xf32>
    %364 = arith.mulf %353, %286 : vector<1x128xf32>
    %365 = arith.addf %363, %364 : vector<1x128xf32>
    %366 = arith.truncf %312 : vector<1x128xf32> to vector<1x128xbf16>
    %c0_197 = arith.constant 0 : index
    %c0_198 = arith.constant 0 : index
    %367 = vector.load %arg14[%c0_197, %c0_198] : memref<128x384xbf16, #tpu.memory_space<vmem>>, vector<128x384xbf16>
    %cst_199 = arith.constant dense<0.000000e+00> : vector<1x384xf32>
    %368 = tpu.matmul %366, %367, %cst_199 {dimension_numbers = #tpu.dot_dimension_numbers<[1], [0], [0], [1], [0, 0, 1, 1], [], []>} : vector<1x128xbf16>, vector<128x384xbf16>, vector<1x384xf32> -> vector<1x384xf32>
    %c3_200 = arith.constant 3 : index
    %c0_201 = arith.constant 0 : index
    %369 = vector.load %arg36[%c3_200, %c0_201] : memref<5x384xf32, #tpu.memory_space<vmem>>, vector<1x384xf32>
    %370 = vector.extract_strided_slice %369 {offsets = [0, 0], sizes = [1, 256], strides = [1, 1]} : vector<1x384xf32> to vector<1x256xf32>
    %371 = vector.extract_strided_slice %368 {offsets = [0, 0], sizes = [1, 256], strides = [1, 1]} : vector<1x384xf32> to vector<1x256xf32>
    %372 = arith.addf %370, %371 : vector<1x256xf32>
    %373 = arith.negf %372 : vector<1x256xf32>
    %374 = math.exp %373 : vector<1x256xf32>
    %cst_202 = arith.constant 1.000000e+00 : f32
    %375 = vector.broadcast %cst_202 : f32 to vector<1x256xf32>
    %376 = arith.addf %375, %374 : vector<1x256xf32>
    %377 = arith.divf %375, %376 : vector<1x256xf32>
    %378 = vector.extract_strided_slice %377 {offsets = [0, 0], sizes = [1, 128], strides = [1, 1]} : vector<1x256xf32> to vector<1x128xf32>
    %379 = vector.extract_strided_slice %377 {offsets = [0, 128], sizes = [1, 128], strides = [1, 1]} : vector<1x256xf32> to vector<1x128xf32>
    %380 = vector.extract_strided_slice %369 {offsets = [0, 256], sizes = [1, 128], strides = [1, 1]} : vector<1x384xf32> to vector<1x128xf32>
    %381 = vector.extract_strided_slice %368 {offsets = [0, 256], sizes = [1, 128], strides = [1, 1]} : vector<1x384xf32> to vector<1x128xf32>
    %c0_203 = arith.constant 0 : index
    %c0_204 = arith.constant 0 : index
    %382 = vector.load %arg16[%c0_203, %c0_204] : memref<1x128xf32, #tpu.memory_space<vmem>>, vector<1x128xf32>
    %383 = arith.addf %381, %382 : vector<1x128xf32>
    %384 = arith.mulf %378, %383 : vector<1x128xf32>
    %385 = arith.addf %380, %384 : vector<1x128xf32>
    %386 = math.tanh %385 : vector<1x128xf32>
    %cst_205 = arith.constant 1.000000e+00 : f32
    %387 = vector.broadcast %cst_205 : f32 to vector<1x128xf32>
    %388 = arith.subf %387, %379 : vector<1x128xf32>
    %389 = arith.mulf %388, %386 : vector<1x128xf32>
    %390 = arith.mulf %379, %312 : vector<1x128xf32>
    %391 = arith.addf %389, %390 : vector<1x128xf32>
    %392 = arith.truncf %338 : vector<1x128xf32> to vector<1x128xbf16>
    %c0_206 = arith.constant 0 : index
    %c0_207 = arith.constant 0 : index
    %393 = vector.load %arg18[%c0_206, %c0_207] : memref<128x384xbf16, #tpu.memory_space<vmem>>, vector<128x384xbf16>
    %cst_208 = arith.constant dense<0.000000e+00> : vector<1x384xf32>
    %394 = tpu.matmul %392, %393, %cst_208 {dimension_numbers = #tpu.dot_dimension_numbers<[1], [0], [0], [1], [0, 0, 1, 1], [], []>} : vector<1x128xbf16>, vector<128x384xbf16>, vector<1x384xf32> -> vector<1x384xf32>
    %c3_209 = arith.constant 3 : index
    %c0_210 = arith.constant 0 : index
    %395 = vector.load %arg37[%c3_209, %c0_210] : memref<7x384xf32, #tpu.memory_space<vmem>>, vector<1x384xf32>
    %396 = vector.extract_strided_slice %395 {offsets = [0, 0], sizes = [1, 256], strides = [1, 1]} : vector<1x384xf32> to vector<1x256xf32>
    %397 = vector.extract_strided_slice %394 {offsets = [0, 0], sizes = [1, 256], strides = [1, 1]} : vector<1x384xf32> to vector<1x256xf32>
    %398 = arith.addf %396, %397 : vector<1x256xf32>
    %399 = arith.negf %398 : vector<1x256xf32>
    %400 = math.exp %399 : vector<1x256xf32>
    %cst_211 = arith.constant 1.000000e+00 : f32
    %401 = vector.broadcast %cst_211 : f32 to vector<1x256xf32>
    %402 = arith.addf %401, %400 : vector<1x256xf32>
    %403 = arith.divf %401, %402 : vector<1x256xf32>
    %404 = vector.extract_strided_slice %403 {offsets = [0, 0], sizes = [1, 128], strides = [1, 1]} : vector<1x256xf32> to vector<1x128xf32>
    %405 = vector.extract_strided_slice %403 {offsets = [0, 128], sizes = [1, 128], strides = [1, 1]} : vector<1x256xf32> to vector<1x128xf32>
    %406 = vector.extract_strided_slice %395 {offsets = [0, 256], sizes = [1, 128], strides = [1, 1]} : vector<1x384xf32> to vector<1x128xf32>
    %407 = vector.extract_strided_slice %394 {offsets = [0, 256], sizes = [1, 128], strides = [1, 1]} : vector<1x384xf32> to vector<1x128xf32>
    %c0_212 = arith.constant 0 : index
    %c0_213 = arith.constant 0 : index
    %408 = vector.load %arg20[%c0_212, %c0_213] : memref<1x128xf32, #tpu.memory_space<vmem>>, vector<1x128xf32>
    %409 = arith.addf %407, %408 : vector<1x128xf32>
    %410 = arith.mulf %404, %409 : vector<1x128xf32>
    %411 = arith.addf %406, %410 : vector<1x128xf32>
    %412 = math.tanh %411 : vector<1x128xf32>
    %cst_214 = arith.constant 1.000000e+00 : f32
    %413 = vector.broadcast %cst_214 : f32 to vector<1x128xf32>
    %414 = arith.subf %413, %405 : vector<1x128xf32>
    %415 = arith.mulf %414, %412 : vector<1x128xf32>
    %416 = arith.mulf %405, %338 : vector<1x128xf32>
    %417 = arith.addf %415, %416 : vector<1x128xf32>
    %c3_215 = arith.constant 3 : index
    %c0_216 = arith.constant 0 : index
    %418 = vector.load %arg38[%c3_215, %c0_216] : memref<7x128xf32, #tpu.memory_space<vmem>>, vector<1x128xf32>
    tpu.vector_store %arg38[%c3_215, %c0_216], %417 {strides = array<i32>} : memref<7x128xf32, #tpu.memory_space<vmem>>, vector<1x128xf32>,
    %419 = arith.truncf %365 : vector<1x128xf32> to vector<1x128xbf16>
    %c0_217 = arith.constant 0 : index
    %c0_218 = arith.constant 0 : index
    %420 = vector.load %arg10[%c0_217, %c0_218] : memref<128x384xbf16, #tpu.memory_space<vmem>>, vector<128x384xbf16>
    %cst_219 = arith.constant dense<0.000000e+00> : vector<1x384xf32>
    %421 = tpu.matmul %419, %420, %cst_219 {dimension_numbers = #tpu.dot_dimension_numbers<[1], [0], [0], [1], [0, 0, 1, 1], [], []>} : vector<1x128xbf16>, vector<128x384xbf16>, vector<1x384xf32> -> vector<1x384xf32>
    %c4_220 = arith.constant 4 : index
    %c0_221 = arith.constant 0 : index
    %422 = vector.load %arg35[%c4_220, %c0_221] : memref<7x384xf32, #tpu.memory_space<vmem>>, vector<1x384xf32>
    %423 = vector.extract_strided_slice %422 {offsets = [0, 0], sizes = [1, 256], strides = [1, 1]} : vector<1x384xf32> to vector<1x256xf32>
    %424 = vector.extract_strided_slice %421 {offsets = [0, 0], sizes = [1, 256], strides = [1, 1]} : vector<1x384xf32> to vector<1x256xf32>
    %425 = arith.addf %423, %424 : vector<1x256xf32>
    %426 = arith.negf %425 : vector<1x256xf32>
    %427 = math.exp %426 : vector<1x256xf32>
    %cst_222 = arith.constant 1.000000e+00 : f32
    %428 = vector.broadcast %cst_222 : f32 to vector<1x256xf32>
    %429 = arith.addf %428, %427 : vector<1x256xf32>
    %430 = arith.divf %428, %429 : vector<1x256xf32>
    %431 = vector.extract_strided_slice %430 {offsets = [0, 0], sizes = [1, 128], strides = [1, 1]} : vector<1x256xf32> to vector<1x128xf32>
    %432 = vector.extract_strided_slice %430 {offsets = [0, 128], sizes = [1, 128], strides = [1, 1]} : vector<1x256xf32> to vector<1x128xf32>
    %433 = vector.extract_strided_slice %422 {offsets = [0, 256], sizes = [1, 128], strides = [1, 1]} : vector<1x384xf32> to vector<1x128xf32>
    %434 = vector.extract_strided_slice %421 {offsets = [0, 256], sizes = [1, 128], strides = [1, 1]} : vector<1x384xf32> to vector<1x128xf32>
    %c0_223 = arith.constant 0 : index
    %c0_224 = arith.constant 0 : index
    %435 = vector.load %arg12[%c0_223, %c0_224] : memref<1x128xf32, #tpu.memory_space<vmem>>, vector<1x128xf32>
    %436 = arith.addf %434, %435 : vector<1x128xf32>
    %437 = arith.mulf %431, %436 : vector<1x128xf32>
    %438 = arith.addf %433, %437 : vector<1x128xf32>
    %439 = math.tanh %438 : vector<1x128xf32>
    %cst_225 = arith.constant 1.000000e+00 : f32
    %440 = vector.broadcast %cst_225 : f32 to vector<1x128xf32>
    %441 = arith.subf %440, %432 : vector<1x128xf32>
    %442 = arith.mulf %441, %439 : vector<1x128xf32>
    %443 = arith.mulf %432, %365 : vector<1x128xf32>
    %444 = arith.addf %442, %443 : vector<1x128xf32>
    %445 = arith.truncf %391 : vector<1x128xf32> to vector<1x128xbf16>
    %c0_226 = arith.constant 0 : index
    %c0_227 = arith.constant 0 : index
    %446 = vector.load %arg14[%c0_226, %c0_227] : memref<128x384xbf16, #tpu.memory_space<vmem>>, vector<128x384xbf16>
    %cst_228 = arith.constant dense<0.000000e+00> : vector<1x384xf32>
    %447 = tpu.matmul %445, %446, %cst_228 {dimension_numbers = #tpu.dot_dimension_numbers<[1], [0], [0], [1], [0, 0, 1, 1], [], []>} : vector<1x128xbf16>, vector<128x384xbf16>, vector<1x384xf32> -> vector<1x384xf32>
    %c4_229 = arith.constant 4 : index
    %c0_230 = arith.constant 0 : index
    %448 = vector.load %arg36[%c4_229, %c0_230] : memref<5x384xf32, #tpu.memory_space<vmem>>, vector<1x384xf32>
    %449 = vector.extract_strided_slice %448 {offsets = [0, 0], sizes = [1, 256], strides = [1, 1]} : vector<1x384xf32> to vector<1x256xf32>
    %450 = vector.extract_strided_slice %447 {offsets = [0, 0], sizes = [1, 256], strides = [1, 1]} : vector<1x384xf32> to vector<1x256xf32>
    %451 = arith.addf %449, %450 : vector<1x256xf32>
    %452 = arith.negf %451 : vector<1x256xf32>
    %453 = math.exp %452 : vector<1x256xf32>
    %cst_231 = arith.constant 1.000000e+00 : f32
    %454 = vector.broadcast %cst_231 : f32 to vector<1x256xf32>
    %455 = arith.addf %454, %453 : vector<1x256xf32>
    %456 = arith.divf %454, %455 : vector<1x256xf32>
    %457 = vector.extract_strided_slice %456 {offsets = [0, 0], sizes = [1, 128], strides = [1, 1]} : vector<1x256xf32> to vector<1x128xf32>
    %458 = vector.extract_strided_slice %456 {offsets = [0, 128], sizes = [1, 128], strides = [1, 1]} : vector<1x256xf32> to vector<1x128xf32>
    %459 = vector.extract_strided_slice %448 {offsets = [0, 256], sizes = [1, 128], strides = [1, 1]} : vector<1x384xf32> to vector<1x128xf32>
    %460 = vector.extract_strided_slice %447 {offsets = [0, 256], sizes = [1, 128], strides = [1, 1]} : vector<1x384xf32> to vector<1x128xf32>
    %c0_232 = arith.constant 0 : index
    %c0_233 = arith.constant 0 : index
    %461 = vector.load %arg16[%c0_232, %c0_233] : memref<1x128xf32, #tpu.memory_space<vmem>>, vector<1x128xf32>
    %462 = arith.addf %460, %461 : vector<1x128xf32>
    %463 = arith.mulf %457, %462 : vector<1x128xf32>
    %464 = arith.addf %459, %463 : vector<1x128xf32>
    %465 = math.tanh %464 : vector<1x128xf32>
    %cst_234 = arith.constant 1.000000e+00 : f32
    %466 = vector.broadcast %cst_234 : f32 to vector<1x128xf32>
    %467 = arith.subf %466, %458 : vector<1x128xf32>
    %468 = arith.mulf %467, %465 : vector<1x128xf32>
    %469 = arith.mulf %458, %391 : vector<1x128xf32>
    %470 = arith.addf %468, %469 : vector<1x128xf32>
    %471 = arith.truncf %417 : vector<1x128xf32> to vector<1x128xbf16>
    %c0_235 = arith.constant 0 : index
    %c0_236 = arith.constant 0 : index
    %472 = vector.load %arg18[%c0_235, %c0_236] : memref<128x384xbf16, #tpu.memory_space<vmem>>, vector<128x384xbf16>
    %cst_237 = arith.constant dense<0.000000e+00> : vector<1x384xf32>
    %473 = tpu.matmul %471, %472, %cst_237 {dimension_numbers = #tpu.dot_dimension_numbers<[1], [0], [0], [1], [0, 0, 1, 1], [], []>} : vector<1x128xbf16>, vector<128x384xbf16>, vector<1x384xf32> -> vector<1x384xf32>
    %c4_238 = arith.constant 4 : index
    %c0_239 = arith.constant 0 : index
    %474 = vector.load %arg37[%c4_238, %c0_239] : memref<7x384xf32, #tpu.memory_space<vmem>>, vector<1x384xf32>
    %475 = vector.extract_strided_slice %474 {offsets = [0, 0], sizes = [1, 256], strides = [1, 1]} : vector<1x384xf32> to vector<1x256xf32>
    %476 = vector.extract_strided_slice %473 {offsets = [0, 0], sizes = [1, 256], strides = [1, 1]} : vector<1x384xf32> to vector<1x256xf32>
    %477 = arith.addf %475, %476 : vector<1x256xf32>
    %478 = arith.negf %477 : vector<1x256xf32>
    %479 = math.exp %478 : vector<1x256xf32>
    %cst_240 = arith.constant 1.000000e+00 : f32
    %480 = vector.broadcast %cst_240 : f32 to vector<1x256xf32>
    %481 = arith.addf %480, %479 : vector<1x256xf32>
    %482 = arith.divf %480, %481 : vector<1x256xf32>
    %483 = vector.extract_strided_slice %482 {offsets = [0, 0], sizes = [1, 128], strides = [1, 1]} : vector<1x256xf32> to vector<1x128xf32>
    %484 = vector.extract_strided_slice %482 {offsets = [0, 128], sizes = [1, 128], strides = [1, 1]} : vector<1x256xf32> to vector<1x128xf32>
    %485 = vector.extract_strided_slice %474 {offsets = [0, 256], sizes = [1, 128], strides = [1, 1]} : vector<1x384xf32> to vector<1x128xf32>
    %486 = vector.extract_strided_slice %473 {offsets = [0, 256], sizes = [1, 128], strides = [1, 1]} : vector<1x384xf32> to vector<1x128xf32>
    %c0_241 = arith.constant 0 : index
    %c0_242 = arith.constant 0 : index
    %487 = vector.load %arg20[%c0_241, %c0_242] : memref<1x128xf32, #tpu.memory_space<vmem>>, vector<1x128xf32>
    %488 = arith.addf %486, %487 : vector<1x128xf32>
    %489 = arith.mulf %483, %488 : vector<1x128xf32>
    %490 = arith.addf %485, %489 : vector<1x128xf32>
    %491 = math.tanh %490 : vector<1x128xf32>
    %cst_243 = arith.constant 1.000000e+00 : f32
    %492 = vector.broadcast %cst_243 : f32 to vector<1x128xf32>
    %493 = arith.subf %492, %484 : vector<1x128xf32>
    %494 = arith.mulf %493, %491 : vector<1x128xf32>
    %495 = arith.mulf %484, %417 : vector<1x128xf32>
    %496 = arith.addf %494, %495 : vector<1x128xf32>
    %c4_244 = arith.constant 4 : index
    %c0_245 = arith.constant 0 : index
    %497 = vector.load %arg38[%c4_244, %c0_245] : memref<7x128xf32, #tpu.memory_space<vmem>>, vector<1x128xf32>
    tpu.vector_store %arg38[%c4_244, %c0_245], %496 {strides = array<i32>} : memref<7x128xf32, #tpu.memory_space<vmem>>, vector<1x128xf32>,
    %498 = arith.truncf %444 : vector<1x128xf32> to vector<1x128xbf16>
    %c0_246 = arith.constant 0 : index
    %c0_247 = arith.constant 0 : index
    %499 = vector.load %arg10[%c0_246, %c0_247] : memref<128x384xbf16, #tpu.memory_space<vmem>>, vector<128x384xbf16>
    %cst_248 = arith.constant dense<0.000000e+00> : vector<1x384xf32>
    %500 = tpu.matmul %498, %499, %cst_248 {dimension_numbers = #tpu.dot_dimension_numbers<[1], [0], [0], [1], [0, 0, 1, 1], [], []>} : vector<1x128xbf16>, vector<128x384xbf16>, vector<1x384xf32> -> vector<1x384xf32>
    %c5_249 = arith.constant 5 : index
    %c0_250 = arith.constant 0 : index
    %501 = vector.load %arg35[%c5_249, %c0_250] : memref<7x384xf32, #tpu.memory_space<vmem>>, vector<1x384xf32>
    %502 = vector.extract_strided_slice %501 {offsets = [0, 0], sizes = [1, 256], strides = [1, 1]} : vector<1x384xf32> to vector<1x256xf32>
    %503 = vector.extract_strided_slice %500 {offsets = [0, 0], sizes = [1, 256], strides = [1, 1]} : vector<1x384xf32> to vector<1x256xf32>
    %504 = arith.addf %502, %503 : vector<1x256xf32>
    %505 = arith.negf %504 : vector<1x256xf32>
    %506 = math.exp %505 : vector<1x256xf32>
    %cst_251 = arith.constant 1.000000e+00 : f32
    %507 = vector.broadcast %cst_251 : f32 to vector<1x256xf32>
    %508 = arith.addf %507, %506 : vector<1x256xf32>
    %509 = arith.divf %507, %508 : vector<1x256xf32>
    %510 = vector.extract_strided_slice %509 {offsets = [0, 0], sizes = [1, 128], strides = [1, 1]} : vector<1x256xf32> to vector<1x128xf32>
    %511 = vector.extract_strided_slice %509 {offsets = [0, 128], sizes = [1, 128], strides = [1, 1]} : vector<1x256xf32> to vector<1x128xf32>
    %512 = vector.extract_strided_slice %501 {offsets = [0, 256], sizes = [1, 128], strides = [1, 1]} : vector<1x384xf32> to vector<1x128xf32>
    %513 = vector.extract_strided_slice %500 {offsets = [0, 256], sizes = [1, 128], strides = [1, 1]} : vector<1x384xf32> to vector<1x128xf32>
    %c0_252 = arith.constant 0 : index
    %c0_253 = arith.constant 0 : index
    %514 = vector.load %arg12[%c0_252, %c0_253] : memref<1x128xf32, #tpu.memory_space<vmem>>, vector<1x128xf32>
    %515 = arith.addf %513, %514 : vector<1x128xf32>
    %516 = arith.mulf %510, %515 : vector<1x128xf32>
    %517 = arith.addf %512, %516 : vector<1x128xf32>
    %518 = math.tanh %517 : vector<1x128xf32>
    %cst_254 = arith.constant 1.000000e+00 : f32
    %519 = vector.broadcast %cst_254 : f32 to vector<1x128xf32>
    %520 = arith.subf %519, %511 : vector<1x128xf32>
    %521 = arith.mulf %520, %518 : vector<1x128xf32>
    %522 = arith.mulf %511, %444 : vector<1x128xf32>
    %523 = arith.addf %521, %522 : vector<1x128xf32>
    %524 = arith.truncf %496 : vector<1x128xf32> to vector<1x128xbf16>
    %c0_255 = arith.constant 0 : index
    %c0_256 = arith.constant 0 : index
    %525 = vector.load %arg18[%c0_255, %c0_256] : memref<128x384xbf16, #tpu.memory_space<vmem>>, vector<128x384xbf16>
    %cst_257 = arith.constant dense<0.000000e+00> : vector<1x384xf32>
    %526 = tpu.matmul %524, %525, %cst_257 {dimension_numbers = #tpu.dot_dimension_numbers<[1], [0], [0], [1], [0, 0, 1, 1], [], []>} : vector<1x128xbf16>, vector<128x384xbf16>, vector<1x384xf32> -> vector<1x384xf32>
    %c5_258 = arith.constant 5 : index
    %c0_259 = arith.constant 0 : index
    %527 = vector.load %arg37[%c5_258, %c0_259] : memref<7x384xf32, #tpu.memory_space<vmem>>, vector<1x384xf32>
    %528 = vector.extract_strided_slice %527 {offsets = [0, 0], sizes = [1, 256], strides = [1, 1]} : vector<1x384xf32> to vector<1x256xf32>
    %529 = vector.extract_strided_slice %526 {offsets = [0, 0], sizes = [1, 256], strides = [1, 1]} : vector<1x384xf32> to vector<1x256xf32>
    %530 = arith.addf %528, %529 : vector<1x256xf32>
    %531 = arith.negf %530 : vector<1x256xf32>
    %532 = math.exp %531 : vector<1x256xf32>
    %cst_260 = arith.constant 1.000000e+00 : f32
    %533 = vector.broadcast %cst_260 : f32 to vector<1x256xf32>
    %534 = arith.addf %533, %532 : vector<1x256xf32>
    %535 = arith.divf %533, %534 : vector<1x256xf32>
    %536 = vector.extract_strided_slice %535 {offsets = [0, 0], sizes = [1, 128], strides = [1, 1]} : vector<1x256xf32> to vector<1x128xf32>
    %537 = vector.extract_strided_slice %535 {offsets = [0, 128], sizes = [1, 128], strides = [1, 1]} : vector<1x256xf32> to vector<1x128xf32>
    %538 = vector.extract_strided_slice %527 {offsets = [0, 256], sizes = [1, 128], strides = [1, 1]} : vector<1x384xf32> to vector<1x128xf32>
    %539 = vector.extract_strided_slice %526 {offsets = [0, 256], sizes = [1, 128], strides = [1, 1]} : vector<1x384xf32> to vector<1x128xf32>
    %c0_261 = arith.constant 0 : index
    %c0_262 = arith.constant 0 : index
    %540 = vector.load %arg20[%c0_261, %c0_262] : memref<1x128xf32, #tpu.memory_space<vmem>>, vector<1x128xf32>
    %541 = arith.addf %539, %540 : vector<1x128xf32>
    %542 = arith.mulf %536, %541 : vector<1x128xf32>
    %543 = arith.addf %538, %542 : vector<1x128xf32>
    %544 = math.tanh %543 : vector<1x128xf32>
    %cst_263 = arith.constant 1.000000e+00 : f32
    %545 = vector.broadcast %cst_263 : f32 to vector<1x128xf32>
    %546 = arith.subf %545, %537 : vector<1x128xf32>
    %547 = arith.mulf %546, %544 : vector<1x128xf32>
    %548 = arith.mulf %537, %496 : vector<1x128xf32>
    %549 = arith.addf %547, %548 : vector<1x128xf32>
    %c5_264 = arith.constant 5 : index
    %c0_265 = arith.constant 0 : index
    %550 = vector.load %arg38[%c5_264, %c0_265] : memref<7x128xf32, #tpu.memory_space<vmem>>, vector<1x128xf32>
    tpu.vector_store %arg38[%c5_264, %c0_265], %549 {strides = array<i32>} : memref<7x128xf32, #tpu.memory_space<vmem>>, vector<1x128xf32>,
    %551 = arith.truncf %523 : vector<1x128xf32> to vector<1x128xbf16>
    %c0_266 = arith.constant 0 : index
    %c0_267 = arith.constant 0 : index
    %552 = vector.load %arg10[%c0_266, %c0_267] : memref<128x384xbf16, #tpu.memory_space<vmem>>, vector<128x384xbf16>
    %cst_268 = arith.constant dense<0.000000e+00> : vector<1x384xf32>
    %553 = tpu.matmul %551, %552, %cst_268 {dimension_numbers = #tpu.dot_dimension_numbers<[1], [0], [0], [1], [0, 0, 1, 1], [], []>} : vector<1x128xbf16>, vector<128x384xbf16>, vector<1x384xf32> -> vector<1x384xf32>
    %c6_269 = arith.constant 6 : index
    %c0_270 = arith.constant 0 : index
    %554 = vector.load %arg35[%c6_269, %c0_270] : memref<7x384xf32, #tpu.memory_space<vmem>>, vector<1x384xf32>
    %555 = vector.extract_strided_slice %554 {offsets = [0, 0], sizes = [1, 256], strides = [1, 1]} : vector<1x384xf32> to vector<1x256xf32>
    %556 = vector.extract_strided_slice %553 {offsets = [0, 0], sizes = [1, 256], strides = [1, 1]} : vector<1x384xf32> to vector<1x256xf32>
    %557 = arith.addf %555, %556 : vector<1x256xf32>
    %558 = arith.negf %557 : vector<1x256xf32>
    %559 = math.exp %558 : vector<1x256xf32>
    %cst_271 = arith.constant 1.000000e+00 : f32
    %560 = vector.broadcast %cst_271 : f32 to vector<1x256xf32>
    %561 = arith.addf %560, %559 : vector<1x256xf32>
    %562 = arith.divf %560, %561 : vector<1x256xf32>
    %563 = vector.extract_strided_slice %562 {offsets = [0, 0], sizes = [1, 128], strides = [1, 1]} : vector<1x256xf32> to vector<1x128xf32>
    %564 = vector.extract_strided_slice %562 {offsets = [0, 128], sizes = [1, 128], strides = [1, 1]} : vector<1x256xf32> to vector<1x128xf32>
    %565 = vector.extract_strided_slice %554 {offsets = [0, 256], sizes = [1, 128], strides = [1, 1]} : vector<1x384xf32> to vector<1x128xf32>
    %566 = vector.extract_strided_slice %553 {offsets = [0, 256], sizes = [1, 128], strides = [1, 1]} : vector<1x384xf32> to vector<1x128xf32>
    %c0_272 = arith.constant 0 : index
    %c0_273 = arith.constant 0 : index
    %567 = vector.load %arg12[%c0_272, %c0_273] : memref<1x128xf32, #tpu.memory_space<vmem>>, vector<1x128xf32>
    %568 = arith.addf %566, %567 : vector<1x128xf32>
    %569 = arith.mulf %563, %568 : vector<1x128xf32>
    %570 = arith.addf %565, %569 : vector<1x128xf32>
    %571 = math.tanh %570 : vector<1x128xf32>
    %cst_274 = arith.constant 1.000000e+00 : f32
    %572 = vector.broadcast %cst_274 : f32 to vector<1x128xf32>
    %573 = arith.subf %572, %564 : vector<1x128xf32>
    %574 = arith.mulf %573, %571 : vector<1x128xf32>
    %575 = arith.mulf %564, %523 : vector<1x128xf32>
    %576 = arith.addf %574, %575 : vector<1x128xf32>
    %577 = arith.truncf %549 : vector<1x128xf32> to vector<1x128xbf16>
    %c0_275 = arith.constant 0 : index
    %c0_276 = arith.constant 0 : index
    %578 = vector.load %arg18[%c0_275, %c0_276] : memref<128x384xbf16, #tpu.memory_space<vmem>>, vector<128x384xbf16>
    %cst_277 = arith.constant dense<0.000000e+00> : vector<1x384xf32>
    %579 = tpu.matmul %577, %578, %cst_277 {dimension_numbers = #tpu.dot_dimension_numbers<[1], [0], [0], [1], [0, 0, 1, 1], [], []>} : vector<1x128xbf16>, vector<128x384xbf16>, vector<1x384xf32> -> vector<1x384xf32>
    %c6_278 = arith.constant 6 : index
    %c0_279 = arith.constant 0 : index
    %580 = vector.load %arg37[%c6_278, %c0_279] : memref<7x384xf32, #tpu.memory_space<vmem>>, vector<1x384xf32>
    %581 = vector.extract_strided_slice %580 {offsets = [0, 0], sizes = [1, 256], strides = [1, 1]} : vector<1x384xf32> to vector<1x256xf32>
    %582 = vector.extract_strided_slice %579 {offsets = [0, 0], sizes = [1, 256], strides = [1, 1]} : vector<1x384xf32> to vector<1x256xf32>
    %583 = arith.addf %581, %582 : vector<1x256xf32>
    %584 = arith.negf %583 : vector<1x256xf32>
    %585 = math.exp %584 : vector<1x256xf32>
    %cst_280 = arith.constant 1.000000e+00 : f32
    %586 = vector.broadcast %cst_280 : f32 to vector<1x256xf32>
    %587 = arith.addf %586, %585 : vector<1x256xf32>
    %588 = arith.divf %586, %587 : vector<1x256xf32>
    %589 = vector.extract_strided_slice %588 {offsets = [0, 0], sizes = [1, 128], strides = [1, 1]} : vector<1x256xf32> to vector<1x128xf32>
    %590 = vector.extract_strided_slice %588 {offsets = [0, 128], sizes = [1, 128], strides = [1, 1]} : vector<1x256xf32> to vector<1x128xf32>
    %591 = vector.extract_strided_slice %580 {offsets = [0, 256], sizes = [1, 128], strides = [1, 1]} : vector<1x384xf32> to vector<1x128xf32>
    %592 = vector.extract_strided_slice %579 {offsets = [0, 256], sizes = [1, 128], strides = [1, 1]} : vector<1x384xf32> to vector<1x128xf32>
    %c0_281 = arith.constant 0 : index
    %c0_282 = arith.constant 0 : index
    %593 = vector.load %arg20[%c0_281, %c0_282] : memref<1x128xf32, #tpu.memory_space<vmem>>, vector<1x128xf32>
    %594 = arith.addf %592, %593 : vector<1x128xf32>
    %595 = arith.mulf %589, %594 : vector<1x128xf32>
    %596 = arith.addf %591, %595 : vector<1x128xf32>
    %597 = math.tanh %596 : vector<1x128xf32>
    %cst_283 = arith.constant 1.000000e+00 : f32
    %598 = vector.broadcast %cst_283 : f32 to vector<1x128xf32>
    %599 = arith.subf %598, %590 : vector<1x128xf32>
    %600 = arith.mulf %599, %597 : vector<1x128xf32>
    %601 = arith.mulf %590, %549 : vector<1x128xf32>
    %602 = arith.addf %600, %601 : vector<1x128xf32>
    %c6_284 = arith.constant 6 : index
    %c0_285 = arith.constant 0 : index
    %603 = vector.load %arg38[%c6_284, %c0_285] : memref<7x128xf32, #tpu.memory_space<vmem>>, vector<1x128xf32>
    tpu.vector_store %arg38[%c6_284, %c0_285], %602 {strides = array<i32>} : memref<7x128xf32, #tpu.memory_space<vmem>>, vector<1x128xf32>,
    %c0_286 = arith.constant 0 : index
    %c0_287 = arith.constant 0 : index
    %604 = vector.load %arg29[%c0_286, %c0_287] : memref<1x128xf32, #tpu.memory_space<vmem>>, vector<1x128xf32>
    tpu.vector_store %arg29[%c0_286, %c0_287], %576 {strides = array<i32>} : memref<1x128xf32, #tpu.memory_space<vmem>>, vector<1x128xf32>,
    %c0_288 = arith.constant 0 : index
    %c0_289 = arith.constant 0 : index
    %605 = vector.load %arg30[%c0_288, %c0_289] : memref<1x128xf32, #tpu.memory_space<vmem>>, vector<1x128xf32>
    tpu.vector_store %arg30[%c0_288, %c0_289], %470 {strides = array<i32>} : memref<1x128xf32, #tpu.memory_space<vmem>>, vector<1x128xf32>,
    %c0_290 = arith.constant 0 : index
    %c0_291 = arith.constant 0 : index
    %606 = vector.load %arg31[%c0_290, %c0_291] : memref<1x128xf32, #tpu.memory_space<vmem>>, vector<1x128xf32>
    tpu.vector_store %arg31[%c0_290, %c0_291], %602 {strides = array<i32>} : memref<1x128xf32, #tpu.memory_space<vmem>>, vector<1x128xf32>,
    %607 = tpu.concatenate %576, %470 in 1 : vector<1x128xf32>, vector<1x128xf32> -> vector<1x256xf32>
    %cst_292 = arith.constant 0.000000e+00 : f32
    %608 = vector.broadcast %cst_292 : f32 to vector<1x256xf32>
    %609 = arith.maximumf %607, %608 : vector<1x256xf32>
    %610 = arith.truncf %609 : vector<1x256xf32> to vector<1x256xbf16>
    %c0_293 = arith.constant 0 : index
    %c0_294 = arith.constant 0 : index
    %611 = vector.load %arg21[%c0_293, %c0_294] : memref<256x128xbf16, #tpu.memory_space<vmem>>, vector<256x128xbf16>
    %cst_295 = arith.constant dense<0.000000e+00> : vector<1x128xf32>
    %612 = tpu.matmul %610, %611, %cst_295 {dimension_numbers = #tpu.dot_dimension_numbers<[1], [0], [0], [1], [0, 0, 1, 1], [], []>} : vector<1x256xbf16>, vector<256x128xbf16>, vector<1x128xf32> -> vector<1x128xf32>
    %c0_296 = arith.constant 0 : index
    %c0_297 = arith.constant 0 : index
    %613 = vector.load %arg22[%c0_296, %c0_297] : memref<1x128xf32, #tpu.memory_space<vmem>>, vector<1x128xf32>
    %614 = arith.addf %612, %613 : vector<1x128xf32>
    %cst_298 = arith.constant 0.000000e+00 : f32
    %615 = vector.broadcast %cst_298 : f32 to vector<1x128xf32>
    %616 = arith.maximumf %614, %615 : vector<1x128xf32>
    %617 = arith.truncf %616 : vector<1x128xf32> to vector<1x128xbf16>
    %c0_299 = arith.constant 0 : index
    %c0_300 = arith.constant 0 : index
    %618 = vector.load %arg23[%c0_299, %c0_300] : memref<128x128xbf16, #tpu.memory_space<vmem>>, vector<128x128xbf16>
    %cst_301 = arith.constant dense<0.000000e+00> : vector<1x128xf32>
    %619 = tpu.matmul %617, %618, %cst_301 {dimension_numbers = #tpu.dot_dimension_numbers<[1], [0], [0], [1], [0, 0, 1, 1], [], []>} : vector<1x128xbf16>, vector<128x128xbf16>, vector<1x128xf32> -> vector<1x128xf32>
    %c0_302 = arith.constant 0 : index
    %c0_303 = arith.constant 0 : index
    %620 = vector.load %arg24[%c0_302, %c0_303] : memref<1x128xf32, #tpu.memory_space<vmem>>, vector<1x128xf32>
    %621 = arith.addf %619, %620 : vector<1x128xf32>
    %c0_304 = arith.constant 0 : index
    %c0_305 = arith.constant 0 : index
    %622 = vector.load %arg27[%c0_304, %c0_305] : memref<1x128xf32, #tpu.memory_space<vmem>>, vector<1x128xf32>
    tpu.vector_store %arg27[%c0_304, %c0_305], %621 {strides = array<i32>} : memref<1x128xf32, #tpu.memory_space<vmem>>, vector<1x128xf32>,
    %c0_306 = arith.constant 0 : index
    %c0_307 = arith.constant 0 : index
    %623 = vector.load %arg38[%c0_306, %c0_307] : memref<7x128xf32, #tpu.memory_space<vmem>>, vector<7x128xf32>
    %624 = arith.truncf %623 : vector<7x128xf32> to vector<7x128xbf16>
    %c0_308 = arith.constant 0 : index
    %c0_309 = arith.constant 0 : index
    %625 = vector.load %arg25[%c0_308, %c0_309] : memref<128x128xbf16, #tpu.memory_space<vmem>>, vector<128x128xbf16>
    %cst_310 = arith.constant dense<0.000000e+00> : vector<7x128xf32>
    %626 = tpu.matmul %624, %625, %cst_310 {dimension_numbers = #tpu.dot_dimension_numbers<[1], [0], [0], [1], [0, 0, 1, 1], [], []>} : vector<7x128xbf16>, vector<128x128xbf16>, vector<7x128xf32> -> vector<7x128xf32>
    %c0_311 = arith.constant 0 : index
    %c0_312 = arith.constant 0 : index
    %627 = vector.load %arg26[%c0_311, %c0_312] : memref<1x128xf32, #tpu.memory_space<vmem>>, vector<1x128xf32>
    %628 = vector.broadcast %627 : vector<1x128xf32> to vector<7x128xf32>
    %629 = arith.addf %626, %628 : vector<7x128xf32>
    %c0_313 = arith.constant 0 : index
    %c0_314 = arith.constant 0 : index
    %630 = vector.load %arg28[%c0_313, %c0_314] : memref<7x128xf32, #tpu.memory_space<vmem>>, vector<7x128xf32>
    tpu.vector_store %arg28[%c0_313, %c0_314], %629 {strides = array<i32>} : memref<7x128xf32, #tpu.memory_space<vmem>>, vector<7x128xf32>,
    return
  }
}

</mosaic_0001>

<llo_original>
// kernel: tpu_custom_call.1
$region0: #{tpu_custom_call.1}
  #allocation0 [shape = 'u32[]', space=smem, size = 0x4, offset = 0x4, fixed_abs, tag = 'smem constant byte address 0x4 - core index']
  #allocation1 [shape = 'u32[144,128]{1,0:T(1,128)}', space=vmem, size = 0x12000, scoped, tag = 'internal scratch']
  #allocation2 [shape = 'f32[7,32]{1,0:T(8,128)}', space=vmem, size = 0x1000, scoped, tag = 'scratch operand']
  #allocation3 [shape = 'f32[5,32]{1,0:T(8,128)}', space=vmem, size = 0x1000, scoped, tag = 'scratch operand']
  #allocation4 [shape = 'f32[7,32]{1,0:T(8,128)}', space=vmem, size = 0x1000, scoped, tag = 'scratch operand']
  #allocation5 [shape = 'f32[7,384]{1,0:T(8,128)}', space=vmem, size = 0x3000, scoped, tag = 'scratch operand']
  #allocation6 [shape = 'f32[5,384]{1,0:T(8,128)}', space=vmem, size = 0x3000, scoped, tag = 'scratch operand']
  #allocation7 [shape = 'f32[7,384]{1,0:T(8,128)}', space=vmem, size = 0x3000, scoped, tag = 'scratch operand']
  #allocation8 [shape = 'f32[7,128]{1,0:T(8,128)}', space=vmem, size = 0x1000, scoped, tag = 'scratch operand']
  %s0 = inlined_call_operand.smem [shape: u32[32], index: -1, kind: input, shape index: {}]
  %s1 = sld [smem:[%s0]]
  %s2 = scalar_lea.smem %s0, 1
  %s3 = sld [smem:[%s2]]
  %s4 = scalar_lea.smem %s0, 2
  %s5 = sld [smem:[%s4]]
  %s6 = scalar_lea.smem %s0, 3
  %s7 = sld [smem:[%s6]]
  %s8 = scalar_lea.smem %s0, 4
  %s9 = sld [smem:[%s8]]
  %s10 = scalar_lea.smem %s0, 5
  %s11 = sld [smem:[%s10]]
  %s12 = scalar_lea.smem %s0, 6
  %s13 = sld [smem:[%s12]]
  %s14 = scalar_lea.smem %s0, 7
  %s15 = sld [smem:[%s14]]
  %s16 = scalar_lea.smem %s0, 8
  %s17 = sld [smem:[%s16]]
  %s18 = scalar_lea.smem %s0, 9
  %s19 = sld [smem:[%s18]]
  %s20 = scalar_lea.smem %s0, 10
  %s21 = sld [smem:[%s20]]
  %s22 = scalar_lea.smem %s0, 11
  %s23 = sld [smem:[%s22]]
  %s24 = scalar_lea.smem %s0, 12
  %s25 = sld [smem:[%s24]]
  %s26 = scalar_lea.smem %s0, 13
  %s27 = sld [smem:[%s26]]
  %s28 = scalar_lea.smem %s0, 14
  %s29 = sld [smem:[%s28]]
  %s30 = scalar_lea.smem %s0, 15
  %s31 = sld [smem:[%s30]]
  %s32 = scalar_lea.smem %s0, 16
  %s33 = sld [smem:[%s32]]
  %s34 = scalar_lea.smem %s0, 17
  %s35 = sld [smem:[%s34]]
  %s36 = scalar_lea.smem %s0, 18
  %s37 = sld [smem:[%s36]]
  %s38 = scalar_lea.smem %s0, 19
  %s39 = sld [smem:[%s38]]
  %s40 = scalar_lea.smem %s0, 20
  %s41 = sld [smem:[%s40]]
  %s42 = scalar_lea.smem %s0, 21
  %s43 = sld [smem:[%s42]]
  %s44 = scalar_lea.smem %s0, 22
  %s45 = sld [smem:[%s44]]
  %s46 = scalar_lea.smem %s0, 23
  %s47 = sld [smem:[%s46]]
  %s48 = scalar_lea.smem %s0, 24
  %s49 = sld [smem:[%s48]]
  %s50 = scalar_lea.smem %s0, 25
  %s51 = sld [smem:[%s50]]
  %s52 = scalar_lea.smem %s0, 26
  %s53 = sld [smem:[%s52]]
  %s54 = scalar_lea.smem %s0, 27
  %s55 = sld [smem:[%s54]]
  %s56 = scalar_lea.smem %s0, 28
  %s57 = sld [smem:[%s56]]
  %s58 = scalar_lea.smem %s0, 29
  %s59 = sld [smem:[%s58]]
  %s60 = scalar_lea.smem %s0, 30
  %s61 = sld [smem:[%s60]]
  %s62 = scalar_lea.smem %s0, 31
  %s63 = sld [smem:[%s62]]
  %64 = xla_tuple %s55, %s57, %s59, %s61, %s63
  %s65 = sld [smem:[#allocation0]]
  $region210: #{tpu_custom_call.1} parent=0
    _
  %s67 = ssub.s32 1, %s65
  %s68 = scalar_select 0, %s67, %s65
  $region1: #{tpu_custom_call.1} parent=0
    #allocation9 [shape = 'u8[512]{0}', space=smem, size = 0x200, scoped, tag = 'input window, operand 0, single buffered']
    #allocation10 [shape = 's32[1]{0}', space=sflag, size = 0x4, scoped, tag = 'scoped memory for tpu_custom_call.1']
    #allocation11 [shape = 's32[1]{0}', space=sflag, size = 0x4, scoped, tag = 'scoped memory for tpu_custom_call.1']
    #allocation12 [shape = 's32[1]{0}', space=sflag, size = 0x4, scoped, tag = 'scoped memory for tpu_custom_call.1']
    #allocation13 [shape = 'u8[512]{0}', space=smem, size = 0x200, scoped, tag = 'input window, operand 1, single buffered']
    #allocation14 [shape = 's32[1]{0}', space=sflag, size = 0x4, scoped, tag = 'scoped memory for tpu_custom_call.1']
    #allocation15 [shape = 'u8[512]{0}', space=smem, size = 0x200, scoped, tag = 'input window, operand 2, single buffered']
    #allocation16 [shape = 'u8[16384]{0}', space=vmem, size = 0x4000, scoped, tag = 'input window, operand 5, single buffered']
    #allocation17 [shape = 'u8[512]{0}', space=vmem, size = 0x400, scoped, tag = 'input window, operand 6, single buffered']
    #allocation18 [shape = 's32[1]{0}', space=sflag, size = 0x4, scoped, tag = 'scoped memory for tpu_custom_call.1']
    #allocation19 [shape = 'u8[512]{0}', space=vmem, size = 0x400, scoped, tag = 'input window, operand 7, single buffered']
    #allocation20 [shape = 'u8[512]{0}', space=vmem, size = 0x400, scoped, tag = 'input window, operand 8, single buffered']
    #allocation21 [shape = 's32[1]{0}', space=sflag, size = 0x4, scoped, tag = 'scoped memory for tpu_custom_call.1']
    #allocation22 [shape = 'u8[24576]{0}', space=vmem, size = 0x6000, scoped, tag = 'input window, operand 9, single buffered']
    #allocation23 [shape = 'u8[24576]{0}', space=vmem, size = 0x6000, scoped, tag = 'input window, operand 13, single buffered']
    #allocation24 [shape = 's32[1]{0}', space=sflag, size = 0x4, scoped, tag = 'scoped memory for tpu_custom_call.1']
    #allocation25 [shape = 'u8[98304]{0}', space=vmem, size = 0x18000, scoped, tag = 'input window, operand 14, single buffered']
    #allocation26 [shape = 'u8[24576]{0}', space=vmem, size = 0x6000, scoped, tag = 'input window, operand 17, single buffered']
    #allocation27 [shape = 's32[1]{0}', space=sflag, size = 0x4, scoped, tag = 'scoped memory for tpu_custom_call.1']
    #allocation28 [shape = 'u8[98304]{0}', space=vmem, size = 0x18000, scoped, tag = 'input window, operand 18, single buffered']
    #allocation29 [shape = 'u8[65536]{0}', space=vmem, size = 0x10000, scoped, tag = 'input window, operand 21, single buffered']
    #allocation30 [shape = 's32[1]{0}', space=sflag, size = 0x4, scoped, tag = 'scoped memory for tpu_custom_call.1']
    #allocation31 [shape = 'u8[32768]{0}', space=vmem, size = 0x8000, scoped, tag = 'input window, operand 23, single buffered']
    #allocation32 [shape = 'u8[32768]{0}', space=vmem, size = 0x8000, scoped, tag = 'input window, operand 25, single buffered']
    #allocation33 [shape = 's32[1]{0}', space=sflag, size = 0x4, scoped, tag = 'scoped memory for tpu_custom_call.1']
    #allocation34 [shape = 'u8[512]{0}', space=vmem, size = 0x400, scoped, tag = 'output window, operand 0, single buffered']
    #allocation35 [shape = 'u8[4096]{0}', space=vmem, size = 0x1000, scoped, tag = 'output window, operand 1, single buffered']
    #allocation36 [shape = 's32[1]{0}', space=sflag, size = 0x4, scoped, tag = 'scoped memory for tpu_custom_call.1']
    #allocation37 [shape = 'u8[512]{0}', space=vmem, size = 0x400, scoped, tag = 'output window, operand 2, single buffered']
    #allocation38 [shape = 'u8[512]{0}', space=vmem, size = 0x400, scoped, tag = 'output window, operand 3, single buffered']
    #allocation39 [shape = 's32[1]{0}', space=sflag, size = 0x4, scoped, tag = 'scoped memory for tpu_custom_call.1']
    #allocation40 [shape = 'u8[512]{0}', space=vmem, size = 0x400, scoped, tag = 'output window, operand 4, single buffered']
    %69 = vsyncpa [#allocation12], 0
    %70 = vsyncpa [#allocation14], 0
    %71 = vsyncpa [#allocation10], 0
    %72 = vsyncpa [#allocation18], 0
    %73 = vsyncpa [#allocation21], 0
    %74 = vsyncpa [#allocation24], 0
    %75 = vsyncpa [#allocation27], 0
    %76 = vsyncpa [#allocation30], 0
    %77 = vsyncpa [#allocation33], 0
    %78 = vsyncpa [#allocation11], 0
    %79 = vsyncpa [#allocation36], 0
    %80 = vsyncpa [#allocation39], 0
    // Predicated region
    $region2: #{tpu_custom_call.1} parent=1 // pred_check
      _
    $region3: #{tpu_custom_call.1} parent=1 // pred_check_branch
      %82 = sbr.rel (0) target = $region5
    $region4: #{tpu_custom_call.1} parent=1 // pred_region
      %s84 = ssub.s32 16, 16
      %85 = vsyncadd [#allocation12], %s84
      %88 = dma.hbm_to_smem %s1, 16, [#allocation9], [#allocation12]
    $region5: #{tpu_custom_call.1} parent=1 // pred_fallthru
      _
    // Predicated region
    $region6: #{tpu_custom_call.1} parent=1 // pred_check
      _
    $region7: #{tpu_custom_call.1} parent=1 // pred_check_branch
      %90 = sbr.rel (0) target = $region9
    $region8: #{tpu_custom_call.1} parent=1 // pred_region
      %s92 = ssub.s32 16, 16
      %93 = vsyncadd [#allocation14], %s92
      %96 = dma.hbm_to_smem %s3, 16, [#allocation13], [#allocation14]
    $region9: #{tpu_custom_call.1} parent=1 // pred_fallthru
      _
    // Predicated region
    $region10: #{tpu_custom_call.1} parent=1 // pred_check
      _
    $region11: #{tpu_custom_call.1} parent=1 // pred_check_branch
      %98 = sbr.rel (0) target = $region13
    $region12: #{tpu_custom_call.1} parent=1 // pred_region
      %s100 = ssub.s32 16, 16
      %101 = vsyncadd [#allocation14], %s100
      %104 = dma.hbm_to_smem %s5, 16, [#allocation15], [#allocation14]
    $region13: #{tpu_custom_call.1} parent=1 // pred_fallthru
      _
    // Predicated region
    $region14: #{tpu_custom_call.1} parent=1 // pred_check
      _
    $region15: #{tpu_custom_call.1} parent=1 // pred_check_branch
      %106 = sbr.rel (0) target = $region17
    $region16: #{tpu_custom_call.1} parent=1 // pred_region
      _
    $region17: #{tpu_custom_call.1} parent=1 // pred_fallthru
      _
    // Predicated region
    $region18: #{tpu_custom_call.1} parent=1 // pred_check
      _
    $region19: #{tpu_custom_call.1} parent=1 // pred_check_branch
      %108 = sbr.rel (0) target = $region21
    $region20: #{tpu_custom_call.1} parent=1 // pred_region
      _
    $region21: #{tpu_custom_call.1} parent=1 // pred_fallthru
      _
    // Predicated region
    $region22: #{tpu_custom_call.1} parent=1 // pred_check
      _
    $region23: #{tpu_custom_call.1} parent=1 // pred_check_branch
      %110 = sbr.rel (0) target = $region25
    $region24: #{tpu_custom_call.1} parent=1 // pred_region
      %s112 = ssub.s32 512, 512
      %113 = vsyncadd [#allocation10], %s112
      %s114 = sshll.u32 [#allocation16], 4
      %s115 = int_to_ptr.vmem [resolvable:$true] %s114
      %120 = dma.hbm_to_vmem [thread:$0]  %s11, 512, %s115, [#allocation10], 128, 128, 8
    $region25: #{tpu_custom_call.1} parent=1 // pred_fallthru
      _
    // Predicated region
    $region26: #{tpu_custom_call.1} parent=1 // pred_check
      _
    $region27: #{tpu_custom_call.1} parent=1 // pred_check_branch
      %122 = sbr.rel (0) target = $region29
    $region28: #{tpu_custom_call.1} parent=1 // pred_region
      %s124 = ssub.s32 16, 16
      %125 = vsyncadd [#allocation18], %s124
      %s127 = sshll.u32 [#allocation17], 4
      %s128 = int_to_ptr.vmem [resolvable:$true] %s127
      %130 = dma.hbm_to_vmem [thread:$0]  %s13, 16, %s128, [#allocation18]
    $region29: #{tpu_custom_call.1} parent=1 // pred_fallthru
      _
    // Predicated region
    $region30: #{tpu_custom_call.1} parent=1 // pred_check
      _
    $region31: #{tpu_custom_call.1} parent=1 // pred_check_branch
      %132 = sbr.rel (0) target = $region33
    $region32: #{tpu_custom_call.1} parent=1 // pred_region
      %s134 = ssub.s32 16, 16
      %135 = vsyncadd [#allocation18], %s134
      %s137 = sshll.u32 [#allocation19], 4
      %s138 = int_to_ptr.vmem [resolvable:$true] %s137
      %140 = dma.hbm_to_vmem [thread:$0]  %s15, 16, %s138, [#allocation18]
    $region33: #{tpu_custom_call.1} parent=1 // pred_fallthru
      _
    // Predicated region
    $region34: #{tpu_custom_call.1} parent=1 // pred_check
      _
    $region35: #{tpu_custom_call.1} parent=1 // pred_check_branch
      %142 = sbr.rel (0) target = $region37
    $region36: #{tpu_custom_call.1} parent=1 // pred_region
      %s144 = ssub.s32 16, 16
      %145 = vsyncadd [#allocation21], %s144
      %s147 = sshll.u32 [#allocation20], 4
      %s148 = int_to_ptr.vmem [resolvable:$true] %s147
      %150 = dma.hbm_to_vmem [thread:$0]  %s17, 16, %s148, [#allocation21]
    $region37: #{tpu_custom_call.1} parent=1 // pred_fallthru
      _
    // Predicated region
    $region38: #{tpu_custom_call.1} parent=1 // pred_check
      _
    $region39: #{tpu_custom_call.1} parent=1 // pred_check_branch
      %152 = sbr.rel (0) target = $region41
    $region40: #{tpu_custom_call.1} parent=1 // pred_region
      %s154 = ssub.s32 768, 768
      %155 = vsyncadd [#allocation21], %s154
      %s156 = sshll.u32 [#allocation22], 4
      %s157 = int_to_ptr.vmem [resolvable:$true] %s156
      %162 = dma.hbm_to_vmem [thread:$0]  %s19, 768, %s157, [#allocation21], 192, 192, 12
    $region41: #{tpu_custom_call.1} parent=1 // pred_fallthru
      _
    // Predicated region
    $region42: #{tpu_custom_call.1} parent=1 // pred_check
      _
    $region43: #{tpu_custom_call.1} parent=1 // pred_check_branch
      %164 = sbr.rel (0) target = $region45
    $region44: #{tpu_custom_call.1} parent=1 // pred_region
      _
    $region45: #{tpu_custom_call.1} parent=1 // pred_fallthru
      _
    // Predicated region
    $region46: #{tpu_custom_call.1} parent=1 // pred_check
      _
    $region47: #{tpu_custom_call.1} parent=1 // pred_check_branch
      %166 = sbr.rel (0) target = $region49
    $region48: #{tpu_custom_call.1} parent=1 // pred_region
      _
    $region49: #{tpu_custom_call.1} parent=1 // pred_fallthru
      _
    // Predicated region
    $region50: #{tpu_custom_call.1} parent=1 // pred_check
      _
    $region51: #{tpu_custom_call.1} parent=1 // pred_check_branch
      %168 = sbr.rel (0) target = $region53
    $region52: #{tpu_custom_call.1} parent=1 // pred_region
      _
    $region53: #{tpu_custom_call.1} parent=1 // pred_fallthru
      _
    // Predicated region
    $region54: #{tpu_custom_call.1} parent=1 // pred_check
      _
    $region55: #{tpu_custom_call.1} parent=1 // pred_check_branch
      %170 = sbr.rel (0) target = $region57
    $region56: #{tpu_custom_call.1} parent=1 // pred_region
      %s172 = ssub.s32 768, 768
      %173 = vsyncadd [#allocation24], %s172
      %s174 = sshll.u32 [#allocation23], 4
      %s175 = int_to_ptr.vmem [resolvable:$true] %s174
      %180 = dma.hbm_to_vmem [thread:$0]  %s27, 768, %s175, [#allocation24], 192, 192, 12
    $region57: #{tpu_custom_call.1} parent=1 // pred_fallthru
      _
    // Predicated region
    $region58: #{tpu_custom_call.1} parent=1 // pred_check
      _
    $region59: #{tpu_custom_call.1} parent=1 // pred_check_branch
      %182 = sbr.rel (0) target = $region61
    $region60: #{tpu_custom_call.1} parent=1 // pred_region
      %s184 = ssub.s32 3072, 3072
      %185 = vsyncadd [#allocation24], %s184
      %s186 = sshll.u32 [#allocation25], 4
      %s187 = int_to_ptr.vmem [resolvable:$true] %s186
      %192 = dma.hbm_to_vmem [thread:$0]  %s29, 3072, %s187, [#allocation24], 192, 192, 12
    $region61: #{tpu_custom_call.1} parent=1 // pred_fallthru
      _
    // Predicated region
    $region62: #{tpu_custom_call.1} parent=1 // pred_check
      _
    $region63: #{tpu_custom_call.1} parent=1 // pred_check_branch
      %194 = sbr.rel (0) target = $region65
    $region64: #{tpu_custom_call.1} parent=1 // pred_region
      _
    $region65: #{tpu_custom_call.1} parent=1 // pred_fallthru
      _
    // Predicated region
    $region66: #{tpu_custom_call.1} parent=1 // pred_check
      _
    $region67: #{tpu_custom_call.1} parent=1 // pred_check_branch
      %196 = sbr.rel (0) target = $region69
    $region68: #{tpu_custom_call.1} parent=1 // pred_region
      _
    $region69: #{tpu_custom_call.1} parent=1 // pred_fallthru
      _
    // Predicated region
    $region70: #{tpu_custom_call.1} parent=1 // pred_check
      _
    $region71: #{tpu_custom_call.1} parent=1 // pred_check_branch
      %198 = sbr.rel (0) target = $region73
    $region72: #{tpu_custom_call.1} parent=1 // pred_region
      %s200 = ssub.s32 768, 768
      %201 = vsyncadd [#allocation27], %s200
      %s202 = sshll.u32 [#allocation26], 4
      %s203 = int_to_ptr.vmem [resolvable:$true] %s202
      %208 = dma.hbm_to_vmem [thread:$0]  %s35, 768, %s203, [#allocation27], 192, 192, 12
    $region73: #{tpu_custom_call.1} parent=1 // pred_fallthru
      _
    // Predicated region
    $region74: #{tpu_custom_call.1} parent=1 // pred_check
      _
    $region75: #{tpu_custom_call.1} parent=1 // pred_check_branch
      %210 = sbr.rel (0) target = $region77
    $region76: #{tpu_custom_call.1} parent=1 // pred_region
      %s212 = ssub.s32 3072, 3072
      %213 = vsyncadd [#allocation27], %s212
      %s214 = sshll.u32 [#allocation28], 4
      %s215 = int_to_ptr.vmem [resolvable:$true] %s214
      %220 = dma.hbm_to_vmem [thread:$0]  %s37, 3072, %s215, [#allocation27], 192, 192, 12
    $region77: #{tpu_custom_call.1} parent=1 // pred_fallthru
      _
    // Predicated region
    $region78: #{tpu_custom_call.1} parent=1 // pred_check
      _
    $region79: #{tpu_custom_call.1} parent=1 // pred_check_branch
      %222 = sbr.rel (0) target = $region81
    $region80: #{tpu_custom_call.1} parent=1 // pred_region
      _
    $region81: #{tpu_custom_call.1} parent=1 // pred_fallthru
      _
    // Predicated region
    $region82: #{tpu_custom_call.1} parent=1 // pred_check
      _
    $region83: #{tpu_custom_call.1} parent=1 // pred_check_branch
      %224 = sbr.rel (0) target = $region85
    $region84: #{tpu_custom_call.1} parent=1 // pred_region
      _
    $region85: #{tpu_custom_call.1} parent=1 // pred_fallthru
      _
    // Predicated region
    $region86: #{tpu_custom_call.1} parent=1 // pred_check
      _
    $region87: #{tpu_custom_call.1} parent=1 // pred_check_branch
      %226 = sbr.rel (0) target = $region89
    $region88: #{tpu_custom_call.1} parent=1 // pred_region
      %s228 = ssub.s32 2048, 2048
      %229 = vsyncadd [#allocation30], %s228
      %s230 = sshll.u32 [#allocation29], 4
      %s231 = int_to_ptr.vmem [resolvable:$true] %s230
      %236 = dma.hbm_to_vmem [thread:$0]  %s43, 2048, %s231, [#allocation30], 64, 64, 4
    $region89: #{tpu_custom_call.1} parent=1 // pred_fallthru
      _
    // Predicated region
    $region90: #{tpu_custom_call.1} parent=1 // pred_check
      _
    $region91: #{tpu_custom_call.1} parent=1 // pred_check_branch
      %238 = sbr.rel (0) target = $region93
    $region92: #{tpu_custom_call.1} parent=1 // pred_region
      _
    $region93: #{tpu_custom_call.1} parent=1 // pred_fallthru
      _
    // Predicated region
    $region94: #{tpu_custom_call.1} parent=1 // pred_check
      _
    $region95: #{tpu_custom_call.1} parent=1 // pred_check_branch
      %240 = sbr.rel (0) target = $region97
    $region96: #{tpu_custom_call.1} parent=1 // pred_region
      %s242 = ssub.s32 1024, 1024
      %243 = vsyncadd [#allocation30], %s242
      %s244 = sshll.u32 [#allocation31], 4
      %s245 = int_to_ptr.vmem [resolvable:$true] %s244
      %250 = dma.hbm_to_vmem [thread:$0]  %s47, 1024, %s245, [#allocation30], 64, 64, 4
    $region97: #{tpu_custom_call.1} parent=1 // pred_fallthru
      _
    // Predicated region
    $region98: #{tpu_custom_call.1} parent=1 // pred_check
      _
    $region99: #{tpu_custom_call.1} parent=1 // pred_check_branch
      %252 = sbr.rel (0) target = $region101
    $region100: #{tpu_custom_call.1} parent=1 // pred_region
      _
    $region101: #{tpu_custom_call.1} parent=1 // pred_fallthru
      _
    // Predicated region
    $region102: #{tpu_custom_call.1} parent=1 // pred_check
      _
    $region103: #{tpu_custom_call.1} parent=1 // pred_check_branch
      %254 = sbr.rel (0) target = $region105
    $region104: #{tpu_custom_call.1} parent=1 // pred_region
      %s256 = ssub.s32 1024, 1024
      %257 = vsyncadd [#allocation33], %s256
      %s258 = sshll.u32 [#allocation32], 4
      %s259 = int_to_ptr.vmem [resolvable:$true] %s258
      %264 = dma.hbm_to_vmem [thread:$0]  %s51, 1024, %s259, [#allocation33], 64, 64, 4
    $region105: #{tpu_custom_call.1} parent=1 // pred_fallthru
      _
    // Predicated region
    $region106: #{tpu_custom_call.1} parent=1 // pred_check
      _
    $region107: #{tpu_custom_call.1} parent=1 // pred_check_branch
      %266 = sbr.rel (0) target = $region109
    $region108: #{tpu_custom_call.1} parent=1 // pred_region
      _
    $region109: #{tpu_custom_call.1} parent=1 // pred_fallthru
      _
    // Predicated region
    $region110: #{tpu_custom_call.1} parent=1 // pred_check
      _
    $region111: #{tpu_custom_call.1} parent=1 // pred_check_branch
      %268 = sbr.rel (0) target = $region113
    $region112: #{tpu_custom_call.1} parent=1 // pred_region
      %269 = dma.done [#allocation12], 16
    $region113: #{tpu_custom_call.1} parent=1 // pred_fallthru
      _
    // Predicated region
    $region114: #{tpu_custom_call.1} parent=1 // pred_check
      _
    $region115: #{tpu_custom_call.1} parent=1 // pred_check_branch
      %271 = sbr.rel (0) target = $region117
    $region116: #{tpu_custom_call.1} parent=1 // pred_region
      %272 = dma.done [#allocation14], 16
    $region117: #{tpu_custom_call.1} parent=1 // pred_fallthru
      _
    // Predicated region
    $region118: #{tpu_custom_call.1} parent=1 // pred_check
      _
    $region119: #{tpu_custom_call.1} parent=1 // pred_check_branch
      %274 = sbr.rel (0) target = $region121
    $region120: #{tpu_custom_call.1} parent=1 // pred_region
      %275 = dma.done [#allocation14], 16
    $region121: #{tpu_custom_call.1} parent=1 // pred_fallthru
      _
    // Predicated region
    $region122: #{tpu_custom_call.1} parent=1 // pred_check
      _
    $region123: #{tpu_custom_call.1} parent=1 // pred_check_branch
      %277 = sbr.rel (0) target = $region125
    $region124: #{tpu_custom_call.1} parent=1 // pred_region
      %278 = dma.done [#allocation10], 512
    $region125: #{tpu_custom_call.1} parent=1 // pred_fallthru
      _
    // Predicated region
    $region126: #{tpu_custom_call.1} parent=1 // pred_check
      _
    $region127: #{tpu_custom_call.1} parent=1 // pred_check_branch
      %280 = sbr.rel (0) target = $region129
    $region128: #{tpu_custom_call.1} parent=1 // pred_region
      %281 = dma.done [#allocation18], 16
    $region129: #{tpu_custom_call.1} parent=1 // pred_fallthru
      _
    // Predicated region
    $region130: #{tpu_custom_call.1} parent=1 // pred_check
      _
    $region131: #{tpu_custom_call.1} parent=1 // pred_check_branch
      %283 = sbr.rel (0) target = $region133
    $region132: #{tpu_custom_call.1} parent=1 // pred_region
      %284 = dma.done [#allocation18], 16
    $region133: #{tpu_custom_call.1} parent=1 // pred_fallthru
      _
    // Predicated region
    $region134: #{tpu_custom_call.1} parent=1 // pred_check
      _
    $region135: #{tpu_custom_call.1} parent=1 // pred_check_branch
      %286 = sbr.rel (0) target = $region137
    $region136: #{tpu_custom_call.1} parent=1 // pred_region
      %287 = dma.done [#allocation21], 16
    $region137: #{tpu_custom_call.1} parent=1 // pred_fallthru
      _
    // Predicated region
    $region138: #{tpu_custom_call.1} parent=1 // pred_check
      _
    $region139: #{tpu_custom_call.1} parent=1 // pred_check_branch
      %289 = sbr.rel (0) target = $region141
    $region140: #{tpu_custom_call.1} parent=1 // pred_region
      %290 = dma.done [#allocation21], 768
    $region141: #{tpu_custom_call.1} parent=1 // pred_fallthru
      _
    // Predicated region
    $region142: #{tpu_custom_call.1} parent=1 // pred_check
      _
    $region143: #{tpu_custom_call.1} parent=1 // pred_check_branch
      %292 = sbr.rel (0) target = $region145
    $region144: #{tpu_custom_call.1} parent=1 // pred_region
      %293 = dma.done [#allocation24], 768
    $region145: #{tpu_custom_call.1} parent=1 // pred_fallthru
      _
    // Predicated region
    $region146: #{tpu_custom_call.1} parent=1 // pred_check
      _
    $region147: #{tpu_custom_call.1} parent=1 // pred_check_branch
      %295 = sbr.rel (0) target = $region149
    $region148: #{tpu_custom_call.1} parent=1 // pred_region
      %296 = dma.done [#allocation24], 3072
    $region149: #{tpu_custom_call.1} parent=1 // pred_fallthru
      _
    // Predicated region
    $region150: #{tpu_custom_call.1} parent=1 // pred_check
      _
    $region151: #{tpu_custom_call.1} parent=1 // pred_check_branch
      %298 = sbr.rel (0) target = $region153
    $region152: #{tpu_custom_call.1} parent=1 // pred_region
      %299 = dma.done [#allocation27], 768
    $region153: #{tpu_custom_call.1} parent=1 // pred_fallthru
      _
    // Predicated region
    $region154: #{tpu_custom_call.1} parent=1 // pred_check
      _
    $region155: #{tpu_custom_call.1} parent=1 // pred_check_branch
      %301 = sbr.rel (0) target = $region157
    $region156: #{tpu_custom_call.1} parent=1 // pred_region
      %302 = dma.done [#allocation27], 3072
    $region157: #{tpu_custom_call.1} parent=1 // pred_fallthru
      _
    // Predicated region
    $region158: #{tpu_custom_call.1} parent=1 // pred_check
      _
    $region159: #{tpu_custom_call.1} parent=1 // pred_check_branch
      %304 = sbr.rel (0) target = $region161
    $region160: #{tpu_custom_call.1} parent=1 // pred_region
      %305 = dma.done [#allocation30], 2048
    $region161: #{tpu_custom_call.1} parent=1 // pred_fallthru
      _
    // Predicated region
    $region162: #{tpu_custom_call.1} parent=1 // pred_check
      _
    $region163: #{tpu_custom_call.1} parent=1 // pred_check_branch
      %307 = sbr.rel (0) target = $region165
    $region164: #{tpu_custom_call.1} parent=1 // pred_region
      %308 = dma.done [#allocation30], 1024
    $region165: #{tpu_custom_call.1} parent=1 // pred_fallthru
      _
    // Predicated region
    $region166: #{tpu_custom_call.1} parent=1 // pred_check
      _
    $region167: #{tpu_custom_call.1} parent=1 // pred_check_branch
      %310 = sbr.rel (0) target = $region169
    $region168: #{tpu_custom_call.1} parent=1 // pred_region
      %311 = dma.done [#allocation33], 1024
    $region169: #{tpu_custom_call.1} parent=1 // pred_fallthru
      _
    %312 = sfence
    %s314 = sld [smem:[#allocation9]]
    %s315 = scalar_lea.vmem %s7, %s314
    %v316 = vld [vmem:[%s315] sm:$0x1]
    %vm317 = vcmask 253952
    %318 = vst.msk [vmem:[#allocation2] sm:$0x1] %vm317, %v316
    %s319 = sld [smem:[#allocation9 + $0x1]]
    %s320 = scalar_lea.vmem %s7, %s319
    %v321 = vld [vmem:[%s320] sm:$0x1]
    %322 = vst.msk [vmem:[#allocation2 + $0x1] sm:$0x1] %vm317, %v321
    %s323 = sld [smem:[#allocation9 + $0x2]]
    %s324 = scalar_lea.vmem %s7, %s323
    %v325 = vld [vmem:[%s324] sm:$0x1]
    %326 = vst.msk [vmem:[#allocation2 + $0x2] sm:$0x1] %vm317, %v325
    %s327 = sld [smem:[#allocation9 + $0x3]]
    %s328 = scalar_lea.vmem %s7, %s327
    %v329 = vld [vmem:[%s328] sm:$0x1]
    %330 = vst.msk [vmem:[#allocation2 + $0x3] sm:$0x1] %vm317, %v329
    %s331 = sld [smem:[#allocation9 + $0x4]]
    %s332 = scalar_lea.vmem %s7, %s331
    %v333 = vld [vmem:[%s332] sm:$0x1]
    %334 = vst.msk [vmem:[#allocation2 + $0x4] sm:$0x1] %vm317, %v333
    %s335 = sld [smem:[#allocation9 + $0x5]]
    %s336 = scalar_lea.vmem %s7, %s335
    %v337 = vld [vmem:[%s336] sm:$0x1]
    %338 = vst.msk [vmem:[#allocation2 + $0x5] sm:$0x1] %vm317, %v337
    %s339 = sld [smem:[#allocation9 + $0x6]]
    %s340 = scalar_lea.vmem %s7, %s339
    %v341 = vld [vmem:[%s340] sm:$0x1]
    %342 = vst.msk [vmem:[#allocation2 + $0x6] sm:$0x1] %vm317, %v341
    %v343 = vld [vmem:[#allocation2] sm:$0x7f]
    %v344 = vpack.c.bf16 %v343, %v343
    %v345 = vld [vmem:[#allocation22] sm:$0xff]
    %v346 = vld [vmem:[#allocation22 + $0x8] sm:$0xf]
    %v347 = vld [vmem:[#allocation22 + $0xc] sm:$0xff]
    %v348 = vld [vmem:[#allocation22 + $0x14] sm:$0xf]
    %v349 = vld [vmem:[#allocation22 + $0x18] sm:$0xff]
    %v350 = vld [vmem:[#allocation22 + $0x20] sm:$0xf]
    %v351 = vld [vmem:[#allocation22 + $0x24] sm:$0xff]
    %v352 = vld [vmem:[#allocation22 + $0x2c] sm:$0xf]
    %v353 = vld [vmem:[%s23] sm:$0x7]
    %v355 = vlaneseq
    %v356 = vshrl.u32 %v355, 7
    %v357 = vsub.s32 0, %v356
    %v358 = vrot.slane %v353, %v357
    %v359 = vlaneseq
    %v360 = vshrl.u32 %v359, 7
    %v361 = vsub.s32 1, %v360
    %v362 = vrot.slane %v353, %v361
    %v363 = vlaneseq
    %v364 = vshrl.u32 %v363, 7
    %v365 = vsub.s32 2, %v364
    %v366 = vrot.slane %v353, %v365
    %v378 = vunpack.c.l.b16 %v345
    %v379 = vunpack.c.h.b16 %v345
    %v380 = vunpack.c.l.b16 %v346
    %v381 = vunpack.c.l.b16 %v347
    %v382 = vunpack.c.h.b16 %v347
    %v383 = vunpack.c.l.b16 %v348
    %v384 = vunpack.c.l.b16 %v349
    %v385 = vunpack.c.h.b16 %v349
    %v386 = vunpack.c.l.b16 %v350
    %v387 = vunpack.c.l.b16 %v351
    %v388 = vunpack.c.h.b16 %v351
    %v389 = vunpack.c.l.b16 %v352
    %v390 = vpack.c.b16 %v381, %v378
    %v391 = vpack.c.b16 %v382, %v379
    %v392 = vpack.c.b16 %v383, %v380
    %v393 = vpack.c.b16 %v387, %v384
    %v394 = vpack.c.b16 %v388, %v385
    %v395 = vpack.c.b16 %v389, %v386
    %vm402 = vcmask 261120
    %v404 = vsel %vm402, %v344, 0
    %406 = vmatprep.subr.bf16.mxu0 %v391
    %407 = vmatpush1.bf16.msra.mxu0 %v390
    %408 = vmatprep.subr.bf16.mxu0 %v394
    %409 = vmatpush1.bf16.msra.mxu0 %v393
    %410 = vmatprep.subr.bf16.mxu0 0
    %411 = vmatpush1.bf16.msra.mxu0 0
    %412 = vmatprep.subr.bf16.mxu0 0
    %413 = vmatpush1.bf16.msra.mxu0 0
    %414 = vmatprep.subr.bf16.mxu0 0
    %415 = vmatpush1.bf16.msra.mxu0 0
    %416 = vmatprep.subr.bf16.mxu0 0
    %417 = vmatpush1.bf16.msra.mxu0 0
    %418 = vmatprep.subr.bf16.mxu0 0
    %419 = vmatpush1.bf16.msra.mxu0 0
    %420 = vmatprep.subr.bf16.mxu0 0
    %421 = vmatpush1.bf16.msra.mxu0 0
    %422 = vmatprep.subr.bf16.mxu0 0
    %423 = vmatpush1.bf16.msra.mxu0 0
    %424 = vmatprep.subr.bf16.mxu0 0
    %425 = vmatpush1.bf16.msra.mxu0 0
    %426 = vmatprep.subr.bf16.mxu0 0
    %427 = vmatpush1.bf16.msra.mxu0 0
    %428 = vmatprep.subr.bf16.mxu0 0
    %429 = vmatpush1.bf16.msra.mxu0 0
    %430 = vmatprep.subr.bf16.mxu0 0
    %431 = vmatpush1.bf16.msra.mxu0 0
    %432 = vmatprep.subr.bf16.mxu0 0
    %433 = vmatpush1.bf16.msra.mxu0 0
    %434 = vmatprep.subr.bf16.mxu0 0
    %435 = vmatpush1.bf16.msra.mxu0 0
    %436 = vmatprep.subr.bf16.mxu0 0
    %437 = vmatpush1.bf16.msra.mxu0 0
    %438 = vmatprep.mubr.bf16.mxu0 0
    %439 = vmatmul.mubr.bf16.gmra.mrb[0].mxu0 %v404
    %v440 = vpop.f32.mrb[0].mxu0
    %v441 = vadd.f32 %v358, %v440
    %v442 = vpop.f32.mrb[0].mxu0
    %v443 = vadd.f32 %v362, %v442
    %v444 = vpop.f32.mrb[0].mxu0
    %v445 = vpop.f32.mrb[0].mxu0
    %446 = vdwg.mxu0
    %447 = vmatprep.subr.bf16.mxu0 0
    %448 = vmatpush1.bf16.msra.mxu0 %v392
    %449 = vmatprep.subr.bf16.mxu0 0
    %450 = vmatpush1.bf16.msra.mxu0 %v395
    %451 = vmatprep.subr.bf16.mxu0 0
    %452 = vmatpush1.bf16.msra.mxu0 0
    %453 = vmatprep.subr.bf16.mxu0 0
    %454 = vmatpush1.bf16.msra.mxu0 0
    %455 = vmatprep.subr.bf16.mxu0 0
    %456 = vmatpush1.bf16.msra.mxu0 0
    %457 = vmatprep.subr.bf16.mxu0 0
    %458 = vmatpush1.bf16.msra.mxu0 0
    %459 = vmatprep.subr.bf16.mxu0 0
    %460 = vmatpush1.bf16.msra.mxu0 0
    %461 = vmatprep.subr.bf16.mxu0 0
    %462 = vmatpush1.bf16.msra.mxu0 0
    %463 = vmatprep.subr.bf16.mxu0 0
    %464 = vmatpush1.bf16.msra.mxu0 0
    %465 = vmatprep.subr.bf16.mxu0 0
    %466 = vmatpush1.bf16.msra.mxu0 0
    %467 = vmatprep.subr.bf16.mxu0 0
    %468 = vmatpush1.bf16.msra.mxu0 0
    %469 = vmatprep.subr.bf16.mxu0 0
    %470 = vmatpush1.bf16.msra.mxu0 0
    %471 = vmatprep.subr.bf16.mxu0 0
    %472 = vmatpush1.bf16.msra.mxu0 0
    %473 = vmatprep.subr.bf16.mxu0 0
    %474 = vmatpush1.bf16.msra.mxu0 0
    %475 = vmatprep.subr.bf16.mxu0 0
    %476 = vmatpush1.bf16.msra.mxu0 0
    %477 = vmatprep.subr.bf16.mxu0 0
    %478 = vmatpush1.bf16.msra.mxu0 0
    %479 = vmatprep.mubr.bf16.mxu0 0
    %480 = vmatmul.mubr.bf16.gmra.mrb[0].mxu0 %v404
    %v481 = vpop.f32.mrb[0].mxu0
    %v482 = vadd.f32 %v366, %v481
    %v483 = vpop.f32.mrb[0].mxu0
    %v484 = vpop.f32.mrb[0].mxu0
    %v485 = vpop.f32.mrb[0].mxu0
    %486 = vdwg.mxu0
    %487 = vst [vmem:[#allocation5] sm:$0x7f] %v441
    %488 = vst [vmem:[#allocation5 + $0x8] sm:$0x7f] %v443
    %489 = vst [vmem:[#allocation5 + $0x10] sm:$0x7f] %v482
    %s490 = sld [smem:[#allocation13]]
    %s491 = scalar_lea.vmem %s9, %s490
    %v492 = vld [vmem:[%s491] sm:$0x1]
    %493 = vst.msk [vmem:[#allocation3] sm:$0x1] %vm317, %v492
    %s494 = sld [smem:[#allocation13 + $0x1]]
    %s495 = scalar_lea.vmem %s9, %s494
    %v496 = vld [vmem:[%s495] sm:$0x1]
    %497 = vst.msk [vmem:[#allocation3 + $0x1] sm:$0x1] %vm317, %v496
    %s498 = sld [smem:[#allocation13 + $0x2]]
    %s499 = scalar_lea.vmem %s9, %s498
    %v500 = vld [vmem:[%s499] sm:$0x1]
    %501 = vst.msk [vmem:[#allocation3 + $0x2] sm:$0x1] %vm317, %v500
    %s502 = sld [smem:[#allocation13 + $0x3]]
    %s503 = scalar_lea.vmem %s9, %s502
    %v504 = vld [vmem:[%s503] sm:$0x1]
    %505 = vst.msk [vmem:[#allocation3 + $0x3] sm:$0x1] %vm317, %v504
    %s506 = sld [smem:[#allocation13 + $0x4]]
    %s507 = scalar_lea.vmem %s9, %s506
    %v508 = vld [vmem:[%s507] sm:$0x1]
    %509 = vst.msk [vmem:[#allocation3 + $0x4] sm:$0x1] %vm317, %v508
    %v510 = vld [vmem:[#allocation3] sm:$0x1f]
    %v511 = vpack.c.bf16 %v510, %v510
    %v512 = vld [vmem:[#allocation23] sm:$0xff]
    %v513 = vld [vmem:[#allocation23 + $0x8] sm:$0xf]
    %v514 = vld [vmem:[#allocation23 + $0xc] sm:$0xff]
    %v515 = vld [vmem:[#allocation23 + $0x14] sm:$0xf]
    %v516 = vld [vmem:[#allocation23 + $0x18] sm:$0xff]
    %v517 = vld [vmem:[#allocation23 + $0x20] sm:$0xf]
    %v518 = vld [vmem:[#allocation23 + $0x24] sm:$0xff]
    %v519 = vld [vmem:[#allocation23 + $0x2c] sm:$0xf]
    %v520 = vld [vmem:[%s31] sm:$0x7]
    %v522 = vlaneseq
    %v523 = vshrl.u32 %v522, 7
    %v524 = vsub.s32 0, %v523
    %v525 = vrot.slane %v520, %v524
    %v526 = vlaneseq
    %v527 = vshrl.u32 %v526, 7
    %v528 = vsub.s32 1, %v527
    %v529 = vrot.slane %v520, %v528
    %v530 = vlaneseq
    %v531 = vshrl.u32 %v530, 7
    %v532 = vsub.s32 2, %v531
    %v533 = vrot.slane %v520, %v532
    %v545 = vunpack.c.l.b16 %v512
    %v546 = vunpack.c.h.b16 %v512
    %v547 = vunpack.c.l.b16 %v513
    %v548 = vunpack.c.l.b16 %v514
    %v549 = vunpack.c.h.b16 %v514
    %v550 = vunpack.c.l.b16 %v515
    %v551 = vunpack.c.l.b16 %v516
    %v552 = vunpack.c.h.b16 %v516
    %v553 = vunpack.c.l.b16 %v517
    %v554 = vunpack.c.l.b16 %v518
    %v555 = vunpack.c.h.b16 %v518
    %v556 = vunpack.c.l.b16 %v519
    %v557 = vpack.c.b16 %v548, %v545
    %v558 = vpack.c.b16 %v549, %v546
    %v559 = vpack.c.b16 %v550, %v547
    %v560 = vpack.c.b16 %v554, %v551
    %v561 = vpack.c.b16 %v555, %v552
    %v562 = vpack.c.b16 %v556, %v553
    %v570 = vsel %vm402, %v511, 0
    %572 = vmatprep.subr.bf16.mxu0 %v558
    %573 = vmatpush1.bf16.msra.mxu0 %v557
    %574 = vmatprep.subr.bf16.mxu0 %v561
    %575 = vmatpush1.bf16.msra.mxu0 %v560
    %576 = vmatprep.subr.bf16.mxu0 0
    %577 = vmatpush1.bf16.msra.mxu0 0
    %578 = vmatprep.subr.bf16.mxu0 0
    %579 = vmatpush1.bf16.msra.mxu0 0
    %580 = vmatprep.subr.bf16.mxu0 0
    %581 = vmatpush1.bf16.msra.mxu0 0
    %582 = vmatprep.subr.bf16.mxu0 0
    %583 = vmatpush1.bf16.msra.mxu0 0
    %584 = vmatprep.subr.bf16.mxu0 0
    %585 = vmatpush1.bf16.msra.mxu0 0
    %586 = vmatprep.subr.bf16.mxu0 0
    %587 = vmatpush1.bf16.msra.mxu0 0
    %588 = vmatprep.subr.bf16.mxu0 0
    %589 = vmatpush1.bf16.msra.mxu0 0
    %590 = vmatprep.subr.bf16.mxu0 0
    %591 = vmatpush1.bf16.msra.mxu0 0
    %592 = vmatprep.subr.bf16.mxu0 0
    %593 = vmatpush1.bf16.msra.mxu0 0
    %594 = vmatprep.subr.bf16.mxu0 0
    %595 = vmatpush1.bf16.msra.mxu0 0
    %596 = vmatprep.subr.bf16.mxu0 0
    %597 = vmatpush1.bf16.msra.mxu0 0
    %598 = vmatprep.subr.bf16.mxu0 0
    %599 = vmatpush1.bf16.msra.mxu0 0
    %600 = vmatprep.subr.bf16.mxu0 0
    %601 = vmatpush1.bf16.msra.mxu0 0
    %602 = vmatprep.subr.bf16.mxu0 0
    %603 = vmatpush1.bf16.msra.mxu0 0
    %604 = vmatprep.mubr.bf16.mxu0 0
    %605 = vmatmul.mubr.bf16.gmra.mrb[0].mxu0 %v570
    %v606 = vpop.f32.mrb[0].mxu0
    %v607 = vadd.f32 %v525, %v606
    %v608 = vpop.f32.mrb[0].mxu0
    %v609 = vadd.f32 %v529, %v608
    %v610 = vpop.f32.mrb[0].mxu0
    %v611 = vpop.f32.mrb[0].mxu0
    %612 = vdwg.mxu0
    %613 = vmatprep.subr.bf16.mxu0 0
    %614 = vmatpush1.bf16.msra.mxu0 %v559
    %615 = vmatprep.subr.bf16.mxu0 0
    %616 = vmatpush1.bf16.msra.mxu0 %v562
    %617 = vmatprep.subr.bf16.mxu0 0
    %618 = vmatpush1.bf16.msra.mxu0 0
    %619 = vmatprep.subr.bf16.mxu0 0
    %620 = vmatpush1.bf16.msra.mxu0 0
    %621 = vmatprep.subr.bf16.mxu0 0
    %622 = vmatpush1.bf16.msra.mxu0 0
    %623 = vmatprep.subr.bf16.mxu0 0
    %624 = vmatpush1.bf16.msra.mxu0 0
    %625 = vmatprep.subr.bf16.mxu0 0
    %626 = vmatpush1.bf16.msra.mxu0 0
    %627 = vmatprep.subr.bf16.mxu0 0
    %628 = vmatpush1.bf16.msra.mxu0 0
    %629 = vmatprep.subr.bf16.mxu0 0
    %630 = vmatpush1.bf16.msra.mxu0 0
    %631 = vmatprep.subr.bf16.mxu0 0
    %632 = vmatpush1.bf16.msra.mxu0 0
    %633 = vmatprep.subr.bf16.mxu0 0
    %634 = vmatpush1.bf16.msra.mxu0 0
    %635 = vmatprep.subr.bf16.mxu0 0
    %636 = vmatpush1.bf16.msra.mxu0 0
    %637 = vmatprep.subr.bf16.mxu0 0
    %638 = vmatpush1.bf16.msra.mxu0 0
    %639 = vmatprep.subr.bf16.mxu0 0
    %640 = vmatpush1.bf16.msra.mxu0 0
    %641 = vmatprep.subr.bf16.mxu0 0
    %642 = vmatpush1.bf16.msra.mxu0 0
    %643 = vmatprep.subr.bf16.mxu0 0
    %644 = vmatpush1.bf16.msra.mxu0 0
    %645 = vmatprep.mubr.bf16.mxu0 0
    %646 = vmatmul.mubr.bf16.gmra.mrb[0].mxu0 %v570
    %v647 = vpop.f32.mrb[0].mxu0
    %v648 = vadd.f32 %v533, %v647
    %v649 = vpop.f32.mrb[0].mxu0
    %v650 = vpop.f32.mrb[0].mxu0
    %v651 = vpop.f32.mrb[0].mxu0
    %652 = vdwg.mxu0
    %653 = vst [vmem:[#allocation6] sm:$0x1f] %v607
    %654 = vst [vmem:[#allocation6 + $0x8] sm:$0x1f] %v609
    %655 = vst [vmem:[#allocation6 + $0x10] sm:$0x1f] %v648
    %s656 = sld [smem:[#allocation15]]
    %s657 = scalar_lea.vmem [#allocation16], %s656
    %v658 = vld [vmem:[%s657] sm:$0x1]
    %659 = vst.msk [vmem:[#allocation4] sm:$0x1] %vm317, %v658
    %s660 = sld [smem:[#allocation15 + $0x1]]
    %s661 = scalar_lea.vmem [#allocation16], %s660
    %v662 = vld [vmem:[%s661] sm:$0x1]
    %663 = vst.msk [vmem:[#allocation4 + $0x1] sm:$0x1] %vm317, %v662
    %s664 = sld [smem:[#allocation15 + $0x2]]
    %s665 = scalar_lea.vmem [#allocation16], %s664
    %v666 = vld [vmem:[%s665] sm:$0x1]
    %667 = vst.msk [vmem:[#allocation4 + $0x2] sm:$0x1] %vm317, %v666
    %s668 = sld [smem:[#allocation15 + $0x3]]
    %s669 = scalar_lea.vmem [#allocation16], %s668
    %v670 = vld [vmem:[%s669] sm:$0x1]
    %671 = vst.msk [vmem:[#allocation4 + $0x3] sm:$0x1] %vm317, %v670
    %s672 = sld [smem:[#allocation15 + $0x4]]
    %s673 = scalar_lea.vmem [#allocation16], %s672
    %v674 = vld [vmem:[%s673] sm:$0x1]
    %675 = vst.msk [vmem:[#allocation4 + $0x4] sm:$0x1] %vm317, %v674
    %s676 = sld [smem:[#allocation15 + $0x5]]
    %s677 = scalar_lea.vmem [#allocation16], %s676
    %v678 = vld [vmem:[%s677] sm:$0x1]
    %679 = vst.msk [vmem:[#allocation4 + $0x5] sm:$0x1] %vm317, %v678
    %s680 = sld [smem:[#allocation15 + $0x6]]
    %s681 = scalar_lea.vmem [#allocation16], %s680
    %v682 = vld [vmem:[%s681] sm:$0x1]
    %683 = vst.msk [vmem:[#allocation4 + $0x6] sm:$0x1] %vm317, %v682
    %v684 = vld [vmem:[#allocation4] sm:$0x7f]
    %v685 = vpack.c.bf16 %v684, %v684
    %v686 = vld [vmem:[#allocation26] sm:$0xff]
    %v687 = vld [vmem:[#allocation26 + $0x8] sm:$0xf]
    %v688 = vld [vmem:[#allocation26 + $0xc] sm:$0xff]
    %v689 = vld [vmem:[#allocation26 + $0x14] sm:$0xf]
    %v690 = vld [vmem:[#allocation26 + $0x18] sm:$0xff]
    %v691 = vld [vmem:[#allocation26 + $0x20] sm:$0xf]
    %v692 = vld [vmem:[#allocation26 + $0x24] sm:$0xff]
    %v693 = vld [vmem:[#allocation26 + $0x2c] sm:$0xf]
    %v694 = vld [vmem:[%s39] sm:$0x7]
    %v696 = vlaneseq
    %v697 = vshrl.u32 %v696, 7
    %v698 = vsub.s32 0, %v697
    %v699 = vrot.slane %v694, %v698
    %v700 = vlaneseq
    %v701 = vshrl.u32 %v700, 7
    %v702 = vsub.s32 1, %v701
    %v703 = vrot.slane %v694, %v702
    %v704 = vlaneseq
    %v705 = vshrl.u32 %v704, 7
    %v706 = vsub.s32 2, %v705
    %v707 = vrot.slane %v694, %v706
    %v719 = vunpack.c.l.b16 %v686
    %v720 = vunpack.c.h.b16 %v686
    %v721 = vunpack.c.l.b16 %v687
    %v722 = vunpack.c.l.b16 %v688
    %v723 = vunpack.c.h.b16 %v688
    %v724 = vunpack.c.l.b16 %v689
    %v725 = vunpack.c.l.b16 %v690
    %v726 = vunpack.c.h.b16 %v690
    %v727 = vunpack.c.l.b16 %v691
    %v728 = vunpack.c.l.b16 %v692
    %v729 = vunpack.c.h.b16 %v692
    %v730 = vunpack.c.l.b16 %v693
    %v731 = vpack.c.b16 %v722, %v719
    %v732 = vpack.c.b16 %v723, %v720
    %v733 = vpack.c.b16 %v724, %v721
    %v734 = vpack.c.b16 %v728, %v725
    %v735 = vpack.c.b16 %v729, %v726
    %v736 = vpack.c.b16 %v730, %v727
    %v744 = vsel %vm402, %v685, 0
    %746 = vmatprep.subr.bf16.mxu0 %v732
    %747 = vmatpush1.bf16.msra.mxu0 %v731
    %748 = vmatprep.subr.bf16.mxu0 %v735
    %749 = vmatpush1.bf16.msra.mxu0 %v734
    %750 = vmatprep.subr.bf16.mxu0 0
    %751 = vmatpush1.bf16.msra.mxu0 0
    %752 = vmatprep.subr.bf16.mxu0 0
    %753 = vmatpush1.bf16.msra.mxu0 0
    %754 = vmatprep.subr.bf16.mxu0 0
    %755 = vmatpush1.bf16.msra.mxu0 0
    %756 = vmatprep.subr.bf16.mxu0 0
    %757 = vmatpush1.bf16.msra.mxu0 0
    %758 = vmatprep.subr.bf16.mxu0 0
    %759 = vmatpush1.bf16.msra.mxu0 0
    %760 = vmatprep.subr.bf16.mxu0 0
    %761 = vmatpush1.bf16.msra.mxu0 0
    %762 = vmatprep.subr.bf16.mxu0 0
    %763 = vmatpush1.bf16.msra.mxu0 0
    %764 = vmatprep.subr.bf16.mxu0 0
    %765 = vmatpush1.bf16.msra.mxu0 0
    %766 = vmatprep.subr.bf16.mxu0 0
    %767 = vmatpush1.bf16.msra.mxu0 0
    %768 = vmatprep.subr.bf16.mxu0 0
    %769 = vmatpush1.bf16.msra.mxu0 0
    %770 = vmatprep.subr.bf16.mxu0 0
    %771 = vmatpush1.bf16.msra.mxu0 0
    %772 = vmatprep.subr.bf16.mxu0 0
    %773 = vmatpush1.bf16.msra.mxu0 0
    %774 = vmatprep.subr.bf16.mxu0 0
    %775 = vmatpush1.bf16.msra.mxu0 0
    %776 = vmatprep.subr.bf16.mxu0 0
    %777 = vmatpush1.bf16.msra.mxu0 0
    %778 = vmatprep.mubr.bf16.mxu0 0
    %779 = vmatmul.mubr.bf16.gmra.mrb[0].mxu0 %v744
    %v780 = vpop.f32.mrb[0].mxu0
    %v781 = vadd.f32 %v699, %v780
    %v782 = vpop.f32.mrb[0].mxu0
    %v783 = vadd.f32 %v703, %v782
    %v784 = vpop.f32.mrb[0].mxu0
    %v785 = vpop.f32.mrb[0].mxu0
    %786 = vdwg.mxu0
    %787 = vmatprep.subr.bf16.mxu0 0
    %788 = vmatpush1.bf16.msra.mxu0 %v733
    %789 = vmatprep.subr.bf16.mxu0 0
    %790 = vmatpush1.bf16.msra.mxu0 %v736
    %791 = vmatprep.subr.bf16.mxu0 0
    %792 = vmatpush1.bf16.msra.mxu0 0
    %793 = vmatprep.subr.bf16.mxu0 0
    %794 = vmatpush1.bf16.msra.mxu0 0
    %795 = vmatprep.subr.bf16.mxu0 0
    %796 = vmatpush1.bf16.msra.mxu0 0
    %797 = vmatprep.subr.bf16.mxu0 0
    %798 = vmatpush1.bf16.msra.mxu0 0
    %799 = vmatprep.subr.bf16.mxu0 0
    %800 = vmatpush1.bf16.msra.mxu0 0
    %801 = vmatprep.subr.bf16.mxu0 0
    %802 = vmatpush1.bf16.msra.mxu0 0
    %803 = vmatprep.subr.bf16.mxu0 0
    %804 = vmatpush1.bf16.msra.mxu0 0
    %805 = vmatprep.subr.bf16.mxu0 0
    %806 = vmatpush1.bf16.msra.mxu0 0
    %807 = vmatprep.subr.bf16.mxu0 0
    %808 = vmatpush1.bf16.msra.mxu0 0
    %809 = vmatprep.subr.bf16.mxu0 0
    %810 = vmatpush1.bf16.msra.mxu0 0
    %811 = vmatprep.subr.bf16.mxu0 0
    %812 = vmatpush1.bf16.msra.mxu0 0
    %813 = vmatprep.subr.bf16.mxu0 0
    %814 = vmatpush1.bf16.msra.mxu0 0
    %815 = vmatprep.subr.bf16.mxu0 0
    %816 = vmatpush1.bf16.msra.mxu0 0
    %817 = vmatprep.subr.bf16.mxu0 0
    %818 = vmatpush1.bf16.msra.mxu0 0
    %819 = vmatprep.mubr.bf16.mxu0 0
    %820 = vmatmul.mubr.bf16.gmra.mrb[0].mxu0 %v744
    %v821 = vpop.f32.mrb[0].mxu0
    %v822 = vadd.f32 %v707, %v821
    %v823 = vpop.f32.mrb[0].mxu0
    %v824 = vpop.f32.mrb[0].mxu0
    %v825 = vpop.f32.mrb[0].mxu0
    %826 = vdwg.mxu0
    %827 = vst [vmem:[#allocation7] sm:$0x7f] %v781
    %828 = vst [vmem:[#allocation7 + $0x8] sm:$0x7f] %v783
    %829 = vst [vmem:[#allocation7 + $0x10] sm:$0x7f] %v822
    %v830 = vld [vmem:[#allocation17] sm:$0x1]
    %v831 = vld [vmem:[#allocation19] sm:$0x1]
    %v832 = vld [vmem:[#allocation20] sm:$0x1]
    %v833 = vpack.c.bf16 %v830, %v830
    %v834 = vld [vmem:[%s21] sm:$0xff]
    %v835 = vld [vmem:[%s21 + $0x8] sm:$0xf]
    %v836 = vld [vmem:[%s21 + $0xc] sm:$0xff]
    %v837 = vld [vmem:[%s21 + $0x14] sm:$0xf]
    %v838 = vld [vmem:[%s21 + $0x18] sm:$0xff]
    %v839 = vld [vmem:[%s21 + $0x20] sm:$0xf]
    %v840 = vld [vmem:[%s21 + $0x24] sm:$0xff]
    %v841 = vld [vmem:[%s21 + $0x2c] sm:$0xf]
    %v842 = vld [vmem:[%s21 + $0x30] sm:$0xff]
    %v843 = vld [vmem:[%s21 + $0x38] sm:$0xf]
    %v844 = vld [vmem:[%s21 + $0x3c] sm:$0xff]
    %v845 = vld [vmem:[%s21 + $0x44] sm:$0xf]
    %v846 = vld [vmem:[%s21 + $0x48] sm:$0xff]
    %v847 = vld [vmem:[%s21 + $0x50] sm:$0xf]
    %v848 = vld [vmem:[%s21 + $0x54] sm:$0xff]
    %v849 = vld [vmem:[%s21 + $0x5c] sm:$0xf]
    %v850 = vld [vmem:[%s21 + $0x60] sm:$0xff]
    %v851 = vld [vmem:[%s21 + $0x68] sm:$0xf]
    %v852 = vld [vmem:[%s21 + $0x6c] sm:$0xff]
    %v853 = vld [vmem:[%s21 + $0x74] sm:$0xf]
    %v854 = vld [vmem:[%s21 + $0x78] sm:$0xff]
    %v855 = vld [vmem:[%s21 + $0x80] sm:$0xf]
    %v856 = vld [vmem:[%s21 + $0x84] sm:$0xff]
    %v857 = vld [vmem:[%s21 + $0x8c] sm:$0xf]
    %v858 = vld [vmem:[%s21 + $0x90] sm:$0xff]
    %v859 = vld [vmem:[%s21 + $0x98] sm:$0xf]
    %v860 = vld [vmem:[%s21 + $0x9c] sm:$0xff]
    %v861 = vld [vmem:[%s21 + $0xa4] sm:$0xf]
    %v862 = vld [vmem:[%s21 + $0xa8] sm:$0xff]
    %v863 = vld [vmem:[%s21 + $0xb0] sm:$0xf]
    %v864 = vld [vmem:[%s21 + $0xb4] sm:$0xff]
    %v865 = vld [vmem:[%s21 + $0xbc] sm:$0xf]
    %v898 = vunpack.c.l.b16 %v834
    %v899 = vunpack.c.h.b16 %v834
    %v900 = vunpack.c.l.b16 %v835
    %v901 = vunpack.c.l.b16 %v836
    %v902 = vunpack.c.h.b16 %v836
    %v903 = vunpack.c.l.b16 %v837
    %v904 = vunpack.c.l.b16 %v838
    %v905 = vunpack.c.h.b16 %v838
    %v906 = vunpack.c.l.b16 %v839
    %v907 = vunpack.c.l.b16 %v840
    %v908 = vunpack.c.h.b16 %v840
    %v909 = vunpack.c.l.b16 %v841
    %v910 = vunpack.c.l.b16 %v842
    %v911 = vunpack.c.h.b16 %v842
    %v912 = vunpack.c.l.b16 %v843
    %v913 = vunpack.c.l.b16 %v844
    %v914 = vunpack.c.h.b16 %v844
    %v915 = vunpack.c.l.b16 %v845
    %v916 = vunpack.c.l.b16 %v846
    %v917 = vunpack.c.h.b16 %v846
    %v918 = vunpack.c.l.b16 %v847
    %v919 = vunpack.c.l.b16 %v848
    %v920 = vunpack.c.h.b16 %v848
    %v921 = vunpack.c.l.b16 %v849
    %v922 = vunpack.c.l.b16 %v850
    %v923 = vunpack.c.h.b16 %v850
    %v924 = vunpack.c.l.b16 %v851
    %v925 = vunpack.c.l.b16 %v852
    %v926 = vunpack.c.h.b16 %v852
    %v927 = vunpack.c.l.b16 %v853
    %v928 = vunpack.c.l.b16 %v854
    %v929 = vunpack.c.h.b16 %v854
    %v930 = vunpack.c.l.b16 %v855
    %v931 = vunpack.c.l.b16 %v856
    %v932 = vunpack.c.h.b16 %v856
    %v933 = vunpack.c.l.b16 %v857
    %v934 = vunpack.c.l.b16 %v858
    %v935 = vunpack.c.h.b16 %v858
    %v936 = vunpack.c.l.b16 %v859
    %v937 = vunpack.c.l.b16 %v860
    %v938 = vunpack.c.h.b16 %v860
    %v939 = vunpack.c.l.b16 %v861
    %v940 = vunpack.c.l.b16 %v862
    %v941 = vunpack.c.h.b16 %v862
    %v942 = vunpack.c.l.b16 %v863
    %v943 = vunpack.c.l.b16 %v864
    %v944 = vunpack.c.h.b16 %v864
    %v945 = vunpack.c.l.b16 %v865
    %v946 = vpack.c.b16 %v901, %v898
    %v947 = vpack.c.b16 %v902, %v899
    %v948 = vpack.c.b16 %v903, %v900
    %v949 = vpack.c.b16 %v907, %v904
    %v950 = vpack.c.b16 %v908, %v905
    %v951 = vpack.c.b16 %v909, %v906
    %v952 = vpack.c.b16 %v913, %v910
    %v953 = vpack.c.b16 %v914, %v911
    %v954 = vpack.c.b16 %v915, %v912
    %v955 = vpack.c.b16 %v919, %v916
    %v956 = vpack.c.b16 %v920, %v917
    %v957 = vpack.c.b16 %v921, %v918
    %v958 = vpack.c.b16 %v925, %v922
    %v959 = vpack.c.b16 %v926, %v923
    %v960 = vpack.c.b16 %v927, %v924
    %v961 = vpack.c.b16 %v931, %v928
    %v962 = vpack.c.b16 %v932, %v929
    %v963 = vpack.c.b16 %v933, %v930
    %v964 = vpack.c.b16 %v937, %v934
    %v965 = vpack.c.b16 %v938, %v935
    %v966 = vpack.c.b16 %v939, %v936
    %v967 = vpack.c.b16 %v943, %v940
    %v968 = vpack.c.b16 %v944, %v941
    %v969 = vpack.c.b16 %v945, %v942
    %994 = vmatprep.subr.bf16.mxu0 %v947
    %995 = vmatpush1.bf16.msra.mxu0 %v946
    %996 = vmatprep.subr.bf16.mxu0 %v950
    %997 = vmatpush1.bf16.msra.mxu0 %v949
    %998 = vmatprep.subr.bf16.mxu0 %v953
    %999 = vmatpush1.bf16.msra.mxu0 %v952
    %1000 = vmatprep.subr.bf16.mxu0 %v956
    %1001 = vmatpush1.bf16.msra.mxu0 %v955
    %1002 = vmatprep.subr.bf16.mxu0 %v959
    %1003 = vmatpush1.bf16.msra.mxu0 %v958
    %1004 = vmatprep.subr.bf16.mxu0 %v962
    %1005 = vmatpush1.bf16.msra.mxu0 %v961
    %1006 = vmatprep.subr.bf16.mxu0 %v965
    %1007 = vmatpush1.bf16.msra.mxu0 %v964
    %1008 = vmatprep.subr.bf16.mxu0 %v968
    %1009 = vmatpush1.bf16.msra.mxu0 %v967
    %1010 = vmatprep.subr.bf16.mxu0 0
    %1011 = vmatpush1.bf16.msra.mxu0 0
    %1012 = vmatprep.subr.bf16.mxu0 0
    %1013 = vmatpush1.bf16.msra.mxu0 0
    %1014 = vmatprep.subr.bf16.mxu0 0
    %1015 = vmatpush1.bf16.msra.mxu0 0
    %1016 = vmatprep.subr.bf16.mxu0 0
    %1017 = vmatpush1.bf16.msra.mxu0 0
    %1018 = vmatprep.subr.bf16.mxu0 0
    %1019 = vmatpush1.bf16.msra.mxu0 0
    %1020 = vmatprep.subr.bf16.mxu0 0
    %1021 = vmatpush1.bf16.msra.mxu0 0
    %1022 = vmatprep.subr.bf16.mxu0 0
    %1023 = vmatpush1.bf16.msra.mxu0 0
    %1024 = vmatprep.subr.bf16.mxu0 0
    %1025 = vmatpush1.bf16.msra.mxu0 0
    %1026 = vmatprep.mubr.bf16.mxu0 0
    %1027 = vmatmul.mubr.bf16.gmra.mrb[0].mxu0 %v833
    %v1028 = vpop.f32.mrb[0].mxu0
    %v1029 = vadd.f32 0.0, %v1028
    %v1030 = vpop.f32.mrb[0].mxu0
    %v1031 = vadd.f32 0.0, %v1030
    %v1032 = vpop.f32.mrb[0].mxu0
    %v1033 = vpop.f32.mrb[0].mxu0
    %1034 = vdwg.mxu0
    %1035 = vmatprep.subr.bf16.mxu0 0
    %1036 = vmatpush1.bf16.msra.mxu0 %v948
    %1037 = vmatprep.subr.bf16.mxu0 0
    %1038 = vmatpush1.bf16.msra.mxu0 %v951
    %1039 = vmatprep.subr.bf16.mxu0 0
    %1040 = vmatpush1.bf16.msra.mxu0 %v954
    %1041 = vmatprep.subr.bf16.mxu0 0
    %1042 = vmatpush1.bf16.msra.mxu0 %v957
    %1043 = vmatprep.subr.bf16.mxu0 0
    %1044 = vmatpush1.bf16.msra.mxu0 %v960
    %1045 = vmatprep.subr.bf16.mxu0 0
    %1046 = vmatpush1.bf16.msra.mxu0 %v963
    %1047 = vmatprep.subr.bf16.mxu0 0
    %1048 = vmatpush1.bf16.msra.mxu0 %v966
    %1049 = vmatprep.subr.bf16.mxu0 0
    %1050 = vmatpush1.bf16.msra.mxu0 %v969
    %1051 = vmatprep.subr.bf16.mxu0 0
    %1052 = vmatpush1.bf16.msra.mxu0 0
    %1053 = vmatprep.subr.bf16.mxu0 0
    %1054 = vmatpush1.bf16.msra.mxu0 0
    %1055 = vmatprep.subr.bf16.mxu0 0
    %1056 = vmatpush1.bf16.msra.mxu0 0
    %1057 = vmatprep.subr.bf16.mxu0 0
    %1058 = vmatpush1.bf16.msra.mxu0 0
    %1059 = vmatprep.subr.bf16.mxu0 0
    %1060 = vmatpush1.bf16.msra.mxu0 0
    %1061 = vmatprep.subr.bf16.mxu0 0
    %1062 = vmatpush1.bf16.msra.mxu0 0
    %1063 = vmatprep.subr.bf16.mxu0 0
    %1064 = vmatpush1.bf16.msra.mxu0 0
    %1065 = vmatprep.subr.bf16.mxu0 0
    %1066 = vmatpush1.bf16.msra.mxu0 0
    %1067 = vmatprep.mubr.bf16.mxu0 0
    %1068 = vmatmul.mubr.bf16.gmra.mrb[0].mxu0 %v833
    %v1069 = vpop.f32.mrb[0].mxu0
    %v1070 = vadd.f32 0.0, %v1069
    %v1071 = vpop.f32.mrb[0].mxu0
    %v1072 = vpop.f32.mrb[0].mxu0
    %v1073 = vpop.f32.mrb[0].mxu0
    %1074 = vdwg.mxu0
    %v1075 = vld [vmem:[#allocation5] ss:$8 sm:$0x7]
    %v1078 = vcombine.low %v1029, %v1031
    %v1080 = vunpack.c.l.s4 1966171168
    %v1081 = vunpack.c.0.s8 %v1080
    %v1082 = vlaneseq
    %v1083 = vshrl.u32 %v1082, 7
    %v1084 = vsub.s32 %v1081, %v1083
    %v1085 = vrot.slane %v1078, %v1084
    %v1087 = vunpack.c.l.s4 1966171168
    %v1088 = vunpack.c.0.s8 %v1087
    %v1089 = vlaneseq
    %v1090 = vshrl.u32 %v1089, 7
    %v1091 = vsub.s32 %v1088, %v1090
    %v1092 = vrot.slane %v1085, %v1091
    %v1094 = vadd.f32 %v1075, %v1092
    %v1095 = vxor.u32 %v1094, 2147483648
    %v1096 = vmul.f32 %v1095, 1.442695
    %v1097 = vpow.pop %v1096
    %v1098 = vadd.f32 %v1097, 1.0
    %v1099 = vrcp.pop %v1098
    %v1100 = vmul.f32 1.0, %v1099
    %v1101 = vld [vmem:[%s25] sm:$0x1]
    %v1102 = vadd.f32 %v1070, %v1101
    %v1103 = vmul.f32 %v1100, %v1102
    %v1105 = vrot.slane %v1075, 2
    %v1107 = vadd.f32 %v1105, %v1103
    %v1108 = vtanh.pop %v1107
    %v1110 = vrot.slane %v1100, 1
    %v1112 = vsub.f32 1.0, %v1110
    %v1113 = vmul.f32 %v1112, %v1108
    %v1114 = vmul.f32 %v1110, %v830
    %v1115 = vadd.f32 %v1113, %v1114
    %v1116 = vpack.c.bf16 %v831, %v831
    %v1117 = vld [vmem:[#allocation25] sm:$0xff]
    %v1118 = vld [vmem:[#allocation25 + $0x8] sm:$0xf]
    %v1119 = vld [vmem:[#allocation25 + $0xc] sm:$0xff]
    %v1120 = vld [vmem:[#allocation25 + $0x14] sm:$0xf]
    %v1121 = vld [vmem:[#allocation25 + $0x18] sm:$0xff]
    %v1122 = vld [vmem:[#allocation25 + $0x20] sm:$0xf]
    %v1123 = vld [vmem:[#allocation25 + $0x24] sm:$0xff]
    %v1124 = vld [vmem:[#allocation25 + $0x2c] sm:$0xf]
    %v1125 = vld [vmem:[#allocation25 + $0x30] sm:$0xff]
    %v1126 = vld [vmem:[#allocation25 + $0x38] sm:$0xf]
    %v1127 = vld [vmem:[#allocation25 + $0x3c] sm:$0xff]
    %v1128 = vld [vmem:[#allocation25 + $0x44] sm:$0xf]
    %v1129 = vld [vmem:[#allocation25 + $0x48] sm:$0xff]
    %v1130 = vld [vmem:[#allocation25 + $0x50] sm:$0xf]
    %v1131 = vld [vmem:[#allocation25 + $0x54] sm:$0xff]
    %v1132 = vld [vmem:[#allocation25 + $0x5c] sm:$0xf]
    %v1133 = vld [vmem:[#allocation25 + $0x60] sm:$0xff]
    %v1134 = vld [vmem:[#allocation25 + $0x68] sm:$0xf]
    %v1135 = vld [vmem:[#allocation25 + $0x6c] sm:$0xff]
    %v1136 = vld [vmem:[#allocation25 + $0x74] sm:$0xf]
    %v1137 = vld [vmem:[#allocation25 + $0x78] sm:$0xff]
    %v1138 = vld [vmem:[#allocation25 + $0x80] sm:$0xf]
    %v1139 = vld [vmem:[#allocation25 + $0x84] sm:$0xff]
    %v1140 = vld [vmem:[#allocation25 + $0x8c] sm:$0xf]
    %v1141 = vld [vmem:[#allocation25 + $0x90] sm:$0xff]
    %v1142 = vld [vmem:[#allocation25 + $0x98] sm:$0xf]
    %v1143 = vld [vmem:[#allocation25 + $0x9c] sm:$0xff]
    %v1144 = vld [vmem:[#allocation25 + $0xa4] sm:$0xf]
    %v1145 = vld [vmem:[#allocation25 + $0xa8] sm:$0xff]
    %v1146 = vld [vmem:[#allocation25 + $0xb0] sm:$0xf]
    %v1147 = vld [vmem:[#allocation25 + $0xb4] sm:$0xff]
    %v1148 = vld [vmem:[#allocation25 + $0xbc] sm:$0xf]
    %v1181 = vunpack.c.l.b16 %v1117
    %v1182 = vunpack.c.h.b16 %v1117
    %v1183 = vunpack.c.l.b16 %v1118
    %v1184 = vunpack.c.l.b16 %v1119
    %v1185 = vunpack.c.h.b16 %v1119
    %v1186 = vunpack.c.l.b16 %v1120
    %v1187 = vunpack.c.l.b16 %v1121
    %v1188 = vunpack.c.h.b16 %v1121
    %v1189 = vunpack.c.l.b16 %v1122
    %v1190 = vunpack.c.l.b16 %v1123
    %v1191 = vunpack.c.h.b16 %v1123
    %v1192 = vunpack.c.l.b16 %v1124
    %v1193 = vunpack.c.l.b16 %v1125
    %v1194 = vunpack.c.h.b16 %v1125
    %v1195 = vunpack.c.l.b16 %v1126
    %v1196 = vunpack.c.l.b16 %v1127
    %v1197 = vunpack.c.h.b16 %v1127
    %v1198 = vunpack.c.l.b16 %v1128
    %v1199 = vunpack.c.l.b16 %v1129
    %v1200 = vunpack.c.h.b16 %v1129
    %v1201 = vunpack.c.l.b16 %v1130
    %v1202 = vunpack.c.l.b16 %v1131
    %v1203 = vunpack.c.h.b16 %v1131
    %v1204 = vunpack.c.l.b16 %v1132
    %v1205 = vunpack.c.l.b16 %v1133
    %v1206 = vunpack.c.h.b16 %v1133
    %v1207 = vunpack.c.l.b16 %v1134
    %v1208 = vunpack.c.l.b16 %v1135
    %v1209 = vunpack.c.h.b16 %v1135
    %v1210 = vunpack.c.l.b16 %v1136
    %v1211 = vunpack.c.l.b16 %v1137
    %v1212 = vunpack.c.h.b16 %v1137
    %v1213 = vunpack.c.l.b16 %v1138
    %v1214 = vunpack.c.l.b16 %v1139
    %v1215 = vunpack.c.h.b16 %v1139
    %v1216 = vunpack.c.l.b16 %v1140
    %v1217 = vunpack.c.l.b16 %v1141
    %v1218 = vunpack.c.h.b16 %v1141
    %v1219 = vunpack.c.l.b16 %v1142
    %v1220 = vunpack.c.l.b16 %v1143
    %v1221 = vunpack.c.h.b16 %v1143
    %v1222 = vunpack.c.l.b16 %v1144
    %v1223 = vunpack.c.l.b16 %v1145
    %v1224 = vunpack.c.h.b16 %v1145
    %v1225 = vunpack.c.l.b16 %v1146
    %v1226 = vunpack.c.l.b16 %v1147
    %v1227 = vunpack.c.h.b16 %v1147
    %v1228 = vunpack.c.l.b16 %v1148
    %v1229 = vpack.c.b16 %v1184, %v1181
    %v1230 = vpack.c.b16 %v1185, %v1182
    %v1231 = vpack.c.b16 %v1186, %v1183
    %v1232 = vpack.c.b16 %v1190, %v1187
    %v1233 = vpack.c.b16 %v1191, %v1188
    %v1234 = vpack.c.b16 %v1192, %v1189
    %v1235 = vpack.c.b16 %v1196, %v1193
    %v1236 = vpack.c.b16 %v1197, %v1194
    %v1237 = vpack.c.b16 %v1198, %v1195
    %v1238 = vpack.c.b16 %v1202, %v1199
    %v1239 = vpack.c.b16 %v1203, %v1200
    %v1240 = vpack.c.b16 %v1204, %v1201
    %v1241 = vpack.c.b16 %v1208, %v1205
    %v1242 = vpack.c.b16 %v1209, %v1206
    %v1243 = vpack.c.b16 %v1210, %v1207
    %v1244 = vpack.c.b16 %v1214, %v1211
    %v1245 = vpack.c.b16 %v1215, %v1212
    %v1246 = vpack.c.b16 %v1216, %v1213
    %v1247 = vpack.c.b16 %v1220, %v1217
    %v1248 = vpack.c.b16 %v1221, %v1218
    %v1249 = vpack.c.b16 %v1222, %v1219
    %v1250 = vpack.c.b16 %v1226, %v1223
    %v1251 = vpack.c.b16 %v1227, %v1224
    %v1252 = vpack.c.b16 %v1228, %v1225
    %1277 = vmatprep.subr.bf16.mxu0 %v1230
    %1278 = vmatpush1.bf16.msra.mxu0 %v1229
    %1279 = vmatprep.subr.bf16.mxu0 %v1233
    %1280 = vmatpush1.bf16.msra.mxu0 %v1232
    %1281 = vmatprep.subr.bf16.mxu0 %v1236
    %1282 = vmatpush1.bf16.msra.mxu0 %v1235
    %1283 = vmatprep.subr.bf16.mxu0 %v1239
    %1284 = vmatpush1.bf16.msra.mxu0 %v1238
    %1285 = vmatprep.subr.bf16.mxu0 %v1242
    %1286 = vmatpush1.bf16.msra.mxu0 %v1241
    %1287 = vmatprep.subr.bf16.mxu0 %v1245
    %1288 = vmatpush1.bf16.msra.mxu0 %v1244
    %1289 = vmatprep.subr.bf16.mxu0 %v1248
    %1290 = vmatpush1.bf16.msra.mxu0 %v1247
    %1291 = vmatprep.subr.bf16.mxu0 %v1251
    %1292 = vmatpush1.bf16.msra.mxu0 %v1250
    %1293 = vmatprep.subr.bf16.mxu0 0
    %1294 = vmatpush1.bf16.msra.mxu0 0
    %1295 = vmatprep.subr.bf16.mxu0 0
    %1296 = vmatpush1.bf16.msra.mxu0 0
    %1297 = vmatprep.subr.bf16.mxu0 0
    %1298 = vmatpush1.bf16.msra.mxu0 0
    %1299 = vmatprep.subr.bf16.mxu0 0
    %1300 = vmatpush1.bf16.msra.mxu0 0
    %1301 = vmatprep.subr.bf16.mxu0 0
    %1302 = vmatpush1.bf16.msra.mxu0 0
    %1303 = vmatprep.subr.bf16.mxu0 0
    %1304 = vmatpush1.bf16.msra.mxu0 0
    %1305 = vmatprep.subr.bf16.mxu0 0
    %1306 = vmatpush1.bf16.msra.mxu0 0
    %1307 = vmatprep.subr.bf16.mxu0 0
    %1308 = vmatpush1.bf16.msra.mxu0 0
    %1309 = vmatprep.mubr.bf16.mxu0 0
    %1310 = vmatmul.mubr.bf16.gmra.mrb[0].mxu0 %v1116
    %v1311 = vpop.f32.mrb[0].mxu0
    %v1312 = vadd.f32 0.0, %v1311
    %v1313 = vpop.f32.mrb[0].mxu0
    %v1314 = vadd.f32 0.0, %v1313
    %v1315 = vpop.f32.mrb[0].mxu0
    %v1316 = vpop.f32.mrb[0].mxu0
    %1317 = vdwg.mxu0
    %1318 = vmatprep.subr.bf16.mxu0 0
    %1319 = vmatpush1.bf16.msra.mxu0 %v1231
    %1320 = vmatprep.subr.bf16.mxu0 0
    %1321 = vmatpush1.bf16.msra.mxu0 %v1234
    %1322 = vmatprep.subr.bf16.mxu0 0
    %1323 = vmatpush1.bf16.msra.mxu0 %v1237
    %1324 = vmatprep.subr.bf16.mxu0 0
    %1325 = vmatpush1.bf16.msra.mxu0 %v1240
    %1326 = vmatprep.subr.bf16.mxu0 0
    %1327 = vmatpush1.bf16.msra.mxu0 %v1243
    %1328 = vmatprep.subr.bf16.mxu0 0
    %1329 = vmatpush1.bf16.msra.mxu0 %v1246
    %1330 = vmatprep.subr.bf16.mxu0 0
    %1331 = vmatpush1.bf16.msra.mxu0 %v1249
    %1332 = vmatprep.subr.bf16.mxu0 0
    %1333 = vmatpush1.bf16.msra.mxu0 %v1252
    %1334 = vmatprep.subr.bf16.mxu0 0
    %1335 = vmatpush1.bf16.msra.mxu0 0
    %1336 = vmatprep.subr.bf16.mxu0 0
    %1337 = vmatpush1.bf16.msra.mxu0 0
    %1338 = vmatprep.subr.bf16.mxu0 0
    %1339 = vmatpush1.bf16.msra.mxu0 0
    %1340 = vmatprep.subr.bf16.mxu0 0
    %1341 = vmatpush1.bf16.msra.mxu0 0
    %1342 = vmatprep.subr.bf16.mxu0 0
    %1343 = vmatpush1.bf16.msra.mxu0 0
    %1344 = vmatprep.subr.bf16.mxu0 0
    %1345 = vmatpush1.bf16.msra.mxu0 0
    %1346 = vmatprep.subr.bf16.mxu0 0
    %1347 = vmatpush1.bf16.msra.mxu0 0
    %1348 = vmatprep.subr.bf16.mxu0 0
    %1349 = vmatpush1.bf16.msra.mxu0 0
    %1350 = vmatprep.mubr.bf16.mxu0 0
    %1351 = vmatmul.mubr.bf16.gmra.mrb[0].mxu0 %v1116
    %v1352 = vpop.f32.mrb[0].mxu0
    %v1353 = vadd.f32 0.0, %v1352
    %v1354 = vpop.f32.mrb[0].mxu0
    %v1355 = vpop.f32.mrb[0].mxu0
    %v1356 = vpop.f32.mrb[0].mxu0
    %1357 = vdwg.mxu0
    %v1358 = vld [vmem:[#allocation6] ss:$8 sm:$0x7]
    %v1361 = vcombine.low %v1312, %v1314
    %v1363 = vunpack.c.l.s4 1966171168
    %v1364 = vunpack.c.0.s8 %v1363
    %v1365 = vlaneseq
    %v1366 = vshrl.u32 %v1365, 7
    %v1367 = vsub.s32 %v1364, %v1366
    %v1368 = vrot.slane %v1361, %v1367
    %v1370 = vunpack.c.l.s4 1966171168
    %v1371 = vunpack.c.0.s8 %v1370
    %v1372 = vlaneseq
    %v1373 = vshrl.u32 %v1372, 7
    %v1374 = vsub.s32 %v1371, %v1373
    %v1375 = vrot.slane %v1368, %v1374
    %v1377 = vadd.f32 %v1358, %v1375
    %v1378 = vxor.u32 %v1377, 2147483648
    %v1379 = vmul.f32 %v1378, 1.442695
    %v1380 = vpow.pop %v1379
    %v1381 = vadd.f32 %v1380, 1.0
    %v1382 = vrcp.pop %v1381
    %v1383 = vmul.f32 1.0, %v1382
    %v1384 = vld [vmem:[%s33] sm:$0x1]
    %v1385 = vadd.f32 %v1353, %v1384
    %v1386 = vmul.f32 %v1383, %v1385
    %v1388 = vrot.slane %v1358, 2
    %v1390 = vadd.f32 %v1388, %v1386
    %v1391 = vtanh.pop %v1390
    %v1393 = vrot.slane %v1383, 1
    %v1395 = vsub.f32 1.0, %v1393
    %v1396 = vmul.f32 %v1395, %v1391
    %v1397 = vmul.f32 %v1393, %v831
    %v1398 = vadd.f32 %v1396, %v1397
    %v1399 = vpack.c.bf16 %v832, %v832
    %v1400 = vld [vmem:[#allocation28] sm:$0xff]
    %v1401 = vld [vmem:[#allocation28 + $0x8] sm:$0xf]
    %v1402 = vld [vmem:[#allocation28 + $0xc] sm:$0xff]
    %v1403 = vld [vmem:[#allocation28 + $0x14] sm:$0xf]
    %v1404 = vld [vmem:[#allocation28 + $0x18] sm:$0xff]
    %v1405 = vld [vmem:[#allocation28 + $0x20] sm:$0xf]
    %v1406 = vld [vmem:[#allocation28 + $0x24] sm:$0xff]
    %v1407 = vld [vmem:[#allocation28 + $0x2c] sm:$0xf]
    %v1408 = vld [vmem:[#allocation28 + $0x30] sm:$0xff]
    %v1409 = vld [vmem:[#allocation28 + $0x38] sm:$0xf]
    %v1410 = vld [vmem:[#allocation28 + $0x3c] sm:$0xff]
    %v1411 = vld [vmem:[#allocation28 + $0x44] sm:$0xf]
    %v1412 = vld [vmem:[#allocation28 + $0x48] sm:$0xff]
    %v1413 = vld [vmem:[#allocation28 + $0x50] sm:$0xf]
    %v1414 = vld [vmem:[#allocation28 + $0x54] sm:$0xff]
    %v1415 = vld [vmem:[#allocation28 + $0x5c] sm:$0xf]
    %v1416 = vld [vmem:[#allocation28 + $0x60] sm:$0xff]
    %v1417 = vld [vmem:[#allocation28 + $0x68] sm:$0xf]
    %v1418 = vld [vmem:[#allocation28 + $0x6c] sm:$0xff]
    %v1419 = vld [vmem:[#allocation28 + $0x74] sm:$0xf]
    %v1420 = vld [vmem:[#allocation28 + $0x78] sm:$0xff]
    %v1421 = vld [vmem:[#allocation28 + $0x80] sm:$0xf]
    %v1422 = vld [vmem:[#allocation28 + $0x84] sm:$0xff]
    %v1423 = vld [vmem:[#allocation28 + $0x8c] sm:$0xf]
    %v1424 = vld [vmem:[#allocation28 + $0x90] sm:$0xff]
    %v1425 = vld [vmem:[#allocation28 + $0x98] sm:$0xf]
    %v1426 = vld [vmem:[#allocation28 + $0x9c] sm:$0xff]
    %v1427 = vld [vmem:[#allocation28 + $0xa4] sm:$0xf]
    %v1428 = vld [vmem:[#allocation28 + $0xa8] sm:$0xff]
    %v1429 = vld [vmem:[#allocation28 + $0xb0] sm:$0xf]
    %v1430 = vld [vmem:[#allocation28 + $0xb4] sm:$0xff]
    %v1431 = vld [vmem:[#allocation28 + $0xbc] sm:$0xf]
    %v1464 = vunpack.c.l.b16 %v1400
    %v1465 = vunpack.c.h.b16 %v1400
    %v1466 = vunpack.c.l.b16 %v1401
    %v1467 = vunpack.c.l.b16 %v1402
    %v1468 = vunpack.c.h.b16 %v1402
    %v1469 = vunpack.c.l.b16 %v1403
    %v1470 = vunpack.c.l.b16 %v1404
    %v1471 = vunpack.c.h.b16 %v1404
    %v1472 = vunpack.c.l.b16 %v1405
    %v1473 = vunpack.c.l.b16 %v1406
    %v1474 = vunpack.c.h.b16 %v1406
    %v1475 = vunpack.c.l.b16 %v1407
    %v1476 = vunpack.c.l.b16 %v1408
    %v1477 = vunpack.c.h.b16 %v1408
    %v1478 = vunpack.c.l.b16 %v1409
    %v1479 = vunpack.c.l.b16 %v1410
    %v1480 = vunpack.c.h.b16 %v1410
    %v1481 = vunpack.c.l.b16 %v1411
    %v1482 = vunpack.c.l.b16 %v1412
    %v1483 = vunpack.c.h.b16 %v1412
    %v1484 = vunpack.c.l.b16 %v1413
    %v1485 = vunpack.c.l.b16 %v1414
    %v1486 = vunpack.c.h.b16 %v1414
    %v1487 = vunpack.c.l.b16 %v1415
    %v1488 = vunpack.c.l.b16 %v1416
    %v1489 = vunpack.c.h.b16 %v1416
    %v1490 = vunpack.c.l.b16 %v1417
    %v1491 = vunpack.c.l.b16 %v1418
    %v1492 = vunpack.c.h.b16 %v1418
    %v1493 = vunpack.c.l.b16 %v1419
    %v1494 = vunpack.c.l.b16 %v1420
    %v1495 = vunpack.c.h.b16 %v1420
    %v1496 = vunpack.c.l.b16 %v1421
    %v1497 = vunpack.c.l.b16 %v1422
    %v1498 = vunpack.c.h.b16 %v1422
    %v1499 = vunpack.c.l.b16 %v1423
    %v1500 = vunpack.c.l.b16 %v1424
    %v1501 = vunpack.c.h.b16 %v1424
    %v1502 = vunpack.c.l.b16 %v1425
    %v1503 = vunpack.c.l.b16 %v1426
    %v1504 = vunpack.c.h.b16 %v1426
    %v1505 = vunpack.c.l.b16 %v1427
    %v1506 = vunpack.c.l.b16 %v1428
    %v1507 = vunpack.c.h.b16 %v1428
    %v1508 = vunpack.c.l.b16 %v1429
    %v1509 = vunpack.c.l.b16 %v1430
    %v1510 = vunpack.c.h.b16 %v1430
    %v1511 = vunpack.c.l.b16 %v1431
    %v1512 = vpack.c.b16 %v1467, %v1464
    %v1513 = vpack.c.b16 %v1468, %v1465
    %v1514 = vpack.c.b16 %v1469, %v1466
    %v1515 = vpack.c.b16 %v1473, %v1470
    %v1516 = vpack.c.b16 %v1474, %v1471
    %v1517 = vpack.c.b16 %v1475, %v1472
    %v1518 = vpack.c.b16 %v1479, %v1476
    %v1519 = vpack.c.b16 %v1480, %v1477
    %v1520 = vpack.c.b16 %v1481, %v1478
    %v1521 = vpack.c.b16 %v1485, %v1482
    %v1522 = vpack.c.b16 %v1486, %v1483
    %v1523 = vpack.c.b16 %v1487, %v1484
    %v1524 = vpack.c.b16 %v1491, %v1488
    %v1525 = vpack.c.b16 %v1492, %v1489
    %v1526 = vpack.c.b16 %v1493, %v1490
    %v1527 = vpack.c.b16 %v1497, %v1494
    %v1528 = vpack.c.b16 %v1498, %v1495
    %v1529 = vpack.c.b16 %v1499, %v1496
    %v1530 = vpack.c.b16 %v1503, %v1500
    %v1531 = vpack.c.b16 %v1504, %v1501
    %v1532 = vpack.c.b16 %v1505, %v1502
    %v1533 = vpack.c.b16 %v1509, %v1506
    %v1534 = vpack.c.b16 %v1510, %v1507
    %v1535 = vpack.c.b16 %v1511, %v1508
    %1560 = vmatprep.subr.bf16.mxu0 %v1513
    %1561 = vmatpush1.bf16.msra.mxu0 %v1512
    %1562 = vmatprep.subr.bf16.mxu0 %v1516
    %1563 = vmatpush1.bf16.msra.mxu0 %v1515
    %1564 = vmatprep.subr.bf16.mxu0 %v1519
    %1565 = vmatpush1.bf16.msra.mxu0 %v1518
    %1566 = vmatprep.subr.bf16.mxu0 %v1522
    %1567 = vmatpush1.bf16.msra.mxu0 %v1521
    %1568 = vmatprep.subr.bf16.mxu0 %v1525
    %1569 = vmatpush1.bf16.msra.mxu0 %v1524
    %1570 = vmatprep.subr.bf16.mxu0 %v1528
    %1571 = vmatpush1.bf16.msra.mxu0 %v1527
    %1572 = vmatprep.subr.bf16.mxu0 %v1531
    %1573 = vmatpush1.bf16.msra.mxu0 %v1530
    %1574 = vmatprep.subr.bf16.mxu0 %v1534
    %1575 = vmatpush1.bf16.msra.mxu0 %v1533
    %1576 = vmatprep.subr.bf16.mxu0 0
    %1577 = vmatpush1.bf16.msra.mxu0 0
    %1578 = vmatprep.subr.bf16.mxu0 0
    %1579 = vmatpush1.bf16.msra.mxu0 0
    %1580 = vmatprep.subr.bf16.mxu0 0
    %1581 = vmatpush1.bf16.msra.mxu0 0
    %1582 = vmatprep.subr.bf16.mxu0 0
    %1583 = vmatpush1.bf16.msra.mxu0 0
    %1584 = vmatprep.subr.bf16.mxu0 0
    %1585 = vmatpush1.bf16.msra.mxu0 0
    %1586 = vmatprep.subr.bf16.mxu0 0
    %1587 = vmatpush1.bf16.msra.mxu0 0
    %1588 = vmatprep.subr.bf16.mxu0 0
    %1589 = vmatpush1.bf16.msra.mxu0 0
    %1590 = vmatprep.subr.bf16.mxu0 0
    %1591 = vmatpush1.bf16.msra.mxu0 0
    %1592 = vmatprep.mubr.bf16.mxu0 0
    %1593 = vmatmul.mubr.bf16.gmra.mrb[0].mxu0 %v1399
    %v1594 = vpop.f32.mrb[0].mxu0
    %v1595 = vadd.f32 0.0, %v1594
    %v1596 = vpop.f32.mrb[0].mxu0
    %v1597 = vadd.f32 0.0, %v1596
    %v1598 = vpop.f32.mrb[0].mxu0
    %v1599 = vpop.f32.mrb[0].mxu0
    %1600 = vdwg.mxu0
    %1601 = vmatprep.subr.bf16.mxu0 0
    %1602 = vmatpush1.bf16.msra.mxu0 %v1514
    %1603 = vmatprep.subr.bf16.mxu0 0
    %1604 = vmatpush1.bf16.msra.mxu0 %v1517
    %1605 = vmatprep.subr.bf16.mxu0 0
    %1606 = vmatpush1.bf16.msra.mxu0 %v1520
    %1607 = vmatprep.subr.bf16.mxu0 0
    %1608 = vmatpush1.bf16.msra.mxu0 %v1523
    %1609 = vmatprep.subr.bf16.mxu0 0
    %1610 = vmatpush1.bf16.msra.mxu0 %v1526
    %1611 = vmatprep.subr.bf16.mxu0 0
    %1612 = vmatpush1.bf16.msra.mxu0 %v1529
    %1613 = vmatprep.subr.bf16.mxu0 0
    %1614 = vmatpush1.bf16.msra.mxu0 %v1532
    %1615 = vmatprep.subr.bf16.mxu0 0
    %1616 = vmatpush1.bf16.msra.mxu0 %v1535
    %1617 = vmatprep.subr.bf16.mxu0 0
    %1618 = vmatpush1.bf16.msra.mxu0 0
    %1619 = vmatprep.subr.bf16.mxu0 0
    %1620 = vmatpush1.bf16.msra.mxu0 0
    %1621 = vmatprep.subr.bf16.mxu0 0
    %1622 = vmatpush1.bf16.msra.mxu0 0
    %1623 = vmatprep.subr.bf16.mxu0 0
    %1624 = vmatpush1.bf16.msra.mxu0 0
    %1625 = vmatprep.subr.bf16.mxu0 0
    %1626 = vmatpush1.bf16.msra.mxu0 0
    %1627 = vmatprep.subr.bf16.mxu0 0
    %1628 = vmatpush1.bf16.msra.mxu0 0
    %1629 = vmatprep.subr.bf16.mxu0 0
    %1630 = vmatpush1.bf16.msra.mxu0 0
    %1631 = vmatprep.subr.bf16.mxu0 0
    %1632 = vmatpush1.bf16.msra.mxu0 0
    %1633 = vmatprep.mubr.bf16.mxu0 0
    %1634 = vmatmul.mubr.bf16.gmra.mrb[0].mxu0 %v1399
    %v1635 = vpop.f32.mrb[0].mxu0
    %v1636 = vadd.f32 0.0, %v1635
    %v1637 = vpop.f32.mrb[0].mxu0
    %v1638 = vpop.f32.mrb[0].mxu0
    %v1639 = vpop.f32.mrb[0].mxu0
    %1640 = vdwg.mxu0
    %v1641 = vld [vmem:[#allocation7] ss:$8 sm:$0x7]
    %v1644 = vcombine.low %v1595, %v1597
    %v1646 = vunpack.c.l.s4 1966171168
    %v1647 = vunpack.c.0.s8 %v1646
    %v1648 = vlaneseq
    %v1649 = vshrl.u32 %v1648, 7
    %v1650 = vsub.s32 %v1647, %v1649
    %v1651 = vrot.slane %v1644, %v1650
    %v1653 = vunpack.c.l.s4 1966171168
    %v1654 = vunpack.c.0.s8 %v1653
    %v1655 = vlaneseq
    %v1656 = vshrl.u32 %v1655, 7
    %v1657 = vsub.s32 %v1654, %v1656
    %v1658 = vrot.slane %v1651, %v1657
    %v1660 = vadd.f32 %v1641, %v1658
    %v1661 = vxor.u32 %v1660, 2147483648
    %v1662 = vmul.f32 %v1661, 1.442695
    %v1663 = vpow.pop %v1662
    %v1664 = vadd.f32 %v1663, 1.0
    %v1665 = vrcp.pop %v1664
    %v1666 = vmul.f32 1.0, %v1665
    %v1667 = vld [vmem:[%s41] sm:$0x1]
    %v1668 = vadd.f32 %v1636, %v1667
    %v1669 = vmul.f32 %v1666, %v1668
    %v1671 = vrot.slane %v1641, 2
    %v1673 = vadd.f32 %v1671, %v1669
    %v1674 = vtanh.pop %v1673
    %v1676 = vrot.slane %v1666, 1
    %v1678 = vsub.f32 1.0, %v1676
    %v1679 = vmul.f32 %v1678, %v1674
    %v1680 = vmul.f32 %v1676, %v832
    %v1681 = vadd.f32 %v1679, %v1680
    %1682 = vst [vmem:[#allocation8] sm:$0x1] %v1681
    %v1683 = vpack.c.bf16 %v1115, %v1115
    %v1684 = vld [vmem:[%s21] sm:$0xff]
    %v1685 = vld [vmem:[%s21 + $0x8] sm:$0xf]
    %v1686 = vld [vmem:[%s21 + $0xc] sm:$0xff]
    %v1687 = vld [vmem:[%s21 + $0x14] sm:$0xf]
    %v1688 = vld [vmem:[%s21 + $0x18] sm:$0xff]
    %v1689 = vld [vmem:[%s21 + $0x20] sm:$0xf]
    %v1690 = vld [vmem:[%s21 + $0x24] sm:$0xff]
    %v1691 = vld [vmem:[%s21 + $0x2c] sm:$0xf]
    %v1692 = vld [vmem:[%s21 + $0x30] sm:$0xff]
    %v1693 = vld [vmem:[%s21 + $0x38] sm:$0xf]
    %v1694 = vld [vmem:[%s21 + $0x3c] sm:$0xff]
    %v1695 = vld [vmem:[%s21 + $0x44] sm:$0xf]
    %v1696 = vld [vmem:[%s21 + $0x48] sm:$0xff]
    %v1697 = vld [vmem:[%s21 + $0x50] sm:$0xf]
    %v1698 = vld [vmem:[%s21 + $0x54] sm:$0xff]
    %v1699 = vld [vmem:[%s21 + $0x5c] sm:$0xf]
    %v1700 = vld [vmem:[%s21 + $0x60] sm:$0xff]
    %v1701 = vld [vmem:[%s21 + $0x68] sm:$0xf]
    %v1702 = vld [vmem:[%s21 + $0x6c] sm:$0xff]
    %v1703 = vld [vmem:[%s21 + $0x74] sm:$0xf]
    %v1704 = vld [vmem:[%s21 + $0x78] sm:$0xff]
    %v1705 = vld [vmem:[%s21 + $0x80] sm:$0xf]
    %v1706 = vld [vmem:[%s21 + $0x84] sm:$0xff]
    %v1707 = vld [vmem:[%s21 + $0x8c] sm:$0xf]
    %v1708 = vld [vmem:[%s21 + $0x90] sm:$0xff]
    %v1709 = vld [vmem:[%s21 + $0x98] sm:$0xf]
    %v1710 = vld [vmem:[%s21 + $0x9c] sm:$0xff]
    %v1711 = vld [vmem:[%s21 + $0xa4] sm:$0xf]
    %v1712 = vld [vmem:[%s21 + $0xa8] sm:$0xff]
    %v1713 = vld [vmem:[%s21 + $0xb0] sm:$0xf]
    %v1714 = vld [vmem:[%s21 + $0xb4] sm:$0xff]
    %v1715 = vld [vmem:[%s21 + $0xbc] sm:$0xf]
    %v1748 = vunpack.c.l.b16 %v1684
    %v1749 = vunpack.c.h.b16 %v1684
    %v1750 = vunpack.c.l.b16 %v1685
    %v1751 = vunpack.c.l.b16 %v1686
    %v1752 = vunpack.c.h.b16 %v1686
    %v1753 = vunpack.c.l.b16 %v1687
    %v1754 = vunpack.c.l.b16 %v1688
    %v1755 = vunpack.c.h.b16 %v1688
    %v1756 = vunpack.c.l.b16 %v1689
    %v1757 = vunpack.c.l.b16 %v1690
    %v1758 = vunpack.c.h.b16 %v1690
    %v1759 = vunpack.c.l.b16 %v1691
    %v1760 = vunpack.c.l.b16 %v1692
    %v1761 = vunpack.c.h.b16 %v1692
    %v1762 = vunpack.c.l.b16 %v1693
    %v1763 = vunpack.c.l.b16 %v1694
    %v1764 = vunpack.c.h.b16 %v1694
    %v1765 = vunpack.c.l.b16 %v1695
    %v1766 = vunpack.c.l.b16 %v1696
    %v1767 = vunpack.c.h.b16 %v1696
    %v1768 = vunpack.c.l.b16 %v1697
    %v1769 = vunpack.c.l.b16 %v1698
    %v1770 = vunpack.c.h.b16 %v1698
    %v1771 = vunpack.c.l.b16 %v1699
    %v1772 = vunpack.c.l.b16 %v1700
    %v1773 = vunpack.c.h.b16 %v1700
    %v1774 = vunpack.c.l.b16 %v1701
    %v1775 = vunpack.c.l.b16 %v1702
    %v1776 = vunpack.c.h.b16 %v1702
    %v1777 = vunpack.c.l.b16 %v1703
    %v1778 = vunpack.c.l.b16 %v1704
    %v1779 = vunpack.c.h.b16 %v1704
    %v1780 = vunpack.c.l.b16 %v1705
    %v1781 = vunpack.c.l.b16 %v1706
    %v1782 = vunpack.c.h.b16 %v1706
    %v1783 = vunpack.c.l.b16 %v1707
    %v1784 = vunpack.c.l.b16 %v1708
    %v1785 = vunpack.c.h.b16 %v1708
    %v1786 = vunpack.c.l.b16 %v1709
    %v1787 = vunpack.c.l.b16 %v1710
    %v1788 = vunpack.c.h.b16 %v1710
    %v1789 = vunpack.c.l.b16 %v1711
    %v1790 = vunpack.c.l.b16 %v1712
    %v1791 = vunpack.c.h.b16 %v1712
    %v1792 = vunpack.c.l.b16 %v1713
    %v1793 = vunpack.c.l.b16 %v1714
    %v1794 = vunpack.c.h.b16 %v1714
    %v1795 = vunpack.c.l.b16 %v1715
    %v1796 = vpack.c.b16 %v1751, %v1748
    %v1797 = vpack.c.b16 %v1752, %v1749
    %v1798 = vpack.c.b16 %v1753, %v1750
    %v1799 = vpack.c.b16 %v1757, %v1754
    %v1800 = vpack.c.b16 %v1758, %v1755
    %v1801 = vpack.c.b16 %v1759, %v1756
    %v1802 = vpack.c.b16 %v1763, %v1760
    %v1803 = vpack.c.b16 %v1764, %v1761
    %v1804 = vpack.c.b16 %v1765, %v1762
    %v1805 = vpack.c.b16 %v1769, %v1766
    %v1806 = vpack.c.b16 %v1770, %v1767
    %v1807 = vpack.c.b16 %v1771, %v1768
    %v1808 = vpack.c.b16 %v1775, %v1772
    %v1809 = vpack.c.b16 %v1776, %v1773
    %v1810 = vpack.c.b16 %v1777, %v1774
    %v1811 = vpack.c.b16 %v1781, %v1778
    %v1812 = vpack.c.b16 %v1782, %v1779
    %v1813 = vpack.c.b16 %v1783, %v1780
    %v1814 = vpack.c.b16 %v1787, %v1784
    %v1815 = vpack.c.b16 %v1788, %v1785
    %v1816 = vpack.c.b16 %v1789, %v1786
    %v1817 = vpack.c.b16 %v1793, %v1790
    %v1818 = vpack.c.b16 %v1794, %v1791
    %v1819 = vpack.c.b16 %v1795, %v1792
    %1844 = vmatprep.subr.bf16.mxu0 %v1797
    %1845 = vmatpush1.bf16.msra.mxu0 %v1796
    %1846 = vmatprep.subr.bf16.mxu0 %v1800
    %1847 = vmatpush1.bf16.msra.mxu0 %v1799
    %1848 = vmatprep.subr.bf16.mxu0 %v1803
    %1849 = vmatpush1.bf16.msra.mxu0 %v1802
    %1850 = vmatprep.subr.bf16.mxu0 %v1806
    %1851 = vmatpush1.bf16.msra.mxu0 %v1805
    %1852 = vmatprep.subr.bf16.mxu0 %v1809
    %1853 = vmatpush1.bf16.msra.mxu0 %v1808
    %1854 = vmatprep.subr.bf16.mxu0 %v1812
    %1855 = vmatpush1.bf16.msra.mxu0 %v1811
    %1856 = vmatprep.subr.bf16.mxu0 %v1815
    %1857 = vmatpush1.bf16.msra.mxu0 %v1814
    %1858 = vmatprep.subr.bf16.mxu0 %v1818
    %1859 = vmatpush1.bf16.msra.mxu0 %v1817
    %1860 = vmatprep.subr.bf16.mxu0 0
    %1861 = vmatpush1.bf16.msra.mxu0 0
    %1862 = vmatprep.subr.bf16.mxu0 0
    %1863 = vmatpush1.bf16.msra.mxu0 0
    %1864 = vmatprep.subr.bf16.mxu0 0
    %1865 = vmatpush1.bf16.msra.mxu0 0
    %1866 = vmatprep.subr.bf16.mxu0 0
    %1867 = vmatpush1.bf16.msra.mxu0 0
    %1868 = vmatprep.subr.bf16.mxu0 0
    %1869 = vmatpush1.bf16.msra.mxu0 0
    %1870 = vmatprep.subr.bf16.mxu0 0
    %1871 = vmatpush1.bf16.msra.mxu0 0
    %1872 = vmatprep.subr.bf16.mxu0 0
    %1873 = vmatpush1.bf16.msra.mxu0 0
    %1874 = vmatprep.subr.bf16.mxu0 0
    %1875 = vmatpush1.bf16.msra.mxu0 0
    %1876 = vmatprep.mubr.bf16.mxu0 0
    %1877 = vmatmul.mubr.bf16.gmra.mrb[0].mxu0 %v1683
    %v1878 = vpop.f32.mrb[0].mxu0
    %v1879 = vadd.f32 0.0, %v1878
    %v1880 = vpop.f32.mrb[0].mxu0
    %v1881 = vadd.f32 0.0, %v1880
    %v1882 = vpop.f32.mrb[0].mxu0
    %v1883 = vpop.f32.mrb[0].mxu0
    %1884 = vdwg.mxu0
    %1885 = vmatprep.subr.bf16.mxu0 0
    %1886 = vmatpush1.bf16.msra.mxu0 %v1798
    %1887 = vmatprep.subr.bf16.mxu0 0
    %1888 = vmatpush1.bf16.msra.mxu0 %v1801
    %1889 = vmatprep.subr.bf16.mxu0 0
    %1890 = vmatpush1.bf16.msra.mxu0 %v1804
    %1891 = vmatprep.subr.bf16.mxu0 0
    %1892 = vmatpush1.bf16.msra.mxu0 %v1807
    %1893 = vmatprep.subr.bf16.mxu0 0
    %1894 = vmatpush1.bf16.msra.mxu0 %v1810
    %1895 = vmatprep.subr.bf16.mxu0 0
    %1896 = vmatpush1.bf16.msra.mxu0 %v1813
    %1897 = vmatprep.subr.bf16.mxu0 0
    %1898 = vmatpush1.bf16.msra.mxu0 %v1816
    %1899 = vmatprep.subr.bf16.mxu0 0
    %1900 = vmatpush1.bf16.msra.mxu0 %v1819
    %1901 = vmatprep.subr.bf16.mxu0 0
    %1902 = vmatpush1.bf16.msra.mxu0 0
    %1903 = vmatprep.subr.bf16.mxu0 0
    %1904 = vmatpush1.bf16.msra.mxu0 0
    %1905 = vmatprep.subr.bf16.mxu0 0
    %1906 = vmatpush1.bf16.msra.mxu0 0
    %1907 = vmatprep.subr.bf16.mxu0 0
    %1908 = vmatpush1.bf16.msra.mxu0 0
    %1909 = vmatprep.subr.bf16.mxu0 0
    %1910 = vmatpush1.bf16.msra.mxu0 0
    %1911 = vmatprep.subr.bf16.mxu0 0
    %1912 = vmatpush1.bf16.msra.mxu0 0
    %1913 = vmatprep.subr.bf16.mxu0 0
    %1914 = vmatpush1.bf16.msra.mxu0 0
    %1915 = vmatprep.subr.bf16.mxu0 0
    %1916 = vmatpush1.bf16.msra.mxu0 0
    %1917 = vmatprep.mubr.bf16.mxu0 0
    %1918 = vmatmul.mubr.bf16.gmra.mrb[0].mxu0 %v1683
    %v1919 = vpop.f32.mrb[0].mxu0
    %v1920 = vadd.f32 0.0, %v1919
    %v1921 = vpop.f32.mrb[0].mxu0
    %v1922 = vpop.f32.mrb[0].mxu0
    %v1923 = vpop.f32.mrb[0].mxu0
    %1924 = vdwg.mxu0
    %s1925 = scalar_lea.vmem [#allocation5], 1
    %v1926 = vld [vmem:[%s1925] ss:$8 sm:$0x7]
    %v1929 = vcombine.low %v1879, %v1881
    %v1931 = vunpack.c.l.s4 1966171168
    %v1932 = vunpack.c.0.s8 %v1931
    %v1933 = vlaneseq
    %v1934 = vshrl.u32 %v1933, 7
    %v1935 = vsub.s32 %v1932, %v1934
    %v1936 = vrot.slane %v1929, %v1935
    %v1938 = vunpack.c.l.s4 1966171168
    %v1939 = vunpack.c.0.s8 %v1938
    %v1940 = vlaneseq
    %v1941 = vshrl.u32 %v1940, 7
    %v1942 = vsub.s32 %v1939, %v1941
    %v1943 = vrot.slane %v1936, %v1942
    %v1945 = vadd.f32 %v1926, %v1943
    %v1946 = vxor.u32 %v1945, 2147483648
    %v1947 = vmul.f32 %v1946, 1.442695
    %v1948 = vpow.pop %v1947
    %v1949 = vadd.f32 %v1948, 1.0
    %v1950 = vrcp.pop %v1949
    %v1951 = vmul.f32 1.0, %v1950
    %v1952 = vld [vmem:[%s25] sm:$0x1]
    %v1953 = vadd.f32 %v1920, %v1952
    %v1954 = vmul.f32 %v1951, %v1953
    %v1956 = vrot.slane %v1926, 2
    %v1958 = vadd.f32 %v1956, %v1954
    %v1959 = vtanh.pop %v1958
    %v1961 = vrot.slane %v1951, 1
    %v1963 = vsub.f32 1.0, %v1961
    %v1964 = vmul.f32 %v1963, %v1959
    %v1965 = vmul.f32 %v1961, %v1115
    %v1966 = vadd.f32 %v1964, %v1965
    %v1967 = vpack.c.bf16 %v1398, %v1398
    %v1968 = vld [vmem:[#allocation25] sm:$0xff]
    %v1969 = vld [vmem:[#allocation25 + $0x8] sm:$0xf]
    %v1970 = vld [vmem:[#allocation25 + $0xc] sm:$0xff]
    %v1971 = vld [vmem:[#allocation25 + $0x14] sm:$0xf]
    %v1972 = vld [vmem:[#allocation25 + $0x18] sm:$0xff]
    %v1973 = vld [vmem:[#allocation25 + $0x20] sm:$0xf]
    %v1974 = vld [vmem:[#allocation25 + $0x24] sm:$0xff]
    %v1975 = vld [vmem:[#allocation25 + $0x2c] sm:$0xf]
    %v1976 = vld [vmem:[#allocation25 + $0x30] sm:$0xff]
    %v1977 = vld [vmem:[#allocation25 + $0x38] sm:$0xf]
    %v1978 = vld [vmem:[#allocation25 + $0x3c] sm:$0xff]
    %v1979 = vld [vmem:[#allocation25 + $0x44] sm:$0xf]
    %v1980 = vld [vmem:[#allocation25 + $0x48] sm:$0xff]
    %v1981 = vld [vmem:[#allocation25 + $0x50] sm:$0xf]
    %v1982 = vld [vmem:[#allocation25 + $0x54] sm:$0xff]
    %v1983 = vld [vmem:[#allocation25 + $0x5c] sm:$0xf]
    %v1984 = vld [vmem:[#allocation25 + $0x60] sm:$0xff]
    %v1985 = vld [vmem:[#allocation25 + $0x68] sm:$0xf]
    %v1986 = vld [vmem:[#allocation25 + $0x6c] sm:$0xff]
    %v1987 = vld [vmem:[#allocation25 + $0x74] sm:$0xf]
    %v1988 = vld [vmem:[#allocation25 + $0x78] sm:$0xff]
    %v1989 = vld [vmem:[#allocation25 + $0x80] sm:$0xf]
    %v1990 = vld [vmem:[#allocation25 + $0x84] sm:$0xff]
    %v1991 = vld [vmem:[#allocation25 + $0x8c] sm:$0xf]
    %v1992 = vld [vmem:[#allocation25 + $0x90] sm:$0xff]
    %v1993 = vld [vmem:[#allocation25 + $0x98] sm:$0xf]
    %v1994 = vld [vmem:[#allocation25 + $0x9c] sm:$0xff]
    %v1995 = vld [vmem:[#allocation25 + $0xa4] sm:$0xf]
    %v1996 = vld [vmem:[#allocation25 + $0xa8] sm:$0xff]
    %v1997 = vld [vmem:[#allocation25 + $0xb0] sm:$0xf]
    %v1998 = vld [vmem:[#allocation25 + $0xb4] sm:$0xff]
    %v1999 = vld [vmem:[#allocation25 + $0xbc] sm:$0xf]
    %v2032 = vunpack.c.l.b16 %v1968
    %v2033 = vunpack.c.h.b16 %v1968
    %v2034 = vunpack.c.l.b16 %v1969
    %v2035 = vunpack.c.l.b16 %v1970
    %v2036 = vunpack.c.h.b16 %v1970
    %v2037 = vunpack.c.l.b16 %v1971
    %v2038 = vunpack.c.l.b16 %v1972
    %v2039 = vunpack.c.h.b16 %v1972
    %v2040 = vunpack.c.l.b16 %v1973
    %v2041 = vunpack.c.l.b16 %v1974
    %v2042 = vunpack.c.h.b16 %v1974
    %v2043 = vunpack.c.l.b16 %v1975
    %v2044 = vunpack.c.l.b16 %v1976
    %v2045 = vunpack.c.h.b16 %v1976
    %v2046 = vunpack.c.l.b16 %v1977
    %v2047 = vunpack.c.l.b16 %v1978
    %v2048 = vunpack.c.h.b16 %v1978
    %v2049 = vunpack.c.l.b16 %v1979
    %v2050 = vunpack.c.l.b16 %v1980
    %v2051 = vunpack.c.h.b16 %v1980
    %v2052 = vunpack.c.l.b16 %v1981
    %v2053 = vunpack.c.l.b16 %v1982
    %v2054 = vunpack.c.h.b16 %v1982
    %v2055 = vunpack.c.l.b16 %v1983
    %v2056 = vunpack.c.l.b16 %v1984
    %v2057 = vunpack.c.h.b16 %v1984
    %v2058 = vunpack.c.l.b16 %v1985
    %v2059 = vunpack.c.l.b16 %v1986
    %v2060 = vunpack.c.h.b16 %v1986
    %v2061 = vunpack.c.l.b16 %v1987
    %v2062 = vunpack.c.l.b16 %v1988
    %v2063 = vunpack.c.h.b16 %v1988
    %v2064 = vunpack.c.l.b16 %v1989
    %v2065 = vunpack.c.l.b16 %v1990
    %v2066 = vunpack.c.h.b16 %v1990
    %v2067 = vunpack.c.l.b16 %v1991
    %v2068 = vunpack.c.l.b16 %v1992
    %v2069 = vunpack.c.h.b16 %v1992
    %v2070 = vunpack.c.l.b16 %v1993
    %v2071 = vunpack.c.l.b16 %v1994
    %v2072 = vunpack.c.h.b16 %v1994
    %v2073 = vunpack.c.l.b16 %v1995
    %v2074 = vunpack.c.l.b16 %v1996
    %v2075 = vunpack.c.h.b16 %v1996
    %v2076 = vunpack.c.l.b16 %v1997
    %v2077 = vunpack.c.l.b16 %v1998
    %v2078 = vunpack.c.h.b16 %v1998
    %v2079 = vunpack.c.l.b16 %v1999
    %v2080 = vpack.c.b16 %v2035, %v2032
    %v2081 = vpack.c.b16 %v2036, %v2033
    %v2082 = vpack.c.b16 %v2037, %v2034
    %v2083 = vpack.c.b16 %v2041, %v2038
    %v2084 = vpack.c.b16 %v2042, %v2039
    %v2085 = vpack.c.b16 %v2043, %v2040
    %v2086 = vpack.c.b16 %v2047, %v2044
    %v2087 = vpack.c.b16 %v2048, %v2045
    %v2088 = vpack.c.b16 %v2049, %v2046
    %v2089 = vpack.c.b16 %v2053, %v2050
    %v2090 = vpack.c.b16 %v2054, %v2051
    %v2091 = vpack.c.b16 %v2055, %v2052
    %v2092 = vpack.c.b16 %v2059, %v2056
    %v2093 = vpack.c.b16 %v2060, %v2057
    %v2094 = vpack.c.b16 %v2061, %v2058
    %v2095 = vpack.c.b16 %v2065, %v2062
    %v2096 = vpack.c.b16 %v2066, %v2063
    %v2097 = vpack.c.b16 %v2067, %v2064
    %v2098 = vpack.c.b16 %v2071, %v2068
    %v2099 = vpack.c.b16 %v2072, %v2069
    %v2100 = vpack.c.b16 %v2073, %v2070
    %v2101 = vpack.c.b16 %v2077, %v2074
    %v2102 = vpack.c.b16 %v2078, %v2075
    %v2103 = vpack.c.b16 %v2079, %v2076
    %2128 = vmatprep.subr.bf16.mxu0 %v2081
    %2129 = vmatpush1.bf16.msra.mxu0 %v2080
    %2130 = vmatprep.subr.bf16.mxu0 %v2084
    %2131 = vmatpush1.bf16.msra.mxu0 %v2083
    %2132 = vmatprep.subr.bf16.mxu0 %v2087
    %2133 = vmatpush1.bf16.msra.mxu0 %v2086
    %2134 = vmatprep.subr.bf16.mxu0 %v2090
    %2135 = vmatpush1.bf16.msra.mxu0 %v2089
    %2136 = vmatprep.subr.bf16.mxu0 %v2093
    %2137 = vmatpush1.bf16.msra.mxu0 %v2092
    %2138 = vmatprep.subr.bf16.mxu0 %v2096
    %2139 = vmatpush1.bf16.msra.mxu0 %v2095
    %2140 = vmatprep.subr.bf16.mxu0 %v2099
    %2141 = vmatpush1.bf16.msra.mxu0 %v2098
    %2142 = vmatprep.subr.bf16.mxu0 %v2102
    %2143 = vmatpush1.bf16.msra.mxu0 %v2101
    %2144 = vmatprep.subr.bf16.mxu0 0
    %2145 = vmatpush1.bf16.msra.mxu0 0
    %2146 = vmatprep.subr.bf16.mxu0 0
    %2147 = vmatpush1.bf16.msra.mxu0 0
    %2148 = vmatprep.subr.bf16.mxu0 0
    %2149 = vmatpush1.bf16.msra.mxu0 0
    %2150 = vmatprep.subr.bf16.mxu0 0
    %2151 = vmatpush1.bf16.msra.mxu0 0
    %2152 = vmatprep.subr.bf16.mxu0 0
    %2153 = vmatpush1.bf16.msra.mxu0 0
    %2154 = vmatprep.subr.bf16.mxu0 0
    %2155 = vmatpush1.bf16.msra.mxu0 0
    %2156 = vmatprep.subr.bf16.mxu0 0
    %2157 = vmatpush1.bf16.msra.mxu0 0
    %2158 = vmatprep.subr.bf16.mxu0 0
    %2159 = vmatpush1.bf16.msra.mxu0 0
    %2160 = vmatprep.mubr.bf16.mxu0 0
    %2161 = vmatmul.mubr.bf16.gmra.mrb[0].mxu0 %v1967
    %v2162 = vpop.f32.mrb[0].mxu0
    %v2163 = vadd.f32 0.0, %v2162
    %v2164 = vpop.f32.mrb[0].mxu0
    %v2165 = vadd.f32 0.0, %v2164
    %v2166 = vpop.f32.mrb[0].mxu0
    %v2167 = vpop.f32.mrb[0].mxu0
    %2168 = vdwg.mxu0
    %2169 = vmatprep.subr.bf16.mxu0 0
    %2170 = vmatpush1.bf16.msra.mxu0 %v2082
    %2171 = vmatprep.subr.bf16.mxu0 0
    %2172 = vmatpush1.bf16.msra.mxu0 %v2085
    %2173 = vmatprep.subr.bf16.mxu0 0
    %2174 = vmatpush1.bf16.msra.mxu0 %v2088
    %2175 = vmatprep.subr.bf16.mxu0 0
    %2176 = vmatpush1.bf16.msra.mxu0 %v2091
    %2177 = vmatprep.subr.bf16.mxu0 0
    %2178 = vmatpush1.bf16.msra.mxu0 %v2094
    %2179 = vmatprep.subr.bf16.mxu0 0
    %2180 = vmatpush1.bf16.msra.mxu0 %v2097
    %2181 = vmatprep.subr.bf16.mxu0 0
    %2182 = vmatpush1.bf16.msra.mxu0 %v2100
    %2183 = vmatprep.subr.bf16.mxu0 0
    %2184 = vmatpush1.bf16.msra.mxu0 %v2103
    %2185 = vmatprep.subr.bf16.mxu0 0
    %2186 = vmatpush1.bf16.msra.mxu0 0
    %2187 = vmatprep.subr.bf16.mxu0 0
    %2188 = vmatpush1.bf16.msra.mxu0 0
    %2189 = vmatprep.subr.bf16.mxu0 0
    %2190 = vmatpush1.bf16.msra.mxu0 0
    %2191 = vmatprep.subr.bf16.mxu0 0
    %2192 = vmatpush1.bf16.msra.mxu0 0
    %2193 = vmatprep.subr.bf16.mxu0 0
    %2194 = vmatpush1.bf16.msra.mxu0 0
    %2195 = vmatprep.subr.bf16.mxu0 0
    %2196 = vmatpush1.bf16.msra.mxu0 0
    %2197 = vmatprep.subr.bf16.mxu0 0
    %2198 = vmatpush1.bf16.msra.mxu0 0
    %2199 = vmatprep.subr.bf16.mxu0 0
    %2200 = vmatpush1.bf16.msra.mxu0 0
    %2201 = vmatprep.mubr.bf16.mxu0 0
    %2202 = vmatmul.mubr.bf16.gmra.mrb[0].mxu0 %v1967
    %v2203 = vpop.f32.mrb[0].mxu0
    %v2204 = vadd.f32 0.0, %v2203
    %v2205 = vpop.f32.mrb[0].mxu0
    %v2206 = vpop.f32.mrb[0].mxu0
    %v2207 = vpop.f32.mrb[0].mxu0
    %2208 = vdwg.mxu0
    %s2209 = scalar_lea.vmem [#allocation6], 1
    %v2210 = vld [vmem:[%s2209] ss:$8 sm:$0x7]
    %v2213 = vcombine.low %v2163, %v2165
    %v2215 = vunpack.c.l.s4 1966171168
    %v2216 = vunpack.c.0.s8 %v2215
    %v2217 = vlaneseq
    %v2218 = vshrl.u32 %v2217, 7
    %v2219 = vsub.s32 %v2216, %v2218
    %v2220 = vrot.slane %v2213, %v2219
    %v2222 = vunpack.c.l.s4 1966171168
    %v2223 = vunpack.c.0.s8 %v2222
    %v2224 = vlaneseq
    %v2225 = vshrl.u32 %v2224, 7
    %v2226 = vsub.s32 %v2223, %v2225
    %v2227 = vrot.slane %v2220, %v2226
    %v2229 = vadd.f32 %v2210, %v2227
    %v2230 = vxor.u32 %v2229, 2147483648
    %v2231 = vmul.f32 %v2230, 1.442695
    %v2232 = vpow.pop %v2231
    %v2233 = vadd.f32 %v2232, 1.0
    %v2234 = vrcp.pop %v2233
    %v2235 = vmul.f32 1.0, %v2234
    %v2236 = vld [vmem:[%s33] sm:$0x1]
    %v2237 = vadd.f32 %v2204, %v2236
    %v2238 = vmul.f32 %v2235, %v2237
    %v2240 = vrot.slane %v2210, 2
    %v2242 = vadd.f32 %v2240, %v2238
    %v2243 = vtanh.pop %v2242
    %v2245 = vrot.slane %v2235, 1
    %v2247 = vsub.f32 1.0, %v2245
    %v2248 = vmul.f32 %v2247, %v2243
    %v2249 = vmul.f32 %v2245, %v1398
    %v2250 = vadd.f32 %v2248, %v2249
    %v2251 = vpack.c.bf16 %v1681, %v1681
    %v2252 = vld [vmem:[#allocation28] sm:$0xff]
    %v2253 = vld [vmem:[#allocation28 + $0x8] sm:$0xf]
    %v2254 = vld [vmem:[#allocation28 + $0xc] sm:$0xff]
    %v2255 = vld [vmem:[#allocation28 + $0x14] sm:$0xf]
    %v2256 = vld [vmem:[#allocation28 + $0x18] sm:$0xff]
    %v2257 = vld [vmem:[#allocation28 + $0x20] sm:$0xf]
    %v2258 = vld [vmem:[#allocation28 + $0x24] sm:$0xff]
    %v2259 = vld [vmem:[#allocation28 + $0x2c] sm:$0xf]
    %v2260 = vld [vmem:[#allocation28 + $0x30] sm:$0xff]
    %v2261 = vld [vmem:[#allocation28 + $0x38] sm:$0xf]
    %v2262 = vld [vmem:[#allocation28 + $0x3c] sm:$0xff]
    %v2263 = vld [vmem:[#allocation28 + $0x44] sm:$0xf]
    %v2264 = vld [vmem:[#allocation28 + $0x48] sm:$0xff]
    %v2265 = vld [vmem:[#allocation28 + $0x50] sm:$0xf]
    %v2266 = vld [vmem:[#allocation28 + $0x54] sm:$0xff]
    %v2267 = vld [vmem:[#allocation28 + $0x5c] sm:$0xf]
    %v2268 = vld [vmem:[#allocation28 + $0x60] sm:$0xff]
    %v2269 = vld [vmem:[#allocation28 + $0x68] sm:$0xf]
    %v2270 = vld [vmem:[#allocation28 + $0x6c] sm:$0xff]
    %v2271 = vld [vmem:[#allocation28 + $0x74] sm:$0xf]
    %v2272 = vld [vmem:[#allocation28 + $0x78] sm:$0xff]
    %v2273 = vld [vmem:[#allocation28 + $0x80] sm:$0xf]
    %v2274 = vld [vmem:[#allocation28 + $0x84] sm:$0xff]
    %v2275 = vld [vmem:[#allocation28 + $0x8c] sm:$0xf]
    %v2276 = vld [vmem:[#allocation28 + $0x90] sm:$0xff]
    %v2277 = vld [vmem:[#allocation28 + $0x98] sm:$0xf]
    %v2278 = vld [vmem:[#allocation28 + $0x9c] sm:$0xff]
    %v2279 = vld [vmem:[#allocation28 + $0xa4] sm:$0xf]
    %v2280 = vld [vmem:[#allocation28 + $0xa8] sm:$0xff]
    %v2281 = vld [vmem:[#allocation28 + $0xb0] sm:$0xf]
    %v2282 = vld [vmem:[#allocation28 + $0xb4] sm:$0xff]
    %v2283 = vld [vmem:[#allocation28 + $0xbc] sm:$0xf]
    %v2316 = vunpack.c.l.b16 %v2252
    %v2317 = vunpack.c.h.b16 %v2252
    %v2318 = vunpack.c.l.b16 %v2253
    %v2319 = vunpack.c.l.b16 %v2254
    %v2320 = vunpack.c.h.b16 %v2254
    %v2321 = vunpack.c.l.b16 %v2255
    %v2322 = vunpack.c.l.b16 %v2256
    %v2323 = vunpack.c.h.b16 %v2256
    %v2324 = vunpack.c.l.b16 %v2257
    %v2325 = vunpack.c.l.b16 %v2258
    %v2326 = vunpack.c.h.b16 %v2258
    %v2327 = vunpack.c.l.b16 %v2259
    %v2328 = vunpack.c.l.b16 %v2260
    %v2329 = vunpack.c.h.b16 %v2260
    %v2330 = vunpack.c.l.b16 %v2261
    %v2331 = vunpack.c.l.b16 %v2262
    %v2332 = vunpack.c.h.b16 %v2262
    %v2333 = vunpack.c.l.b16 %v2263
    %v2334 = vunpack.c.l.b16 %v2264
    %v2335 = vunpack.c.h.b16 %v2264
    %v2336 = vunpack.c.l.b16 %v2265
    %v2337 = vunpack.c.l.b16 %v2266
    %v2338 = vunpack.c.h.b16 %v2266
    %v2339 = vunpack.c.l.b16 %v2267
    %v2340 = vunpack.c.l.b16 %v2268
    %v2341 = vunpack.c.h.b16 %v2268
    %v2342 = vunpack.c.l.b16 %v2269
    %v2343 = vunpack.c.l.b16 %v2270
    %v2344 = vunpack.c.h.b16 %v2270
    %v2345 = vunpack.c.l.b16 %v2271
    %v2346 = vunpack.c.l.b16 %v2272
    %v2347 = vunpack.c.h.b16 %v2272
    %v2348 = vunpack.c.l.b16 %v2273
    %v2349 = vunpack.c.l.b16 %v2274
    %v2350 = vunpack.c.h.b16 %v2274
    %v2351 = vunpack.c.l.b16 %v2275
    %v2352 = vunpack.c.l.b16 %v2276
    %v2353 = vunpack.c.h.b16 %v2276
    %v2354 = vunpack.c.l.b16 %v2277
    %v2355 = vunpack.c.l.b16 %v2278
    %v2356 = vunpack.c.h.b16 %v2278
    %v2357 = vunpack.c.l.b16 %v2279
    %v2358 = vunpack.c.l.b16 %v2280
    %v2359 = vunpack.c.h.b16 %v2280
    %v2360 = vunpack.c.l.b16 %v2281
    %v2361 = vunpack.c.l.b16 %v2282
    %v2362 = vunpack.c.h.b16 %v2282
    %v2363 = vunpack.c.l.b16 %v2283
    %v2364 = vpack.c.b16 %v2319, %v2316
    %v2365 = vpack.c.b16 %v2320, %v2317
    %v2366 = vpack.c.b16 %v2321, %v2318
    %v2367 = vpack.c.b16 %v2325, %v2322
    %v2368 = vpack.c.b16 %v2326, %v2323
    %v2369 = vpack.c.b16 %v2327, %v2324
    %v2370 = vpack.c.b16 %v2331, %v2328
    %v2371 = vpack.c.b16 %v2332, %v2329
    %v2372 = vpack.c.b16 %v2333, %v2330
    %v2373 = vpack.c.b16 %v2337, %v2334
    %v2374 = vpack.c.b16 %v2338, %v2335
    %v2375 = vpack.c.b16 %v2339, %v2336
    %v2376 = vpack.c.b16 %v2343, %v2340
    %v2377 = vpack.c.b16 %v2344, %v2341
    %v2378 = vpack.c.b16 %v2345, %v2342
    %v2379 = vpack.c.b16 %v2349, %v2346
    %v2380 = vpack.c.b16 %v2350, %v2347
    %v2381 = vpack.c.b16 %v2351, %v2348
    %v2382 = vpack.c.b16 %v2355, %v2352
    %v2383 = vpack.c.b16 %v2356, %v2353
    %v2384 = vpack.c.b16 %v2357, %v2354
    %v2385 = vpack.c.b16 %v2361, %v2358
    %v2386 = vpack.c.b16 %v2362, %v2359
    %v2387 = vpack.c.b16 %v2363, %v2360
    %2412 = vmatprep.subr.bf16.mxu0 %v2365
    %2413 = vmatpush1.bf16.msra.mxu0 %v2364
    %2414 = vmatprep.subr.bf16.mxu0 %v2368
    %2415 = vmatpush1.bf16.msra.mxu0 %v2367
    %2416 = vmatprep.subr.bf16.mxu0 %v2371
    %2417 = vmatpush1.bf16.msra.mxu0 %v2370
    %2418 = vmatprep.subr.bf16.mxu0 %v2374
    %2419 = vmatpush1.bf16.msra.mxu0 %v2373
    %2420 = vmatprep.subr.bf16.mxu0 %v2377
    %2421 = vmatpush1.bf16.msra.mxu0 %v2376
    %2422 = vmatprep.subr.bf16.mxu0 %v2380
    %2423 = vmatpush1.bf16.msra.mxu0 %v2379
    %2424 = vmatprep.subr.bf16.mxu0 %v2383
    %2425 = vmatpush1.bf16.msra.mxu0 %v2382
    %2426 = vmatprep.subr.bf16.mxu0 %v2386
    %2427 = vmatpush1.bf16.msra.mxu0 %v2385
    %2428 = vmatprep.subr.bf16.mxu0 0
    %2429 = vmatpush1.bf16.msra.mxu0 0
    %2430 = vmatprep.subr.bf16.mxu0 0
    %2431 = vmatpush1.bf16.msra.mxu0 0
    %2432 = vmatprep.subr.bf16.mxu0 0
    %2433 = vmatpush1.bf16.msra.mxu0 0
    %2434 = vmatprep.subr.bf16.mxu0 0
    %2435 = vmatpush1.bf16.msra.mxu0 0
    %2436 = vmatprep.subr.bf16.mxu0 0
    %2437 = vmatpush1.bf16.msra.mxu0 0
    %2438 = vmatprep.subr.bf16.mxu0 0
    %2439 = vmatpush1.bf16.msra.mxu0 0
    %2440 = vmatprep.subr.bf16.mxu0 0
    %2441 = vmatpush1.bf16.msra.mxu0 0
    %2442 = vmatprep.subr.bf16.mxu0 0
    %2443 = vmatpush1.bf16.msra.mxu0 0
    %2444 = vmatprep.mubr.bf16.mxu0 0
    %2445 = vmatmul.mubr.bf16.gmra.mrb[0].mxu0 %v2251
    %v2446 = vpop.f32.mrb[0].mxu0
    %v2447 = vadd.f32 0.0, %v2446
    %v2448 = vpop.f32.mrb[0].mxu0
    %v2449 = vadd.f32 0.0, %v2448
    %v2450 = vpop.f32.mrb[0].mxu0
    %v2451 = vpop.f32.mrb[0].mxu0
    %2452 = vdwg.mxu0
    %2453 = vmatprep.subr.bf16.mxu0 0
    %2454 = vmatpush1.bf16.msra.mxu0 %v2366
    %2455 = vmatprep.subr.bf16.mxu0 0
    %2456 = vmatpush1.bf16.msra.mxu0 %v2369
    %2457 = vmatprep.subr.bf16.mxu0 0
    %2458 = vmatpush1.bf16.msra.mxu0 %v2372
    %2459 = vmatprep.subr.bf16.mxu0 0
    %2460 = vmatpush1.bf16.msra.mxu0 %v2375
    %2461 = vmatprep.subr.bf16.mxu0 0
    %2462 = vmatpush1.bf16.msra.mxu0 %v2378
    %2463 = vmatprep.subr.bf16.mxu0 0
    %2464 = vmatpush1.bf16.msra.mxu0 %v2381
    %2465 = vmatprep.subr.bf16.mxu0 0
    %2466 = vmatpush1.bf16.msra.mxu0 %v2384
    %2467 = vmatprep.subr.bf16.mxu0 0
    %2468 = vmatpush1.bf16.msra.mxu0 %v2387
    %2469 = vmatprep.subr.bf16.mxu0 0
    %2470 = vmatpush1.bf16.msra.mxu0 0
    %2471 = vmatprep.subr.bf16.mxu0 0
    %2472 = vmatpush1.bf16.msra.mxu0 0
    %2473 = vmatprep.subr.bf16.mxu0 0
    %2474 = vmatpush1.bf16.msra.mxu0 0
    %2475 = vmatprep.subr.bf16.mxu0 0
    %2476 = vmatpush1.bf16.msra.mxu0 0
    %2477 = vmatprep.subr.bf16.mxu0 0
    %2478 = vmatpush1.bf16.msra.mxu0 0
    %2479 = vmatprep.subr.bf16.mxu0 0
    %2480 = vmatpush1.bf16.msra.mxu0 0
    %2481 = vmatprep.subr.bf16.mxu0 0
    %2482 = vmatpush1.bf16.msra.mxu0 0
    %2483 = vmatprep.subr.bf16.mxu0 0
    %2484 = vmatpush1.bf16.msra.mxu0 0
    %2485 = vmatprep.mubr.bf16.mxu0 0
    %2486 = vmatmul.mubr.bf16.gmra.mrb[0].mxu0 %v2251
    %v2487 = vpop.f32.mrb[0].mxu0
    %v2488 = vadd.f32 0.0, %v2487
    %v2489 = vpop.f32.mrb[0].mxu0
    %v2490 = vpop.f32.mrb[0].mxu0
    %v2491 = vpop.f32.mrb[0].mxu0
    %2492 = vdwg.mxu0
    %s2493 = scalar_lea.vmem [#allocation7], 1
    %v2494 = vld [vmem:[%s2493] ss:$8 sm:$0x7]
    %v2497 = vcombine.low %v2447, %v2449
    %v2499 = vunpack.c.l.s4 1966171168
    %v2500 = vunpack.c.0.s8 %v2499
    %v2501 = vlaneseq
    %v2502 = vshrl.u32 %v2501, 7
    %v2503 = vsub.s32 %v2500, %v2502
    %v2504 = vrot.slane %v2497, %v2503
    %v2506 = vunpack.c.l.s4 1966171168
    %v2507 = vunpack.c.0.s8 %v2506
    %v2508 = vlaneseq
    %v2509 = vshrl.u32 %v2508, 7
    %v2510 = vsub.s32 %v2507, %v2509
    %v2511 = vrot.slane %v2504, %v2510
    %v2513 = vadd.f32 %v2494, %v2511
    %v2514 = vxor.u32 %v2513, 2147483648
    %v2515 = vmul.f32 %v2514, 1.442695
    %v2516 = vpow.pop %v2515
    %v2517 = vadd.f32 %v2516, 1.0
    %v2518 = vrcp.pop %v2517
    %v2519 = vmul.f32 1.0, %v2518
    %v2520 = vld [vmem:[%s41] sm:$0x1]
    %v2521 = vadd.f32 %v2488, %v2520
    %v2522 = vmul.f32 %v2519, %v2521
    %v2524 = vrot.slane %v2494, 2
    %v2526 = vadd.f32 %v2524, %v2522
    %v2527 = vtanh.pop %v2526
    %v2529 = vrot.slane %v2519, 1
    %v2531 = vsub.f32 1.0, %v2529
    %v2532 = vmul.f32 %v2531, %v2527
    %v2533 = vmul.f32 %v2529, %v1681
    %v2534 = vadd.f32 %v2532, %v2533
    %2535 = vst [vmem:[#allocation8 + $0x1] sm:$0x1] %v2534
    %v2536 = vpack.c.bf16 %v1966, %v1966
    %v2537 = vld [vmem:[%s21] sm:$0xff]
    %v2538 = vld [vmem:[%s21 + $0x8] sm:$0xf]
    %v2539 = vld [vmem:[%s21 + $0xc] sm:$0xff]
    %v2540 = vld [vmem:[%s21 + $0x14] sm:$0xf]
    %v2541 = vld [vmem:[%s21 + $0x18] sm:$0xff]
    %v2542 = vld [vmem:[%s21 + $0x20] sm:$0xf]
    %v2543 = vld [vmem:[%s21 + $0x24] sm:$0xff]
    %v2544 = vld [vmem:[%s21 + $0x2c] sm:$0xf]
    %v2545 = vld [vmem:[%s21 + $0x30] sm:$0xff]
    %v2546 = vld [vmem:[%s21 + $0x38] sm:$0xf]
    %v2547 = vld [vmem:[%s21 + $0x3c] sm:$0xff]
    %v2548 = vld [vmem:[%s21 + $0x44] sm:$0xf]
    %v2549 = vld [vmem:[%s21 + $0x48] sm:$0xff]
    %v2550 = vld [vmem:[%s21 + $0x50] sm:$0xf]
    %v2551 = vld [vmem:[%s21 + $0x54] sm:$0xff]
    %v2552 = vld [vmem:[%s21 + $0x5c] sm:$0xf]
    %v2553 = vld [vmem:[%s21 + $0x60] sm:$0xff]
    %v2554 = vld [vmem:[%s21 + $0x68] sm:$0xf]
    %v2555 = vld [vmem:[%s21 + $0x6c] sm:$0xff]
    %v2556 = vld [vmem:[%s21 + $0x74] sm:$0xf]
    %v2557 = vld [vmem:[%s21 + $0x78] sm:$0xff]
    %v2558 = vld [vmem:[%s21 + $0x80] sm:$0xf]
    %v2559 = vld [vmem:[%s21 + $0x84] sm:$0xff]
    %v2560 = vld [vmem:[%s21 + $0x8c] sm:$0xf]
    %v2561 = vld [vmem:[%s21 + $0x90] sm:$0xff]
    %v2562 = vld [vmem:[%s21 + $0x98] sm:$0xf]
    %v2563 = vld [vmem:[%s21 + $0x9c] sm:$0xff]
    %v2564 = vld [vmem:[%s21 + $0xa4] sm:$0xf]
    %v2565 = vld [vmem:[%s21 + $0xa8] sm:$0xff]
    %v2566 = vld [vmem:[%s21 + $0xb0] sm:$0xf]
    %v2567 = vld [vmem:[%s21 + $0xb4] sm:$0xff]
    %v2568 = vld [vmem:[%s21 + $0xbc] sm:$0xf]
    %v2601 = vunpack.c.l.b16 %v2537
    %v2602 = vunpack.c.h.b16 %v2537
    %v2603 = vunpack.c.l.b16 %v2538
    %v2604 = vunpack.c.l.b16 %v2539
    %v2605 = vunpack.c.h.b16 %v2539
    %v2606 = vunpack.c.l.b16 %v2540
    %v2607 = vunpack.c.l.b16 %v2541
    %v2608 = vunpack.c.h.b16 %v2541
    %v2609 = vunpack.c.l.b16 %v2542
    %v2610 = vunpack.c.l.b16 %v2543
    %v2611 = vunpack.c.h.b16 %v2543
    %v2612 = vunpack.c.l.b16 %v2544
    %v2613 = vunpack.c.l.b16 %v2545
    %v2614 = vunpack.c.h.b16 %v2545
    %v2615 = vunpack.c.l.b16 %v2546
    %v2616 = vunpack.c.l.b16 %v2547
    %v2617 = vunpack.c.h.b16 %v2547
    %v2618 = vunpack.c.l.b16 %v2548
    %v2619 = vunpack.c.l.b16 %v2549
    %v2620 = vunpack.c.h.b16 %v2549
    %v2621 = vunpack.c.l.b16 %v2550
    %v2622 = vunpack.c.l.b16 %v2551
    %v2623 = vunpack.c.h.b16 %v2551
    %v2624 = vunpack.c.l.b16 %v2552
    %v2625 = vunpack.c.l.b16 %v2553
    %v2626 = vunpack.c.h.b16 %v2553
    %v2627 = vunpack.c.l.b16 %v2554
    %v2628 = vunpack.c.l.b16 %v2555
    %v2629 = vunpack.c.h.b16 %v2555
    %v2630 = vunpack.c.l.b16 %v2556
    %v2631 = vunpack.c.l.b16 %v2557
    %v2632 = vunpack.c.h.b16 %v2557
    %v2633 = vunpack.c.l.b16 %v2558
    %v2634 = vunpack.c.l.b16 %v2559
    %v2635 = vunpack.c.h.b16 %v2559
    %v2636 = vunpack.c.l.b16 %v2560
    %v2637 = vunpack.c.l.b16 %v2561
    %v2638 = vunpack.c.h.b16 %v2561
    %v2639 = vunpack.c.l.b16 %v2562
    %v2640 = vunpack.c.l.b16 %v2563
    %v2641 = vunpack.c.h.b16 %v2563
    %v2642 = vunpack.c.l.b16 %v2564
    %v2643 = vunpack.c.l.b16 %v2565
    %v2644 = vunpack.c.h.b16 %v2565
    %v2645 = vunpack.c.l.b16 %v2566
    %v2646 = vunpack.c.l.b16 %v2567
    %v2647 = vunpack.c.h.b16 %v2567
    %v2648 = vunpack.c.l.b16 %v2568
    %v2649 = vpack.c.b16 %v2604, %v2601
    %v2650 = vpack.c.b16 %v2605, %v2602
    %v2651 = vpack.c.b16 %v2606, %v2603
    %v2652 = vpack.c.b16 %v2610, %v2607
    %v2653 = vpack.c.b16 %v2611, %v2608
    %v2654 = vpack.c.b16 %v2612, %v2609
    %v2655 = vpack.c.b16 %v2616, %v2613
    %v2656 = vpack.c.b16 %v2617, %v2614
    %v2657 = vpack.c.b16 %v2618, %v2615
    %v2658 = vpack.c.b16 %v2622, %v2619
    %v2659 = vpack.c.b16 %v2623, %v2620
    %v2660 = vpack.c.b16 %v2624, %v2621
    %v2661 = vpack.c.b16 %v2628, %v2625
    %v2662 = vpack.c.b16 %v2629, %v2626
    %v2663 = vpack.c.b16 %v2630, %v2627
    %v2664 = vpack.c.b16 %v2634, %v2631
    %v2665 = vpack.c.b16 %v2635, %v2632
    %v2666 = vpack.c.b16 %v2636, %v2633
    %v2667 = vpack.c.b16 %v2640, %v2637
    %v2668 = vpack.c.b16 %v2641, %v2638
    %v2669 = vpack.c.b16 %v2642, %v2639
    %v2670 = vpack.c.b16 %v2646, %v2643
    %v2671 = vpack.c.b16 %v2647, %v2644
    %v2672 = vpack.c.b16 %v2648, %v2645
    %2697 = vmatprep.subr.bf16.mxu0 %v2650
    %2698 = vmatpush1.bf16.msra.mxu0 %v2649
    %2699 = vmatprep.subr.bf16.mxu0 %v2653
    %2700 = vmatpush1.bf16.msra.mxu0 %v2652
    %2701 = vmatprep.subr.bf16.mxu0 %v2656
    %2702 = vmatpush1.bf16.msra.mxu0 %v2655
    %2703 = vmatprep.subr.bf16.mxu0 %v2659
    %2704 = vmatpush1.bf16.msra.mxu0 %v2658
    %2705 = vmatprep.subr.bf16.mxu0 %v2662
    %2706 = vmatpush1.bf16.msra.mxu0 %v2661
    %2707 = vmatprep.subr.bf16.mxu0 %v2665
    %2708 = vmatpush1.bf16.msra.mxu0 %v2664
    %2709 = vmatprep.subr.bf16.mxu0 %v2668
    %2710 = vmatpush1.bf16.msra.mxu0 %v2667
    %2711 = vmatprep.subr.bf16.mxu0 %v2671
    %2712 = vmatpush1.bf16.msra.mxu0 %v2670
    %2713 = vmatprep.subr.bf16.mxu0 0
    %2714 = vmatpush1.bf16.msra.mxu0 0
    %2715 = vmatprep.subr.bf16.mxu0 0
    %2716 = vmatpush1.bf16.msra.mxu0 0
    %2717 = vmatprep.subr.bf16.mxu0 0
    %2718 = vmatpush1.bf16.msra.mxu0 0
    %2719 = vmatprep.subr.bf16.mxu0 0
    %2720 = vmatpush1.bf16.msra.mxu0 0
    %2721 = vmatprep.subr.bf16.mxu0 0
    %2722 = vmatpush1.bf16.msra.mxu0 0
    %2723 = vmatprep.subr.bf16.mxu0 0
    %2724 = vmatpush1.bf16.msra.mxu0 0
    %2725 = vmatprep.subr.bf16.mxu0 0
    %2726 = vmatpush1.bf16.msra.mxu0 0
    %2727 = vmatprep.subr.bf16.mxu0 0
    %2728 = vmatpush1.bf16.msra.mxu0 0
    %2729 = vmatprep.mubr.bf16.mxu0 0
    %2730 = vmatmul.mubr.bf16.gmra.mrb[0].mxu0 %v2536
    %v2731 = vpop.f32.mrb[0].mxu0
    %v2732 = vadd.f32 0.0, %v2731
    %v2733 = vpop.f32.mrb[0].mxu0
    %v2734 = vadd.f32 0.0, %v2733
    %v2735 = vpop.f32.mrb[0].mxu0
    %v2736 = vpop.f32.mrb[0].mxu0
    %2737 = vdwg.mxu0
    %2738 = vmatprep.subr.bf16.mxu0 0
    %2739 = vmatpush1.bf16.msra.mxu0 %v2651
    %2740 = vmatprep.subr.bf16.mxu0 0
    %2741 = vmatpush1.bf16.msra.mxu0 %v2654
    %2742 = vmatprep.subr.bf16.mxu0 0
    %2743 = vmatpush1.bf16.msra.mxu0 %v2657
    %2744 = vmatprep.subr.bf16.mxu0 0
    %2745 = vmatpush1.bf16.msra.mxu0 %v2660
    %2746 = vmatprep.subr.bf16.mxu0 0
    %2747 = vmatpush1.bf16.msra.mxu0 %v2663
    %2748 = vmatprep.subr.bf16.mxu0 0
    %2749 = vmatpush1.bf16.msra.mxu0 %v2666
    %2750 = vmatprep.subr.bf16.mxu0 0
    %2751 = vmatpush1.bf16.msra.mxu0 %v2669
    %2752 = vmatprep.subr.bf16.mxu0 0
    %2753 = vmatpush1.bf16.msra.mxu0 %v2672
    %2754 = vmatprep.subr.bf16.mxu0 0
    %2755 = vmatpush1.bf16.msra.mxu0 0
    %2756 = vmatprep.subr.bf16.mxu0 0
    %2757 = vmatpush1.bf16.msra.mxu0 0
    %2758 = vmatprep.subr.bf16.mxu0 0
    %2759 = vmatpush1.bf16.msra.mxu0 0
    %2760 = vmatprep.subr.bf16.mxu0 0
    %2761 = vmatpush1.bf16.msra.mxu0 0
    %2762 = vmatprep.subr.bf16.mxu0 0
    %2763 = vmatpush1.bf16.msra.mxu0 0
    %2764 = vmatprep.subr.bf16.mxu0 0
    %2765 = vmatpush1.bf16.msra.mxu0 0
    %2766 = vmatprep.subr.bf16.mxu0 0
    %2767 = vmatpush1.bf16.msra.mxu0 0
    %2768 = vmatprep.subr.bf16.mxu0 0
    %2769 = vmatpush1.bf16.msra.mxu0 0
    %2770 = vmatprep.mubr.bf16.mxu0 0
    %2771 = vmatmul.mubr.bf16.gmra.mrb[0].mxu0 %v2536
    %v2772 = vpop.f32.mrb[0].mxu0
    %v2773 = vadd.f32 0.0, %v2772
    %v2774 = vpop.f32.mrb[0].mxu0
    %v2775 = vpop.f32.mrb[0].mxu0
    %v2776 = vpop.f32.mrb[0].mxu0
    %2777 = vdwg.mxu0
    %s2778 = scalar_lea.vmem [#allocation5], 2
    %v2779 = vld [vmem:[%s2778] ss:$8 sm:$0x7]
    %v2782 = vcombine.low %v2732, %v2734
    %v2784 = vunpack.c.l.s4 1966171168
    %v2785 = vunpack.c.0.s8 %v2784
    %v2786 = vlaneseq
    %v2787 = vshrl.u32 %v2786, 7
    %v2788 = vsub.s32 %v2785, %v2787
    %v2789 = vrot.slane %v2782, %v2788
    %v2791 = vunpack.c.l.s4 1966171168
    %v2792 = vunpack.c.0.s8 %v2791
    %v2793 = vlaneseq
    %v2794 = vshrl.u32 %v2793, 7
    %v2795 = vsub.s32 %v2792, %v2794
    %v2796 = vrot.slane %v2789, %v2795
    %v2798 = vadd.f32 %v2779, %v2796
    %v2799 = vxor.u32 %v2798, 2147483648
    %v2800 = vmul.f32 %v2799, 1.442695
    %v2801 = vpow.pop %v2800
    %v2802 = vadd.f32 %v2801, 1.0
    %v2803 = vrcp.pop %v2802
    %v2804 = vmul.f32 1.0, %v2803
    %v2805 = vld [vmem:[%s25] sm:$0x1]
    %v2806 = vadd.f32 %v2773, %v2805
    %v2807 = vmul.f32 %v2804, %v2806
    %v2809 = vrot.slane %v2779, 2
    %v2811 = vadd.f32 %v2809, %v2807
    %v2812 = vtanh.pop %v2811
    %v2814 = vrot.slane %v2804, 1
    %v2816 = vsub.f32 1.0, %v2814
    %v2817 = vmul.f32 %v2816, %v2812
    %v2818 = vmul.f32 %v2814, %v1966
    %v2819 = vadd.f32 %v2817, %v2818
    %v2820 = vpack.c.bf16 %v2250, %v2250
    %v2821 = vld [vmem:[#allocation25] sm:$0xff]
    %v2822 = vld [vmem:[#allocation25 + $0x8] sm:$0xf]
    %v2823 = vld [vmem:[#allocation25 + $0xc] sm:$0xff]
    %v2824 = vld [vmem:[#allocation25 + $0x14] sm:$0xf]
    %v2825 = vld [vmem:[#allocation25 + $0x18] sm:$0xff]
    %v2826 = vld [vmem:[#allocation25 + $0x20] sm:$0xf]
    %v2827 = vld [vmem:[#allocation25 + $0x24] sm:$0xff]
    %v2828 = vld [vmem:[#allocation25 + $0x2c] sm:$0xf]
    %v2829 = vld [vmem:[#allocation25 + $0x30] sm:$0xff]
    %v2830 = vld [vmem:[#allocation25 + $0x38] sm:$0xf]
    %v2831 = vld [vmem:[#allocation25 + $0x3c] sm:$0xff]
    %v2832 = vld [vmem:[#allocation25 + $0x44] sm:$0xf]
    %v2833 = vld [vmem:[#allocation25 + $0x48] sm:$0xff]
    %v2834 = vld [vmem:[#allocation25 + $0x50] sm:$0xf]
    %v2835 = vld [vmem:[#allocation25 + $0x54] sm:$0xff]
    %v2836 = vld [vmem:[#allocation25 + $0x5c] sm:$0xf]
    %v2837 = vld [vmem:[#allocation25 + $0x60] sm:$0xff]
    %v2838 = vld [vmem:[#allocation25 + $0x68] sm:$0xf]
    %v2839 = vld [vmem:[#allocation25 + $0x6c] sm:$0xff]
    %v2840 = vld [vmem:[#allocation25 + $0x74] sm:$0xf]
    %v2841 = vld [vmem:[#allocation25 + $0x78] sm:$0xff]
    %v2842 = vld [vmem:[#allocation25 + $0x80] sm:$0xf]
    %v2843 = vld [vmem:[#allocation25 + $0x84] sm:$0xff]
    %v2844 = vld [vmem:[#allocation25 + $0x8c] sm:$0xf]
    %v2845 = vld [vmem:[#allocation25 + $0x90] sm:$0xff]
    %v2846 = vld [vmem:[#allocation25 + $0x98] sm:$0xf]
    %v2847 = vld [vmem:[#allocation25 + $0x9c] sm:$0xff]
    %v2848 = vld [vmem:[#allocation25 + $0xa4] sm:$0xf]
    %v2849 = vld [vmem:[#allocation25 + $0xa8] sm:$0xff]
    %v2850 = vld [vmem:[#allocation25 + $0xb0] sm:$0xf]
    %v2851 = vld [vmem:[#allocation25 + $0xb4] sm:$0xff]
    %v2852 = vld [vmem:[#allocation25 + $0xbc] sm:$0xf]
    %v2885 = vunpack.c.l.b16 %v2821
    %v2886 = vunpack.c.h.b16 %v2821
    %v2887 = vunpack.c.l.b16 %v2822
    %v2888 = vunpack.c.l.b16 %v2823
    %v2889 = vunpack.c.h.b16 %v2823
    %v2890 = vunpack.c.l.b16 %v2824
    %v2891 = vunpack.c.l.b16 %v2825
    %v2892 = vunpack.c.h.b16 %v2825
    %v2893 = vunpack.c.l.b16 %v2826
    %v2894 = vunpack.c.l.b16 %v2827
    %v2895 = vunpack.c.h.b16 %v2827
    %v2896 = vunpack.c.l.b16 %v2828
    %v2897 = vunpack.c.l.b16 %v2829
    %v2898 = vunpack.c.h.b16 %v2829
    %v2899 = vunpack.c.l.b16 %v2830
    %v2900 = vunpack.c.l.b16 %v2831
    %v2901 = vunpack.c.h.b16 %v2831
    %v2902 = vunpack.c.l.b16 %v2832
    %v2903 = vunpack.c.l.b16 %v2833
    %v2904 = vunpack.c.h.b16 %v2833
    %v2905 = vunpack.c.l.b16 %v2834
    %v2906 = vunpack.c.l.b16 %v2835
    %v2907 = vunpack.c.h.b16 %v2835
    %v2908 = vunpack.c.l.b16 %v2836
    %v2909 = vunpack.c.l.b16 %v2837
    %v2910 = vunpack.c.h.b16 %v2837
    %v2911 = vunpack.c.l.b16 %v2838
    %v2912 = vunpack.c.l.b16 %v2839
    %v2913 = vunpack.c.h.b16 %v2839
    %v2914 = vunpack.c.l.b16 %v2840
    %v2915 = vunpack.c.l.b16 %v2841
    %v2916 = vunpack.c.h.b16 %v2841
    %v2917 = vunpack.c.l.b16 %v2842
    %v2918 = vunpack.c.l.b16 %v2843
    %v2919 = vunpack.c.h.b16 %v2843
    %v2920 = vunpack.c.l.b16 %v2844
    %v2921 = vunpack.c.l.b16 %v2845
    %v2922 = vunpack.c.h.b16 %v2845
    %v2923 = vunpack.c.l.b16 %v2846
    %v2924 = vunpack.c.l.b16 %v2847
    %v2925 = vunpack.c.h.b16 %v2847
    %v2926 = vunpack.c.l.b16 %v2848
    %v2927 = vunpack.c.l.b16 %v2849
    %v2928 = vunpack.c.h.b16 %v2849
    %v2929 = vunpack.c.l.b16 %v2850
    %v2930 = vunpack.c.l.b16 %v2851
    %v2931 = vunpack.c.h.b16 %v2851
    %v2932 = vunpack.c.l.b16 %v2852
    %v2933 = vpack.c.b16 %v2888, %v2885
    %v2934 = vpack.c.b16 %v2889, %v2886
    %v2935 = vpack.c.b16 %v2890, %v2887
    %v2936 = vpack.c.b16 %v2894, %v2891
    %v2937 = vpack.c.b16 %v2895, %v2892
    %v2938 = vpack.c.b16 %v2896, %v2893
    %v2939 = vpack.c.b16 %v2900, %v2897
    %v2940 = vpack.c.b16 %v2901, %v2898
    %v2941 = vpack.c.b16 %v2902, %v2899
    %v2942 = vpack.c.b16 %v2906, %v2903
    %v2943 = vpack.c.b16 %v2907, %v2904
    %v2944 = vpack.c.b16 %v2908, %v2905
    %v2945 = vpack.c.b16 %v2912, %v2909
    %v2946 = vpack.c.b16 %v2913, %v2910
    %v2947 = vpack.c.b16 %v2914, %v2911
    %v2948 = vpack.c.b16 %v2918, %v2915
    %v2949 = vpack.c.b16 %v2919, %v2916
    %v2950 = vpack.c.b16 %v2920, %v2917
    %v2951 = vpack.c.b16 %v2924, %v2921
    %v2952 = vpack.c.b16 %v2925, %v2922
    %v2953 = vpack.c.b16 %v2926, %v2923
    %v2954 = vpack.c.b16 %v2930, %v2927
    %v2955 = vpack.c.b16 %v2931, %v2928
    %v2956 = vpack.c.b16 %v2932, %v2929
    %2981 = vmatprep.subr.bf16.mxu0 %v2934
    %2982 = vmatpush1.bf16.msra.mxu0 %v2933
    %2983 = vmatprep.subr.bf16.mxu0 %v2937
    %2984 = vmatpush1.bf16.msra.mxu0 %v2936
    %2985 = vmatprep.subr.bf16.mxu0 %v2940
    %2986 = vmatpush1.bf16.msra.mxu0 %v2939
    %2987 = vmatprep.subr.bf16.mxu0 %v2943
    %2988 = vmatpush1.bf16.msra.mxu0 %v2942
    %2989 = vmatprep.subr.bf16.mxu0 %v2946
    %2990 = vmatpush1.bf16.msra.mxu0 %v2945
    %2991 = vmatprep.subr.bf16.mxu0 %v2949
    %2992 = vmatpush1.bf16.msra.mxu0 %v2948
    %2993 = vmatprep.subr.bf16.mxu0 %v2952
    %2994 = vmatpush1.bf16.msra.mxu0 %v2951
    %2995 = vmatprep.subr.bf16.mxu0 %v2955
    %2996 = vmatpush1.bf16.msra.mxu0 %v2954
    %2997 = vmatprep.subr.bf16.mxu0 0
    %2998 = vmatpush1.bf16.msra.mxu0 0
    %2999 = vmatprep.subr.bf16.mxu0 0
    %3000 = vmatpush1.bf16.msra.mxu0 0
    %3001 = vmatprep.subr.bf16.mxu0 0
    %3002 = vmatpush1.bf16.msra.mxu0 0
    %3003 = vmatprep.subr.bf16.mxu0 0
    %3004 = vmatpush1.bf16.msra.mxu0 0
    %3005 = vmatprep.subr.bf16.mxu0 0
    %3006 = vmatpush1.bf16.msra.mxu0 0
    %3007 = vmatprep.subr.bf16.mxu0 0
    %3008 = vmatpush1.bf16.msra.mxu0 0
    %3009 = vmatprep.subr.bf16.mxu0 0
    %3010 = vmatpush1.bf16.msra.mxu0 0
    %3011 = vmatprep.subr.bf16.mxu0 0
    %3012 = vmatpush1.bf16.msra.mxu0 0
    %3013 = vmatprep.mubr.bf16.mxu0 0
    %3014 = vmatmul.mubr.bf16.gmra.mrb[0].mxu0 %v2820
    %v3015 = vpop.f32.mrb[0].mxu0
    %v3016 = vadd.f32 0.0, %v3015
    %v3017 = vpop.f32.mrb[0].mxu0
    %v3018 = vadd.f32 0.0, %v3017
    %v3019 = vpop.f32.mrb[0].mxu0
    %v3020 = vpop.f32.mrb[0].mxu0
    %3021 = vdwg.mxu0
    %3022 = vmatprep.subr.bf16.mxu0 0
    %3023 = vmatpush1.bf16.msra.mxu0 %v2935
    %3024 = vmatprep.subr.bf16.mxu0 0
    %3025 = vmatpush1.bf16.msra.mxu0 %v2938
    %3026 = vmatprep.subr.bf16.mxu0 0
    %3027 = vmatpush1.bf16.msra.mxu0 %v2941
    %3028 = vmatprep.subr.bf16.mxu0 0
    %3029 = vmatpush1.bf16.msra.mxu0 %v2944
    %3030 = vmatprep.subr.bf16.mxu0 0
    %3031 = vmatpush1.bf16.msra.mxu0 %v2947
    %3032 = vmatprep.subr.bf16.mxu0 0
    %3033 = vmatpush1.bf16.msra.mxu0 %v2950
    %3034 = vmatprep.subr.bf16.mxu0 0
    %3035 = vmatpush1.bf16.msra.mxu0 %v2953
    %3036 = vmatprep.subr.bf16.mxu0 0
    %3037 = vmatpush1.bf16.msra.mxu0 %v2956
    %3038 = vmatprep.subr.bf16.mxu0 0
    %3039 = vmatpush1.bf16.msra.mxu0 0
    %3040 = vmatprep.subr.bf16.mxu0 0
    %3041 = vmatpush1.bf16.msra.mxu0 0
    %3042 = vmatprep.subr.bf16.mxu0 0
    %3043 = vmatpush1.bf16.msra.mxu0 0
    %3044 = vmatprep.subr.bf16.mxu0 0
    %3045 = vmatpush1.bf16.msra.mxu0 0
    %3046 = vmatprep.subr.bf16.mxu0 0
    %3047 = vmatpush1.bf16.msra.mxu0 0
    %3048 = vmatprep.subr.bf16.mxu0 0
    %3049 = vmatpush1.bf16.msra.mxu0 0
    %3050 = vmatprep.subr.bf16.mxu0 0
    %3051 = vmatpush1.bf16.msra.mxu0 0
    %3052 = vmatprep.subr.bf16.mxu0 0
    %3053 = vmatpush1.bf16.msra.mxu0 0
    %3054 = vmatprep.mubr.bf16.mxu0 0
    %3055 = vmatmul.mubr.bf16.gmra.mrb[0].mxu0 %v2820
    %v3056 = vpop.f32.mrb[0].mxu0
    %v3057 = vadd.f32 0.0, %v3056
    %v3058 = vpop.f32.mrb[0].mxu0
    %v3059 = vpop.f32.mrb[0].mxu0
    %v3060 = vpop.f32.mrb[0].mxu0
    %3061 = vdwg.mxu0
    %s3062 = scalar_lea.vmem [#allocation6], 2
    %v3063 = vld [vmem:[%s3062] ss:$8 sm:$0x7]
    %v3066 = vcombine.low %v3016, %v3018
    %v3068 = vunpack.c.l.s4 1966171168
    %v3069 = vunpack.c.0.s8 %v3068
    %v3070 = vlaneseq
    %v3071 = vshrl.u32 %v3070, 7
    %v3072 = vsub.s32 %v3069, %v3071
    %v3073 = vrot.slane %v3066, %v3072
    %v3075 = vunpack.c.l.s4 1966171168
    %v3076 = vunpack.c.0.s8 %v3075
    %v3077 = vlaneseq
    %v3078 = vshrl.u32 %v3077, 7
    %v3079 = vsub.s32 %v3076, %v3078
    %v3080 = vrot.slane %v3073, %v3079
    %v3082 = vadd.f32 %v3063, %v3080
    %v3083 = vxor.u32 %v3082, 2147483648
    %v3084 = vmul.f32 %v3083, 1.442695
    %v3085 = vpow.pop %v3084
    %v3086 = vadd.f32 %v3085, 1.0
    %v3087 = vrcp.pop %v3086
    %v3088 = vmul.f32 1.0, %v3087
    %v3089 = vld [vmem:[%s33] sm:$0x1]
    %v3090 = vadd.f32 %v3057, %v3089
    %v3091 = vmul.f32 %v3088, %v3090
    %v3093 = vrot.slane %v3063, 2
    %v3095 = vadd.f32 %v3093, %v3091
    %v3096 = vtanh.pop %v3095
    %v3098 = vrot.slane %v3088, 1
    %v3100 = vsub.f32 1.0, %v3098
    %v3101 = vmul.f32 %v3100, %v3096
    %v3102 = vmul.f32 %v3098, %v2250
    %v3103 = vadd.f32 %v3101, %v3102
    %v3104 = vpack.c.bf16 %v2534, %v2534
    %v3105 = vld [vmem:[#allocation28] sm:$0xff]
    %v3106 = vld [vmem:[#allocation28 + $0x8] sm:$0xf]
    %v3107 = vld [vmem:[#allocation28 + $0xc] sm:$0xff]
    %v3108 = vld [vmem:[#allocation28 + $0x14] sm:$0xf]
    %v3109 = vld [vmem:[#allocation28 + $0x18] sm:$0xff]
    %v3110 = vld [vmem:[#allocation28 + $0x20] sm:$0xf]
    %v3111 = vld [vmem:[#allocation28 + $0x24] sm:$0xff]
    %v3112 = vld [vmem:[#allocation28 + $0x2c] sm:$0xf]
    %v3113 = vld [vmem:[#allocation28 + $0x30] sm:$0xff]
    %v3114 = vld [vmem:[#allocation28 + $0x38] sm:$0xf]
    %v3115 = vld [vmem:[#allocation28 + $0x3c] sm:$0xff]
    %v3116 = vld [vmem:[#allocation28 + $0x44] sm:$0xf]
    %v3117 = vld [vmem:[#allocation28 + $0x48] sm:$0xff]
    %v3118 = vld [vmem:[#allocation28 + $0x50] sm:$0xf]
    %v3119 = vld [vmem:[#allocation28 + $0x54] sm:$0xff]
    %v3120 = vld [vmem:[#allocation28 + $0x5c] sm:$0xf]
    %v3121 = vld [vmem:[#allocation28 + $0x60] sm:$0xff]
    %v3122 = vld [vmem:[#allocation28 + $0x68] sm:$0xf]
    %v3123 = vld [vmem:[#allocation28 + $0x6c] sm:$0xff]
    %v3124 = vld [vmem:[#allocation28 + $0x74] sm:$0xf]
    %v3125 = vld [vmem:[#allocation28 + $0x78] sm:$0xff]
    %v3126 = vld [vmem:[#allocation28 + $0x80] sm:$0xf]
    %v3127 = vld [vmem:[#allocation28 + $0x84] sm:$0xff]
    %v3128 = vld [vmem:[#allocation28 + $0x8c] sm:$0xf]
    %v3129 = vld [vmem:[#allocation28 + $0x90] sm:$0xff]
    %v3130 = vld [vmem:[#allocation28 + $0x98] sm:$0xf]
    %v3131 = vld [vmem:[#allocation28 + $0x9c] sm:$0xff]
    %v3132 = vld [vmem:[#allocation28 + $0xa4] sm:$0xf]
    %v3133 = vld [vmem:[#allocation28 + $0xa8] sm:$0xff]
    %v3134 = vld [vmem:[#allocation28 + $0xb0] sm:$0xf]
    %v3135 = vld [vmem:[#allocation28 + $0xb4] sm:$0xff]
    %v3136 = vld [vmem:[#allocation28 + $0xbc] sm:$0xf]
    %v3169 = vunpack.c.l.b16 %v3105
    %v3170 = vunpack.c.h.b16 %v3105
    %v3171 = vunpack.c.l.b16 %v3106
    %v3172 = vunpack.c.l.b16 %v3107
    %v3173 = vunpack.c.h.b16 %v3107
    %v3174 = vunpack.c.l.b16 %v3108
    %v3175 = vunpack.c.l.b16 %v3109
    %v3176 = vunpack.c.h.b16 %v3109
    %v3177 = vunpack.c.l.b16 %v3110
    %v3178 = vunpack.c.l.b16 %v3111
    %v3179 = vunpack.c.h.b16 %v3111
    %v3180 = vunpack.c.l.b16 %v3112
    %v3181 = vunpack.c.l.b16 %v3113
    %v3182 = vunpack.c.h.b16 %v3113
    %v3183 = vunpack.c.l.b16 %v3114
    %v3184 = vunpack.c.l.b16 %v3115
    %v3185 = vunpack.c.h.b16 %v3115
    %v3186 = vunpack.c.l.b16 %v3116
    %v3187 = vunpack.c.l.b16 %v3117
    %v3188 = vunpack.c.h.b16 %v3117
    %v3189 = vunpack.c.l.b16 %v3118
    %v3190 = vunpack.c.l.b16 %v3119
    %v3191 = vunpack.c.h.b16 %v3119
    %v3192 = vunpack.c.l.b16 %v3120
    %v3193 = vunpack.c.l.b16 %v3121
    %v3194 = vunpack.c.h.b16 %v3121
    %v3195 = vunpack.c.l.b16 %v3122
    %v3196 = vunpack.c.l.b16 %v3123
    %v3197 = vunpack.c.h.b16 %v3123
    %v3198 = vunpack.c.l.b16 %v3124
    %v3199 = vunpack.c.l.b16 %v3125
    %v3200 = vunpack.c.h.b16 %v3125
    %v3201 = vunpack.c.l.b16 %v3126
    %v3202 = vunpack.c.l.b16 %v3127
    %v3203 = vunpack.c.h.b16 %v3127
    %v3204 = vunpack.c.l.b16 %v3128
    %v3205 = vunpack.c.l.b16 %v3129
    %v3206 = vunpack.c.h.b16 %v3129
    %v3207 = vunpack.c.l.b16 %v3130
    %v3208 = vunpack.c.l.b16 %v3131
    %v3209 = vunpack.c.h.b16 %v3131
    %v3210 = vunpack.c.l.b16 %v3132
    %v3211 = vunpack.c.l.b16 %v3133
    %v3212 = vunpack.c.h.b16 %v3133
    %v3213 = vunpack.c.l.b16 %v3134
    %v3214 = vunpack.c.l.b16 %v3135
    %v3215 = vunpack.c.h.b16 %v3135
    %v3216 = vunpack.c.l.b16 %v3136
    %v3217 = vpack.c.b16 %v3172, %v3169
    %v3218 = vpack.c.b16 %v3173, %v3170
    %v3219 = vpack.c.b16 %v3174, %v3171
    %v3220 = vpack.c.b16 %v3178, %v3175
    %v3221 = vpack.c.b16 %v3179, %v3176
    %v3222 = vpack.c.b16 %v3180, %v3177
    %v3223 = vpack.c.b16 %v3184, %v3181
    %v3224 = vpack.c.b16 %v3185, %v3182
    %v3225 = vpack.c.b16 %v3186, %v3183
    %v3226 = vpack.c.b16 %v3190, %v3187
    %v3227 = vpack.c.b16 %v3191, %v3188
    %v3228 = vpack.c.b16 %v3192, %v3189
    %v3229 = vpack.c.b16 %v3196, %v3193
    %v3230 = vpack.c.b16 %v3197, %v3194
    %v3231 = vpack.c.b16 %v3198, %v3195
    %v3232 = vpack.c.b16 %v3202, %v3199
    %v3233 = vpack.c.b16 %v3203, %v3200
    %v3234 = vpack.c.b16 %v3204, %v3201
    %v3235 = vpack.c.b16 %v3208, %v3205
    %v3236 = vpack.c.b16 %v3209, %v3206
    %v3237 = vpack.c.b16 %v3210, %v3207
    %v3238 = vpack.c.b16 %v3214, %v3211
    %v3239 = vpack.c.b16 %v3215, %v3212
    %v3240 = vpack.c.b16 %v3216, %v3213
    %3265 = vmatprep.subr.bf16.mxu0 %v3218
    %3266 = vmatpush1.bf16.msra.mxu0 %v3217
    %3267 = vmatprep.subr.bf16.mxu0 %v3221
    %3268 = vmatpush1.bf16.msra.mxu0 %v3220
    %3269 = vmatprep.subr.bf16.mxu0 %v3224
    %3270 = vmatpush1.bf16.msra.mxu0 %v3223
    %3271 = vmatprep.subr.bf16.mxu0 %v3227
    %3272 = vmatpush1.bf16.msra.mxu0 %v3226
    %3273 = vmatprep.subr.bf16.mxu0 %v3230
    %3274 = vmatpush1.bf16.msra.mxu0 %v3229
    %3275 = vmatprep.subr.bf16.mxu0 %v3233
    %3276 = vmatpush1.bf16.msra.mxu0 %v3232
    %3277 = vmatprep.subr.bf16.mxu0 %v3236
    %3278 = vmatpush1.bf16.msra.mxu0 %v3235
    %3279 = vmatprep.subr.bf16.mxu0 %v3239
    %3280 = vmatpush1.bf16.msra.mxu0 %v3238
    %3281 = vmatprep.subr.bf16.mxu0 0
    %3282 = vmatpush1.bf16.msra.mxu0 0
    %3283 = vmatprep.subr.bf16.mxu0 0
    %3284 = vmatpush1.bf16.msra.mxu0 0
    %3285 = vmatprep.subr.bf16.mxu0 0
    %3286 = vmatpush1.bf16.msra.mxu0 0
    %3287 = vmatprep.subr.bf16.mxu0 0
    %3288 = vmatpush1.bf16.msra.mxu0 0
    %3289 = vmatprep.subr.bf16.mxu0 0
    %3290 = vmatpush1.bf16.msra.mxu0 0
    %3291 = vmatprep.subr.bf16.mxu0 0
    %3292 = vmatpush1.bf16.msra.mxu0 0
    %3293 = vmatprep.subr.bf16.mxu0 0
    %3294 = vmatpush1.bf16.msra.mxu0 0
    %3295 = vmatprep.subr.bf16.mxu0 0
    %3296 = vmatpush1.bf16.msra.mxu0 0
    %3297 = vmatprep.mubr.bf16.mxu0 0
    %3298 = vmatmul.mubr.bf16.gmra.mrb[0].mxu0 %v3104
    %v3299 = vpop.f32.mrb[0].mxu0
    %v3300 = vadd.f32 0.0, %v3299
    %v3301 = vpop.f32.mrb[0].mxu0
    %v3302 = vadd.f32 0.0, %v3301
    %v3303 = vpop.f32.mrb[0].mxu0
    %v3304 = vpop.f32.mrb[0].mxu0
    %3305 = vdwg.mxu0
    %3306 = vmatprep.subr.bf16.mxu0 0
    %3307 = vmatpush1.bf16.msra.mxu0 %v3219
    %3308 = vmatprep.subr.bf16.mxu0 0
    %3309 = vmatpush1.bf16.msra.mxu0 %v3222
    %3310 = vmatprep.subr.bf16.mxu0 0
    %3311 = vmatpush1.bf16.msra.mxu0 %v3225
    %3312 = vmatprep.subr.bf16.mxu0 0
    %3313 = vmatpush1.bf16.msra.mxu0 %v3228
    %3314 = vmatprep.subr.bf16.mxu0 0
    %3315 = vmatpush1.bf16.msra.mxu0 %v3231
    %3316 = vmatprep.subr.bf16.mxu0 0
    %3317 = vmatpush1.bf16.msra.mxu0 %v3234
    %3318 = vmatprep.subr.bf16.mxu0 0
    %3319 = vmatpush1.bf16.msra.mxu0 %v3237
    %3320 = vmatprep.subr.bf16.mxu0 0
    %3321 = vmatpush1.bf16.msra.mxu0 %v3240
    %3322 = vmatprep.subr.bf16.mxu0 0
    %3323 = vmatpush1.bf16.msra.mxu0 0
    %3324 = vmatprep.subr.bf16.mxu0 0
    %3325 = vmatpush1.bf16.msra.mxu0 0
    %3326 = vmatprep.subr.bf16.mxu0 0
    %3327 = vmatpush1.bf16.msra.mxu0 0
    %3328 = vmatprep.subr.bf16.mxu0 0
    %3329 = vmatpush1.bf16.msra.mxu0 0
    %3330 = vmatprep.subr.bf16.mxu0 0
    %3331 = vmatpush1.bf16.msra.mxu0 0
    %3332 = vmatprep.subr.bf16.mxu0 0
    %3333 = vmatpush1.bf16.msra.mxu0 0
    %3334 = vmatprep.subr.bf16.mxu0 0
    %3335 = vmatpush1.bf16.msra.mxu0 0
    %3336 = vmatprep.subr.bf16.mxu0 0
    %3337 = vmatpush1.bf16.msra.mxu0 0
    %3338 = vmatprep.mubr.bf16.mxu0 0
    %3339 = vmatmul.mubr.bf16.gmra.mrb[0].mxu0 %v3104
    %v3340 = vpop.f32.mrb[0].mxu0
    %v3341 = vadd.f32 0.0, %v3340
    %v3342 = vpop.f32.mrb[0].mxu0
    %v3343 = vpop.f32.mrb[0].mxu0
    %v3344 = vpop.f32.mrb[0].mxu0
    %3345 = vdwg.mxu0
    %s3346 = scalar_lea.vmem [#allocation7], 2
    %v3347 = vld [vmem:[%s3346] ss:$8 sm:$0x7]
    %v3350 = vcombine.low %v3300, %v3302
    %v3352 = vunpack.c.l.s4 1966171168
    %v3353 = vunpack.c.0.s8 %v3352
    %v3354 = vlaneseq
    %v3355 = vshrl.u32 %v3354, 7
    %v3356 = vsub.s32 %v3353, %v3355
    %v3357 = vrot.slane %v3350, %v3356
    %v3359 = vunpack.c.l.s4 1966171168
    %v3360 = vunpack.c.0.s8 %v3359
    %v3361 = vlaneseq
    %v3362 = vshrl.u32 %v3361, 7
    %v3363 = vsub.s32 %v3360, %v3362
    %v3364 = vrot.slane %v3357, %v3363
    %v3366 = vadd.f32 %v3347, %v3364
    %v3367 = vxor.u32 %v3366, 2147483648
    %v3368 = vmul.f32 %v3367, 1.442695
    %v3369 = vpow.pop %v3368
    %v3370 = vadd.f32 %v3369, 1.0
    %v3371 = vrcp.pop %v3370
    %v3372 = vmul.f32 1.0, %v3371
    %v3373 = vld [vmem:[%s41] sm:$0x1]
    %v3374 = vadd.f32 %v3341, %v3373
    %v3375 = vmul.f32 %v3372, %v3374
    %v3377 = vrot.slane %v3347, 2
    %v3379 = vadd.f32 %v3377, %v3375
    %v3380 = vtanh.pop %v3379
    %v3382 = vrot.slane %v3372, 1
    %v3384 = vsub.f32 1.0, %v3382
    %v3385 = vmul.f32 %v3384, %v3380
    %v3386 = vmul.f32 %v3382, %v2534
    %v3387 = vadd.f32 %v3385, %v3386
    %3388 = vst [vmem:[#allocation8 + $0x2] sm:$0x1] %v3387
    %v3389 = vpack.c.bf16 %v2819, %v2819
    %v3390 = vld [vmem:[%s21] sm:$0xff]
    %v3391 = vld [vmem:[%s21 + $0x8] sm:$0xf]
    %v3392 = vld [vmem:[%s21 + $0xc] sm:$0xff]
    %v3393 = vld [vmem:[%s21 + $0x14] sm:$0xf]
    %v3394 = vld [vmem:[%s21 + $0x18] sm:$0xff]
    %v3395 = vld [vmem:[%s21 + $0x20] sm:$0xf]
    %v3396 = vld [vmem:[%s21 + $0x24] sm:$0xff]
    %v3397 = vld [vmem:[%s21 + $0x2c] sm:$0xf]
    %v3398 = vld [vmem:[%s21 + $0x30] sm:$0xff]
    %v3399 = vld [vmem:[%s21 + $0x38] sm:$0xf]
    %v3400 = vld [vmem:[%s21 + $0x3c] sm:$0xff]
    %v3401 = vld [vmem:[%s21 + $0x44] sm:$0xf]
    %v3402 = vld [vmem:[%s21 + $0x48] sm:$0xff]
    %v3403 = vld [vmem:[%s21 + $0x50] sm:$0xf]
    %v3404 = vld [vmem:[%s21 + $0x54] sm:$0xff]
    %v3405 = vld [vmem:[%s21 + $0x5c] sm:$0xf]
    %v3406 = vld [vmem:[%s21 + $0x60] sm:$0xff]
    %v3407 = vld [vmem:[%s21 + $0x68] sm:$0xf]
    %v3408 = vld [vmem:[%s21 + $0x6c] sm:$0xff]
    %v3409 = vld [vmem:[%s21 + $0x74] sm:$0xf]
    %v3410 = vld [vmem:[%s21 + $0x78] sm:$0xff]
    %v3411 = vld [vmem:[%s21 + $0x80] sm:$0xf]
    %v3412 = vld [vmem:[%s21 + $0x84] sm:$0xff]
    %v3413 = vld [vmem:[%s21 + $0x8c] sm:$0xf]
    %v3414 = vld [vmem:[%s21 + $0x90] sm:$0xff]
    %v3415 = vld [vmem:[%s21 + $0x98] sm:$0xf]
    %v3416 = vld [vmem:[%s21 + $0x9c] sm:$0xff]
    %v3417 = vld [vmem:[%s21 + $0xa4] sm:$0xf]
    %v3418 = vld [vmem:[%s21 + $0xa8] sm:$0xff]
    %v3419 = vld [vmem:[%s21 + $0xb0] sm:$0xf]
    %v3420 = vld [vmem:[%s21 + $0xb4] sm:$0xff]
    %v3421 = vld [vmem:[%s21 + $0xbc] sm:$0xf]
    %v3454 = vunpack.c.l.b16 %v3390
    %v3455 = vunpack.c.h.b16 %v3390
    %v3456 = vunpack.c.l.b16 %v3391
    %v3457 = vunpack.c.l.b16 %v3392
    %v3458 = vunpack.c.h.b16 %v3392
    %v3459 = vunpack.c.l.b16 %v3393
    %v3460 = vunpack.c.l.b16 %v3394
    %v3461 = vunpack.c.h.b16 %v3394
    %v3462 = vunpack.c.l.b16 %v3395
    %v3463 = vunpack.c.l.b16 %v3396
    %v3464 = vunpack.c.h.b16 %v3396
    %v3465 = vunpack.c.l.b16 %v3397
    %v3466 = vunpack.c.l.b16 %v3398
    %v3467 = vunpack.c.h.b16 %v3398
    %v3468 = vunpack.c.l.b16 %v3399
    %v3469 = vunpack.c.l.b16 %v3400
    %v3470 = vunpack.c.h.b16 %v3400
    %v3471 = vunpack.c.l.b16 %v3401
    %v3472 = vunpack.c.l.b16 %v3402
    %v3473 = vunpack.c.h.b16 %v3402
    %v3474 = vunpack.c.l.b16 %v3403
    %v3475 = vunpack.c.l.b16 %v3404
    %v3476 = vunpack.c.h.b16 %v3404
    %v3477 = vunpack.c.l.b16 %v3405
    %v3478 = vunpack.c.l.b16 %v3406
    %v3479 = vunpack.c.h.b16 %v3406
    %v3480 = vunpack.c.l.b16 %v3407
    %v3481 = vunpack.c.l.b16 %v3408
    %v3482 = vunpack.c.h.b16 %v3408
    %v3483 = vunpack.c.l.b16 %v3409
    %v3484 = vunpack.c.l.b16 %v3410
    %v3485 = vunpack.c.h.b16 %v3410
    %v3486 = vunpack.c.l.b16 %v3411
    %v3487 = vunpack.c.l.b16 %v3412
    %v3488 = vunpack.c.h.b16 %v3412
    %v3489 = vunpack.c.l.b16 %v3413
    %v3490 = vunpack.c.l.b16 %v3414
    %v3491 = vunpack.c.h.b16 %v3414
    %v3492 = vunpack.c.l.b16 %v3415
    %v3493 = vunpack.c.l.b16 %v3416
    %v3494 = vunpack.c.h.b16 %v3416
    %v3495 = vunpack.c.l.b16 %v3417
    %v3496 = vunpack.c.l.b16 %v3418
    %v3497 = vunpack.c.h.b16 %v3418
    %v3498 = vunpack.c.l.b16 %v3419
    %v3499 = vunpack.c.l.b16 %v3420
    %v3500 = vunpack.c.h.b16 %v3420
    %v3501 = vunpack.c.l.b16 %v3421
    %v3502 = vpack.c.b16 %v3457, %v3454
    %v3503 = vpack.c.b16 %v3458, %v3455
    %v3504 = vpack.c.b16 %v3459, %v3456
    %v3505 = vpack.c.b16 %v3463, %v3460
    %v3506 = vpack.c.b16 %v3464, %v3461
    %v3507 = vpack.c.b16 %v3465, %v3462
    %v3508 = vpack.c.b16 %v3469, %v3466
    %v3509 = vpack.c.b16 %v3470, %v3467
    %v3510 = vpack.c.b16 %v3471, %v3468
    %v3511 = vpack.c.b16 %v3475, %v3472
    %v3512 = vpack.c.b16 %v3476, %v3473
    %v3513 = vpack.c.b16 %v3477, %v3474
    %v3514 = vpack.c.b16 %v3481, %v3478
    %v3515 = vpack.c.b16 %v3482, %v3479
    %v3516 = vpack.c.b16 %v3483, %v3480
    %v3517 = vpack.c.b16 %v3487, %v3484
    %v3518 = vpack.c.b16 %v3488, %v3485
    %v3519 = vpack.c.b16 %v3489, %v3486
    %v3520 = vpack.c.b16 %v3493, %v3490
    %v3521 = vpack.c.b16 %v3494, %v3491
    %v3522 = vpack.c.b16 %v3495, %v3492
    %v3523 = vpack.c.b16 %v3499, %v3496
    %v3524 = vpack.c.b16 %v3500, %v3497
    %v3525 = vpack.c.b16 %v3501, %v3498
    %3550 = vmatprep.subr.bf16.mxu0 %v3503
    %3551 = vmatpush1.bf16.msra.mxu0 %v3502
    %3552 = vmatprep.subr.bf16.mxu0 %v3506
    %3553 = vmatpush1.bf16.msra.mxu0 %v3505
    %3554 = vmatprep.subr.bf16.mxu0 %v3509
    %3555 = vmatpush1.bf16.msra.mxu0 %v3508
    %3556 = vmatprep.subr.bf16.mxu0 %v3512
    %3557 = vmatpush1.bf16.msra.mxu0 %v3511
    %3558 = vmatprep.subr.bf16.mxu0 %v3515
    %3559 = vmatpush1.bf16.msra.mxu0 %v3514
    %3560 = vmatprep.subr.bf16.mxu0 %v3518
    %3561 = vmatpush1.bf16.msra.mxu0 %v3517
    %3562 = vmatprep.subr.bf16.mxu0 %v3521
    %3563 = vmatpush1.bf16.msra.mxu0 %v3520
    %3564 = vmatprep.subr.bf16.mxu0 %v3524
    %3565 = vmatpush1.bf16.msra.mxu0 %v3523
    %3566 = vmatprep.subr.bf16.mxu0 0
    %3567 = vmatpush1.bf16.msra.mxu0 0
    %3568 = vmatprep.subr.bf16.mxu0 0
    %3569 = vmatpush1.bf16.msra.mxu0 0
    %3570 = vmatprep.subr.bf16.mxu0 0
    %3571 = vmatpush1.bf16.msra.mxu0 0
    %3572 = vmatprep.subr.bf16.mxu0 0
    %3573 = vmatpush1.bf16.msra.mxu0 0
    %3574 = vmatprep.subr.bf16.mxu0 0
    %3575 = vmatpush1.bf16.msra.mxu0 0
    %3576 = vmatprep.subr.bf16.mxu0 0
    %3577 = vmatpush1.bf16.msra.mxu0 0
    %3578 = vmatprep.subr.bf16.mxu0 0
    %3579 = vmatpush1.bf16.msra.mxu0 0
    %3580 = vmatprep.subr.bf16.mxu0 0
    %3581 = vmatpush1.bf16.msra.mxu0 0
    %3582 = vmatprep.mubr.bf16.mxu0 0
    %3583 = vmatmul.mubr.bf16.gmra.mrb[0].mxu0 %v3389
    %v3584 = vpop.f32.mrb[0].mxu0
    %v3585 = vadd.f32 0.0, %v3584
    %v3586 = vpop.f32.mrb[0].mxu0
    %v3587 = vadd.f32 0.0, %v3586
    %v3588 = vpop.f32.mrb[0].mxu0
    %v3589 = vpop.f32.mrb[0].mxu0
    %3590 = vdwg.mxu0
    %3591 = vmatprep.subr.bf16.mxu0 0
    %3592 = vmatpush1.bf16.msra.mxu0 %v3504
    %3593 = vmatprep.subr.bf16.mxu0 0
    %3594 = vmatpush1.bf16.msra.mxu0 %v3507
    %3595 = vmatprep.subr.bf16.mxu0 0
    %3596 = vmatpush1.bf16.msra.mxu0 %v3510
    %3597 = vmatprep.subr.bf16.mxu0 0
    %3598 = vmatpush1.bf16.msra.mxu0 %v3513
    %3599 = vmatprep.subr.bf16.mxu0 0
    %3600 = vmatpush1.bf16.msra.mxu0 %v3516
    %3601 = vmatprep.subr.bf16.mxu0 0
    %3602 = vmatpush1.bf16.msra.mxu0 %v3519
    %3603 = vmatprep.subr.bf16.mxu0 0
    %3604 = vmatpush1.bf16.msra.mxu0 %v3522
    %3605 = vmatprep.subr.bf16.mxu0 0
    %3606 = vmatpush1.bf16.msra.mxu0 %v3525
    %3607 = vmatprep.subr.bf16.mxu0 0
    %3608 = vmatpush1.bf16.msra.mxu0 0
    %3609 = vmatprep.subr.bf16.mxu0 0
    %3610 = vmatpush1.bf16.msra.mxu0 0
    %3611 = vmatprep.subr.bf16.mxu0 0
    %3612 = vmatpush1.bf16.msra.mxu0 0
    %3613 = vmatprep.subr.bf16.mxu0 0
    %3614 = vmatpush1.bf16.msra.mxu0 0
    %3615 = vmatprep.subr.bf16.mxu0 0
    %3616 = vmatpush1.bf16.msra.mxu0 0
    %3617 = vmatprep.subr.bf16.mxu0 0
    %3618 = vmatpush1.bf16.msra.mxu0 0
    %3619 = vmatprep.subr.bf16.mxu0 0
    %3620 = vmatpush1.bf16.msra.mxu0 0
    %3621 = vmatprep.subr.bf16.mxu0 0
    %3622 = vmatpush1.bf16.msra.mxu0 0
    %3623 = vmatprep.mubr.bf16.mxu0 0
    %3624 = vmatmul.mubr.bf16.gmra.mrb[0].mxu0 %v3389
    %v3625 = vpop.f32.mrb[0].mxu0
    %v3626 = vadd.f32 0.0, %v3625
    %v3627 = vpop.f32.mrb[0].mxu0
    %v3628 = vpop.f32.mrb[0].mxu0
    %v3629 = vpop.f32.mrb[0].mxu0
    %3630 = vdwg.mxu0
    %s3631 = scalar_lea.vmem [#allocation5], 3
    %v3632 = vld [vmem:[%s3631] ss:$8 sm:$0x7]
    %v3635 = vcombine.low %v3585, %v3587
    %v3637 = vunpack.c.l.s4 1966171168
    %v3638 = vunpack.c.0.s8 %v3637
    %v3639 = vlaneseq
    %v3640 = vshrl.u32 %v3639, 7
    %v3641 = vsub.s32 %v3638, %v3640
    %v3642 = vrot.slane %v3635, %v3641
    %v3644 = vunpack.c.l.s4 1966171168
    %v3645 = vunpack.c.0.s8 %v3644
    %v3646 = vlaneseq
    %v3647 = vshrl.u32 %v3646, 7
    %v3648 = vsub.s32 %v3645, %v3647
    %v3649 = vrot.slane %v3642, %v3648
    %v3651 = vadd.f32 %v3632, %v3649
    %v3652 = vxor.u32 %v3651, 2147483648
    %v3653 = vmul.f32 %v3652, 1.442695
    %v3654 = vpow.pop %v3653
    %v3655 = vadd.f32 %v3654, 1.0
    %v3656 = vrcp.pop %v3655
    %v3657 = vmul.f32 1.0, %v3656
    %v3658 = vld [vmem:[%s25] sm:$0x1]
    %v3659 = vadd.f32 %v3626, %v3658
    %v3660 = vmul.f32 %v3657, %v3659
    %v3662 = vrot.slane %v3632, 2
    %v3664 = vadd.f32 %v3662, %v3660
    %v3665 = vtanh.pop %v3664
    %v3667 = vrot.slane %v3657, 1
    %v3669 = vsub.f32 1.0, %v3667
    %v3670 = vmul.f32 %v3669, %v3665
    %v3671 = vmul.f32 %v3667, %v2819
    %v3672 = vadd.f32 %v3670, %v3671
    %v3673 = vpack.c.bf16 %v3103, %v3103
    %v3674 = vld [vmem:[#allocation25] sm:$0xff]
    %v3675 = vld [vmem:[#allocation25 + $0x8] sm:$0xf]
    %v3676 = vld [vmem:[#allocation25 + $0xc] sm:$0xff]
    %v3677 = vld [vmem:[#allocation25 + $0x14] sm:$0xf]
    %v3678 = vld [vmem:[#allocation25 + $0x18] sm:$0xff]
    %v3679 = vld [vmem:[#allocation25 + $0x20] sm:$0xf]
    %v3680 = vld [vmem:[#allocation25 + $0x24] sm:$0xff]
    %v3681 = vld [vmem:[#allocation25 + $0x2c] sm:$0xf]
    %v3682 = vld [vmem:[#allocation25 + $0x30] sm:$0xff]
    %v3683 = vld [vmem:[#allocation25 + $0x38] sm:$0xf]
    %v3684 = vld [vmem:[#allocation25 + $0x3c] sm:$0xff]
    %v3685 = vld [vmem:[#allocation25 + $0x44] sm:$0xf]
    %v3686 = vld [vmem:[#allocation25 + $0x48] sm:$0xff]
    %v3687 = vld [vmem:[#allocation25 + $0x50] sm:$0xf]
    %v3688 = vld [vmem:[#allocation25 + $0x54] sm:$0xff]
    %v3689 = vld [vmem:[#allocation25 + $0x5c] sm:$0xf]
    %v3690 = vld [vmem:[#allocation25 + $0x60] sm:$0xff]
    %v3691 = vld [vmem:[#allocation25 + $0x68] sm:$0xf]
    %v3692 = vld [vmem:[#allocation25 + $0x6c] sm:$0xff]
    %v3693 = vld [vmem:[#allocation25 + $0x74] sm:$0xf]
    %v3694 = vld [vmem:[#allocation25 + $0x78] sm:$0xff]
    %v3695 = vld [vmem:[#allocation25 + $0x80] sm:$0xf]
    %v3696 = vld [vmem:[#allocation25 + $0x84] sm:$0xff]
    %v3697 = vld [vmem:[#allocation25 + $0x8c] sm:$0xf]
    %v3698 = vld [vmem:[#allocation25 + $0x90] sm:$0xff]
    %v3699 = vld [vmem:[#allocation25 + $0x98] sm:$0xf]
    %v3700 = vld [vmem:[#allocation25 + $0x9c] sm:$0xff]
    %v3701 = vld [vmem:[#allocation25 + $0xa4] sm:$0xf]
    %v3702 = vld [vmem:[#allocation25 + $0xa8] sm:$0xff]
    %v3703 = vld [vmem:[#allocation25 + $0xb0] sm:$0xf]
    %v3704 = vld [vmem:[#allocation25 + $0xb4] sm:$0xff]
    %v3705 = vld [vmem:[#allocation25 + $0xbc] sm:$0xf]
    %v3738 = vunpack.c.l.b16 %v3674
    %v3739 = vunpack.c.h.b16 %v3674
    %v3740 = vunpack.c.l.b16 %v3675
    %v3741 = vunpack.c.l.b16 %v3676
    %v3742 = vunpack.c.h.b16 %v3676
    %v3743 = vunpack.c.l.b16 %v3677
    %v3744 = vunpack.c.l.b16 %v3678
    %v3745 = vunpack.c.h.b16 %v3678
    %v3746 = vunpack.c.l.b16 %v3679
    %v3747 = vunpack.c.l.b16 %v3680
    %v3748 = vunpack.c.h.b16 %v3680
    %v3749 = vunpack.c.l.b16 %v3681
    %v3750 = vunpack.c.l.b16 %v3682
    %v3751 = vunpack.c.h.b16 %v3682
    %v3752 = vunpack.c.l.b16 %v3683
    %v3753 = vunpack.c.l.b16 %v3684
    %v3754 = vunpack.c.h.b16 %v3684
    %v3755 = vunpack.c.l.b16 %v3685
    %v3756 = vunpack.c.l.b16 %v3686
    %v3757 = vunpack.c.h.b16 %v3686
    %v3758 = vunpack.c.l.b16 %v3687
    %v3759 = vunpack.c.l.b16 %v3688
    %v3760 = vunpack.c.h.b16 %v3688
    %v3761 = vunpack.c.l.b16 %v3689
    %v3762 = vunpack.c.l.b16 %v3690
    %v3763 = vunpack.c.h.b16 %v3690
    %v3764 = vunpack.c.l.b16 %v3691
    %v3765 = vunpack.c.l.b16 %v3692
    %v3766 = vunpack.c.h.b16 %v3692
    %v3767 = vunpack.c.l.b16 %v3693
    %v3768 = vunpack.c.l.b16 %v3694
    %v3769 = vunpack.c.h.b16 %v3694
    %v3770 = vunpack.c.l.b16 %v3695
    %v3771 = vunpack.c.l.b16 %v3696
    %v3772 = vunpack.c.h.b16 %v3696
    %v3773 = vunpack.c.l.b16 %v3697
    %v3774 = vunpack.c.l.b16 %v3698
    %v3775 = vunpack.c.h.b16 %v3698
    %v3776 = vunpack.c.l.b16 %v3699
    %v3777 = vunpack.c.l.b16 %v3700
    %v3778 = vunpack.c.h.b16 %v3700
    %v3779 = vunpack.c.l.b16 %v3701
    %v3780 = vunpack.c.l.b16 %v3702
    %v3781 = vunpack.c.h.b16 %v3702
    %v3782 = vunpack.c.l.b16 %v3703
    %v3783 = vunpack.c.l.b16 %v3704
    %v3784 = vunpack.c.h.b16 %v3704
    %v3785 = vunpack.c.l.b16 %v3705
    %v3786 = vpack.c.b16 %v3741, %v3738
    %v3787 = vpack.c.b16 %v3742, %v3739
    %v3788 = vpack.c.b16 %v3743, %v3740
    %v3789 = vpack.c.b16 %v3747, %v3744
    %v3790 = vpack.c.b16 %v3748, %v3745
    %v3791 = vpack.c.b16 %v3749, %v3746
    %v3792 = vpack.c.b16 %v3753, %v3750
    %v3793 = vpack.c.b16 %v3754, %v3751
    %v3794 = vpack.c.b16 %v3755, %v3752
    %v3795 = vpack.c.b16 %v3759, %v3756
    %v3796 = vpack.c.b16 %v3760, %v3757
    %v3797 = vpack.c.b16 %v3761, %v3758
    %v3798 = vpack.c.b16 %v3765, %v3762
    %v3799 = vpack.c.b16 %v3766, %v3763
    %v3800 = vpack.c.b16 %v3767, %v3764
    %v3801 = vpack.c.b16 %v3771, %v3768
    %v3802 = vpack.c.b16 %v3772, %v3769
    %v3803 = vpack.c.b16 %v3773, %v3770
    %v3804 = vpack.c.b16 %v3777, %v3774
    %v3805 = vpack.c.b16 %v3778, %v3775
    %v3806 = vpack.c.b16 %v3779, %v3776
    %v3807 = vpack.c.b16 %v3783, %v3780
    %v3808 = vpack.c.b16 %v3784, %v3781
    %v3809 = vpack.c.b16 %v3785, %v3782
    %3834 = vmatprep.subr.bf16.mxu0 %v3787
    %3835 = vmatpush1.bf16.msra.mxu0 %v3786
    %3836 = vmatprep.subr.bf16.mxu0 %v3790
    %3837 = vmatpush1.bf16.msra.mxu0 %v3789
    %3838 = vmatprep.subr.bf16.mxu0 %v3793
    %3839 = vmatpush1.bf16.msra.mxu0 %v3792
    %3840 = vmatprep.subr.bf16.mxu0 %v3796
    %3841 = vmatpush1.bf16.msra.mxu0 %v3795
    %3842 = vmatprep.subr.bf16.mxu0 %v3799
    %3843 = vmatpush1.bf16.msra.mxu0 %v3798
    %3844 = vmatprep.subr.bf16.mxu0 %v3802
    %3845 = vmatpush1.bf16.msra.mxu0 %v3801
    %3846 = vmatprep.subr.bf16.mxu0 %v3805
    %3847 = vmatpush1.bf16.msra.mxu0 %v3804
    %3848 = vmatprep.subr.bf16.mxu0 %v3808
    %3849 = vmatpush1.bf16.msra.mxu0 %v3807
    %3850 = vmatprep.subr.bf16.mxu0 0
    %3851 = vmatpush1.bf16.msra.mxu0 0
    %3852 = vmatprep.subr.bf16.mxu0 0
    %3853 = vmatpush1.bf16.msra.mxu0 0
    %3854 = vmatprep.subr.bf16.mxu0 0
    %3855 = vmatpush1.bf16.msra.mxu0 0
    %3856 = vmatprep.subr.bf16.mxu0 0
    %3857 = vmatpush1.bf16.msra.mxu0 0
    %3858 = vmatprep.subr.bf16.mxu0 0
    %3859 = vmatpush1.bf16.msra.mxu0 0
    %3860 = vmatprep.subr.bf16.mxu0 0
    %3861 = vmatpush1.bf16.msra.mxu0 0
    %3862 = vmatprep.subr.bf16.mxu0 0
    %3863 = vmatpush1.bf16.msra.mxu0 0
    %3864 = vmatprep.subr.bf16.mxu0 0
    %3865 = vmatpush1.bf16.msra.mxu0 0
    %3866 = vmatprep.mubr.bf16.mxu0 0
    %3867 = vmatmul.mubr.bf16.gmra.mrb[0].mxu0 %v3673
    %v3868 = vpop.f32.mrb[0].mxu0
    %v3869 = vadd.f32 0.0, %v3868
    %v3870 = vpop.f32.mrb[0].mxu0
    %v3871 = vadd.f32 0.0, %v3870
    %v3872 = vpop.f32.mrb[0].mxu0
    %v3873 = vpop.f32.mrb[0].mxu0
    %3874 = vdwg.mxu0
    %3875 = vmatprep.subr.bf16.mxu0 0
    %3876 = vmatpush1.bf16.msra.mxu0 %v3788
    %3877 = vmatprep.subr.bf16.mxu0 0
    %3878 = vmatpush1.bf16.msra.mxu0 %v3791
    %3879 = vmatprep.subr.bf16.mxu0 0
    %3880 = vmatpush1.bf16.msra.mxu0 %v3794
    %3881 = vmatprep.subr.bf16.mxu0 0
    %3882 = vmatpush1.bf16.msra.mxu0 %v3797
    %3883 = vmatprep.subr.bf16.mxu0 0
    %3884 = vmatpush1.bf16.msra.mxu0 %v3800
    %3885 = vmatprep.subr.bf16.mxu0 0
    %3886 = vmatpush1.bf16.msra.mxu0 %v3803
    %3887 = vmatprep.subr.bf16.mxu0 0
    %3888 = vmatpush1.bf16.msra.mxu0 %v3806
    %3889 = vmatprep.subr.bf16.mxu0 0
    %3890 = vmatpush1.bf16.msra.mxu0 %v3809
    %3891 = vmatprep.subr.bf16.mxu0 0
    %3892 = vmatpush1.bf16.msra.mxu0 0
    %3893 = vmatprep.subr.bf16.mxu0 0
    %3894 = vmatpush1.bf16.msra.mxu0 0
    %3895 = vmatprep.subr.bf16.mxu0 0
    %3896 = vmatpush1.bf16.msra.mxu0 0
    %3897 = vmatprep.subr.bf16.mxu0 0
    %3898 = vmatpush1.bf16.msra.mxu0 0
    %3899 = vmatprep.subr.bf16.mxu0 0
    %3900 = vmatpush1.bf16.msra.mxu0 0
    %3901 = vmatprep.subr.bf16.mxu0 0
    %3902 = vmatpush1.bf16.msra.mxu0 0
    %3903 = vmatprep.subr.bf16.mxu0 0
    %3904 = vmatpush1.bf16.msra.mxu0 0
    %3905 = vmatprep.subr.bf16.mxu0 0
    %3906 = vmatpush1.bf16.msra.mxu0 0
    %3907 = vmatprep.mubr.bf16.mxu0 0
    %3908 = vmatmul.mubr.bf16.gmra.mrb[0].mxu0 %v3673
    %v3909 = vpop.f32.mrb[0].mxu0
    %v3910 = vadd.f32 0.0, %v3909
    %v3911 = vpop.f32.mrb[0].mxu0
    %v3912 = vpop.f32.mrb[0].mxu0
    %v3913 = vpop.f32.mrb[0].mxu0
    %3914 = vdwg.mxu0
    %s3915 = scalar_lea.vmem [#allocation6], 3
    %v3916 = vld [vmem:[%s3915] ss:$8 sm:$0x7]
    %v3919 = vcombine.low %v3869, %v3871
    %v3921 = vunpack.c.l.s4 1966171168
    %v3922 = vunpack.c.0.s8 %v3921
    %v3923 = vlaneseq
    %v3924 = vshrl.u32 %v3923, 7
    %v3925 = vsub.s32 %v3922, %v3924
    %v3926 = vrot.slane %v3919, %v3925
    %v3928 = vunpack.c.l.s4 1966171168
    %v3929 = vunpack.c.0.s8 %v3928
    %v3930 = vlaneseq
    %v3931 = vshrl.u32 %v3930, 7
    %v3932 = vsub.s32 %v3929, %v3931
    %v3933 = vrot.slane %v3926, %v3932
    %v3935 = vadd.f32 %v3916, %v3933
    %v3936 = vxor.u32 %v3935, 2147483648
    %v3937 = vmul.f32 %v3936, 1.442695
    %v3938 = vpow.pop %v3937
    %v3939 = vadd.f32 %v3938, 1.0
    %v3940 = vrcp.pop %v3939
    %v3941 = vmul.f32 1.0, %v3940
    %v3942 = vld [vmem:[%s33] sm:$0x1]
    %v3943 = vadd.f32 %v3910, %v3942
    %v3944 = vmul.f32 %v3941, %v3943
    %v3946 = vrot.slane %v3916, 2
    %v3948 = vadd.f32 %v3946, %v3944
    %v3949 = vtanh.pop %v3948
    %v3951 = vrot.slane %v3941, 1
    %v3953 = vsub.f32 1.0, %v3951
    %v3954 = vmul.f32 %v3953, %v3949
    %v3955 = vmul.f32 %v3951, %v3103
    %v3956 = vadd.f32 %v3954, %v3955
    %v3957 = vpack.c.bf16 %v3387, %v3387
    %v3958 = vld [vmem:[#allocation28] sm:$0xff]
    %v3959 = vld [vmem:[#allocation28 + $0x8] sm:$0xf]
    %v3960 = vld [vmem:[#allocation28 + $0xc] sm:$0xff]
    %v3961 = vld [vmem:[#allocation28 + $0x14] sm:$0xf]
    %v3962 = vld [vmem:[#allocation28 + $0x18] sm:$0xff]
    %v3963 = vld [vmem:[#allocation28 + $0x20] sm:$0xf]
    %v3964 = vld [vmem:[#allocation28 + $0x24] sm:$0xff]
    %v3965 = vld [vmem:[#allocation28 + $0x2c] sm:$0xf]
    %v3966 = vld [vmem:[#allocation28 + $0x30] sm:$0xff]
    %v3967 = vld [vmem:[#allocation28 + $0x38] sm:$0xf]
    %v3968 = vld [vmem:[#allocation28 + $0x3c] sm:$0xff]
    %v3969 = vld [vmem:[#allocation28 + $0x44] sm:$0xf]
    %v3970 = vld [vmem:[#allocation28 + $0x48] sm:$0xff]
    %v3971 = vld [vmem:[#allocation28 + $0x50] sm:$0xf]
    %v3972 = vld [vmem:[#allocation28 + $0x54] sm:$0xff]
    %v3973 = vld [vmem:[#allocation28 + $0x5c] sm:$0xf]
    %v3974 = vld [vmem:[#allocation28 + $0x60] sm:$0xff]
    %v3975 = vld [vmem:[#allocation28 + $0x68] sm:$0xf]
    %v3976 = vld [vmem:[#allocation28 + $0x6c] sm:$0xff]
    %v3977 = vld [vmem:[#allocation28 + $0x74] sm:$0xf]
    %v3978 = vld [vmem:[#allocation28 + $0x78] sm:$0xff]
    %v3979 = vld [vmem:[#allocation28 + $0x80] sm:$0xf]
    %v3980 = vld [vmem:[#allocation28 + $0x84] sm:$0xff]
    %v3981 = vld [vmem:[#allocation28 + $0x8c] sm:$0xf]
    %v3982 = vld [vmem:[#allocation28 + $0x90] sm:$0xff]
    %v3983 = vld [vmem:[#allocation28 + $0x98] sm:$0xf]
    %v3984 = vld [vmem:[#allocation28 + $0x9c] sm:$0xff]
    %v3985 = vld [vmem:[#allocation28 + $0xa4] sm:$0xf]
    %v3986 = vld [vmem:[#allocation28 + $0xa8] sm:$0xff]
    %v3987 = vld [vmem:[#allocation28 + $0xb0] sm:$0xf]
    %v3988 = vld [vmem:[#allocation28 + $0xb4] sm:$0xff]
    %v3989 = vld [vmem:[#allocation28 + $0xbc] sm:$0xf]
    %v4022 = vunpack.c.l.b16 %v3958
    %v4023 = vunpack.c.h.b16 %v3958
    %v4024 = vunpack.c.l.b16 %v3959
    %v4025 = vunpack.c.l.b16 %v3960
    %v4026 = vunpack.c.h.b16 %v3960
    %v4027 = vunpack.c.l.b16 %v3961
    %v4028 = vunpack.c.l.b16 %v3962
    %v4029 = vunpack.c.h.b16 %v3962
    %v4030 = vunpack.c.l.b16 %v3963
    %v4031 = vunpack.c.l.b16 %v3964
    %v4032 = vunpack.c.h.b16 %v3964
    %v4033 = vunpack.c.l.b16 %v3965
    %v4034 = vunpack.c.l.b16 %v3966
    %v4035 = vunpack.c.h.b16 %v3966
    %v4036 = vunpack.c.l.b16 %v3967
    %v4037 = vunpack.c.l.b16 %v3968
    %v4038 = vunpack.c.h.b16 %v3968
    %v4039 = vunpack.c.l.b16 %v3969
    %v4040 = vunpack.c.l.b16 %v3970
    %v4041 = vunpack.c.h.b16 %v3970
    %v4042 = vunpack.c.l.b16 %v3971
    %v4043 = vunpack.c.l.b16 %v3972
    %v4044 = vunpack.c.h.b16 %v3972
    %v4045 = vunpack.c.l.b16 %v3973
    %v4046 = vunpack.c.l.b16 %v3974
    %v4047 = vunpack.c.h.b16 %v3974
    %v4048 = vunpack.c.l.b16 %v3975
    %v4049 = vunpack.c.l.b16 %v3976
    %v4050 = vunpack.c.h.b16 %v3976
    %v4051 = vunpack.c.l.b16 %v3977
    %v4052 = vunpack.c.l.b16 %v3978
    %v4053 = vunpack.c.h.b16 %v3978
    %v4054 = vunpack.c.l.b16 %v3979
    %v4055 = vunpack.c.l.b16 %v3980
    %v4056 = vunpack.c.h.b16 %v3980
    %v4057 = vunpack.c.l.b16 %v3981
    %v4058 = vunpack.c.l.b16 %v3982
    %v4059 = vunpack.c.h.b16 %v3982
    %v4060 = vunpack.c.l.b16 %v3983
    %v4061 = vunpack.c.l.b16 %v3984
    %v4062 = vunpack.c.h.b16 %v3984
    %v4063 = vunpack.c.l.b16 %v3985
    %v4064 = vunpack.c.l.b16 %v3986
    %v4065 = vunpack.c.h.b16 %v3986
    %v4066 = vunpack.c.l.b16 %v3987
    %v4067 = vunpack.c.l.b16 %v3988
    %v4068 = vunpack.c.h.b16 %v3988
    %v4069 = vunpack.c.l.b16 %v3989
    %v4070 = vpack.c.b16 %v4025, %v4022
    %v4071 = vpack.c.b16 %v4026, %v4023
    %v4072 = vpack.c.b16 %v4027, %v4024
    %v4073 = vpack.c.b16 %v4031, %v4028
    %v4074 = vpack.c.b16 %v4032, %v4029
    %v4075 = vpack.c.b16 %v4033, %v4030
    %v4076 = vpack.c.b16 %v4037, %v4034
    %v4077 = vpack.c.b16 %v4038, %v4035
    %v4078 = vpack.c.b16 %v4039, %v4036
    %v4079 = vpack.c.b16 %v4043, %v4040
    %v4080 = vpack.c.b16 %v4044, %v4041
    %v4081 = vpack.c.b16 %v4045, %v4042
    %v4082 = vpack.c.b16 %v4049, %v4046
    %v4083 = vpack.c.b16 %v4050, %v4047
    %v4084 = vpack.c.b16 %v4051, %v4048
    %v4085 = vpack.c.b16 %v4055, %v4052
    %v4086 = vpack.c.b16 %v4056, %v4053
    %v4087 = vpack.c.b16 %v4057, %v4054
    %v4088 = vpack.c.b16 %v4061, %v4058
    %v4089 = vpack.c.b16 %v4062, %v4059
    %v4090 = vpack.c.b16 %v4063, %v4060
    %v4091 = vpack.c.b16 %v4067, %v4064
    %v4092 = vpack.c.b16 %v4068, %v4065
    %v4093 = vpack.c.b16 %v4069, %v4066
    %4118 = vmatprep.subr.bf16.mxu0 %v4071
    %4119 = vmatpush1.bf16.msra.mxu0 %v4070
    %4120 = vmatprep.subr.bf16.mxu0 %v4074
    %4121 = vmatpush1.bf16.msra.mxu0 %v4073
    %4122 = vmatprep.subr.bf16.mxu0 %v4077
    %4123 = vmatpush1.bf16.msra.mxu0 %v4076
    %4124 = vmatprep.subr.bf16.mxu0 %v4080
    %4125 = vmatpush1.bf16.msra.mxu0 %v4079
    %4126 = vmatprep.subr.bf16.mxu0 %v4083
    %4127 = vmatpush1.bf16.msra.mxu0 %v4082
    %4128 = vmatprep.subr.bf16.mxu0 %v4086
    %4129 = vmatpush1.bf16.msra.mxu0 %v4085
    %4130 = vmatprep.subr.bf16.mxu0 %v4089
    %4131 = vmatpush1.bf16.msra.mxu0 %v4088
    %4132 = vmatprep.subr.bf16.mxu0 %v4092
    %4133 = vmatpush1.bf16.msra.mxu0 %v4091
    %4134 = vmatprep.subr.bf16.mxu0 0
    %4135 = vmatpush1.bf16.msra.mxu0 0
    %4136 = vmatprep.subr.bf16.mxu0 0
    %4137 = vmatpush1.bf16.msra.mxu0 0
    %4138 = vmatprep.subr.bf16.mxu0 0
    %4139 = vmatpush1.bf16.msra.mxu0 0
    %4140 = vmatprep.subr.bf16.mxu0 0
    %4141 = vmatpush1.bf16.msra.mxu0 0
    %4142 = vmatprep.subr.bf16.mxu0 0
    %4143 = vmatpush1.bf16.msra.mxu0 0
    %4144 = vmatprep.subr.bf16.mxu0 0
    %4145 = vmatpush1.bf16.msra.mxu0 0
    %4146 = vmatprep.subr.bf16.mxu0 0
    %4147 = vmatpush1.bf16.msra.mxu0 0
    %4148 = vmatprep.subr.bf16.mxu0 0
    %4149 = vmatpush1.bf16.msra.mxu0 0
    %4150 = vmatprep.mubr.bf16.mxu0 0
    %4151 = vmatmul.mubr.bf16.gmra.mrb[0].mxu0 %v3957
    %v4152 = vpop.f32.mrb[0].mxu0
    %v4153 = vadd.f32 0.0, %v4152
    %v4154 = vpop.f32.mrb[0].mxu0
    %v4155 = vadd.f32 0.0, %v4154
    %v4156 = vpop.f32.mrb[0].mxu0
    %v4157 = vpop.f32.mrb[0].mxu0
    %4158 = vdwg.mxu0
    %4159 = vmatprep.subr.bf16.mxu0 0
    %4160 = vmatpush1.bf16.msra.mxu0 %v4072
    %4161 = vmatprep.subr.bf16.mxu0 0
    %4162 = vmatpush1.bf16.msra.mxu0 %v4075
    %4163 = vmatprep.subr.bf16.mxu0 0
    %4164 = vmatpush1.bf16.msra.mxu0 %v4078
    %4165 = vmatprep.subr.bf16.mxu0 0
    %4166 = vmatpush1.bf16.msra.mxu0 %v4081
    %4167 = vmatprep.subr.bf16.mxu0 0
    %4168 = vmatpush1.bf16.msra.mxu0 %v4084
    %4169 = vmatprep.subr.bf16.mxu0 0
    %4170 = vmatpush1.bf16.msra.mxu0 %v4087
    %4171 = vmatprep.subr.bf16.mxu0 0
    %4172 = vmatpush1.bf16.msra.mxu0 %v4090
    %4173 = vmatprep.subr.bf16.mxu0 0
    %4174 = vmatpush1.bf16.msra.mxu0 %v4093
    %4175 = vmatprep.subr.bf16.mxu0 0
    %4176 = vmatpush1.bf16.msra.mxu0 0
    %4177 = vmatprep.subr.bf16.mxu0 0
    %4178 = vmatpush1.bf16.msra.mxu0 0
    %4179 = vmatprep.subr.bf16.mxu0 0
    %4180 = vmatpush1.bf16.msra.mxu0 0
    %4181 = vmatprep.subr.bf16.mxu0 0
    %4182 = vmatpush1.bf16.msra.mxu0 0
    %4183 = vmatprep.subr.bf16.mxu0 0
    %4184 = vmatpush1.bf16.msra.mxu0 0
    %4185 = vmatprep.subr.bf16.mxu0 0
    %4186 = vmatpush1.bf16.msra.mxu0 0
    %4187 = vmatprep.subr.bf16.mxu0 0
    %4188 = vmatpush1.bf16.msra.mxu0 0
    %4189 = vmatprep.subr.bf16.mxu0 0
    %4190 = vmatpush1.bf16.msra.mxu0 0
    %4191 = vmatprep.mubr.bf16.mxu0 0
    %4192 = vmatmul.mubr.bf16.gmra.mrb[0].mxu0 %v3957
    %v4193 = vpop.f32.mrb[0].mxu0
    %v4194 = vadd.f32 0.0, %v4193
    %v4195 = vpop.f32.mrb[0].mxu0
    %v4196 = vpop.f32.mrb[0].mxu0
    %v4197 = vpop.f32.mrb[0].mxu0
    %4198 = vdwg.mxu0
    %s4199 = scalar_lea.vmem [#allocation7], 3
    %v4200 = vld [vmem:[%s4199] ss:$8 sm:$0x7]
    %v4203 = vcombine.low %v4153, %v4155
    %v4205 = vunpack.c.l.s4 1966171168
    %v4206 = vunpack.c.0.s8 %v4205
    %v4207 = vlaneseq
    %v4208 = vshrl.u32 %v4207, 7
    %v4209 = vsub.s32 %v4206, %v4208
    %v4210 = vrot.slane %v4203, %v4209
    %v4212 = vunpack.c.l.s4 1966171168
    %v4213 = vunpack.c.0.s8 %v4212
    %v4214 = vlaneseq
    %v4215 = vshrl.u32 %v4214, 7
    %v4216 = vsub.s32 %v4213, %v4215
    %v4217 = vrot.slane %v4210, %v4216
    %v4219 = vadd.f32 %v4200, %v4217
    %v4220 = vxor.u32 %v4219, 2147483648
    %v4221 = vmul.f32 %v4220, 1.442695
    %v4222 = vpow.pop %v4221
    %v4223 = vadd.f32 %v4222, 1.0
    %v4224 = vrcp.pop %v4223
    %v4225 = vmul.f32 1.0, %v4224
    %v4226 = vld [vmem:[%s41] sm:$0x1]
    %v4227 = vadd.f32 %v4194, %v4226
    %v4228 = vmul.f32 %v4225, %v4227
    %v4230 = vrot.slane %v4200, 2
    %v4232 = vadd.f32 %v4230, %v4228
    %v4233 = vtanh.pop %v4232
    %v4235 = vrot.slane %v4225, 1
    %v4237 = vsub.f32 1.0, %v4235
    %v4238 = vmul.f32 %v4237, %v4233
    %v4239 = vmul.f32 %v4235, %v3387
    %v4240 = vadd.f32 %v4238, %v4239
    %4241 = vst [vmem:[#allocation8 + $0x3] sm:$0x1] %v4240
    %v4242 = vpack.c.bf16 %v3672, %v3672
    %v4243 = vld [vmem:[%s21] sm:$0xff]
    %v4244 = vld [vmem:[%s21 + $0x8] sm:$0xf]
    %v4245 = vld [vmem:[%s21 + $0xc] sm:$0xff]
    %v4246 = vld [vmem:[%s21 + $0x14] sm:$0xf]
    %v4247 = vld [vmem:[%s21 + $0x18] sm:$0xff]
    %v4248 = vld [vmem:[%s21 + $0x20] sm:$0xf]
    %v4249 = vld [vmem:[%s21 + $0x24] sm:$0xff]
    %v4250 = vld [vmem:[%s21 + $0x2c] sm:$0xf]
    %v4251 = vld [vmem:[%s21 + $0x30] sm:$0xff]
    %v4252 = vld [vmem:[%s21 + $0x38] sm:$0xf]
    %v4253 = vld [vmem:[%s21 + $0x3c] sm:$0xff]
    %v4254 = vld [vmem:[%s21 + $0x44] sm:$0xf]
    %v4255 = vld [vmem:[%s21 + $0x48] sm:$0xff]
    %v4256 = vld [vmem:[%s21 + $0x50] sm:$0xf]
    %v4257 = vld [vmem:[%s21 + $0x54] sm:$0xff]
    %v4258 = vld [vmem:[%s21 + $0x5c] sm:$0xf]
    %v4259 = vld [vmem:[%s21 + $0x60] sm:$0xff]
    %v4260 = vld [vmem:[%s21 + $0x68] sm:$0xf]
    %v4261 = vld [vmem:[%s21 + $0x6c] sm:$0xff]
    %v4262 = vld [vmem:[%s21 + $0x74] sm:$0xf]
    %v4263 = vld [vmem:[%s21 + $0x78] sm:$0xff]
    %v4264 = vld [vmem:[%s21 + $0x80] sm:$0xf]
    %v4265 = vld [vmem:[%s21 + $0x84] sm:$0xff]
    %v4266 = vld [vmem:[%s21 + $0x8c] sm:$0xf]
    %v4267 = vld [vmem:[%s21 + $0x90] sm:$0xff]
    %v4268 = vld [vmem:[%s21 + $0x98] sm:$0xf]
    %v4269 = vld [vmem:[%s21 + $0x9c] sm:$0xff]
    %v4270 = vld [vmem:[%s21 + $0xa4] sm:$0xf]
    %v4271 = vld [vmem:[%s21 + $0xa8] sm:$0xff]
    %v4272 = vld [vmem:[%s21 + $0xb0] sm:$0xf]
    %v4273 = vld [vmem:[%s21 + $0xb4] sm:$0xff]
    %v4274 = vld [vmem:[%s21 + $0xbc] sm:$0xf]
    %v4307 = vunpack.c.l.b16 %v4243
    %v4308 = vunpack.c.h.b16 %v4243
    %v4309 = vunpack.c.l.b16 %v4244
    %v4310 = vunpack.c.l.b16 %v4245
    %v4311 = vunpack.c.h.b16 %v4245
    %v4312 = vunpack.c.l.b16 %v4246
    %v4313 = vunpack.c.l.b16 %v4247
    %v4314 = vunpack.c.h.b16 %v4247
    %v4315 = vunpack.c.l.b16 %v4248
    %v4316 = vunpack.c.l.b16 %v4249
    %v4317 = vunpack.c.h.b16 %v4249
    %v4318 = vunpack.c.l.b16 %v4250
    %v4319 = vunpack.c.l.b16 %v4251
    %v4320 = vunpack.c.h.b16 %v4251
    %v4321 = vunpack.c.l.b16 %v4252
    %v4322 = vunpack.c.l.b16 %v4253
    %v4323 = vunpack.c.h.b16 %v4253
    %v4324 = vunpack.c.l.b16 %v4254
    %v4325 = vunpack.c.l.b16 %v4255
    %v4326 = vunpack.c.h.b16 %v4255
    %v4327 = vunpack.c.l.b16 %v4256
    %v4328 = vunpack.c.l.b16 %v4257
    %v4329 = vunpack.c.h.b16 %v4257
    %v4330 = vunpack.c.l.b16 %v4258
    %v4331 = vunpack.c.l.b16 %v4259
    %v4332 = vunpack.c.h.b16 %v4259
    %v4333 = vunpack.c.l.b16 %v4260
    %v4334 = vunpack.c.l.b16 %v4261
    %v4335 = vunpack.c.h.b16 %v4261
    %v4336 = vunpack.c.l.b16 %v4262
    %v4337 = vunpack.c.l.b16 %v4263
    %v4338 = vunpack.c.h.b16 %v4263
    %v4339 = vunpack.c.l.b16 %v4264
    %v4340 = vunpack.c.l.b16 %v4265
    %v4341 = vunpack.c.h.b16 %v4265
    %v4342 = vunpack.c.l.b16 %v4266
    %v4343 = vunpack.c.l.b16 %v4267
    %v4344 = vunpack.c.h.b16 %v4267
    %v4345 = vunpack.c.l.b16 %v4268
    %v4346 = vunpack.c.l.b16 %v4269
    %v4347 = vunpack.c.h.b16 %v4269
    %v4348 = vunpack.c.l.b16 %v4270
    %v4349 = vunpack.c.l.b16 %v4271
    %v4350 = vunpack.c.h.b16 %v4271
    %v4351 = vunpack.c.l.b16 %v4272
    %v4352 = vunpack.c.l.b16 %v4273
    %v4353 = vunpack.c.h.b16 %v4273
    %v4354 = vunpack.c.l.b16 %v4274
    %v4355 = vpack.c.b16 %v4310, %v4307
    %v4356 = vpack.c.b16 %v4311, %v4308
    %v4357 = vpack.c.b16 %v4312, %v4309
    %v4358 = vpack.c.b16 %v4316, %v4313
    %v4359 = vpack.c.b16 %v4317, %v4314
    %v4360 = vpack.c.b16 %v4318, %v4315
    %v4361 = vpack.c.b16 %v4322, %v4319
    %v4362 = vpack.c.b16 %v4323, %v4320
    %v4363 = vpack.c.b16 %v4324, %v4321
    %v4364 = vpack.c.b16 %v4328, %v4325
    %v4365 = vpack.c.b16 %v4329, %v4326
    %v4366 = vpack.c.b16 %v4330, %v4327
    %v4367 = vpack.c.b16 %v4334, %v4331
    %v4368 = vpack.c.b16 %v4335, %v4332
    %v4369 = vpack.c.b16 %v4336, %v4333
    %v4370 = vpack.c.b16 %v4340, %v4337
    %v4371 = vpack.c.b16 %v4341, %v4338
    %v4372 = vpack.c.b16 %v4342, %v4339
    %v4373 = vpack.c.b16 %v4346, %v4343
    %v4374 = vpack.c.b16 %v4347, %v4344
    %v4375 = vpack.c.b16 %v4348, %v4345
    %v4376 = vpack.c.b16 %v4352, %v4349
    %v4377 = vpack.c.b16 %v4353, %v4350
    %v4378 = vpack.c.b16 %v4354, %v4351
    %4403 = vmatprep.subr.bf16.mxu0 %v4356
    %4404 = vmatpush1.bf16.msra.mxu0 %v4355
    %4405 = vmatprep.subr.bf16.mxu0 %v4359
    %4406 = vmatpush1.bf16.msra.mxu0 %v4358
    %4407 = vmatprep.subr.bf16.mxu0 %v4362
    %4408 = vmatpush1.bf16.msra.mxu0 %v4361
    %4409 = vmatprep.subr.bf16.mxu0 %v4365
    %4410 = vmatpush1.bf16.msra.mxu0 %v4364
    %4411 = vmatprep.subr.bf16.mxu0 %v4368
    %4412 = vmatpush1.bf16.msra.mxu0 %v4367
    %4413 = vmatprep.subr.bf16.mxu0 %v4371
    %4414 = vmatpush1.bf16.msra.mxu0 %v4370
    %4415 = vmatprep.subr.bf16.mxu0 %v4374
    %4416 = vmatpush1.bf16.msra.mxu0 %v4373
    %4417 = vmatprep.subr.bf16.mxu0 %v4377
    %4418 = vmatpush1.bf16.msra.mxu0 %v4376
    %4419 = vmatprep.subr.bf16.mxu0 0
    %4420 = vmatpush1.bf16.msra.mxu0 0
    %4421 = vmatprep.subr.bf16.mxu0 0
    %4422 = vmatpush1.bf16.msra.mxu0 0
    %4423 = vmatprep.subr.bf16.mxu0 0
    %4424 = vmatpush1.bf16.msra.mxu0 0
    %4425 = vmatprep.subr.bf16.mxu0 0
    %4426 = vmatpush1.bf16.msra.mxu0 0
    %4427 = vmatprep.subr.bf16.mxu0 0
    %4428 = vmatpush1.bf16.msra.mxu0 0
    %4429 = vmatprep.subr.bf16.mxu0 0
    %4430 = vmatpush1.bf16.msra.mxu0 0
    %4431 = vmatprep.subr.bf16.mxu0 0
    %4432 = vmatpush1.bf16.msra.mxu0 0
    %4433 = vmatprep.subr.bf16.mxu0 0
    %4434 = vmatpush1.bf16.msra.mxu0 0
    %4435 = vmatprep.mubr.bf16.mxu0 0
    %4436 = vmatmul.mubr.bf16.gmra.mrb[0].mxu0 %v4242
    %v4437 = vpop.f32.mrb[0].mxu0
    %v4438 = vadd.f32 0.0, %v4437
    %v4439 = vpop.f32.mrb[0].mxu0
    %v4440 = vadd.f32 0.0, %v4439
    %v4441 = vpop.f32.mrb[0].mxu0
    %v4442 = vpop.f32.mrb[0].mxu0
    %4443 = vdwg.mxu0
    %4444 = vmatprep.subr.bf16.mxu0 0
    %4445 = vmatpush1.bf16.msra.mxu0 %v4357
    %4446 = vmatprep.subr.bf16.mxu0 0
    %4447 = vmatpush1.bf16.msra.mxu0 %v4360
    %4448 = vmatprep.subr.bf16.mxu0 0
    %4449 = vmatpush1.bf16.msra.mxu0 %v4363
    %4450 = vmatprep.subr.bf16.mxu0 0
    %4451 = vmatpush1.bf16.msra.mxu0 %v4366
    %4452 = vmatprep.subr.bf16.mxu0 0
    %4453 = vmatpush1.bf16.msra.mxu0 %v4369
    %4454 = vmatprep.subr.bf16.mxu0 0
    %4455 = vmatpush1.bf16.msra.mxu0 %v4372
    %4456 = vmatprep.subr.bf16.mxu0 0
    %4457 = vmatpush1.bf16.msra.mxu0 %v4375
    %4458 = vmatprep.subr.bf16.mxu0 0
    %4459 = vmatpush1.bf16.msra.mxu0 %v4378
    %4460 = vmatprep.subr.bf16.mxu0 0
    %4461 = vmatpush1.bf16.msra.mxu0 0
    %4462 = vmatprep.subr.bf16.mxu0 0
    %4463 = vmatpush1.bf16.msra.mxu0 0
    %4464 = vmatprep.subr.bf16.mxu0 0
    %4465 = vmatpush1.bf16.msra.mxu0 0
    %4466 = vmatprep.subr.bf16.mxu0 0
    %4467 = vmatpush1.bf16.msra.mxu0 0
    %4468 = vmatprep.subr.bf16.mxu0 0
    %4469 = vmatpush1.bf16.msra.mxu0 0
    %4470 = vmatprep.subr.bf16.mxu0 0
    %4471 = vmatpush1.bf16.msra.mxu0 0
    %4472 = vmatprep.subr.bf16.mxu0 0
    %4473 = vmatpush1.bf16.msra.mxu0 0
    %4474 = vmatprep.subr.bf16.mxu0 0
    %4475 = vmatpush1.bf16.msra.mxu0 0
    %4476 = vmatprep.mubr.bf16.mxu0 0
    %4477 = vmatmul.mubr.bf16.gmra.mrb[0].mxu0 %v4242
    %v4478 = vpop.f32.mrb[0].mxu0
    %v4479 = vadd.f32 0.0, %v4478
    %v4480 = vpop.f32.mrb[0].mxu0
    %v4481 = vpop.f32.mrb[0].mxu0
    %v4482 = vpop.f32.mrb[0].mxu0
    %4483 = vdwg.mxu0
    %s4484 = scalar_lea.vmem [#allocation5], 4
    %v4485 = vld [vmem:[%s4484] ss:$8 sm:$0x7]
    %v4488 = vcombine.low %v4438, %v4440
    %v4490 = vunpack.c.l.s4 1966171168
    %v4491 = vunpack.c.0.s8 %v4490
    %v4492 = vlaneseq
    %v4493 = vshrl.u32 %v4492, 7
    %v4494 = vsub.s32 %v4491, %v4493
    %v4495 = vrot.slane %v4488, %v4494
    %v4497 = vunpack.c.l.s4 1966171168
    %v4498 = vunpack.c.0.s8 %v4497
    %v4499 = vlaneseq
    %v4500 = vshrl.u32 %v4499, 7
    %v4501 = vsub.s32 %v4498, %v4500
    %v4502 = vrot.slane %v4495, %v4501
    %v4504 = vadd.f32 %v4485, %v4502
    %v4505 = vxor.u32 %v4504, 2147483648
    %v4506 = vmul.f32 %v4505, 1.442695
    %v4507 = vpow.pop %v4506
    %v4508 = vadd.f32 %v4507, 1.0
    %v4509 = vrcp.pop %v4508
    %v4510 = vmul.f32 1.0, %v4509
    %v4511 = vld [vmem:[%s25] sm:$0x1]
    %v4512 = vadd.f32 %v4479, %v4511
    %v4513 = vmul.f32 %v4510, %v4512
    %v4515 = vrot.slane %v4485, 2
    %v4517 = vadd.f32 %v4515, %v4513
    %v4518 = vtanh.pop %v4517
    %v4520 = vrot.slane %v4510, 1
    %v4522 = vsub.f32 1.0, %v4520
    %v4523 = vmul.f32 %v4522, %v4518
    %v4524 = vmul.f32 %v4520, %v3672
    %v4525 = vadd.f32 %v4523, %v4524
    %v4526 = vpack.c.bf16 %v3956, %v3956
    %v4527 = vld [vmem:[#allocation25] sm:$0xff]
    %v4528 = vld [vmem:[#allocation25 + $0x8] sm:$0xf]
    %v4529 = vld [vmem:[#allocation25 + $0xc] sm:$0xff]
    %v4530 = vld [vmem:[#allocation25 + $0x14] sm:$0xf]
    %v4531 = vld [vmem:[#allocation25 + $0x18] sm:$0xff]
    %v4532 = vld [vmem:[#allocation25 + $0x20] sm:$0xf]
    %v4533 = vld [vmem:[#allocation25 + $0x24] sm:$0xff]
    %v4534 = vld [vmem:[#allocation25 + $0x2c] sm:$0xf]
    %v4535 = vld [vmem:[#allocation25 + $0x30] sm:$0xff]
    %v4536 = vld [vmem:[#allocation25 + $0x38] sm:$0xf]
    %v4537 = vld [vmem:[#allocation25 + $0x3c] sm:$0xff]
    %v4538 = vld [vmem:[#allocation25 + $0x44] sm:$0xf]
    %v4539 = vld [vmem:[#allocation25 + $0x48] sm:$0xff]
    %v4540 = vld [vmem:[#allocation25 + $0x50] sm:$0xf]
    %v4541 = vld [vmem:[#allocation25 + $0x54] sm:$0xff]
    %v4542 = vld [vmem:[#allocation25 + $0x5c] sm:$0xf]
    %v4543 = vld [vmem:[#allocation25 + $0x60] sm:$0xff]
    %v4544 = vld [vmem:[#allocation25 + $0x68] sm:$0xf]
    %v4545 = vld [vmem:[#allocation25 + $0x6c] sm:$0xff]
    %v4546 = vld [vmem:[#allocation25 + $0x74] sm:$0xf]
    %v4547 = vld [vmem:[#allocation25 + $0x78] sm:$0xff]
    %v4548 = vld [vmem:[#allocation25 + $0x80] sm:$0xf]
    %v4549 = vld [vmem:[#allocation25 + $0x84] sm:$0xff]
    %v4550 = vld [vmem:[#allocation25 + $0x8c] sm:$0xf]
    %v4551 = vld [vmem:[#allocation25 + $0x90] sm:$0xff]
    %v4552 = vld [vmem:[#allocation25 + $0x98] sm:$0xf]
    %v4553 = vld [vmem:[#allocation25 + $0x9c] sm:$0xff]
    %v4554 = vld [vmem:[#allocation25 + $0xa4] sm:$0xf]
    %v4555 = vld [vmem:[#allocation25 + $0xa8] sm:$0xff]
    %v4556 = vld [vmem:[#allocation25 + $0xb0] sm:$0xf]
    %v4557 = vld [vmem:[#allocation25 + $0xb4] sm:$0xff]
    %v4558 = vld [vmem:[#allocation25 + $0xbc] sm:$0xf]
    %v4591 = vunpack.c.l.b16 %v4527
    %v4592 = vunpack.c.h.b16 %v4527
    %v4593 = vunpack.c.l.b16 %v4528
    %v4594 = vunpack.c.l.b16 %v4529
    %v4595 = vunpack.c.h.b16 %v4529
    %v4596 = vunpack.c.l.b16 %v4530
    %v4597 = vunpack.c.l.b16 %v4531
    %v4598 = vunpack.c.h.b16 %v4531
    %v4599 = vunpack.c.l.b16 %v4532
    %v4600 = vunpack.c.l.b16 %v4533
    %v4601 = vunpack.c.h.b16 %v4533
    %v4602 = vunpack.c.l.b16 %v4534
    %v4603 = vunpack.c.l.b16 %v4535
    %v4604 = vunpack.c.h.b16 %v4535
    %v4605 = vunpack.c.l.b16 %v4536
    %v4606 = vunpack.c.l.b16 %v4537
    %v4607 = vunpack.c.h.b16 %v4537
    %v4608 = vunpack.c.l.b16 %v4538
    %v4609 = vunpack.c.l.b16 %v4539
    %v4610 = vunpack.c.h.b16 %v4539
    %v4611 = vunpack.c.l.b16 %v4540
    %v4612 = vunpack.c.l.b16 %v4541
    %v4613 = vunpack.c.h.b16 %v4541
    %v4614 = vunpack.c.l.b16 %v4542
    %v4615 = vunpack.c.l.b16 %v4543
    %v4616 = vunpack.c.h.b16 %v4543
    %v4617 = vunpack.c.l.b16 %v4544
    %v4618 = vunpack.c.l.b16 %v4545
    %v4619 = vunpack.c.h.b16 %v4545
    %v4620 = vunpack.c.l.b16 %v4546
    %v4621 = vunpack.c.l.b16 %v4547
    %v4622 = vunpack.c.h.b16 %v4547
    %v4623 = vunpack.c.l.b16 %v4548
    %v4624 = vunpack.c.l.b16 %v4549
    %v4625 = vunpack.c.h.b16 %v4549
    %v4626 = vunpack.c.l.b16 %v4550
    %v4627 = vunpack.c.l.b16 %v4551
    %v4628 = vunpack.c.h.b16 %v4551
    %v4629 = vunpack.c.l.b16 %v4552
    %v4630 = vunpack.c.l.b16 %v4553
    %v4631 = vunpack.c.h.b16 %v4553
    %v4632 = vunpack.c.l.b16 %v4554
    %v4633 = vunpack.c.l.b16 %v4555
    %v4634 = vunpack.c.h.b16 %v4555
    %v4635 = vunpack.c.l.b16 %v4556
    %v4636 = vunpack.c.l.b16 %v4557
    %v4637 = vunpack.c.h.b16 %v4557
    %v4638 = vunpack.c.l.b16 %v4558
    %v4639 = vpack.c.b16 %v4594, %v4591
    %v4640 = vpack.c.b16 %v4595, %v4592
    %v4641 = vpack.c.b16 %v4596, %v4593
    %v4642 = vpack.c.b16 %v4600, %v4597
    %v4643 = vpack.c.b16 %v4601, %v4598
    %v4644 = vpack.c.b16 %v4602, %v4599
    %v4645 = vpack.c.b16 %v4606, %v4603
    %v4646 = vpack.c.b16 %v4607, %v4604
    %v4647 = vpack.c.b16 %v4608, %v4605
    %v4648 = vpack.c.b16 %v4612, %v4609
    %v4649 = vpack.c.b16 %v4613, %v4610
    %v4650 = vpack.c.b16 %v4614, %v4611
    %v4651 = vpack.c.b16 %v4618, %v4615
    %v4652 = vpack.c.b16 %v4619, %v4616
    %v4653 = vpack.c.b16 %v4620, %v4617
    %v4654 = vpack.c.b16 %v4624, %v4621
    %v4655 = vpack.c.b16 %v4625, %v4622
    %v4656 = vpack.c.b16 %v4626, %v4623
    %v4657 = vpack.c.b16 %v4630, %v4627
    %v4658 = vpack.c.b16 %v4631, %v4628
    %v4659 = vpack.c.b16 %v4632, %v4629
    %v4660 = vpack.c.b16 %v4636, %v4633
    %v4661 = vpack.c.b16 %v4637, %v4634
    %v4662 = vpack.c.b16 %v4638, %v4635
    %4687 = vmatprep.subr.bf16.mxu0 %v4640
    %4688 = vmatpush1.bf16.msra.mxu0 %v4639
    %4689 = vmatprep.subr.bf16.mxu0 %v4643
    %4690 = vmatpush1.bf16.msra.mxu0 %v4642
    %4691 = vmatprep.subr.bf16.mxu0 %v4646
    %4692 = vmatpush1.bf16.msra.mxu0 %v4645
    %4693 = vmatprep.subr.bf16.mxu0 %v4649
    %4694 = vmatpush1.bf16.msra.mxu0 %v4648
    %4695 = vmatprep.subr.bf16.mxu0 %v4652
    %4696 = vmatpush1.bf16.msra.mxu0 %v4651
    %4697 = vmatprep.subr.bf16.mxu0 %v4655
    %4698 = vmatpush1.bf16.msra.mxu0 %v4654
    %4699 = vmatprep.subr.bf16.mxu0 %v4658
    %4700 = vmatpush1.bf16.msra.mxu0 %v4657
    %4701 = vmatprep.subr.bf16.mxu0 %v4661
    %4702 = vmatpush1.bf16.msra.mxu0 %v4660
    %4703 = vmatprep.subr.bf16.mxu0 0
    %4704 = vmatpush1.bf16.msra.mxu0 0
    %4705 = vmatprep.subr.bf16.mxu0 0
    %4706 = vmatpush1.bf16.msra.mxu0 0
    %4707 = vmatprep.subr.bf16.mxu0 0
    %4708 = vmatpush1.bf16.msra.mxu0 0
    %4709 = vmatprep.subr.bf16.mxu0 0
    %4710 = vmatpush1.bf16.msra.mxu0 0
    %4711 = vmatprep.subr.bf16.mxu0 0
    %4712 = vmatpush1.bf16.msra.mxu0 0
    %4713 = vmatprep.subr.bf16.mxu0 0
    %4714 = vmatpush1.bf16.msra.mxu0 0
    %4715 = vmatprep.subr.bf16.mxu0 0
    %4716 = vmatpush1.bf16.msra.mxu0 0
    %4717 = vmatprep.subr.bf16.mxu0 0
    %4718 = vmatpush1.bf16.msra.mxu0 0
    %4719 = vmatprep.mubr.bf16.mxu0 0
    %4720 = vmatmul.mubr.bf16.gmra.mrb[0].mxu0 %v4526
    %v4721 = vpop.f32.mrb[0].mxu0
    %v4722 = vadd.f32 0.0, %v4721
    %v4723 = vpop.f32.mrb[0].mxu0
    %v4724 = vadd.f32 0.0, %v4723
    %v4725 = vpop.f32.mrb[0].mxu0
    %v4726 = vpop.f32.mrb[0].mxu0
    %4727 = vdwg.mxu0
    %4728 = vmatprep.subr.bf16.mxu0 0
    %4729 = vmatpush1.bf16.msra.mxu0 %v4641
    %4730 = vmatprep.subr.bf16.mxu0 0
    %4731 = vmatpush1.bf16.msra.mxu0 %v4644
    %4732 = vmatprep.subr.bf16.mxu0 0
    %4733 = vmatpush1.bf16.msra.mxu0 %v4647
    %4734 = vmatprep.subr.bf16.mxu0 0
    %4735 = vmatpush1.bf16.msra.mxu0 %v4650
    %4736 = vmatprep.subr.bf16.mxu0 0
    %4737 = vmatpush1.bf16.msra.mxu0 %v4653
    %4738 = vmatprep.subr.bf16.mxu0 0
    %4739 = vmatpush1.bf16.msra.mxu0 %v4656
    %4740 = vmatprep.subr.bf16.mxu0 0
    %4741 = vmatpush1.bf16.msra.mxu0 %v4659
    %4742 = vmatprep.subr.bf16.mxu0 0
    %4743 = vmatpush1.bf16.msra.mxu0 %v4662
    %4744 = vmatprep.subr.bf16.mxu0 0
    %4745 = vmatpush1.bf16.msra.mxu0 0
    %4746 = vmatprep.subr.bf16.mxu0 0
    %4747 = vmatpush1.bf16.msra.mxu0 0
    %4748 = vmatprep.subr.bf16.mxu0 0
    %4749 = vmatpush1.bf16.msra.mxu0 0
    %4750 = vmatprep.subr.bf16.mxu0 0
    %4751 = vmatpush1.bf16.msra.mxu0 0
    %4752 = vmatprep.subr.bf16.mxu0 0
    %4753 = vmatpush1.bf16.msra.mxu0 0
    %4754 = vmatprep.subr.bf16.mxu0 0
    %4755 = vmatpush1.bf16.msra.mxu0 0
    %4756 = vmatprep.subr.bf16.mxu0 0
    %4757 = vmatpush1.bf16.msra.mxu0 0
    %4758 = vmatprep.subr.bf16.mxu0 0
    %4759 = vmatpush1.bf16.msra.mxu0 0
    %4760 = vmatprep.mubr.bf16.mxu0 0
    %4761 = vmatmul.mubr.bf16.gmra.mrb[0].mxu0 %v4526
    %v4762 = vpop.f32.mrb[0].mxu0
    %v4763 = vadd.f32 0.0, %v4762
    %v4764 = vpop.f32.mrb[0].mxu0
    %v4765 = vpop.f32.mrb[0].mxu0
    %v4766 = vpop.f32.mrb[0].mxu0
    %4767 = vdwg.mxu0
    %s4768 = scalar_lea.vmem [#allocation6], 4
    %v4769 = vld [vmem:[%s4768] ss:$8 sm:$0x7]
    %v4772 = vcombine.low %v4722, %v4724
    %v4774 = vunpack.c.l.s4 1966171168
    %v4775 = vunpack.c.0.s8 %v4774
    %v4776 = vlaneseq
    %v4777 = vshrl.u32 %v4776, 7
    %v4778 = vsub.s32 %v4775, %v4777
    %v4779 = vrot.slane %v4772, %v4778
    %v4781 = vunpack.c.l.s4 1966171168
    %v4782 = vunpack.c.0.s8 %v4781
    %v4783 = vlaneseq
    %v4784 = vshrl.u32 %v4783, 7
    %v4785 = vsub.s32 %v4782, %v4784
    %v4786 = vrot.slane %v4779, %v4785
    %v4788 = vadd.f32 %v4769, %v4786
    %v4789 = vxor.u32 %v4788, 2147483648
    %v4790 = vmul.f32 %v4789, 1.442695
    %v4791 = vpow.pop %v4790
    %v4792 = vadd.f32 %v4791, 1.0
    %v4793 = vrcp.pop %v4792
    %v4794 = vmul.f32 1.0, %v4793
    %v4795 = vld [vmem:[%s33] sm:$0x1]
    %v4796 = vadd.f32 %v4763, %v4795
    %v4797 = vmul.f32 %v4794, %v4796
    %v4799 = vrot.slane %v4769, 2
    %v4801 = vadd.f32 %v4799, %v4797
    %v4802 = vtanh.pop %v4801
    %v4804 = vrot.slane %v4794, 1
    %v4806 = vsub.f32 1.0, %v4804
    %v4807 = vmul.f32 %v4806, %v4802
    %v4808 = vmul.f32 %v4804, %v3956
    %v4809 = vadd.f32 %v4807, %v4808
    %v4810 = vpack.c.bf16 %v4240, %v4240
    %v4811 = vld [vmem:[#allocation28] sm:$0xff]
    %v4812 = vld [vmem:[#allocation28 + $0x8] sm:$0xf]
    %v4813 = vld [vmem:[#allocation28 + $0xc] sm:$0xff]
    %v4814 = vld [vmem:[#allocation28 + $0x14] sm:$0xf]
    %v4815 = vld [vmem:[#allocation28 + $0x18] sm:$0xff]
    %v4816 = vld [vmem:[#allocation28 + $0x20] sm:$0xf]
    %v4817 = vld [vmem:[#allocation28 + $0x24] sm:$0xff]
    %v4818 = vld [vmem:[#allocation28 + $0x2c] sm:$0xf]
    %v4819 = vld [vmem:[#allocation28 + $0x30] sm:$0xff]
    %v4820 = vld [vmem:[#allocation28 + $0x38] sm:$0xf]
    %v4821 = vld [vmem:[#allocation28 + $0x3c] sm:$0xff]
    %v4822 = vld [vmem:[#allocation28 + $0x44] sm:$0xf]
    %v4823 = vld [vmem:[#allocation28 + $0x48] sm:$0xff]
    %v4824 = vld [vmem:[#allocation28 + $0x50] sm:$0xf]
    %v4825 = vld [vmem:[#allocation28 + $0x54] sm:$0xff]
    %v4826 = vld [vmem:[#allocation28 + $0x5c] sm:$0xf]
    %v4827 = vld [vmem:[#allocation28 + $0x60] sm:$0xff]
    %v4828 = vld [vmem:[#allocation28 + $0x68] sm:$0xf]
    %v4829 = vld [vmem:[#allocation28 + $0x6c] sm:$0xff]
    %v4830 = vld [vmem:[#allocation28 + $0x74] sm:$0xf]
    %v4831 = vld [vmem:[#allocation28 + $0x78] sm:$0xff]
    %v4832 = vld [vmem:[#allocation28 + $0x80] sm:$0xf]
    %v4833 = vld [vmem:[#allocation28 + $0x84] sm:$0xff]
    %v4834 = vld [vmem:[#allocation28 + $0x8c] sm:$0xf]
    %v4835 = vld [vmem:[#allocation28 + $0x90] sm:$0xff]
    %v4836 = vld [vmem:[#allocation28 + $0x98] sm:$0xf]
    %v4837 = vld [vmem:[#allocation28 + $0x9c] sm:$0xff]
    %v4838 = vld [vmem:[#allocation28 + $0xa4] sm:$0xf]
    %v4839 = vld [vmem:[#allocation28 + $0xa8] sm:$0xff]
    %v4840 = vld [vmem:[#allocation28 + $0xb0] sm:$0xf]
    %v4841 = vld [vmem:[#allocation28 + $0xb4] sm:$0xff]
    %v4842 = vld [vmem:[#allocation28 + $0xbc] sm:$0xf]
    %v4875 = vunpack.c.l.b16 %v4811
    %v4876 = vunpack.c.h.b16 %v4811
    %v4877 = vunpack.c.l.b16 %v4812
    %v4878 = vunpack.c.l.b16 %v4813
    %v4879 = vunpack.c.h.b16 %v4813
    %v4880 = vunpack.c.l.b16 %v4814
    %v4881 = vunpack.c.l.b16 %v4815
    %v4882 = vunpack.c.h.b16 %v4815
    %v4883 = vunpack.c.l.b16 %v4816
    %v4884 = vunpack.c.l.b16 %v4817
    %v4885 = vunpack.c.h.b16 %v4817
    %v4886 = vunpack.c.l.b16 %v4818
    %v4887 = vunpack.c.l.b16 %v4819
    %v4888 = vunpack.c.h.b16 %v4819
    %v4889 = vunpack.c.l.b16 %v4820
    %v4890 = vunpack.c.l.b16 %v4821
    %v4891 = vunpack.c.h.b16 %v4821
    %v4892 = vunpack.c.l.b16 %v4822
    %v4893 = vunpack.c.l.b16 %v4823
    %v4894 = vunpack.c.h.b16 %v4823
    %v4895 = vunpack.c.l.b16 %v4824
    %v4896 = vunpack.c.l.b16 %v4825
    %v4897 = vunpack.c.h.b16 %v4825
    %v4898 = vunpack.c.l.b16 %v4826
    %v4899 = vunpack.c.l.b16 %v4827
    %v4900 = vunpack.c.h.b16 %v4827
    %v4901 = vunpack.c.l.b16 %v4828
    %v4902 = vunpack.c.l.b16 %v4829
    %v4903 = vunpack.c.h.b16 %v4829
    %v4904 = vunpack.c.l.b16 %v4830
    %v4905 = vunpack.c.l.b16 %v4831
    %v4906 = vunpack.c.h.b16 %v4831
    %v4907 = vunpack.c.l.b16 %v4832
    %v4908 = vunpack.c.l.b16 %v4833
    %v4909 = vunpack.c.h.b16 %v4833
    %v4910 = vunpack.c.l.b16 %v4834
    %v4911 = vunpack.c.l.b16 %v4835
    %v4912 = vunpack.c.h.b16 %v4835
    %v4913 = vunpack.c.l.b16 %v4836
    %v4914 = vunpack.c.l.b16 %v4837
    %v4915 = vunpack.c.h.b16 %v4837
    %v4916 = vunpack.c.l.b16 %v4838
    %v4917 = vunpack.c.l.b16 %v4839
    %v4918 = vunpack.c.h.b16 %v4839
    %v4919 = vunpack.c.l.b16 %v4840
    %v4920 = vunpack.c.l.b16 %v4841
    %v4921 = vunpack.c.h.b16 %v4841
    %v4922 = vunpack.c.l.b16 %v4842
    %v4923 = vpack.c.b16 %v4878, %v4875
    %v4924 = vpack.c.b16 %v4879, %v4876
    %v4925 = vpack.c.b16 %v4880, %v4877
    %v4926 = vpack.c.b16 %v4884, %v4881
    %v4927 = vpack.c.b16 %v4885, %v4882
    %v4928 = vpack.c.b16 %v4886, %v4883
    %v4929 = vpack.c.b16 %v4890, %v4887
    %v4930 = vpack.c.b16 %v4891, %v4888
    %v4931 = vpack.c.b16 %v4892, %v4889
    %v4932 = vpack.c.b16 %v4896, %v4893
    %v4933 = vpack.c.b16 %v4897, %v4894
    %v4934 = vpack.c.b16 %v4898, %v4895
    %v4935 = vpack.c.b16 %v4902, %v4899
    %v4936 = vpack.c.b16 %v4903, %v4900
    %v4937 = vpack.c.b16 %v4904, %v4901
    %v4938 = vpack.c.b16 %v4908, %v4905
    %v4939 = vpack.c.b16 %v4909, %v4906
    %v4940 = vpack.c.b16 %v4910, %v4907
    %v4941 = vpack.c.b16 %v4914, %v4911
    %v4942 = vpack.c.b16 %v4915, %v4912
    %v4943 = vpack.c.b16 %v4916, %v4913
    %v4944 = vpack.c.b16 %v4920, %v4917
    %v4945 = vpack.c.b16 %v4921, %v4918
    %v4946 = vpack.c.b16 %v4922, %v4919
    %4971 = vmatprep.subr.bf16.mxu0 %v4924
    %4972 = vmatpush1.bf16.msra.mxu0 %v4923
    %4973 = vmatprep.subr.bf16.mxu0 %v4927
    %4974 = vmatpush1.bf16.msra.mxu0 %v4926
    %4975 = vmatprep.subr.bf16.mxu0 %v4930
    %4976 = vmatpush1.bf16.msra.mxu0 %v4929
    %4977 = vmatprep.subr.bf16.mxu0 %v4933
    %4978 = vmatpush1.bf16.msra.mxu0 %v4932
    %4979 = vmatprep.subr.bf16.mxu0 %v4936
    %4980 = vmatpush1.bf16.msra.mxu0 %v4935
    %4981 = vmatprep.subr.bf16.mxu0 %v4939
    %4982 = vmatpush1.bf16.msra.mxu0 %v4938
    %4983 = vmatprep.subr.bf16.mxu0 %v4942
    %4984 = vmatpush1.bf16.msra.mxu0 %v4941
    %4985 = vmatprep.subr.bf16.mxu0 %v4945
    %4986 = vmatpush1.bf16.msra.mxu0 %v4944
    %4987 = vmatprep.subr.bf16.mxu0 0
    %4988 = vmatpush1.bf16.msra.mxu0 0
    %4989 = vmatprep.subr.bf16.mxu0 0
    %4990 = vmatpush1.bf16.msra.mxu0 0
    %4991 = vmatprep.subr.bf16.mxu0 0
    %4992 = vmatpush1.bf16.msra.mxu0 0
    %4993 = vmatprep.subr.bf16.mxu0 0
    %4994 = vmatpush1.bf16.msra.mxu0 0
    %4995 = vmatprep.subr.bf16.mxu0 0
    %4996 = vmatpush1.bf16.msra.mxu0 0
    %4997 = vmatprep.subr.bf16.mxu0 0
    %4998 = vmatpush1.bf16.msra.mxu0 0
    %4999 = vmatprep.subr.bf16.mxu0 0
    %5000 = vmatpush1.bf16.msra.mxu0 0
    %5001 = vmatprep.subr.bf16.mxu0 0
    %5002 = vmatpush1.bf16.msra.mxu0 0
    %5003 = vmatprep.mubr.bf16.mxu0 0
    %5004 = vmatmul.mubr.bf16.gmra.mrb[0].mxu0 %v4810
    %v5005 = vpop.f32.mrb[0].mxu0
    %v5006 = vadd.f32 0.0, %v5005
    %v5007 = vpop.f32.mrb[0].mxu0
    %v5008 = vadd.f32 0.0, %v5007
    %v5009 = vpop.f32.mrb[0].mxu0
    %v5010 = vpop.f32.mrb[0].mxu0
    %5011 = vdwg.mxu0
    %5012 = vmatprep.subr.bf16.mxu0 0
    %5013 = vmatpush1.bf16.msra.mxu0 %v4925
    %5014 = vmatprep.subr.bf16.mxu0 0
    %5015 = vmatpush1.bf16.msra.mxu0 %v4928
    %5016 = vmatprep.subr.bf16.mxu0 0
    %5017 = vmatpush1.bf16.msra.mxu0 %v4931
    %5018 = vmatprep.subr.bf16.mxu0 0
    %5019 = vmatpush1.bf16.msra.mxu0 %v4934
    %5020 = vmatprep.subr.bf16.mxu0 0
    %5021 = vmatpush1.bf16.msra.mxu0 %v4937
    %5022 = vmatprep.subr.bf16.mxu0 0
    %5023 = vmatpush1.bf16.msra.mxu0 %v4940
    %5024 = vmatprep.subr.bf16.mxu0 0
    %5025 = vmatpush1.bf16.msra.mxu0 %v4943
    %5026 = vmatprep.subr.bf16.mxu0 0
    %5027 = vmatpush1.bf16.msra.mxu0 %v4946
    %5028 = vmatprep.subr.bf16.mxu0 0
    %5029 = vmatpush1.bf16.msra.mxu0 0
    %5030 = vmatprep.subr.bf16.mxu0 0
    %5031 = vmatpush1.bf16.msra.mxu0 0
    %5032 = vmatprep.subr.bf16.mxu0 0
    %5033 = vmatpush1.bf16.msra.mxu0 0
    %5034 = vmatprep.subr.bf16.mxu0 0
    %5035 = vmatpush1.bf16.msra.mxu0 0
    %5036 = vmatprep.subr.bf16.mxu0 0
    %5037 = vmatpush1.bf16.msra.mxu0 0
    %5038 = vmatprep.subr.bf16.mxu0 0
    %5039 = vmatpush1.bf16.msra.mxu0 0
    %5040 = vmatprep.subr.bf16.mxu0 0
    %5041 = vmatpush1.bf16.msra.mxu0 0
    %5042 = vmatprep.subr.bf16.mxu0 0
    %5043 = vmatpush1.bf16.msra.mxu0 0
    %5044 = vmatprep.mubr.bf16.mxu0 0
    %5045 = vmatmul.mubr.bf16.gmra.mrb[0].mxu0 %v4810
    %v5046 = vpop.f32.mrb[0].mxu0
    %v5047 = vadd.f32 0.0, %v5046
    %v5048 = vpop.f32.mrb[0].mxu0
    %v5049 = vpop.f32.mrb[0].mxu0
    %v5050 = vpop.f32.mrb[0].mxu0
    %5051 = vdwg.mxu0
    %s5052 = scalar_lea.vmem [#allocation7], 4
    %v5053 = vld [vmem:[%s5052] ss:$8 sm:$0x7]
    %v5056 = vcombine.low %v5006, %v5008
    %v5058 = vunpack.c.l.s4 1966171168
    %v5059 = vunpack.c.0.s8 %v5058
    %v5060 = vlaneseq
    %v5061 = vshrl.u32 %v5060, 7
    %v5062 = vsub.s32 %v5059, %v5061
    %v5063 = vrot.slane %v5056, %v5062
    %v5065 = vunpack.c.l.s4 1966171168
    %v5066 = vunpack.c.0.s8 %v5065
    %v5067 = vlaneseq
    %v5068 = vshrl.u32 %v5067, 7
    %v5069 = vsub.s32 %v5066, %v5068
    %v5070 = vrot.slane %v5063, %v5069
    %v5072 = vadd.f32 %v5053, %v5070
    %v5073 = vxor.u32 %v5072, 2147483648
    %v5074 = vmul.f32 %v5073, 1.442695
    %v5075 = vpow.pop %v5074
    %v5076 = vadd.f32 %v5075, 1.0
    %v5077 = vrcp.pop %v5076
    %v5078 = vmul.f32 1.0, %v5077
    %v5079 = vld [vmem:[%s41] sm:$0x1]
    %v5080 = vadd.f32 %v5047, %v5079
    %v5081 = vmul.f32 %v5078, %v5080
    %v5083 = vrot.slane %v5053, 2
    %v5085 = vadd.f32 %v5083, %v5081
    %v5086 = vtanh.pop %v5085
    %v5088 = vrot.slane %v5078, 1
    %v5090 = vsub.f32 1.0, %v5088
    %v5091 = vmul.f32 %v5090, %v5086
    %v5092 = vmul.f32 %v5088, %v4240
    %v5093 = vadd.f32 %v5091, %v5092
    %5094 = vst [vmem:[#allocation8 + $0x4] sm:$0x1] %v5093
    %v5095 = vpack.c.bf16 %v4525, %v4525
    %v5096 = vld [vmem:[%s21] sm:$0xff]
    %v5097 = vld [vmem:[%s21 + $0x8] sm:$0xf]
    %v5098 = vld [vmem:[%s21 + $0xc] sm:$0xff]
    %v5099 = vld [vmem:[%s21 + $0x14] sm:$0xf]
    %v5100 = vld [vmem:[%s21 + $0x18] sm:$0xff]
    %v5101 = vld [vmem:[%s21 + $0x20] sm:$0xf]
    %v5102 = vld [vmem:[%s21 + $0x24] sm:$0xff]
    %v5103 = vld [vmem:[%s21 + $0x2c] sm:$0xf]
    %v5104 = vld [vmem:[%s21 + $0x30] sm:$0xff]
    %v5105 = vld [vmem:[%s21 + $0x38] sm:$0xf]
    %v5106 = vld [vmem:[%s21 + $0x3c] sm:$0xff]
    %v5107 = vld [vmem:[%s21 + $0x44] sm:$0xf]
    %v5108 = vld [vmem:[%s21 + $0x48] sm:$0xff]
    %v5109 = vld [vmem:[%s21 + $0x50] sm:$0xf]
    %v5110 = vld [vmem:[%s21 + $0x54] sm:$0xff]
    %v5111 = vld [vmem:[%s21 + $0x5c] sm:$0xf]
    %v5112 = vld [vmem:[%s21 + $0x60] sm:$0xff]
    %v5113 = vld [vmem:[%s21 + $0x68] sm:$0xf]
    %v5114 = vld [vmem:[%s21 + $0x6c] sm:$0xff]
    %v5115 = vld [vmem:[%s21 + $0x74] sm:$0xf]
    %v5116 = vld [vmem:[%s21 + $0x78] sm:$0xff]
    %v5117 = vld [vmem:[%s21 + $0x80] sm:$0xf]
    %v5118 = vld [vmem:[%s21 + $0x84] sm:$0xff]
    %v5119 = vld [vmem:[%s21 + $0x8c] sm:$0xf]
    %v5120 = vld [vmem:[%s21 + $0x90] sm:$0xff]
    %v5121 = vld [vmem:[%s21 + $0x98] sm:$0xf]
    %v5122 = vld [vmem:[%s21 + $0x9c] sm:$0xff]
    %v5123 = vld [vmem:[%s21 + $0xa4] sm:$0xf]
    %v5124 = vld [vmem:[%s21 + $0xa8] sm:$0xff]
    %v5125 = vld [vmem:[%s21 + $0xb0] sm:$0xf]
    %v5126 = vld [vmem:[%s21 + $0xb4] sm:$0xff]
    %v5127 = vld [vmem:[%s21 + $0xbc] sm:$0xf]
    %v5160 = vunpack.c.l.b16 %v5096
    %v5161 = vunpack.c.h.b16 %v5096
    %v5162 = vunpack.c.l.b16 %v5097
    %v5163 = vunpack.c.l.b16 %v5098
    %v5164 = vunpack.c.h.b16 %v5098
    %v5165 = vunpack.c.l.b16 %v5099
    %v5166 = vunpack.c.l.b16 %v5100
    %v5167 = vunpack.c.h.b16 %v5100
    %v5168 = vunpack.c.l.b16 %v5101
    %v5169 = vunpack.c.l.b16 %v5102
    %v5170 = vunpack.c.h.b16 %v5102
    %v5171 = vunpack.c.l.b16 %v5103
    %v5172 = vunpack.c.l.b16 %v5104
    %v5173 = vunpack.c.h.b16 %v5104
    %v5174 = vunpack.c.l.b16 %v5105
    %v5175 = vunpack.c.l.b16 %v5106
    %v5176 = vunpack.c.h.b16 %v5106
    %v5177 = vunpack.c.l.b16 %v5107
    %v5178 = vunpack.c.l.b16 %v5108
    %v5179 = vunpack.c.h.b16 %v5108
    %v5180 = vunpack.c.l.b16 %v5109
    %v5181 = vunpack.c.l.b16 %v5110
    %v5182 = vunpack.c.h.b16 %v5110
    %v5183 = vunpack.c.l.b16 %v5111
    %v5184 = vunpack.c.l.b16 %v5112
    %v5185 = vunpack.c.h.b16 %v5112
    %v5186 = vunpack.c.l.b16 %v5113
    %v5187 = vunpack.c.l.b16 %v5114
    %v5188 = vunpack.c.h.b16 %v5114
    %v5189 = vunpack.c.l.b16 %v5115
    %v5190 = vunpack.c.l.b16 %v5116
    %v5191 = vunpack.c.h.b16 %v5116
    %v5192 = vunpack.c.l.b16 %v5117
    %v5193 = vunpack.c.l.b16 %v5118
    %v5194 = vunpack.c.h.b16 %v5118
    %v5195 = vunpack.c.l.b16 %v5119
    %v5196 = vunpack.c.l.b16 %v5120
    %v5197 = vunpack.c.h.b16 %v5120
    %v5198 = vunpack.c.l.b16 %v5121
    %v5199 = vunpack.c.l.b16 %v5122
    %v5200 = vunpack.c.h.b16 %v5122
    %v5201 = vunpack.c.l.b16 %v5123
    %v5202 = vunpack.c.l.b16 %v5124
    %v5203 = vunpack.c.h.b16 %v5124
    %v5204 = vunpack.c.l.b16 %v5125
    %v5205 = vunpack.c.l.b16 %v5126
    %v5206 = vunpack.c.h.b16 %v5126
    %v5207 = vunpack.c.l.b16 %v5127
    %v5208 = vpack.c.b16 %v5163, %v5160
    %v5209 = vpack.c.b16 %v5164, %v5161
    %v5210 = vpack.c.b16 %v5165, %v5162
    %v5211 = vpack.c.b16 %v5169, %v5166
    %v5212 = vpack.c.b16 %v5170, %v5167
    %v5213 = vpack.c.b16 %v5171, %v5168
    %v5214 = vpack.c.b16 %v5175, %v5172
    %v5215 = vpack.c.b16 %v5176, %v5173
    %v5216 = vpack.c.b16 %v5177, %v5174
    %v5217 = vpack.c.b16 %v5181, %v5178
    %v5218 = vpack.c.b16 %v5182, %v5179
    %v5219 = vpack.c.b16 %v5183, %v5180
    %v5220 = vpack.c.b16 %v5187, %v5184
    %v5221 = vpack.c.b16 %v5188, %v5185
    %v5222 = vpack.c.b16 %v5189, %v5186
    %v5223 = vpack.c.b16 %v5193, %v5190
    %v5224 = vpack.c.b16 %v5194, %v5191
    %v5225 = vpack.c.b16 %v5195, %v5192
    %v5226 = vpack.c.b16 %v5199, %v5196
    %v5227 = vpack.c.b16 %v5200, %v5197
    %v5228 = vpack.c.b16 %v5201, %v5198
    %v5229 = vpack.c.b16 %v5205, %v5202
    %v5230 = vpack.c.b16 %v5206, %v5203
    %v5231 = vpack.c.b16 %v5207, %v5204
    %5256 = vmatprep.subr.bf16.mxu0 %v5209
    %5257 = vmatpush1.bf16.msra.mxu0 %v5208
    %5258 = vmatprep.subr.bf16.mxu0 %v5212
    %5259 = vmatpush1.bf16.msra.mxu0 %v5211
    %5260 = vmatprep.subr.bf16.mxu0 %v5215
    %5261 = vmatpush1.bf16.msra.mxu0 %v5214
    %5262 = vmatprep.subr.bf16.mxu0 %v5218
    %5263 = vmatpush1.bf16.msra.mxu0 %v5217
    %5264 = vmatprep.subr.bf16.mxu0 %v5221
    %5265 = vmatpush1.bf16.msra.mxu0 %v5220
    %5266 = vmatprep.subr.bf16.mxu0 %v5224
    %5267 = vmatpush1.bf16.msra.mxu0 %v5223
    %5268 = vmatprep.subr.bf16.mxu0 %v5227
    %5269 = vmatpush1.bf16.msra.mxu0 %v5226
    %5270 = vmatprep.subr.bf16.mxu0 %v5230
    %5271 = vmatpush1.bf16.msra.mxu0 %v5229
    %5272 = vmatprep.subr.bf16.mxu0 0
    %5273 = vmatpush1.bf16.msra.mxu0 0
    %5274 = vmatprep.subr.bf16.mxu0 0
    %5275 = vmatpush1.bf16.msra.mxu0 0
    %5276 = vmatprep.subr.bf16.mxu0 0
    %5277 = vmatpush1.bf16.msra.mxu0 0
    %5278 = vmatprep.subr.bf16.mxu0 0
    %5279 = vmatpush1.bf16.msra.mxu0 0
    %5280 = vmatprep.subr.bf16.mxu0 0
    %5281 = vmatpush1.bf16.msra.mxu0 0
    %5282 = vmatprep.subr.bf16.mxu0 0
    %5283 = vmatpush1.bf16.msra.mxu0 0
    %5284 = vmatprep.subr.bf16.mxu0 0
    %5285 = vmatpush1.bf16.msra.mxu0 0
    %5286 = vmatprep.subr.bf16.mxu0 0
    %5287 = vmatpush1.bf16.msra.mxu0 0
    %5288 = vmatprep.mubr.bf16.mxu0 0
    %5289 = vmatmul.mubr.bf16.gmra.mrb[0].mxu0 %v5095
    %v5290 = vpop.f32.mrb[0].mxu0
    %v5291 = vadd.f32 0.0, %v5290
    %v5292 = vpop.f32.mrb[0].mxu0
    %v5293 = vadd.f32 0.0, %v5292
    %v5294 = vpop.f32.mrb[0].mxu0
    %v5295 = vpop.f32.mrb[0].mxu0
    %5296 = vdwg.mxu0
    %5297 = vmatprep.subr.bf16.mxu0 0
    %5298 = vmatpush1.bf16.msra.mxu0 %v5210
    %5299 = vmatprep.subr.bf16.mxu0 0
    %5300 = vmatpush1.bf16.msra.mxu0 %v5213
    %5301 = vmatprep.subr.bf16.mxu0 0
    %5302 = vmatpush1.bf16.msra.mxu0 %v5216
    %5303 = vmatprep.subr.bf16.mxu0 0
    %5304 = vmatpush1.bf16.msra.mxu0 %v5219
    %5305 = vmatprep.subr.bf16.mxu0 0
    %5306 = vmatpush1.bf16.msra.mxu0 %v5222
    %5307 = vmatprep.subr.bf16.mxu0 0
    %5308 = vmatpush1.bf16.msra.mxu0 %v5225
    %5309 = vmatprep.subr.bf16.mxu0 0
    %5310 = vmatpush1.bf16.msra.mxu0 %v5228
    %5311 = vmatprep.subr.bf16.mxu0 0
    %5312 = vmatpush1.bf16.msra.mxu0 %v5231
    %5313 = vmatprep.subr.bf16.mxu0 0
    %5314 = vmatpush1.bf16.msra.mxu0 0
    %5315 = vmatprep.subr.bf16.mxu0 0
    %5316 = vmatpush1.bf16.msra.mxu0 0
    %5317 = vmatprep.subr.bf16.mxu0 0
    %5318 = vmatpush1.bf16.msra.mxu0 0
    %5319 = vmatprep.subr.bf16.mxu0 0
    %5320 = vmatpush1.bf16.msra.mxu0 0
    %5321 = vmatprep.subr.bf16.mxu0 0
    %5322 = vmatpush1.bf16.msra.mxu0 0
    %5323 = vmatprep.subr.bf16.mxu0 0
    %5324 = vmatpush1.bf16.msra.mxu0 0
    %5325 = vmatprep.subr.bf16.mxu0 0
    %5326 = vmatpush1.bf16.msra.mxu0 0
    %5327 = vmatprep.subr.bf16.mxu0 0
    %5328 = vmatpush1.bf16.msra.mxu0 0
    %5329 = vmatprep.mubr.bf16.mxu0 0
    %5330 = vmatmul.mubr.bf16.gmra.mrb[0].mxu0 %v5095
    %v5331 = vpop.f32.mrb[0].mxu0
    %v5332 = vadd.f32 0.0, %v5331
    %v5333 = vpop.f32.mrb[0].mxu0
    %v5334 = vpop.f32.mrb[0].mxu0
    %v5335 = vpop.f32.mrb[0].mxu0
    %5336 = vdwg.mxu0
    %s5337 = scalar_lea.vmem [#allocation5], 5
    %v5338 = vld [vmem:[%s5337] ss:$8 sm:$0x7]
    %v5341 = vcombine.low %v5291, %v5293
    %v5343 = vunpack.c.l.s4 1966171168
    %v5344 = vunpack.c.0.s8 %v5343
    %v5345 = vlaneseq
    %v5346 = vshrl.u32 %v5345, 7
    %v5347 = vsub.s32 %v5344, %v5346
    %v5348 = vrot.slane %v5341, %v5347
    %v5350 = vunpack.c.l.s4 1966171168
    %v5351 = vunpack.c.0.s8 %v5350
    %v5352 = vlaneseq
    %v5353 = vshrl.u32 %v5352, 7
    %v5354 = vsub.s32 %v5351, %v5353
    %v5355 = vrot.slane %v5348, %v5354
    %v5357 = vadd.f32 %v5338, %v5355
    %v5358 = vxor.u32 %v5357, 2147483648
    %v5359 = vmul.f32 %v5358, 1.442695
    %v5360 = vpow.pop %v5359
    %v5361 = vadd.f32 %v5360, 1.0
    %v5362 = vrcp.pop %v5361
    %v5363 = vmul.f32 1.0, %v5362
    %v5364 = vld [vmem:[%s25] sm:$0x1]
    %v5365 = vadd.f32 %v5332, %v5364
    %v5366 = vmul.f32 %v5363, %v5365
    %v5368 = vrot.slane %v5338, 2
    %v5370 = vadd.f32 %v5368, %v5366
    %v5371 = vtanh.pop %v5370
    %v5373 = vrot.slane %v5363, 1
    %v5375 = vsub.f32 1.0, %v5373
    %v5376 = vmul.f32 %v5375, %v5371
    %v5377 = vmul.f32 %v5373, %v4525
    %v5378 = vadd.f32 %v5376, %v5377
    %v5379 = vpack.c.bf16 %v5093, %v5093
    %v5380 = vld [vmem:[#allocation28] sm:$0xff]
    %v5381 = vld [vmem:[#allocation28 + $0x8] sm:$0xf]
    %v5382 = vld [vmem:[#allocation28 + $0xc] sm:$0xff]
    %v5383 = vld [vmem:[#allocation28 + $0x14] sm:$0xf]
    %v5384 = vld [vmem:[#allocation28 + $0x18] sm:$0xff]
    %v5385 = vld [vmem:[#allocation28 + $0x20] sm:$0xf]
    %v5386 = vld [vmem:[#allocation28 + $0x24] sm:$0xff]
    %v5387 = vld [vmem:[#allocation28 + $0x2c] sm:$0xf]
    %v5388 = vld [vmem:[#allocation28 + $0x30] sm:$0xff]
    %v5389 = vld [vmem:[#allocation28 + $0x38] sm:$0xf]
    %v5390 = vld [vmem:[#allocation28 + $0x3c] sm:$0xff]
    %v5391 = vld [vmem:[#allocation28 + $0x44] sm:$0xf]
    %v5392 = vld [vmem:[#allocation28 + $0x48] sm:$0xff]
    %v5393 = vld [vmem:[#allocation28 + $0x50] sm:$0xf]
    %v5394 = vld [vmem:[#allocation28 + $0x54] sm:$0xff]
    %v5395 = vld [vmem:[#allocation28 + $0x5c] sm:$0xf]
    %v5396 = vld [vmem:[#allocation28 + $0x60] sm:$0xff]
    %v5397 = vld [vmem:[#allocation28 + $0x68] sm:$0xf]
    %v5398 = vld [vmem:[#allocation28 + $0x6c] sm:$0xff]
    %v5399 = vld [vmem:[#allocation28 + $0x74] sm:$0xf]
    %v5400 = vld [vmem:[#allocation28 + $0x78] sm:$0xff]
    %v5401 = vld [vmem:[#allocation28 + $0x80] sm:$0xf]
    %v5402 = vld [vmem:[#allocation28 + $0x84] sm:$0xff]
    %v5403 = vld [vmem:[#allocation28 + $0x8c] sm:$0xf]
    %v5404 = vld [vmem:[#allocation28 + $0x90] sm:$0xff]
    %v5405 = vld [vmem:[#allocation28 + $0x98] sm:$0xf]
    %v5406 = vld [vmem:[#allocation28 + $0x9c] sm:$0xff]
    %v5407 = vld [vmem:[#allocation28 + $0xa4] sm:$0xf]
    %v5408 = vld [vmem:[#allocation28 + $0xa8] sm:$0xff]
    %v5409 = vld [vmem:[#allocation28 + $0xb0] sm:$0xf]
    %v5410 = vld [vmem:[#allocation28 + $0xb4] sm:$0xff]
    %v5411 = vld [vmem:[#allocation28 + $0xbc] sm:$0xf]
    %v5444 = vunpack.c.l.b16 %v5380
    %v5445 = vunpack.c.h.b16 %v5380
    %v5446 = vunpack.c.l.b16 %v5381
    %v5447 = vunpack.c.l.b16 %v5382
    %v5448 = vunpack.c.h.b16 %v5382
    %v5449 = vunpack.c.l.b16 %v5383
    %v5450 = vunpack.c.l.b16 %v5384
    %v5451 = vunpack.c.h.b16 %v5384
    %v5452 = vunpack.c.l.b16 %v5385
    %v5453 = vunpack.c.l.b16 %v5386
    %v5454 = vunpack.c.h.b16 %v5386
    %v5455 = vunpack.c.l.b16 %v5387
    %v5456 = vunpack.c.l.b16 %v5388
    %v5457 = vunpack.c.h.b16 %v5388
    %v5458 = vunpack.c.l.b16 %v5389
    %v5459 = vunpack.c.l.b16 %v5390
    %v5460 = vunpack.c.h.b16 %v5390
    %v5461 = vunpack.c.l.b16 %v5391
    %v5462 = vunpack.c.l.b16 %v5392
    %v5463 = vunpack.c.h.b16 %v5392
    %v5464 = vunpack.c.l.b16 %v5393
    %v5465 = vunpack.c.l.b16 %v5394
    %v5466 = vunpack.c.h.b16 %v5394
    %v5467 = vunpack.c.l.b16 %v5395
    %v5468 = vunpack.c.l.b16 %v5396
    %v5469 = vunpack.c.h.b16 %v5396
    %v5470 = vunpack.c.l.b16 %v5397
    %v5471 = vunpack.c.l.b16 %v5398
    %v5472 = vunpack.c.h.b16 %v5398
    %v5473 = vunpack.c.l.b16 %v5399
    %v5474 = vunpack.c.l.b16 %v5400
    %v5475 = vunpack.c.h.b16 %v5400
    %v5476 = vunpack.c.l.b16 %v5401
    %v5477 = vunpack.c.l.b16 %v5402
    %v5478 = vunpack.c.h.b16 %v5402
    %v5479 = vunpack.c.l.b16 %v5403
    %v5480 = vunpack.c.l.b16 %v5404
    %v5481 = vunpack.c.h.b16 %v5404
    %v5482 = vunpack.c.l.b16 %v5405
    %v5483 = vunpack.c.l.b16 %v5406
    %v5484 = vunpack.c.h.b16 %v5406
    %v5485 = vunpack.c.l.b16 %v5407
    %v5486 = vunpack.c.l.b16 %v5408
    %v5487 = vunpack.c.h.b16 %v5408
    %v5488 = vunpack.c.l.b16 %v5409
    %v5489 = vunpack.c.l.b16 %v5410
    %v5490 = vunpack.c.h.b16 %v5410
    %v5491 = vunpack.c.l.b16 %v5411
    %v5492 = vpack.c.b16 %v5447, %v5444
    %v5493 = vpack.c.b16 %v5448, %v5445
    %v5494 = vpack.c.b16 %v5449, %v5446
    %v5495 = vpack.c.b16 %v5453, %v5450
    %v5496 = vpack.c.b16 %v5454, %v5451
    %v5497 = vpack.c.b16 %v5455, %v5452
    %v5498 = vpack.c.b16 %v5459, %v5456
    %v5499 = vpack.c.b16 %v5460, %v5457
    %v5500 = vpack.c.b16 %v5461, %v5458
    %v5501 = vpack.c.b16 %v5465, %v5462
    %v5502 = vpack.c.b16 %v5466, %v5463
    %v5503 = vpack.c.b16 %v5467, %v5464
    %v5504 = vpack.c.b16 %v5471, %v5468
    %v5505 = vpack.c.b16 %v5472, %v5469
    %v5506 = vpack.c.b16 %v5473, %v5470
    %v5507 = vpack.c.b16 %v5477, %v5474
    %v5508 = vpack.c.b16 %v5478, %v5475
    %v5509 = vpack.c.b16 %v5479, %v5476
    %v5510 = vpack.c.b16 %v5483, %v5480
    %v5511 = vpack.c.b16 %v5484, %v5481
    %v5512 = vpack.c.b16 %v5485, %v5482
    %v5513 = vpack.c.b16 %v5489, %v5486
    %v5514 = vpack.c.b16 %v5490, %v5487
    %v5515 = vpack.c.b16 %v5491, %v5488
    %5540 = vmatprep.subr.bf16.mxu0 %v5493
    %5541 = vmatpush1.bf16.msra.mxu0 %v5492
    %5542 = vmatprep.subr.bf16.mxu0 %v5496
    %5543 = vmatpush1.bf16.msra.mxu0 %v5495
    %5544 = vmatprep.subr.bf16.mxu0 %v5499
    %5545 = vmatpush1.bf16.msra.mxu0 %v5498
    %5546 = vmatprep.subr.bf16.mxu0 %v5502
    %5547 = vmatpush1.bf16.msra.mxu0 %v5501
    %5548 = vmatprep.subr.bf16.mxu0 %v5505
    %5549 = vmatpush1.bf16.msra.mxu0 %v5504
    %5550 = vmatprep.subr.bf16.mxu0 %v5508
    %5551 = vmatpush1.bf16.msra.mxu0 %v5507
    %5552 = vmatprep.subr.bf16.mxu0 %v5511
    %5553 = vmatpush1.bf16.msra.mxu0 %v5510
    %5554 = vmatprep.subr.bf16.mxu0 %v5514
    %5555 = vmatpush1.bf16.msra.mxu0 %v5513
    %5556 = vmatprep.subr.bf16.mxu0 0
    %5557 = vmatpush1.bf16.msra.mxu0 0
    %5558 = vmatprep.subr.bf16.mxu0 0
    %5559 = vmatpush1.bf16.msra.mxu0 0
    %5560 = vmatprep.subr.bf16.mxu0 0
    %5561 = vmatpush1.bf16.msra.mxu0 0
    %5562 = vmatprep.subr.bf16.mxu0 0
    %5563 = vmatpush1.bf16.msra.mxu0 0
    %5564 = vmatprep.subr.bf16.mxu0 0
    %5565 = vmatpush1.bf16.msra.mxu0 0
    %5566 = vmatprep.subr.bf16.mxu0 0
    %5567 = vmatpush1.bf16.msra.mxu0 0
    %5568 = vmatprep.subr.bf16.mxu0 0
    %5569 = vmatpush1.bf16.msra.mxu0 0
    %5570 = vmatprep.subr.bf16.mxu0 0
    %5571 = vmatpush1.bf16.msra.mxu0 0
    %5572 = vmatprep.mubr.bf16.mxu0 0
    %5573 = vmatmul.mubr.bf16.gmra.mrb[0].mxu0 %v5379
    %v5574 = vpop.f32.mrb[0].mxu0
    %v5575 = vadd.f32 0.0, %v5574
    %v5576 = vpop.f32.mrb[0].mxu0
    %v5577 = vadd.f32 0.0, %v5576
    %v5578 = vpop.f32.mrb[0].mxu0
    %v5579 = vpop.f32.mrb[0].mxu0
    %5580 = vdwg.mxu0
    %5581 = vmatprep.subr.bf16.mxu0 0
    %5582 = vmatpush1.bf16.msra.mxu0 %v5494
    %5583 = vmatprep.subr.bf16.mxu0 0
    %5584 = vmatpush1.bf16.msra.mxu0 %v5497
    %5585 = vmatprep.subr.bf16.mxu0 0
    %5586 = vmatpush1.bf16.msra.mxu0 %v5500
    %5587 = vmatprep.subr.bf16.mxu0 0
    %5588 = vmatpush1.bf16.msra.mxu0 %v5503
    %5589 = vmatprep.subr.bf16.mxu0 0
    %5590 = vmatpush1.bf16.msra.mxu0 %v5506
    %5591 = vmatprep.subr.bf16.mxu0 0
    %5592 = vmatpush1.bf16.msra.mxu0 %v5509
    %5593 = vmatprep.subr.bf16.mxu0 0
    %5594 = vmatpush1.bf16.msra.mxu0 %v5512
    %5595 = vmatprep.subr.bf16.mxu0 0
    %5596 = vmatpush1.bf16.msra.mxu0 %v5515
    %5597 = vmatprep.subr.bf16.mxu0 0
    %5598 = vmatpush1.bf16.msra.mxu0 0
    %5599 = vmatprep.subr.bf16.mxu0 0
    %5600 = vmatpush1.bf16.msra.mxu0 0
    %5601 = vmatprep.subr.bf16.mxu0 0
    %5602 = vmatpush1.bf16.msra.mxu0 0
    %5603 = vmatprep.subr.bf16.mxu0 0
    %5604 = vmatpush1.bf16.msra.mxu0 0
    %5605 = vmatprep.subr.bf16.mxu0 0
    %5606 = vmatpush1.bf16.msra.mxu0 0
    %5607 = vmatprep.subr.bf16.mxu0 0
    %5608 = vmatpush1.bf16.msra.mxu0 0
    %5609 = vmatprep.subr.bf16.mxu0 0
    %5610 = vmatpush1.bf16.msra.mxu0 0
    %5611 = vmatprep.subr.bf16.mxu0 0
    %5612 = vmatpush1.bf16.msra.mxu0 0
    %5613 = vmatprep.mubr.bf16.mxu0 0
    %5614 = vmatmul.mubr.bf16.gmra.mrb[0].mxu0 %v5379
    %v5615 = vpop.f32.mrb[0].mxu0
    %v5616 = vadd.f32 0.0, %v5615
    %v5617 = vpop.f32.mrb[0].mxu0
    %v5618 = vpop.f32.mrb[0].mxu0
    %v5619 = vpop.f32.mrb[0].mxu0
    %5620 = vdwg.mxu0
    %s5621 = scalar_lea.vmem [#allocation7], 5
    %v5622 = vld [vmem:[%s5621] ss:$8 sm:$0x7]
    %v5625 = vcombine.low %v5575, %v5577
    %v5627 = vunpack.c.l.s4 1966171168
    %v5628 = vunpack.c.0.s8 %v5627
    %v5629 = vlaneseq
    %v5630 = vshrl.u32 %v5629, 7
    %v5631 = vsub.s32 %v5628, %v5630
    %v5632 = vrot.slane %v5625, %v5631
    %v5634 = vunpack.c.l.s4 1966171168
    %v5635 = vunpack.c.0.s8 %v5634
    %v5636 = vlaneseq
    %v5637 = vshrl.u32 %v5636, 7
    %v5638 = vsub.s32 %v5635, %v5637
    %v5639 = vrot.slane %v5632, %v5638
    %v5641 = vadd.f32 %v5622, %v5639
    %v5642 = vxor.u32 %v5641, 2147483648
    %v5643 = vmul.f32 %v5642, 1.442695
    %v5644 = vpow.pop %v5643
    %v5645 = vadd.f32 %v5644, 1.0
    %v5646 = vrcp.pop %v5645
    %v5647 = vmul.f32 1.0, %v5646
    %v5648 = vld [vmem:[%s41] sm:$0x1]
    %v5649 = vadd.f32 %v5616, %v5648
    %v5650 = vmul.f32 %v5647, %v5649
    %v5652 = vrot.slane %v5622, 2
    %v5654 = vadd.f32 %v5652, %v5650
    %v5655 = vtanh.pop %v5654
    %v5657 = vrot.slane %v5647, 1
    %v5659 = vsub.f32 1.0, %v5657
    %v5660 = vmul.f32 %v5659, %v5655
    %v5661 = vmul.f32 %v5657, %v5093
    %v5662 = vadd.f32 %v5660, %v5661
    %5663 = vst [vmem:[#allocation8 + $0x5] sm:$0x1] %v5662
    %v5664 = vpack.c.bf16 %v5378, %v5378
    %v5665 = vld [vmem:[%s21] sm:$0xff]
    %v5666 = vld [vmem:[%s21 + $0x8] sm:$0xf]
    %v5667 = vld [vmem:[%s21 + $0xc] sm:$0xff]
    %v5668 = vld [vmem:[%s21 + $0x14] sm:$0xf]
    %v5669 = vld [vmem:[%s21 + $0x18] sm:$0xff]
    %v5670 = vld [vmem:[%s21 + $0x20] sm:$0xf]
    %v5671 = vld [vmem:[%s21 + $0x24] sm:$0xff]
    %v5672 = vld [vmem:[%s21 + $0x2c] sm:$0xf]
    %v5673 = vld [vmem:[%s21 + $0x30] sm:$0xff]
    %v5674 = vld [vmem:[%s21 + $0x38] sm:$0xf]
    %v5675 = vld [vmem:[%s21 + $0x3c] sm:$0xff]
    %v5676 = vld [vmem:[%s21 + $0x44] sm:$0xf]
    %v5677 = vld [vmem:[%s21 + $0x48] sm:$0xff]
    %v5678 = vld [vmem:[%s21 + $0x50] sm:$0xf]
    %v5679 = vld [vmem:[%s21 + $0x54] sm:$0xff]
    %v5680 = vld [vmem:[%s21 + $0x5c] sm:$0xf]
    %v5681 = vld [vmem:[%s21 + $0x60] sm:$0xff]
    %v5682 = vld [vmem:[%s21 + $0x68] sm:$0xf]
    %v5683 = vld [vmem:[%s21 + $0x6c] sm:$0xff]
    %v5684 = vld [vmem:[%s21 + $0x74] sm:$0xf]
    %v5685 = vld [vmem:[%s21 + $0x78] sm:$0xff]
    %v5686 = vld [vmem:[%s21 + $0x80] sm:$0xf]
    %v5687 = vld [vmem:[%s21 + $0x84] sm:$0xff]
    %v5688 = vld [vmem:[%s21 + $0x8c] sm:$0xf]
    %v5689 = vld [vmem:[%s21 + $0x90] sm:$0xff]
    %v5690 = vld [vmem:[%s21 + $0x98] sm:$0xf]
    %v5691 = vld [vmem:[%s21 + $0x9c] sm:$0xff]
    %v5692 = vld [vmem:[%s21 + $0xa4] sm:$0xf]
    %v5693 = vld [vmem:[%s21 + $0xa8] sm:$0xff]
    %v5694 = vld [vmem:[%s21 + $0xb0] sm:$0xf]
    %v5695 = vld [vmem:[%s21 + $0xb4] sm:$0xff]
    %v5696 = vld [vmem:[%s21 + $0xbc] sm:$0xf]
    %v5729 = vunpack.c.l.b16 %v5665
    %v5730 = vunpack.c.h.b16 %v5665
    %v5731 = vunpack.c.l.b16 %v5666
    %v5732 = vunpack.c.l.b16 %v5667
    %v5733 = vunpack.c.h.b16 %v5667
    %v5734 = vunpack.c.l.b16 %v5668
    %v5735 = vunpack.c.l.b16 %v5669
    %v5736 = vunpack.c.h.b16 %v5669
    %v5737 = vunpack.c.l.b16 %v5670
    %v5738 = vunpack.c.l.b16 %v5671
    %v5739 = vunpack.c.h.b16 %v5671
    %v5740 = vunpack.c.l.b16 %v5672
    %v5741 = vunpack.c.l.b16 %v5673
    %v5742 = vunpack.c.h.b16 %v5673
    %v5743 = vunpack.c.l.b16 %v5674
    %v5744 = vunpack.c.l.b16 %v5675
    %v5745 = vunpack.c.h.b16 %v5675
    %v5746 = vunpack.c.l.b16 %v5676
    %v5747 = vunpack.c.l.b16 %v5677
    %v5748 = vunpack.c.h.b16 %v5677
    %v5749 = vunpack.c.l.b16 %v5678
    %v5750 = vunpack.c.l.b16 %v5679
    %v5751 = vunpack.c.h.b16 %v5679
    %v5752 = vunpack.c.l.b16 %v5680
    %v5753 = vunpack.c.l.b16 %v5681
    %v5754 = vunpack.c.h.b16 %v5681
    %v5755 = vunpack.c.l.b16 %v5682
    %v5756 = vunpack.c.l.b16 %v5683
    %v5757 = vunpack.c.h.b16 %v5683
    %v5758 = vunpack.c.l.b16 %v5684
    %v5759 = vunpack.c.l.b16 %v5685
    %v5760 = vunpack.c.h.b16 %v5685
    %v5761 = vunpack.c.l.b16 %v5686
    %v5762 = vunpack.c.l.b16 %v5687
    %v5763 = vunpack.c.h.b16 %v5687
    %v5764 = vunpack.c.l.b16 %v5688
    %v5765 = vunpack.c.l.b16 %v5689
    %v5766 = vunpack.c.h.b16 %v5689
    %v5767 = vunpack.c.l.b16 %v5690
    %v5768 = vunpack.c.l.b16 %v5691
    %v5769 = vunpack.c.h.b16 %v5691
    %v5770 = vunpack.c.l.b16 %v5692
    %v5771 = vunpack.c.l.b16 %v5693
    %v5772 = vunpack.c.h.b16 %v5693
    %v5773 = vunpack.c.l.b16 %v5694
    %v5774 = vunpack.c.l.b16 %v5695
    %v5775 = vunpack.c.h.b16 %v5695
    %v5776 = vunpack.c.l.b16 %v5696
    %v5777 = vpack.c.b16 %v5732, %v5729
    %v5778 = vpack.c.b16 %v5733, %v5730
    %v5779 = vpack.c.b16 %v5734, %v5731
    %v5780 = vpack.c.b16 %v5738, %v5735
    %v5781 = vpack.c.b16 %v5739, %v5736
    %v5782 = vpack.c.b16 %v5740, %v5737
    %v5783 = vpack.c.b16 %v5744, %v5741
    %v5784 = vpack.c.b16 %v5745, %v5742
    %v5785 = vpack.c.b16 %v5746, %v5743
    %v5786 = vpack.c.b16 %v5750, %v5747
    %v5787 = vpack.c.b16 %v5751, %v5748
    %v5788 = vpack.c.b16 %v5752, %v5749
    %v5789 = vpack.c.b16 %v5756, %v5753
    %v5790 = vpack.c.b16 %v5757, %v5754
    %v5791 = vpack.c.b16 %v5758, %v5755
    %v5792 = vpack.c.b16 %v5762, %v5759
    %v5793 = vpack.c.b16 %v5763, %v5760
    %v5794 = vpack.c.b16 %v5764, %v5761
    %v5795 = vpack.c.b16 %v5768, %v5765
    %v5796 = vpack.c.b16 %v5769, %v5766
    %v5797 = vpack.c.b16 %v5770, %v5767
    %v5798 = vpack.c.b16 %v5774, %v5771
    %v5799 = vpack.c.b16 %v5775, %v5772
    %v5800 = vpack.c.b16 %v5776, %v5773
    %5825 = vmatprep.subr.bf16.mxu0 %v5778
    %5826 = vmatpush1.bf16.msra.mxu0 %v5777
    %5827 = vmatprep.subr.bf16.mxu0 %v5781
    %5828 = vmatpush1.bf16.msra.mxu0 %v5780
    %5829 = vmatprep.subr.bf16.mxu0 %v5784
    %5830 = vmatpush1.bf16.msra.mxu0 %v5783
    %5831 = vmatprep.subr.bf16.mxu0 %v5787
    %5832 = vmatpush1.bf16.msra.mxu0 %v5786
    %5833 = vmatprep.subr.bf16.mxu0 %v5790
    %5834 = vmatpush1.bf16.msra.mxu0 %v5789
    %5835 = vmatprep.subr.bf16.mxu0 %v5793
    %5836 = vmatpush1.bf16.msra.mxu0 %v5792
    %5837 = vmatprep.subr.bf16.mxu0 %v5796
    %5838 = vmatpush1.bf16.msra.mxu0 %v5795
    %5839 = vmatprep.subr.bf16.mxu0 %v5799
    %5840 = vmatpush1.bf16.msra.mxu0 %v5798
    %5841 = vmatprep.subr.bf16.mxu0 0
    %5842 = vmatpush1.bf16.msra.mxu0 0
    %5843 = vmatprep.subr.bf16.mxu0 0
    %5844 = vmatpush1.bf16.msra.mxu0 0
    %5845 = vmatprep.subr.bf16.mxu0 0
    %5846 = vmatpush1.bf16.msra.mxu0 0
    %5847 = vmatprep.subr.bf16.mxu0 0
    %5848 = vmatpush1.bf16.msra.mxu0 0
    %5849 = vmatprep.subr.bf16.mxu0 0
    %5850 = vmatpush1.bf16.msra.mxu0 0
    %5851 = vmatprep.subr.bf16.mxu0 0
    %5852 = vmatpush1.bf16.msra.mxu0 0
    %5853 = vmatprep.subr.bf16.mxu0 0
    %5854 = vmatpush1.bf16.msra.mxu0 0
    %5855 = vmatprep.subr.bf16.mxu0 0
    %5856 = vmatpush1.bf16.msra.mxu0 0
    %5857 = vmatprep.mubr.bf16.mxu0 0
    %5858 = vmatmul.mubr.bf16.gmra.mrb[0].mxu0 %v5664
    %v5859 = vpop.f32.mrb[0].mxu0
    %v5860 = vadd.f32 0.0, %v5859
    %v5861 = vpop.f32.mrb[0].mxu0
    %v5862 = vadd.f32 0.0, %v5861
    %v5863 = vpop.f32.mrb[0].mxu0
    %v5864 = vpop.f32.mrb[0].mxu0
    %5865 = vdwg.mxu0
    %5866 = vmatprep.subr.bf16.mxu0 0
    %5867 = vmatpush1.bf16.msra.mxu0 %v5779
    %5868 = vmatprep.subr.bf16.mxu0 0
    %5869 = vmatpush1.bf16.msra.mxu0 %v5782
    %5870 = vmatprep.subr.bf16.mxu0 0
    %5871 = vmatpush1.bf16.msra.mxu0 %v5785
    %5872 = vmatprep.subr.bf16.mxu0 0
    %5873 = vmatpush1.bf16.msra.mxu0 %v5788
    %5874 = vmatprep.subr.bf16.mxu0 0
    %5875 = vmatpush1.bf16.msra.mxu0 %v5791
    %5876 = vmatprep.subr.bf16.mxu0 0
    %5877 = vmatpush1.bf16.msra.mxu0 %v5794
    %5878 = vmatprep.subr.bf16.mxu0 0
    %5879 = vmatpush1.bf16.msra.mxu0 %v5797
    %5880 = vmatprep.subr.bf16.mxu0 0
    %5881 = vmatpush1.bf16.msra.mxu0 %v5800
    %5882 = vmatprep.subr.bf16.mxu0 0
    %5883 = vmatpush1.bf16.msra.mxu0 0
    %5884 = vmatprep.subr.bf16.mxu0 0
    %5885 = vmatpush1.bf16.msra.mxu0 0
    %5886 = vmatprep.subr.bf16.mxu0 0
    %5887 = vmatpush1.bf16.msra.mxu0 0
    %5888 = vmatprep.subr.bf16.mxu0 0
    %5889 = vmatpush1.bf16.msra.mxu0 0
    %5890 = vmatprep.subr.bf16.mxu0 0
    %5891 = vmatpush1.bf16.msra.mxu0 0
    %5892 = vmatprep.subr.bf16.mxu0 0
    %5893 = vmatpush1.bf16.msra.mxu0 0
    %5894 = vmatprep.subr.bf16.mxu0 0
    %5895 = vmatpush1.bf16.msra.mxu0 0
    %5896 = vmatprep.subr.bf16.mxu0 0
    %5897 = vmatpush1.bf16.msra.mxu0 0
    %5898 = vmatprep.mubr.bf16.mxu0 0
    %5899 = vmatmul.mubr.bf16.gmra.mrb[0].mxu0 %v5664
    %v5900 = vpop.f32.mrb[0].mxu0
    %v5901 = vadd.f32 0.0, %v5900
    %v5902 = vpop.f32.mrb[0].mxu0
    %v5903 = vpop.f32.mrb[0].mxu0
    %v5904 = vpop.f32.mrb[0].mxu0
    %5905 = vdwg.mxu0
    %s5906 = scalar_lea.vmem [#allocation5], 6
    %v5907 = vld [vmem:[%s5906] ss:$8 sm:$0x7]
    %v5910 = vcombine.low %v5860, %v5862
    %v5912 = vunpack.c.l.s4 1966171168
    %v5913 = vunpack.c.0.s8 %v5912
    %v5914 = vlaneseq
    %v5915 = vshrl.u32 %v5914, 7
    %v5916 = vsub.s32 %v5913, %v5915
    %v5917 = vrot.slane %v5910, %v5916
    %v5919 = vunpack.c.l.s4 1966171168
    %v5920 = vunpack.c.0.s8 %v5919
    %v5921 = vlaneseq
    %v5922 = vshrl.u32 %v5921, 7
    %v5923 = vsub.s32 %v5920, %v5922
    %v5924 = vrot.slane %v5917, %v5923
    %v5926 = vadd.f32 %v5907, %v5924
    %v5927 = vxor.u32 %v5926, 2147483648
    %v5928 = vmul.f32 %v5927, 1.442695
    %v5929 = vpow.pop %v5928
    %v5930 = vadd.f32 %v5929, 1.0
    %v5931 = vrcp.pop %v5930
    %v5932 = vmul.f32 1.0, %v5931
    %v5933 = vld [vmem:[%s25] sm:$0x1]
    %v5934 = vadd.f32 %v5901, %v5933
    %v5935 = vmul.f32 %v5932, %v5934
    %v5937 = vrot.slane %v5907, 2
    %v5939 = vadd.f32 %v5937, %v5935
    %v5940 = vtanh.pop %v5939
    %v5942 = vrot.slane %v5932, 1
    %v5944 = vsub.f32 1.0, %v5942
    %v5945 = vmul.f32 %v5944, %v5940
    %v5946 = vmul.f32 %v5942, %v5378
    %v5947 = vadd.f32 %v5945, %v5946
    %v5948 = vpack.c.bf16 %v5662, %v5662
    %v5949 = vld [vmem:[#allocation28] sm:$0xff]
    %v5950 = vld [vmem:[#allocation28 + $0x8] sm:$0xf]
    %v5951 = vld [vmem:[#allocation28 + $0xc] sm:$0xff]
    %v5952 = vld [vmem:[#allocation28 + $0x14] sm:$0xf]
    %v5953 = vld [vmem:[#allocation28 + $0x18] sm:$0xff]
    %v5954 = vld [vmem:[#allocation28 + $0x20] sm:$0xf]
    %v5955 = vld [vmem:[#allocation28 + $0x24] sm:$0xff]
    %v5956 = vld [vmem:[#allocation28 + $0x2c] sm:$0xf]
    %v5957 = vld [vmem:[#allocation28 + $0x30] sm:$0xff]
    %v5958 = vld [vmem:[#allocation28 + $0x38] sm:$0xf]
    %v5959 = vld [vmem:[#allocation28 + $0x3c] sm:$0xff]
    %v5960 = vld [vmem:[#allocation28 + $0x44] sm:$0xf]
    %v5961 = vld [vmem:[#allocation28 + $0x48] sm:$0xff]
    %v5962 = vld [vmem:[#allocation28 + $0x50] sm:$0xf]
    %v5963 = vld [vmem:[#allocation28 + $0x54] sm:$0xff]
    %v5964 = vld [vmem:[#allocation28 + $0x5c] sm:$0xf]
    %v5965 = vld [vmem:[#allocation28 + $0x60] sm:$0xff]
    %v5966 = vld [vmem:[#allocation28 + $0x68] sm:$0xf]
    %v5967 = vld [vmem:[#allocation28 + $0x6c] sm:$0xff]
    %v5968 = vld [vmem:[#allocation28 + $0x74] sm:$0xf]
    %v5969 = vld [vmem:[#allocation28 + $0x78] sm:$0xff]
    %v5970 = vld [vmem:[#allocation28 + $0x80] sm:$0xf]
    %v5971 = vld [vmem:[#allocation28 + $0x84] sm:$0xff]
    %v5972 = vld [vmem:[#allocation28 + $0x8c] sm:$0xf]
    %v5973 = vld [vmem:[#allocation28 + $0x90] sm:$0xff]
    %v5974 = vld [vmem:[#allocation28 + $0x98] sm:$0xf]
    %v5975 = vld [vmem:[#allocation28 + $0x9c] sm:$0xff]
    %v5976 = vld [vmem:[#allocation28 + $0xa4] sm:$0xf]
    %v5977 = vld [vmem:[#allocation28 + $0xa8] sm:$0xff]
    %v5978 = vld [vmem:[#allocation28 + $0xb0] sm:$0xf]
    %v5979 = vld [vmem:[#allocation28 + $0xb4] sm:$0xff]
    %v5980 = vld [vmem:[#allocation28 + $0xbc] sm:$0xf]
    %v6013 = vunpack.c.l.b16 %v5949
    %v6014 = vunpack.c.h.b16 %v5949
    %v6015 = vunpack.c.l.b16 %v5950
    %v6016 = vunpack.c.l.b16 %v5951
    %v6017 = vunpack.c.h.b16 %v5951
    %v6018 = vunpack.c.l.b16 %v5952
    %v6019 = vunpack.c.l.b16 %v5953
    %v6020 = vunpack.c.h.b16 %v5953
    %v6021 = vunpack.c.l.b16 %v5954
    %v6022 = vunpack.c.l.b16 %v5955
    %v6023 = vunpack.c.h.b16 %v5955
    %v6024 = vunpack.c.l.b16 %v5956
    %v6025 = vunpack.c.l.b16 %v5957
    %v6026 = vunpack.c.h.b16 %v5957
    %v6027 = vunpack.c.l.b16 %v5958
    %v6028 = vunpack.c.l.b16 %v5959
    %v6029 = vunpack.c.h.b16 %v5959
    %v6030 = vunpack.c.l.b16 %v5960
    %v6031 = vunpack.c.l.b16 %v5961
    %v6032 = vunpack.c.h.b16 %v5961
    %v6033 = vunpack.c.l.b16 %v5962
    %v6034 = vunpack.c.l.b16 %v5963
    %v6035 = vunpack.c.h.b16 %v5963
    %v6036 = vunpack.c.l.b16 %v5964
    %v6037 = vunpack.c.l.b16 %v5965
    %v6038 = vunpack.c.h.b16 %v5965
    %v6039 = vunpack.c.l.b16 %v5966
    %v6040 = vunpack.c.l.b16 %v5967
    %v6041 = vunpack.c.h.b16 %v5967
    %v6042 = vunpack.c.l.b16 %v5968
    %v6043 = vunpack.c.l.b16 %v5969
    %v6044 = vunpack.c.h.b16 %v5969
    %v6045 = vunpack.c.l.b16 %v5970
    %v6046 = vunpack.c.l.b16 %v5971
    %v6047 = vunpack.c.h.b16 %v5971
    %v6048 = vunpack.c.l.b16 %v5972
    %v6049 = vunpack.c.l.b16 %v5973
    %v6050 = vunpack.c.h.b16 %v5973
    %v6051 = vunpack.c.l.b16 %v5974
    %v6052 = vunpack.c.l.b16 %v5975
    %v6053 = vunpack.c.h.b16 %v5975
    %v6054 = vunpack.c.l.b16 %v5976
    %v6055 = vunpack.c.l.b16 %v5977
    %v6056 = vunpack.c.h.b16 %v5977
    %v6057 = vunpack.c.l.b16 %v5978
    %v6058 = vunpack.c.l.b16 %v5979
    %v6059 = vunpack.c.h.b16 %v5979
    %v6060 = vunpack.c.l.b16 %v5980
    %v6061 = vpack.c.b16 %v6016, %v6013
    %v6062 = vpack.c.b16 %v6017, %v6014
    %v6063 = vpack.c.b16 %v6018, %v6015
    %v6064 = vpack.c.b16 %v6022, %v6019
    %v6065 = vpack.c.b16 %v6023, %v6020
    %v6066 = vpack.c.b16 %v6024, %v6021
    %v6067 = vpack.c.b16 %v6028, %v6025
    %v6068 = vpack.c.b16 %v6029, %v6026
    %v6069 = vpack.c.b16 %v6030, %v6027
    %v6070 = vpack.c.b16 %v6034, %v6031
    %v6071 = vpack.c.b16 %v6035, %v6032
    %v6072 = vpack.c.b16 %v6036, %v6033
    %v6073 = vpack.c.b16 %v6040, %v6037
    %v6074 = vpack.c.b16 %v6041, %v6038
    %v6075 = vpack.c.b16 %v6042, %v6039
    %v6076 = vpack.c.b16 %v6046, %v6043
    %v6077 = vpack.c.b16 %v6047, %v6044
    %v6078 = vpack.c.b16 %v6048, %v6045
    %v6079 = vpack.c.b16 %v6052, %v6049
    %v6080 = vpack.c.b16 %v6053, %v6050
    %v6081 = vpack.c.b16 %v6054, %v6051
    %v6082 = vpack.c.b16 %v6058, %v6055
    %v6083 = vpack.c.b16 %v6059, %v6056
    %v6084 = vpack.c.b16 %v6060, %v6057
    %6109 = vmatprep.subr.bf16.mxu0 %v6062
    %6110 = vmatpush1.bf16.msra.mxu0 %v6061
    %6111 = vmatprep.subr.bf16.mxu0 %v6065
    %6112 = vmatpush1.bf16.msra.mxu0 %v6064
    %6113 = vmatprep.subr.bf16.mxu0 %v6068
    %6114 = vmatpush1.bf16.msra.mxu0 %v6067
    %6115 = vmatprep.subr.bf16.mxu0 %v6071
    %6116 = vmatpush1.bf16.msra.mxu0 %v6070
    %6117 = vmatprep.subr.bf16.mxu0 %v6074
    %6118 = vmatpush1.bf16.msra.mxu0 %v6073
    %6119 = vmatprep.subr.bf16.mxu0 %v6077
    %6120 = vmatpush1.bf16.msra.mxu0 %v6076
    %6121 = vmatprep.subr.bf16.mxu0 %v6080
    %6122 = vmatpush1.bf16.msra.mxu0 %v6079
    %6123 = vmatprep.subr.bf16.mxu0 %v6083
    %6124 = vmatpush1.bf16.msra.mxu0 %v6082
    %6125 = vmatprep.subr.bf16.mxu0 0
    %6126 = vmatpush1.bf16.msra.mxu0 0
    %6127 = vmatprep.subr.bf16.mxu0 0
    %6128 = vmatpush1.bf16.msra.mxu0 0
    %6129 = vmatprep.subr.bf16.mxu0 0
    %6130 = vmatpush1.bf16.msra.mxu0 0
    %6131 = vmatprep.subr.bf16.mxu0 0
    %6132 = vmatpush1.bf16.msra.mxu0 0
    %6133 = vmatprep.subr.bf16.mxu0 0
    %6134 = vmatpush1.bf16.msra.mxu0 0
    %6135 = vmatprep.subr.bf16.mxu0 0
    %6136 = vmatpush1.bf16.msra.mxu0 0
    %6137 = vmatprep.subr.bf16.mxu0 0
    %6138 = vmatpush1.bf16.msra.mxu0 0
    %6139 = vmatprep.subr.bf16.mxu0 0
    %6140 = vmatpush1.bf16.msra.mxu0 0
    %6141 = vmatprep.mubr.bf16.mxu0 0
    %6142 = vmatmul.mubr.bf16.gmra.mrb[0].mxu0 %v5948
    %v6143 = vpop.f32.mrb[0].mxu0
    %v6144 = vadd.f32 0.0, %v6143
    %v6145 = vpop.f32.mrb[0].mxu0
    %v6146 = vadd.f32 0.0, %v6145
    %v6147 = vpop.f32.mrb[0].mxu0
    %v6148 = vpop.f32.mrb[0].mxu0
    %6149 = vdwg.mxu0
    %6150 = vmatprep.subr.bf16.mxu0 0
    %6151 = vmatpush1.bf16.msra.mxu0 %v6063
    %6152 = vmatprep.subr.bf16.mxu0 0
    %6153 = vmatpush1.bf16.msra.mxu0 %v6066
    %6154 = vmatprep.subr.bf16.mxu0 0
    %6155 = vmatpush1.bf16.msra.mxu0 %v6069
    %6156 = vmatprep.subr.bf16.mxu0 0
    %6157 = vmatpush1.bf16.msra.mxu0 %v6072
    %6158 = vmatprep.subr.bf16.mxu0 0
    %6159 = vmatpush1.bf16.msra.mxu0 %v6075
    %6160 = vmatprep.subr.bf16.mxu0 0
    %6161 = vmatpush1.bf16.msra.mxu0 %v6078
    %6162 = vmatprep.subr.bf16.mxu0 0
    %6163 = vmatpush1.bf16.msra.mxu0 %v6081
    %6164 = vmatprep.subr.bf16.mxu0 0
    %6165 = vmatpush1.bf16.msra.mxu0 %v6084
    %6166 = vmatprep.subr.bf16.mxu0 0
    %6167 = vmatpush1.bf16.msra.mxu0 0
    %6168 = vmatprep.subr.bf16.mxu0 0
    %6169 = vmatpush1.bf16.msra.mxu0 0
    %6170 = vmatprep.subr.bf16.mxu0 0
    %6171 = vmatpush1.bf16.msra.mxu0 0
    %6172 = vmatprep.subr.bf16.mxu0 0
    %6173 = vmatpush1.bf16.msra.mxu0 0
    %6174 = vmatprep.subr.bf16.mxu0 0
    %6175 = vmatpush1.bf16.msra.mxu0 0
    %6176 = vmatprep.subr.bf16.mxu0 0
    %6177 = vmatpush1.bf16.msra.mxu0 0
    %6178 = vmatprep.subr.bf16.mxu0 0
    %6179 = vmatpush1.bf16.msra.mxu0 0
    %6180 = vmatprep.subr.bf16.mxu0 0
    %6181 = vmatpush1.bf16.msra.mxu0 0
    %6182 = vmatprep.mubr.bf16.mxu0 0
    %6183 = vmatmul.mubr.bf16.gmra.mrb[0].mxu0 %v5948
    %v6184 = vpop.f32.mrb[0].mxu0
    %v6185 = vadd.f32 0.0, %v6184
    %v6186 = vpop.f32.mrb[0].mxu0
    %v6187 = vpop.f32.mrb[0].mxu0
    %v6188 = vpop.f32.mrb[0].mxu0
    %6189 = vdwg.mxu0
    %s6190 = scalar_lea.vmem [#allocation7], 6
    %v6191 = vld [vmem:[%s6190] ss:$8 sm:$0x7]
    %v6194 = vcombine.low %v6144, %v6146
    %v6196 = vunpack.c.l.s4 1966171168
    %v6197 = vunpack.c.0.s8 %v6196
    %v6198 = vlaneseq
    %v6199 = vshrl.u32 %v6198, 7
    %v6200 = vsub.s32 %v6197, %v6199
    %v6201 = vrot.slane %v6194, %v6200
    %v6203 = vunpack.c.l.s4 1966171168
    %v6204 = vunpack.c.0.s8 %v6203
    %v6205 = vlaneseq
    %v6206 = vshrl.u32 %v6205, 7
    %v6207 = vsub.s32 %v6204, %v6206
    %v6208 = vrot.slane %v6201, %v6207
    %v6210 = vadd.f32 %v6191, %v6208
    %v6211 = vxor.u32 %v6210, 2147483648
    %v6212 = vmul.f32 %v6211, 1.442695
    %v6213 = vpow.pop %v6212
    %v6214 = vadd.f32 %v6213, 1.0
    %v6215 = vrcp.pop %v6214
    %v6216 = vmul.f32 1.0, %v6215
    %v6217 = vld [vmem:[%s41] sm:$0x1]
    %v6218 = vadd.f32 %v6185, %v6217
    %v6219 = vmul.f32 %v6216, %v6218
    %v6221 = vrot.slane %v6191, 2
    %v6223 = vadd.f32 %v6221, %v6219
    %v6224 = vtanh.pop %v6223
    %v6226 = vrot.slane %v6216, 1
    %v6228 = vsub.f32 1.0, %v6226
    %v6229 = vmul.f32 %v6228, %v6224
    %v6230 = vmul.f32 %v6226, %v5662
    %v6231 = vadd.f32 %v6229, %v6230
    %6232 = vst [vmem:[#allocation8 + $0x6] sm:$0x1] %v6231
    %6233 = vst [vmem:[#allocation37] sm:$0x1] %v5947
    %6234 = vst [vmem:[#allocation38] sm:$0x1] %v4809
    %6235 = vst [vmem:[#allocation40] sm:$0x1] %v6231
    %v6236 = vmax.f32 %v5947, 0.0
    %v6237 = vmax.f32 %v4809, 0.0
    %v6238 = vpack.c.bf16 %v6236, %v6236
    %v6239 = vpack.c.bf16 %v6237, %v6237
    %v6240 = vld [vmem:[#allocation29] sm:$0xf]
    %v6241 = vld [vmem:[#allocation29 + $0x4] sm:$0xf]
    %v6242 = vld [vmem:[#allocation29 + $0x8] sm:$0xf]
    %v6243 = vld [vmem:[#allocation29 + $0xc] sm:$0xf]
    %v6244 = vld [vmem:[#allocation29 + $0x10] sm:$0xf]
    %v6245 = vld [vmem:[#allocation29 + $0x14] sm:$0xf]
    %v6246 = vld [vmem:[#allocation29 + $0x18] sm:$0xf]
    %v6247 = vld [vmem:[#allocation29 + $0x1c] sm:$0xf]
    %v6248 = vld [vmem:[#allocation29 + $0x20] sm:$0xf]
    %v6249 = vld [vmem:[#allocation29 + $0x24] sm:$0xf]
    %v6250 = vld [vmem:[#allocation29 + $0x28] sm:$0xf]
    %v6251 = vld [vmem:[#allocation29 + $0x2c] sm:$0xf]
    %v6252 = vld [vmem:[#allocation29 + $0x30] sm:$0xf]
    %v6253 = vld [vmem:[#allocation29 + $0x34] sm:$0xf]
    %v6254 = vld [vmem:[#allocation29 + $0x38] sm:$0xf]
    %v6255 = vld [vmem:[#allocation29 + $0x3c] sm:$0xf]
    %v6256 = vld [vmem:[#allocation29 + $0x40] sm:$0xf]
    %v6257 = vld [vmem:[#allocation29 + $0x44] sm:$0xf]
    %v6258 = vld [vmem:[#allocation29 + $0x48] sm:$0xf]
    %v6259 = vld [vmem:[#allocation29 + $0x4c] sm:$0xf]
    %v6260 = vld [vmem:[#allocation29 + $0x50] sm:$0xf]
    %v6261 = vld [vmem:[#allocation29 + $0x54] sm:$0xf]
    %v6262 = vld [vmem:[#allocation29 + $0x58] sm:$0xf]
    %v6263 = vld [vmem:[#allocation29 + $0x5c] sm:$0xf]
    %v6264 = vld [vmem:[#allocation29 + $0x60] sm:$0xf]
    %v6265 = vld [vmem:[#allocation29 + $0x64] sm:$0xf]
    %v6266 = vld [vmem:[#allocation29 + $0x68] sm:$0xf]
    %v6267 = vld [vmem:[#allocation29 + $0x6c] sm:$0xf]
    %v6268 = vld [vmem:[#allocation29 + $0x70] sm:$0xf]
    %v6269 = vld [vmem:[#allocation29 + $0x74] sm:$0xf]
    %v6270 = vld [vmem:[#allocation29 + $0x78] sm:$0xf]
    %v6271 = vld [vmem:[#allocation29 + $0x7c] sm:$0xf]
    %v6272 = vld [vmem:[%s45] sm:$0x1]
    %v6305 = vunpack.c.l.b16 %v6240
    %v6306 = vunpack.c.l.b16 %v6241
    %v6307 = vunpack.c.l.b16 %v6242
    %v6308 = vunpack.c.l.b16 %v6243
    %v6309 = vunpack.c.l.b16 %v6244
    %v6310 = vunpack.c.l.b16 %v6245
    %v6311 = vunpack.c.l.b16 %v6246
    %v6312 = vunpack.c.l.b16 %v6247
    %v6313 = vunpack.c.l.b16 %v6248
    %v6314 = vunpack.c.l.b16 %v6249
    %v6315 = vunpack.c.l.b16 %v6250
    %v6316 = vunpack.c.l.b16 %v6251
    %v6317 = vunpack.c.l.b16 %v6252
    %v6318 = vunpack.c.l.b16 %v6253
    %v6319 = vunpack.c.l.b16 %v6254
    %v6320 = vunpack.c.l.b16 %v6255
    %v6321 = vunpack.c.l.b16 %v6256
    %v6322 = vunpack.c.l.b16 %v6257
    %v6323 = vunpack.c.l.b16 %v6258
    %v6324 = vunpack.c.l.b16 %v6259
    %v6325 = vunpack.c.l.b16 %v6260
    %v6326 = vunpack.c.l.b16 %v6261
    %v6327 = vunpack.c.l.b16 %v6262
    %v6328 = vunpack.c.l.b16 %v6263
    %v6329 = vunpack.c.l.b16 %v6264
    %v6330 = vunpack.c.l.b16 %v6265
    %v6331 = vunpack.c.l.b16 %v6266
    %v6332 = vunpack.c.l.b16 %v6267
    %v6333 = vunpack.c.l.b16 %v6268
    %v6334 = vunpack.c.l.b16 %v6269
    %v6335 = vunpack.c.l.b16 %v6270
    %v6336 = vunpack.c.l.b16 %v6271
    %v6337 = vpack.c.b16 %v6306, %v6305
    %v6338 = vpack.c.b16 %v6308, %v6307
    %v6339 = vpack.c.b16 %v6310, %v6309
    %v6340 = vpack.c.b16 %v6312, %v6311
    %v6341 = vpack.c.b16 %v6314, %v6313
    %v6342 = vpack.c.b16 %v6316, %v6315
    %v6343 = vpack.c.b16 %v6318, %v6317
    %v6344 = vpack.c.b16 %v6320, %v6319
    %v6345 = vpack.c.b16 %v6322, %v6321
    %v6346 = vpack.c.b16 %v6324, %v6323
    %v6347 = vpack.c.b16 %v6326, %v6325
    %v6348 = vpack.c.b16 %v6328, %v6327
    %v6349 = vpack.c.b16 %v6330, %v6329
    %v6350 = vpack.c.b16 %v6332, %v6331
    %v6351 = vpack.c.b16 %v6334, %v6333
    %v6352 = vpack.c.b16 %v6336, %v6335
    %6369 = vmatprep.subr.bf16.mxu0 0
    %6370 = vmatpush1.bf16.msra.mxu0 %v6337
    %6371 = vmatprep.subr.bf16.mxu0 0
    %6372 = vmatpush1.bf16.msra.mxu0 %v6338
    %6373 = vmatprep.subr.bf16.mxu0 0
    %6374 = vmatpush1.bf16.msra.mxu0 %v6339
    %6375 = vmatprep.subr.bf16.mxu0 0
    %6376 = vmatpush1.bf16.msra.mxu0 %v6340
    %6377 = vmatprep.subr.bf16.mxu0 0
    %6378 = vmatpush1.bf16.msra.mxu0 %v6341
    %6379 = vmatprep.subr.bf16.mxu0 0
    %6380 = vmatpush1.bf16.msra.mxu0 %v6342
    %6381 = vmatprep.subr.bf16.mxu0 0
    %6382 = vmatpush1.bf16.msra.mxu0 %v6343
    %6383 = vmatprep.subr.bf16.mxu0 0
    %6384 = vmatpush1.bf16.msra.mxu0 %v6344
    %6385 = vmatprep.subr.bf16.mxu0 0
    %6386 = vmatpush1.bf16.msra.mxu0 %v6345
    %6387 = vmatprep.subr.bf16.mxu0 0
    %6388 = vmatpush1.bf16.msra.mxu0 %v6346
    %6389 = vmatprep.subr.bf16.mxu0 0
    %6390 = vmatpush1.bf16.msra.mxu0 %v6347
    %6391 = vmatprep.subr.bf16.mxu0 0
    %6392 = vmatpush1.bf16.msra.mxu0 %v6348
    %6393 = vmatprep.subr.bf16.mxu0 0
    %6394 = vmatpush1.bf16.msra.mxu0 %v6349
    %6395 = vmatprep.subr.bf16.mxu0 0
    %6396 = vmatpush1.bf16.msra.mxu0 %v6350
    %6397 = vmatprep.subr.bf16.mxu0 0
    %6398 = vmatpush1.bf16.msra.mxu0 %v6351
    %6399 = vmatprep.subr.bf16.mxu0 0
    %6400 = vmatpush1.bf16.msra.mxu0 %v6352
    %6401 = vmatprep.mubr.bf16.mxu0 %v6239
    %6402 = vmatmul.mubr.bf16.gmra.mrb[0].mxu0 %v6238
    %v6403 = vpop.f32.mrb[0].mxu0
    %v6404 = vadd.f32 %v6272, %v6403
    %v6405 = vpop.f32.mrb[0].mxu0
    %v6406 = vpop.f32.mrb[0].mxu0
    %v6407 = vpop.f32.mrb[0].mxu0
    %6408 = vdwg.mxu0
    %v6409 = vmax.f32 %v6404, 0.0
    %v6410 = vpack.c.bf16 %v6409, %v6409
    %v6411 = vld [vmem:[#allocation31] sm:$0xf]
    %v6412 = vld [vmem:[#allocation31 + $0x4] sm:$0xf]
    %v6413 = vld [vmem:[#allocation31 + $0x8] sm:$0xf]
    %v6414 = vld [vmem:[#allocation31 + $0xc] sm:$0xf]
    %v6415 = vld [vmem:[#allocation31 + $0x10] sm:$0xf]
    %v6416 = vld [vmem:[#allocation31 + $0x14] sm:$0xf]
    %v6417 = vld [vmem:[#allocation31 + $0x18] sm:$0xf]
    %v6418 = vld [vmem:[#allocation31 + $0x1c] sm:$0xf]
    %v6419 = vld [vmem:[#allocation31 + $0x20] sm:$0xf]
    %v6420 = vld [vmem:[#allocation31 + $0x24] sm:$0xf]
    %v6421 = vld [vmem:[#allocation31 + $0x28] sm:$0xf]
    %v6422 = vld [vmem:[#allocation31 + $0x2c] sm:$0xf]
    %v6423 = vld [vmem:[#allocation31 + $0x30] sm:$0xf]
    %v6424 = vld [vmem:[#allocation31 + $0x34] sm:$0xf]
    %v6425 = vld [vmem:[#allocation31 + $0x38] sm:$0xf]
    %v6426 = vld [vmem:[#allocation31 + $0x3c] sm:$0xf]
    %v6427 = vld [vmem:[%s49] sm:$0x1]
    %v6444 = vunpack.c.l.b16 %v6411
    %v6445 = vunpack.c.l.b16 %v6412
    %v6446 = vunpack.c.l.b16 %v6413
    %v6447 = vunpack.c.l.b16 %v6414
    %v6448 = vunpack.c.l.b16 %v6415
    %v6449 = vunpack.c.l.b16 %v6416
    %v6450 = vunpack.c.l.b16 %v6417
    %v6451 = vunpack.c.l.b16 %v6418
    %v6452 = vunpack.c.l.b16 %v6419
    %v6453 = vunpack.c.l.b16 %v6420
    %v6454 = vunpack.c.l.b16 %v6421
    %v6455 = vunpack.c.l.b16 %v6422
    %v6456 = vunpack.c.l.b16 %v6423
    %v6457 = vunpack.c.l.b16 %v6424
    %v6458 = vunpack.c.l.b16 %v6425
    %v6459 = vunpack.c.l.b16 %v6426
    %v6460 = vpack.c.b16 %v6445, %v6444
    %v6461 = vpack.c.b16 %v6447, %v6446
    %v6462 = vpack.c.b16 %v6449, %v6448
    %v6463 = vpack.c.b16 %v6451, %v6450
    %v6464 = vpack.c.b16 %v6453, %v6452
    %v6465 = vpack.c.b16 %v6455, %v6454
    %v6466 = vpack.c.b16 %v6457, %v6456
    %v6467 = vpack.c.b16 %v6459, %v6458
    %6476 = vmatprep.subr.bf16.mxu0 0
    %6477 = vmatpush1.bf16.msra.mxu0 %v6460
    %6478 = vmatprep.subr.bf16.mxu0 0
    %6479 = vmatpush1.bf16.msra.mxu0 %v6461
    %6480 = vmatprep.subr.bf16.mxu0 0
    %6481 = vmatpush1.bf16.msra.mxu0 %v6462
    %6482 = vmatprep.subr.bf16.mxu0 0
    %6483 = vmatpush1.bf16.msra.mxu0 %v6463
    %6484 = vmatprep.subr.bf16.mxu0 0
    %6485 = vmatpush1.bf16.msra.mxu0 %v6464
    %6486 = vmatprep.subr.bf16.mxu0 0
    %6487 = vmatpush1.bf16.msra.mxu0 %v6465
    %6488 = vmatprep.subr.bf16.mxu0 0
    %6489 = vmatpush1.bf16.msra.mxu0 %v6466
    %6490 = vmatprep.subr.bf16.mxu0 0
    %6491 = vmatpush1.bf16.msra.mxu0 %v6467
    %6492 = vmatprep.subr.bf16.mxu0 0
    %6493 = vmatpush1.bf16.msra.mxu0 0
    %6494 = vmatprep.subr.bf16.mxu0 0
    %6495 = vmatpush1.bf16.msra.mxu0 0
    %6496 = vmatprep.subr.bf16.mxu0 0
    %6497 = vmatpush1.bf16.msra.mxu0 0
    %6498 = vmatprep.subr.bf16.mxu0 0
    %6499 = vmatpush1.bf16.msra.mxu0 0
    %6500 = vmatprep.subr.bf16.mxu0 0
    %6501 = vmatpush1.bf16.msra.mxu0 0
    %6502 = vmatprep.subr.bf16.mxu0 0
    %6503 = vmatpush1.bf16.msra.mxu0 0
    %6504 = vmatprep.subr.bf16.mxu0 0
    %6505 = vmatpush1.bf16.msra.mxu0 0
    %6506 = vmatprep.subr.bf16.mxu0 0
    %6507 = vmatpush1.bf16.msra.mxu0 0
    %6508 = vmatprep.mubr.bf16.mxu0 0
    %6509 = vmatmul.mubr.bf16.gmra.mrb[0].mxu0 %v6410
    %v6510 = vpop.f32.mrb[0].mxu0
    %v6511 = vadd.f32 %v6427, %v6510
    %v6512 = vpop.f32.mrb[0].mxu0
    %v6513 = vpop.f32.mrb[0].mxu0
    %v6514 = vpop.f32.mrb[0].mxu0
    %6515 = vdwg.mxu0
    %6516 = vst [vmem:[#allocation34] sm:$0x1] %v6511
    %v6517 = vld [vmem:[#allocation8] sm:$0x7f]
    %v6518 = vpack.c.bf16 %v6517, %v6517
    %v6519 = vld [vmem:[#allocation32] sm:$0xf]
    %v6520 = vld [vmem:[#allocation32 + $0x4] sm:$0xf]
    %v6521 = vld [vmem:[#allocation32 + $0x8] sm:$0xf]
    %v6522 = vld [vmem:[#allocation32 + $0xc] sm:$0xf]
    %v6523 = vld [vmem:[#allocation32 + $0x10] sm:$0xf]
    %v6524 = vld [vmem:[#allocation32 + $0x14] sm:$0xf]
    %v6525 = vld [vmem:[#allocation32 + $0x18] sm:$0xf]
    %v6526 = vld [vmem:[#allocation32 + $0x1c] sm:$0xf]
    %v6527 = vld [vmem:[#allocation32 + $0x20] sm:$0xf]
    %v6528 = vld [vmem:[#allocation32 + $0x24] sm:$0xf]
    %v6529 = vld [vmem:[#allocation32 + $0x28] sm:$0xf]
    %v6530 = vld [vmem:[#allocation32 + $0x2c] sm:$0xf]
    %v6531 = vld [vmem:[#allocation32 + $0x30] sm:$0xf]
    %v6532 = vld [vmem:[#allocation32 + $0x34] sm:$0xf]
    %v6533 = vld [vmem:[#allocation32 + $0x38] sm:$0xf]
    %v6534 = vld [vmem:[#allocation32 + $0x3c] sm:$0xf]
    %v6535 = vld [vmem:[%s53] sm:$0x1]
    %v6537 = vlaneseq
    %v6538 = vshrl.u32 %v6537, 7
    %v6539 = vsub.s32 0, %v6538
    %v6540 = vrot.slane %v6535, %v6539
    %v6558 = vunpack.c.l.b16 %v6519
    %v6559 = vunpack.c.l.b16 %v6520
    %v6560 = vunpack.c.l.b16 %v6521
    %v6561 = vunpack.c.l.b16 %v6522
    %v6562 = vunpack.c.l.b16 %v6523
    %v6563 = vunpack.c.l.b16 %v6524
    %v6564 = vunpack.c.l.b16 %v6525
    %v6565 = vunpack.c.l.b16 %v6526
    %v6566 = vunpack.c.l.b16 %v6527
    %v6567 = vunpack.c.l.b16 %v6528
    %v6568 = vunpack.c.l.b16 %v6529
    %v6569 = vunpack.c.l.b16 %v6530
    %v6570 = vunpack.c.l.b16 %v6531
    %v6571 = vunpack.c.l.b16 %v6532
    %v6572 = vunpack.c.l.b16 %v6533
    %v6573 = vunpack.c.l.b16 %v6534
    %v6574 = vpack.c.b16 %v6559, %v6558
    %v6575 = vpack.c.b16 %v6561, %v6560
    %v6576 = vpack.c.b16 %v6563, %v6562
    %v6577 = vpack.c.b16 %v6565, %v6564
    %v6578 = vpack.c.b16 %v6567, %v6566
    %v6579 = vpack.c.b16 %v6569, %v6568
    %v6580 = vpack.c.b16 %v6571, %v6570
    %v6581 = vpack.c.b16 %v6573, %v6572
    %6590 = vmatprep.subr.bf16.mxu0 0
    %6591 = vmatpush1.bf16.msra.mxu0 %v6574
    %6592 = vmatprep.subr.bf16.mxu0 0
    %6593 = vmatpush1.bf16.msra.mxu0 %v6575
    %6594 = vmatprep.subr.bf16.mxu0 0
    %6595 = vmatpush1.bf16.msra.mxu0 %v6576
    %6596 = vmatprep.subr.bf16.mxu0 0
    %6597 = vmatpush1.bf16.msra.mxu0 %v6577
    %6598 = vmatprep.subr.bf16.mxu0 0
    %6599 = vmatpush1.bf16.msra.mxu0 %v6578
    %6600 = vmatprep.subr.bf16.mxu0 0
    %6601 = vmatpush1.bf16.msra.mxu0 %v6579
    %6602 = vmatprep.subr.bf16.mxu0 0
    %6603 = vmatpush1.bf16.msra.mxu0 %v6580
    %6604 = vmatprep.subr.bf16.mxu0 0
    %6605 = vmatpush1.bf16.msra.mxu0 %v6581
    %6606 = vmatprep.subr.bf16.mxu0 0
    %6607 = vmatpush1.bf16.msra.mxu0 0
    %6608 = vmatprep.subr.bf16.mxu0 0
    %6609 = vmatpush1.bf16.msra.mxu0 0
    %6610 = vmatprep.subr.bf16.mxu0 0
    %6611 = vmatpush1.bf16.msra.mxu0 0
    %6612 = vmatprep.subr.bf16.mxu0 0
    %6613 = vmatpush1.bf16.msra.mxu0 0
    %6614 = vmatprep.subr.bf16.mxu0 0
    %6615 = vmatpush1.bf16.msra.mxu0 0
    %6616 = vmatprep.subr.bf16.mxu0 0
    %6617 = vmatpush1.bf16.msra.mxu0 0
    %6618 = vmatprep.subr.bf16.mxu0 0
    %6619 = vmatpush1.bf16.msra.mxu0 0
    %6620 = vmatprep.subr.bf16.mxu0 0
    %6621 = vmatpush1.bf16.msra.mxu0 0
    %6622 = vmatprep.mubr.bf16.mxu0 0
    %6623 = vmatmul.mubr.bf16.gmra.mrb[0].mxu0 %v6518
    %v6624 = vpop.f32.mrb[0].mxu0
    %v6625 = vadd.f32 %v6540, %v6624
    %v6626 = vpop.f32.mrb[0].mxu0
    %v6627 = vpop.f32.mrb[0].mxu0
    %v6628 = vpop.f32.mrb[0].mxu0
    %6629 = vdwg.mxu0
    %6630 = vst [vmem:[#allocation35] sm:$0x7f] %v6625
    // Predicated region
    $region170: #{tpu_custom_call.1} parent=1 // pred_check
      _
    $region171: #{tpu_custom_call.1} parent=1 // pred_check_branch
      %6632 = sbr.rel (0) target = $region173
    $region172: #{tpu_custom_call.1} parent=1 // pred_region
      %s6634 = ssub.s32 16, 16
      %6635 = vsyncadd [#allocation11], %s6634
      %s6637 = sshll.u32 [#allocation34], 4
      %s6638 = int_to_ptr.vmem [resolvable:$true] %s6637
      %6640 = dma.vmem_to_hbm [thread:$0]  %s6638, 16, %s55, [#allocation11]
    $region173: #{tpu_custom_call.1} parent=1 // pred_fallthru
      _
    // Predicated region
    $region174: #{tpu_custom_call.1} parent=1 // pred_check
      _
    $region175: #{tpu_custom_call.1} parent=1 // pred_check_branch
      %6642 = sbr.rel (0) target = $region177
    $region176: #{tpu_custom_call.1} parent=1 // pred_region
      %s6644 = ssub.s32 128, 128
      %6645 = vsyncadd [#allocation36], %s6644
      %s6647 = sshll.u32 [#allocation35], 4
      %s6648 = int_to_ptr.vmem [resolvable:$true] %s6647
      %6650 = dma.vmem_to_hbm [thread:$0]  %s6648, 128, %s57, [#allocation36]
    $region177: #{tpu_custom_call.1} parent=1 // pred_fallthru
      _
    // Predicated region
    $region178: #{tpu_custom_call.1} parent=1 // pred_check
      _
    $region179: #{tpu_custom_call.1} parent=1 // pred_check_branch
      %6652 = sbr.rel (0) target = $region181
    $region180: #{tpu_custom_call.1} parent=1 // pred_region
      %s6654 = ssub.s32 16, 16
      %6655 = vsyncadd [#allocation36], %s6654
      %s6657 = sshll.u32 [#allocation37], 4
      %s6658 = int_to_ptr.vmem [resolvable:$true] %s6657
      %6660 = dma.vmem_to_hbm [thread:$0]  %s6658, 16, %s59, [#allocation36]
    $region181: #{tpu_custom_call.1} parent=1 // pred_fallthru
      _
    // Predicated region
    $region182: #{tpu_custom_call.1} parent=1 // pred_check
      _
    $region183: #{tpu_custom_call.1} parent=1 // pred_check_branch
      %6662 = sbr.rel (0) target = $region185
    $region184: #{tpu_custom_call.1} parent=1 // pred_region
      %s6664 = ssub.s32 16, 16
      %6665 = vsyncadd [#allocation39], %s6664
      %s6667 = sshll.u32 [#allocation38], 4
      %s6668 = int_to_ptr.vmem [resolvable:$true] %s6667
      %6670 = dma.vmem_to_hbm [thread:$0]  %s6668, 16, %s61, [#allocation39]
    $region185: #{tpu_custom_call.1} parent=1 // pred_fallthru
      _
    // Predicated region
    $region186: #{tpu_custom_call.1} parent=1 // pred_check
      _
    $region187: #{tpu_custom_call.1} parent=1 // pred_check_branch
      %6672 = sbr.rel (0) target = $region189
    $region188: #{tpu_custom_call.1} parent=1 // pred_region
      %s6674 = ssub.s32 16, 16
      %6675 = vsyncadd [#allocation39], %s6674
      %s6677 = sshll.u32 [#allocation40], 4
      %s6678 = int_to_ptr.vmem [resolvable:$true] %s6677
      %6680 = dma.vmem_to_hbm [thread:$0]  %s6678, 16, %s63, [#allocation39]
    $region189: #{tpu_custom_call.1} parent=1 // pred_fallthru
      _
    // Predicated region
    $region190: #{tpu_custom_call.1} parent=1 // pred_check
      _
    $region191: #{tpu_custom_call.1} parent=1 // pred_check_branch
      %6682 = sbr.rel (0) target = $region193
    $region192: #{tpu_custom_call.1} parent=1 // pred_region
      %6683 = dma.done [#allocation11], 16
    $region193: #{tpu_custom_call.1} parent=1 // pred_fallthru
      _
    // Predicated region
    $region194: #{tpu_custom_call.1} parent=1 // pred_check
      _
    $region195: #{tpu_custom_call.1} parent=1 // pred_check_branch
      %6685 = sbr.rel (0) target = $region197
    $region196: #{tpu_custom_call.1} parent=1 // pred_region
      %6686 = dma.done [#allocation36], 128
    $region197: #{tpu_custom_call.1} parent=1 // pred_fallthru
      _
    // Predicated region
    $region198: #{tpu_custom_call.1} parent=1 // pred_check
      _
    $region199: #{tpu_custom_call.1} parent=1 // pred_check_branch
      %6688 = sbr.rel (0) target = $region201
    $region200: #{tpu_custom_call.1} parent=1 // pred_region
      %6689 = dma.done [#allocation36], 16
    $region201: #{tpu_custom_call.1} parent=1 // pred_fallthru
      _
    // Predicated region
    $region202: #{tpu_custom_call.1} parent=1 // pred_check
      _
    $region203: #{tpu_custom_call.1} parent=1 // pred_check_branch
      %6691 = sbr.rel (0) target = $region205
    $region204: #{tpu_custom_call.1} parent=1 // pred_region
      %6692 = dma.done [#allocation39], 16
    $region205: #{tpu_custom_call.1} parent=1 // pred_fallthru
      _
    // Predicated region
    $region206: #{tpu_custom_call.1} parent=1 // pred_check
      _
    $region207: #{tpu_custom_call.1} parent=1 // pred_check_branch
      %6694 = sbr.rel (0) target = $region209
    $region208: #{tpu_custom_call.1} parent=1 // pred_region
      %6695 = dma.done [#allocation39], 16
    $region209: #{tpu_custom_call.1} parent=1 // pred_fallthru
      _
    %6696 = vsyncpa [#allocation10], 1
    %6697 = vsyncpa [#allocation18], 1
    %6698 = vsyncpa [#allocation21], 1
    %6699 = vsyncpa [#allocation24], 1
    %6700 = vsyncpa [#allocation27], 1
    %6701 = vsyncpa [#allocation30], 1
    %6702 = vsyncpa [#allocation33], 1
    %6703 = vsyncpa [#allocation11], 1
    %6704 = vsyncpa [#allocation36], 1
    %6705 = vsyncpa [#allocation39], 1
    %6706 = vsyncpa [#allocation12], 1
    %6707 = vsyncpa [#allocation14], 1

</llo_original>
